<compile_context>
chip_gen: v6e
topology: v6e:2x2x1
jax: 0.10.0
libtpu: 0.0.40
codegen_flags: <defaults>
</compile_context>

<pallas_src>
import jax
import jax.numpy as jnp
from jax.experimental import pallas as pl
from jax.experimental.pallas import tpu as pltpu


# ----------------------------- fused kernel --------------------------------

def _net_fused_kernel(x_ref, w1_ref, b1_ref, w2_ref, b2_ref,
                      fc1w_ref, fc1b_ref, fc2w_ref, fc2b_ref,
                      fc3w_ref, fc3b_ref,
                      out_ref,
                      p1_ref, s1_ref, p2_ref, s2_ref, fcin_ref):
    f32 = jnp.float32
    bf16 = jnp.bfloat16
    n = out_ref.shape[0]
    IMG = 32 * 32                       # per-image lane stride in x_ref / p1_ref

    # ---------------- conv1: 25-tap matrix, one batch-wide store per tap ----
    # p1[k, nb*1024 + oy*32 + ox] = x[nb, oy+ky, ox+kx],  k = ky*5 + kx.
    # Positions with oy >= 28 or ox >= 28 are garbage and never consumed.
    for k in range(25):
        ky, kx = divmod(k, 5)
        off = ky * 32 + kx
        p1_ref[pl.ds(k, 1), :] = x_ref[:, pl.ds(off, n * IMG)]

    c1 = jnp.dot(w1_ref[...], p1_ref[...].astype(bf16),
                 preferred_element_type=f32)                    # (8, n*1024)
    c1 = jnp.maximum(c1 + b1_ref[...], 0.0)                     # bias + ReLU

    # channels-last view (n, 32, 32, 8); only oy,ox in [0,28) are valid
    a1 = jnp.transpose(c1, (1, 0)).reshape(n, 32, 32, 8)
    a1 = a1[:, :28]                                             # (n, 28, 32, 8)

    # ---------------- max-pool 2x2 #1 ---------------------------------------
    a1p = a1.reshape(n, 14, 2, 32, 8)                           # split row pairs
    s1_ref[...] = jnp.maximum(a1p[:, :, 0], a1p[:, :, 1])       # row-pair max
    pooled1 = jnp.maximum(s1_ref[:, :, pl.ds(0, 14, 2), :],     # column-pair max
                          s1_ref[:, :, pl.ds(1, 14, 2), :])     # (n, 14, 14, 8)

    # ---------------- conv2: im2col + ONE batch-wide MXU matmul -------------
    p2_ref[...] = jnp.zeros(p2_ref.shape, f32)                  # zero pads (ox 10..15)
    for k in range(25):
        ky, kx = divmod(k, 5)
        p2_ref[:, :, pl.ds(0, 10), pl.ds(8 * k, 8)] = \
            pooled1[:, ky:ky + 10, kx:kx + 10, :]

    lhs = p2_ref[...].reshape(n * 160, 200).astype(bf16)        # tile-aligned merge
    c2 = jnp.dot(lhs, w2_ref[...], preferred_element_type=f32)  # (n*160, 112)

    # ---------------- max-pool 2x2 #2 (bias/ReLU after the max) -------------
    c2 = c2.reshape(n, 10, 16, 112)[:, :, :10, :]               # drop pad columns
    c2p = c2.reshape(n, 5, 2, 10, 112)                          # split row pairs
    s2_ref[...] = jnp.maximum(c2p[:, :, 0], c2p[:, :, 1])       # row-pair max
    pooled2 = jnp.maximum(s2_ref[:, :, pl.ds(0, 5, 2), :],      # column-pair max
                          s2_ref[:, :, pl.ds(1, 5, 2), :])      # (n, 5, 5, 112)
    act2 = jnp.maximum(pooled2 + b2_ref[...].reshape(1, 1, 1, 112), 0.0)

    # ---------------- fc1: lane-aligned staging + ONE matmul (K=3200) -------
    fcin_ref[...] = jnp.zeros(fcin_ref.shape, f32)              # zero the 112->128 pads
    for p in range(25):
        yy, xx = divmod(p, 5)
        fcin_ref[:, pl.ds(128 * p, 112)] = act2[:, yy, xx, :]

    h = jnp.dot(fcin_ref[...].astype(bf16), fc1w_ref[...],
                preferred_element_type=f32) + fc1b_ref[...]
    h = jnp.maximum(h, 0.0)                                     # (n, 120)

    # ---------------- fc2 (+ReLU), fc3 --------------------------------------
    h = jnp.maximum(jnp.dot(h.astype(bf16), fc2w_ref[...],
                            preferred_element_type=f32) + fc2b_ref[...], 0.0)
    out = jnp.dot(h.astype(bf16), fc3w_ref[...],
                  preferred_element_type=f32) + fc3b_ref[...]
    out_ref[...] = out.astype(out_ref.dtype)                    # (n, 31)


# ------------------------------ wrapper -------------------------------------

def prepare_params(params):
    """One-time re-layout of PyTorch-format weights for the fused kernel."""
    f32, bf16 = jnp.float32, jnp.bfloat16

    w1 = params["conv1_w"].reshape(6, 25).astype(f32)
    w1m = jnp.zeros((8, 25), f32).at[:6].set(w1).astype(bf16)          # OC pad 6->8
    b1 = jnp.zeros((8, 1), f32).at[:6, 0].set(params["conv1_b"])

    w2 = params["conv2_w"].astype(f32)                                 # (112, 6, 5, 5)
    w2t = jnp.zeros((5, 5, 8, 112), f32).at[:, :, :6, :].set(
        w2.transpose(2, 3, 1, 0))                                      # IC pad 6->8
    w2m = w2t.reshape(200, 112).astype(bf16)                           # K=(ky,kx,ic)
    b2 = params["conv2_b"].reshape(1, 112).astype(f32)

    # torch.flatten(NCHW) order (c, y, x) -> kernel order (y, x, c) with the
    # channel stripe zero-padded 112 -> 128 so fc1 K becomes 25*128 = 3200.
    fc1w = params["fc1_w"].reshape(112, 5, 5, 120).transpose(1, 2, 0, 3)
    fc1w = jnp.zeros((5, 5, 128, 120), f32).at[:, :, :112, :].set(fc1w)
    fc1w = fc1w.reshape(3200, 120).astype(bf16)

    return {
        "w1m": w1m, "b1": b1, "w2m": w2m, "b2": b2,
        "fc1w": fc1w, "fc1b": params["fc1_b"].reshape(1, 120).astype(f32),
        "fc2w": params["fc2_w"].astype(bf16),
        "fc2b": params["fc2_b"].reshape(1, 84).astype(f32),
        "fc3w": params["fc3_w"].astype(bf16),
        "fc3b": params["fc3_b"].reshape(1, 31).astype(f32),
    }


def net_forward(prep, x):
    """x: (N, 1, 32, 32) NCHW float32 -> (N, 31) logits."""
    n = x.shape[0]
    IMG = 32 * 32
    # Single padded row: per-image stride 1024, plus >=132 trailing zero lanes
    # so the largest tap offset (4*32+4=132) stays in bounds.
    x_row = jnp.concatenate(
        [x.reshape(n * IMG).astype(jnp.float32),
         jnp.zeros((256,), jnp.float32)])[None, :]            # (1, n*1024 + 256)

    inputs = (x_row, prep["w1m"], prep["b1"], prep["w2m"], prep["b2"],
              prep["fc1w"], prep["fc1b"], prep["fc2w"], prep["fc2b"],
              prep["fc3w"], prep["fc3b"])

    def full_spec(a):
        nd = a.ndim
        return pl.BlockSpec(a.shape, lambda *_: (0,) * nd)

    # Note: at batch=2 a single TensorCore is the right choice; for batch >~8
    # add a leading "parallel" grid axis over batch tiles (v7x's 2 TCs).
    return pl.pallas_call(
        _net_fused_kernel,
        out_shape=jax.ShapeDtypeStruct((n, 31), jnp.float32),
        in_specs=[full_spec(a) for a in inputs],
        out_specs=pl.BlockSpec((n, 31), lambda *_: (0, 0)),
        scratch_shapes=[
            pltpu.VMEM((25, n * IMG), jnp.float32),      # conv1 tap matrix
            pltpu.VMEM((n, 14, 32, 8), jnp.float32),     # pool1 row-pooled
            pltpu.VMEM((n, 10, 16, 200), jnp.float32),   # conv2 im2col (ox pad 10->16)
            pltpu.VMEM((n, 5, 10, 112), jnp.float32),    # pool2 row-pooled
            pltpu.VMEM((n, 25 * 128), jnp.float32),      # fc1 input slab
        ],
    )(*inputs)


# ------------------------------ model params --------------------------------

def init_params(key):
    def uniform(k, shape, fan_in):
        bound = 1.0 / jnp.sqrt(jnp.float32(fan_in))
        return jax.random.uniform(k, shape, jnp.float32, -bound, bound)

    ks = jax.random.split(key, 10)
    # LazyLinear in_features resolved statically: 112 * 5 * 5 = 2800 for 32x32 input.
    return {
        "conv1_w": uniform(ks[0], (6, 1, 5, 5), 1 * 5 * 5),
        "conv1_b": uniform(ks[1], (6,), 1 * 5 * 5),
        "conv2_w": uniform(ks[2], (112, 6, 5, 5), 6 * 5 * 5),
        "conv2_b": uniform(ks[3], (112,), 6 * 5 * 5),
        "fc1_w": uniform(ks[4], (2800, 120), 2800),
        "fc1_b": uniform(ks[5], (120,), 2800),
        "fc2_w": uniform(ks[6], (120, 84), 120),
        "fc2_b": uniform(ks[7], (84,), 120),
        "fc3_w": uniform(ks[8], (84, 31), 84),
        "fc3_b": uniform(ks[9], (31,), 84),
    }


if __name__ == "__main__":
    key = jax.random.PRNGKey(0)
    k_params, k_x = jax.random.split(key)
    params = init_params(k_params)
    prep = prepare_params(params)
    x = jax.random.normal(k_x, (2, 1, 32, 32), dtype=jnp.float32)

    out = jax.jit(net_forward)(prep, x)
    out = jax.block_until_ready(out)
    assert out.shape == (2, 31), out.shape
    assert bool(jnp.all(jnp.isfinite(out)))
    print("KERNEL_OK")
</pallas_src>

<mosaic_0001>
module attributes {stable_mosaic.version = 11 : i64} {
  func.func @_net_fused_kernel(%arg0: memref<1x2304xf32, #tpu.memory_space<vmem>>, %arg1: memref<8x25xbf16, #tpu.memory_space<vmem>>, %arg2: memref<8x1xf32, #tpu.memory_space<vmem>>, %arg3: memref<200x112xbf16, #tpu.memory_space<vmem>>, %arg4: memref<1x112xf32, #tpu.memory_space<vmem>>, %arg5: memref<3200x120xbf16, #tpu.memory_space<vmem>>, %arg6: memref<1x120xf32, #tpu.memory_space<vmem>>, %arg7: memref<120x84xbf16, #tpu.memory_space<vmem>>, %arg8: memref<1x84xf32, #tpu.memory_space<vmem>>, %arg9: memref<84x31xbf16, #tpu.memory_space<vmem>>, %arg10: memref<1x31xf32, #tpu.memory_space<vmem>>, %arg11: memref<2x31xf32, #tpu.memory_space<vmem>>, %arg12: memref<25x2048xf32, #tpu.memory_space<vmem>>, %arg13: memref<2x14x32x8xf32, #tpu.memory_space<vmem>>, %arg14: memref<2x10x16x200xf32, #tpu.memory_space<vmem>>, %arg15: memref<2x5x10x112xf32, #tpu.memory_space<vmem>>, %arg16: memref<2x3200xf32, #tpu.memory_space<vmem>>) attributes {dimension_semantics = [], scalar_prefetch = 0 : i64, scratch_operands = 5 : i64, tpu.core_type = #tpu.core_type<tc>} {
    %c0 = arith.constant 0 : index
    %c0_0 = arith.constant 0 : index
    %0 = vector.load %arg0[%c0, %c0_0] : memref<1x2304xf32, #tpu.memory_space<vmem>>, vector<1x2048xf32>
    %c0_1 = arith.constant 0 : index
    %c0_2 = arith.constant 0 : index
    %1 = vector.load %arg12[%c0_1, %c0_2] : memref<25x2048xf32, #tpu.memory_space<vmem>>, vector<1x2048xf32>
    tpu.vector_store %arg12[%c0_1, %c0_2], %0 {strides = array<i32>} : memref<25x2048xf32, #tpu.memory_space<vmem>>, vector<1x2048xf32>,
    %c0_3 = arith.constant 0 : index
    %c1 = arith.constant 1 : index
    %2 = vector.load %arg0[%c0_3, %c1] : memref<1x2304xf32, #tpu.memory_space<vmem>>, vector<1x2048xf32>
    %c1_4 = arith.constant 1 : index
    %c0_5 = arith.constant 0 : index
    %3 = vector.load %arg12[%c1_4, %c0_5] : memref<25x2048xf32, #tpu.memory_space<vmem>>, vector<1x2048xf32>
    tpu.vector_store %arg12[%c1_4, %c0_5], %2 {strides = array<i32>} : memref<25x2048xf32, #tpu.memory_space<vmem>>, vector<1x2048xf32>,
    %c0_6 = arith.constant 0 : index
    %c2 = arith.constant 2 : index
    %4 = vector.load %arg0[%c0_6, %c2] : memref<1x2304xf32, #tpu.memory_space<vmem>>, vector<1x2048xf32>
    %c2_7 = arith.constant 2 : index
    %c0_8 = arith.constant 0 : index
    %5 = vector.load %arg12[%c2_7, %c0_8] : memref<25x2048xf32, #tpu.memory_space<vmem>>, vector<1x2048xf32>
    tpu.vector_store %arg12[%c2_7, %c0_8], %4 {strides = array<i32>} : memref<25x2048xf32, #tpu.memory_space<vmem>>, vector<1x2048xf32>,
    %c0_9 = arith.constant 0 : index
    %c3 = arith.constant 3 : index
    %6 = vector.load %arg0[%c0_9, %c3] : memref<1x2304xf32, #tpu.memory_space<vmem>>, vector<1x2048xf32>
    %c3_10 = arith.constant 3 : index
    %c0_11 = arith.constant 0 : index
    %7 = vector.load %arg12[%c3_10, %c0_11] : memref<25x2048xf32, #tpu.memory_space<vmem>>, vector<1x2048xf32>
    tpu.vector_store %arg12[%c3_10, %c0_11], %6 {strides = array<i32>} : memref<25x2048xf32, #tpu.memory_space<vmem>>, vector<1x2048xf32>,
    %c0_12 = arith.constant 0 : index
    %c4 = arith.constant 4 : index
    %8 = vector.load %arg0[%c0_12, %c4] : memref<1x2304xf32, #tpu.memory_space<vmem>>, vector<1x2048xf32>
    %c4_13 = arith.constant 4 : index
    %c0_14 = arith.constant 0 : index
    %9 = vector.load %arg12[%c4_13, %c0_14] : memref<25x2048xf32, #tpu.memory_space<vmem>>, vector<1x2048xf32>
    tpu.vector_store %arg12[%c4_13, %c0_14], %8 {strides = array<i32>} : memref<25x2048xf32, #tpu.memory_space<vmem>>, vector<1x2048xf32>,
    %c0_15 = arith.constant 0 : index
    %c32 = arith.constant 32 : index
    %10 = vector.load %arg0[%c0_15, %c32] : memref<1x2304xf32, #tpu.memory_space<vmem>>, vector<1x2048xf32>
    %c5 = arith.constant 5 : index
    %c0_16 = arith.constant 0 : index
    %11 = vector.load %arg12[%c5, %c0_16] : memref<25x2048xf32, #tpu.memory_space<vmem>>, vector<1x2048xf32>
    tpu.vector_store %arg12[%c5, %c0_16], %10 {strides = array<i32>} : memref<25x2048xf32, #tpu.memory_space<vmem>>, vector<1x2048xf32>,
    %c0_17 = arith.constant 0 : index
    %c33 = arith.constant 33 : index
    %12 = vector.load %arg0[%c0_17, %c33] : memref<1x2304xf32, #tpu.memory_space<vmem>>, vector<1x2048xf32>
    %c6 = arith.constant 6 : index
    %c0_18 = arith.constant 0 : index
    %13 = vector.load %arg12[%c6, %c0_18] : memref<25x2048xf32, #tpu.memory_space<vmem>>, vector<1x2048xf32>
    tpu.vector_store %arg12[%c6, %c0_18], %12 {strides = array<i32>} : memref<25x2048xf32, #tpu.memory_space<vmem>>, vector<1x2048xf32>,
    %c0_19 = arith.constant 0 : index
    %c34 = arith.constant 34 : index
    %14 = vector.load %arg0[%c0_19, %c34] : memref<1x2304xf32, #tpu.memory_space<vmem>>, vector<1x2048xf32>
    %c7 = arith.constant 7 : index
    %c0_20 = arith.constant 0 : index
    %15 = vector.load %arg12[%c7, %c0_20] : memref<25x2048xf32, #tpu.memory_space<vmem>>, vector<1x2048xf32>
    tpu.vector_store %arg12[%c7, %c0_20], %14 {strides = array<i32>} : memref<25x2048xf32, #tpu.memory_space<vmem>>, vector<1x2048xf32>,
    %c0_21 = arith.constant 0 : index
    %c35 = arith.constant 35 : index
    %16 = vector.load %arg0[%c0_21, %c35] : memref<1x2304xf32, #tpu.memory_space<vmem>>, vector<1x2048xf32>
    %c8 = arith.constant 8 : index
    %c0_22 = arith.constant 0 : index
    %17 = vector.load %arg12[%c8, %c0_22] : memref<25x2048xf32, #tpu.memory_space<vmem>>, vector<1x2048xf32>
    tpu.vector_store %arg12[%c8, %c0_22], %16 {strides = array<i32>} : memref<25x2048xf32, #tpu.memory_space<vmem>>, vector<1x2048xf32>,
    %c0_23 = arith.constant 0 : index
    %c36 = arith.constant 36 : index
    %18 = vector.load %arg0[%c0_23, %c36] : memref<1x2304xf32, #tpu.memory_space<vmem>>, vector<1x2048xf32>
    %c9 = arith.constant 9 : index
    %c0_24 = arith.constant 0 : index
    %19 = vector.load %arg12[%c9, %c0_24] : memref<25x2048xf32, #tpu.memory_space<vmem>>, vector<1x2048xf32>
    tpu.vector_store %arg12[%c9, %c0_24], %18 {strides = array<i32>} : memref<25x2048xf32, #tpu.memory_space<vmem>>, vector<1x2048xf32>,
    %c0_25 = arith.constant 0 : index
    %c64 = arith.constant 64 : index
    %20 = vector.load %arg0[%c0_25, %c64] : memref<1x2304xf32, #tpu.memory_space<vmem>>, vector<1x2048xf32>
    %c10 = arith.constant 10 : index
    %c0_26 = arith.constant 0 : index
    %21 = vector.load %arg12[%c10, %c0_26] : memref<25x2048xf32, #tpu.memory_space<vmem>>, vector<1x2048xf32>
    tpu.vector_store %arg12[%c10, %c0_26], %20 {strides = array<i32>} : memref<25x2048xf32, #tpu.memory_space<vmem>>, vector<1x2048xf32>,
    %c0_27 = arith.constant 0 : index
    %c65 = arith.constant 65 : index
    %22 = vector.load %arg0[%c0_27, %c65] : memref<1x2304xf32, #tpu.memory_space<vmem>>, vector<1x2048xf32>
    %c11 = arith.constant 11 : index
    %c0_28 = arith.constant 0 : index
    %23 = vector.load %arg12[%c11, %c0_28] : memref<25x2048xf32, #tpu.memory_space<vmem>>, vector<1x2048xf32>
    tpu.vector_store %arg12[%c11, %c0_28], %22 {strides = array<i32>} : memref<25x2048xf32, #tpu.memory_space<vmem>>, vector<1x2048xf32>,
    %c0_29 = arith.constant 0 : index
    %c66 = arith.constant 66 : index
    %24 = vector.load %arg0[%c0_29, %c66] : memref<1x2304xf32, #tpu.memory_space<vmem>>, vector<1x2048xf32>
    %c12 = arith.constant 12 : index
    %c0_30 = arith.constant 0 : index
    %25 = vector.load %arg12[%c12, %c0_30] : memref<25x2048xf32, #tpu.memory_space<vmem>>, vector<1x2048xf32>
    tpu.vector_store %arg12[%c12, %c0_30], %24 {strides = array<i32>} : memref<25x2048xf32, #tpu.memory_space<vmem>>, vector<1x2048xf32>,
    %c0_31 = arith.constant 0 : index
    %c67 = arith.constant 67 : index
    %26 = vector.load %arg0[%c0_31, %c67] : memref<1x2304xf32, #tpu.memory_space<vmem>>, vector<1x2048xf32>
    %c13 = arith.constant 13 : index
    %c0_32 = arith.constant 0 : index
    %27 = vector.load %arg12[%c13, %c0_32] : memref<25x2048xf32, #tpu.memory_space<vmem>>, vector<1x2048xf32>
    tpu.vector_store %arg12[%c13, %c0_32], %26 {strides = array<i32>} : memref<25x2048xf32, #tpu.memory_space<vmem>>, vector<1x2048xf32>,
    %c0_33 = arith.constant 0 : index
    %c68 = arith.constant 68 : index
    %28 = vector.load %arg0[%c0_33, %c68] : memref<1x2304xf32, #tpu.memory_space<vmem>>, vector<1x2048xf32>
    %c14 = arith.constant 14 : index
    %c0_34 = arith.constant 0 : index
    %29 = vector.load %arg12[%c14, %c0_34] : memref<25x2048xf32, #tpu.memory_space<vmem>>, vector<1x2048xf32>
    tpu.vector_store %arg12[%c14, %c0_34], %28 {strides = array<i32>} : memref<25x2048xf32, #tpu.memory_space<vmem>>, vector<1x2048xf32>,
    %c0_35 = arith.constant 0 : index
    %c96 = arith.constant 96 : index
    %30 = vector.load %arg0[%c0_35, %c96] : memref<1x2304xf32, #tpu.memory_space<vmem>>, vector<1x2048xf32>
    %c15 = arith.constant 15 : index
    %c0_36 = arith.constant 0 : index
    %31 = vector.load %arg12[%c15, %c0_36] : memref<25x2048xf32, #tpu.memory_space<vmem>>, vector<1x2048xf32>
    tpu.vector_store %arg12[%c15, %c0_36], %30 {strides = array<i32>} : memref<25x2048xf32, #tpu.memory_space<vmem>>, vector<1x2048xf32>,
    %c0_37 = arith.constant 0 : index
    %c97 = arith.constant 97 : index
    %32 = vector.load %arg0[%c0_37, %c97] : memref<1x2304xf32, #tpu.memory_space<vmem>>, vector<1x2048xf32>
    %c16 = arith.constant 16 : index
    %c0_38 = arith.constant 0 : index
    %33 = vector.load %arg12[%c16, %c0_38] : memref<25x2048xf32, #tpu.memory_space<vmem>>, vector<1x2048xf32>
    tpu.vector_store %arg12[%c16, %c0_38], %32 {strides = array<i32>} : memref<25x2048xf32, #tpu.memory_space<vmem>>, vector<1x2048xf32>,
    %c0_39 = arith.constant 0 : index
    %c98 = arith.constant 98 : index
    %34 = vector.load %arg0[%c0_39, %c98] : memref<1x2304xf32, #tpu.memory_space<vmem>>, vector<1x2048xf32>
    %c17 = arith.constant 17 : index
    %c0_40 = arith.constant 0 : index
    %35 = vector.load %arg12[%c17, %c0_40] : memref<25x2048xf32, #tpu.memory_space<vmem>>, vector<1x2048xf32>
    tpu.vector_store %arg12[%c17, %c0_40], %34 {strides = array<i32>} : memref<25x2048xf32, #tpu.memory_space<vmem>>, vector<1x2048xf32>,
    %c0_41 = arith.constant 0 : index
    %c99 = arith.constant 99 : index
    %36 = vector.load %arg0[%c0_41, %c99] : memref<1x2304xf32, #tpu.memory_space<vmem>>, vector<1x2048xf32>
    %c18 = arith.constant 18 : index
    %c0_42 = arith.constant 0 : index
    %37 = vector.load %arg12[%c18, %c0_42] : memref<25x2048xf32, #tpu.memory_space<vmem>>, vector<1x2048xf32>
    tpu.vector_store %arg12[%c18, %c0_42], %36 {strides = array<i32>} : memref<25x2048xf32, #tpu.memory_space<vmem>>, vector<1x2048xf32>,
    %c0_43 = arith.constant 0 : index
    %c100 = arith.constant 100 : index
    %38 = vector.load %arg0[%c0_43, %c100] : memref<1x2304xf32, #tpu.memory_space<vmem>>, vector<1x2048xf32>
    %c19 = arith.constant 19 : index
    %c0_44 = arith.constant 0 : index
    %39 = vector.load %arg12[%c19, %c0_44] : memref<25x2048xf32, #tpu.memory_space<vmem>>, vector<1x2048xf32>
    tpu.vector_store %arg12[%c19, %c0_44], %38 {strides = array<i32>} : memref<25x2048xf32, #tpu.memory_space<vmem>>, vector<1x2048xf32>,
    %c0_45 = arith.constant 0 : index
    %c128 = arith.constant 128 : index
    %40 = vector.load %arg0[%c0_45, %c128] : memref<1x2304xf32, #tpu.memory_space<vmem>>, vector<1x2048xf32>
    %c20 = arith.constant 20 : index
    %c0_46 = arith.constant 0 : index
    %41 = vector.load %arg12[%c20, %c0_46] : memref<25x2048xf32, #tpu.memory_space<vmem>>, vector<1x2048xf32>
    tpu.vector_store %arg12[%c20, %c0_46], %40 {strides = array<i32>} : memref<25x2048xf32, #tpu.memory_space<vmem>>, vector<1x2048xf32>,
    %c0_47 = arith.constant 0 : index
    %c129 = arith.constant 129 : index
    %42 = vector.load %arg0[%c0_47, %c129] : memref<1x2304xf32, #tpu.memory_space<vmem>>, vector<1x2048xf32>
    %c21 = arith.constant 21 : index
    %c0_48 = arith.constant 0 : index
    %43 = vector.load %arg12[%c21, %c0_48] : memref<25x2048xf32, #tpu.memory_space<vmem>>, vector<1x2048xf32>
    tpu.vector_store %arg12[%c21, %c0_48], %42 {strides = array<i32>} : memref<25x2048xf32, #tpu.memory_space<vmem>>, vector<1x2048xf32>,
    %c0_49 = arith.constant 0 : index
    %c130 = arith.constant 130 : index
    %44 = vector.load %arg0[%c0_49, %c130] : memref<1x2304xf32, #tpu.memory_space<vmem>>, vector<1x2048xf32>
    %c22 = arith.constant 22 : index
    %c0_50 = arith.constant 0 : index
    %45 = vector.load %arg12[%c22, %c0_50] : memref<25x2048xf32, #tpu.memory_space<vmem>>, vector<1x2048xf32>
    tpu.vector_store %arg12[%c22, %c0_50], %44 {strides = array<i32>} : memref<25x2048xf32, #tpu.memory_space<vmem>>, vector<1x2048xf32>,
    %c0_51 = arith.constant 0 : index
    %c131 = arith.constant 131 : index
    %46 = vector.load %arg0[%c0_51, %c131] : memref<1x2304xf32, #tpu.memory_space<vmem>>, vector<1x2048xf32>
    %c23 = arith.constant 23 : index
    %c0_52 = arith.constant 0 : index
    %47 = vector.load %arg12[%c23, %c0_52] : memref<25x2048xf32, #tpu.memory_space<vmem>>, vector<1x2048xf32>
    tpu.vector_store %arg12[%c23, %c0_52], %46 {strides = array<i32>} : memref<25x2048xf32, #tpu.memory_space<vmem>>, vector<1x2048xf32>,
    %c0_53 = arith.constant 0 : index
    %c132 = arith.constant 132 : index
    %48 = vector.load %arg0[%c0_53, %c132] : memref<1x2304xf32, #tpu.memory_space<vmem>>, vector<1x2048xf32>
    %c24 = arith.constant 24 : index
    %c0_54 = arith.constant 0 : index
    %49 = vector.load %arg12[%c24, %c0_54] : memref<25x2048xf32, #tpu.memory_space<vmem>>, vector<1x2048xf32>
    tpu.vector_store %arg12[%c24, %c0_54], %48 {strides = array<i32>} : memref<25x2048xf32, #tpu.memory_space<vmem>>, vector<1x2048xf32>,
    %c0_55 = arith.constant 0 : index
    %c0_56 = arith.constant 0 : index
    %50 = vector.load %arg1[%c0_55, %c0_56] : memref<8x25xbf16, #tpu.memory_space<vmem>>, vector<8x25xbf16>
    %c0_57 = arith.constant 0 : index
    %c0_58 = arith.constant 0 : index
    %51 = vector.load %arg12[%c0_57, %c0_58] : memref<25x2048xf32, #tpu.memory_space<vmem>>, vector<25x2048xf32>
    %52 = arith.truncf %51 : vector<25x2048xf32> to vector<25x2048xbf16>
    %cst = arith.constant dense<0.000000e+00> : vector<8x2048xf32>
    %53 = tpu.matmul %50, %52, %cst {dimension_numbers = #tpu.dot_dimension_numbers<[1], [0], [0], [1], [0, 0, 1, 1], [], []>} : vector<8x25xbf16>, vector<25x2048xbf16>, vector<8x2048xf32> -> vector<8x2048xf32>
    %c0_59 = arith.constant 0 : index
    %c0_60 = arith.constant 0 : index
    %54 = vector.load %arg2[%c0_59, %c0_60] : memref<8x1xf32, #tpu.memory_space<vmem>>, vector<8x1xf32>
    %55 = vector.broadcast %54 : vector<8x1xf32> to vector<8x2048xf32>
    %56 = arith.addf %53, %55 : vector<8x2048xf32>
    %cst_61 = arith.constant 0.000000e+00 : f32
    %57 = vector.broadcast %cst_61 : f32 to vector<8x2048xf32>
    %58 = arith.maximumf %56, %57 : vector<8x2048xf32>
    %59 = tpu.transpose %58, [1, 0] : vector<8x2048xf32> -> vector<2048x8xf32>
    %60 = vector.shape_cast %59 : vector<2048x8xf32> to vector<2x32x32x8xf32>
    %61 = vector.extract_strided_slice %60 {offsets = [0, 0, 0, 0], sizes = [2, 28, 32, 8], strides = [1, 1, 1, 1]} : vector<2x32x32x8xf32> to vector<2x28x32x8xf32>
    %62 = vector.shape_cast %61 : vector<2x28x32x8xf32> to vector<2x14x2x32x8xf32>
    %63 = vector.extract_strided_slice %62 {offsets = [0, 0, 0, 0, 0], sizes = [2, 14, 1, 32, 8], strides = [1, 1, 1, 1, 1]} : vector<2x14x2x32x8xf32> to vector<2x14x1x32x8xf32>
    %64 = vector.shape_cast %63 : vector<2x14x1x32x8xf32> to vector<2x14x32x8xf32>
    %65 = vector.extract_strided_slice %62 {offsets = [0, 0, 1, 0, 0], sizes = [2, 14, 1, 32, 8], strides = [1, 1, 1, 1, 1]} : vector<2x14x2x32x8xf32> to vector<2x14x1x32x8xf32>
    %66 = vector.shape_cast %65 : vector<2x14x1x32x8xf32> to vector<2x14x32x8xf32>
    %67 = arith.maximumf %64, %66 : vector<2x14x32x8xf32>
    %c0_62 = arith.constant 0 : index
    %c0_63 = arith.constant 0 : index
    %c0_64 = arith.constant 0 : index
    %c0_65 = arith.constant 0 : index
    %68 = vector.load %arg13[%c0_62, %c0_63, %c0_64, %c0_65] : memref<2x14x32x8xf32, #tpu.memory_space<vmem>>, vector<2x14x32x8xf32>
    tpu.vector_store %arg13[%c0_62, %c0_63, %c0_64, %c0_65], %67 {strides = array<i32>} : memref<2x14x32x8xf32, #tpu.memory_space<vmem>>, vector<2x14x32x8xf32>,
    %c0_66 = arith.constant 0 : index
    %c0_67 = arith.constant 0 : index
    %c0_68 = arith.constant 0 : index
    %c0_69 = arith.constant 0 : index
    %69 = tpu.strided_load %arg13[%c0_66, %c0_67, %c0_68, %c0_69] {strides = array<i32: 1, 1, 2, 1>} : memref<2x14x32x8xf32, #tpu.memory_space<vmem>>, vector<2x14x14x8xf32>
    %c0_70 = arith.constant 0 : index
    %c0_71 = arith.constant 0 : index
    %c1_72 = arith.constant 1 : index
    %c0_73 = arith.constant 0 : index
    %70 = tpu.strided_load %arg13[%c0_70, %c0_71, %c1_72, %c0_73] {strides = array<i32: 1, 1, 2, 1>} : memref<2x14x32x8xf32, #tpu.memory_space<vmem>>, vector<2x14x14x8xf32>
    %71 = arith.maximumf %69, %70 : vector<2x14x14x8xf32>
    %cst_74 = arith.constant 0.000000e+00 : f32
    %72 = vector.broadcast %cst_74 : f32 to vector<2x10x16x200xf32>
    %c0_75 = arith.constant 0 : index
    %c0_76 = arith.constant 0 : index
    %c0_77 = arith.constant 0 : index
    %c0_78 = arith.constant 0 : index
    %73 = vector.load %arg14[%c0_75, %c0_76, %c0_77, %c0_78] : memref<2x10x16x200xf32, #tpu.memory_space<vmem>>, vector<2x10x16x200xf32>
    tpu.vector_store %arg14[%c0_75, %c0_76, %c0_77, %c0_78], %72 {strides = array<i32>} : memref<2x10x16x200xf32, #tpu.memory_space<vmem>>, vector<2x10x16x200xf32>,
    %74 = vector.extract_strided_slice %71 {offsets = [0, 0, 0, 0], sizes = [2, 10, 10, 8], strides = [1, 1, 1, 1]} : vector<2x14x14x8xf32> to vector<2x10x10x8xf32>
    %c0_79 = arith.constant 0 : index
    %c0_80 = arith.constant 0 : index
    %c0_81 = arith.constant 0 : index
    %c0_82 = arith.constant 0 : index
    %75 = vector.load %arg14[%c0_79, %c0_80, %c0_81, %c0_82] : memref<2x10x16x200xf32, #tpu.memory_space<vmem>>, vector<2x10x10x8xf32>
    tpu.vector_store %arg14[%c0_79, %c0_80, %c0_81, %c0_82], %74 {strides = array<i32>} : memref<2x10x16x200xf32, #tpu.memory_space<vmem>>, vector<2x10x10x8xf32>,
    %76 = vector.extract_strided_slice %71 {offsets = [0, 0, 1, 0], sizes = [2, 10, 10, 8], strides = [1, 1, 1, 1]} : vector<2x14x14x8xf32> to vector<2x10x10x8xf32>
    %c0_83 = arith.constant 0 : index
    %c0_84 = arith.constant 0 : index
    %c0_85 = arith.constant 0 : index
    %c8_86 = arith.constant 8 : index
    %77 = vector.load %arg14[%c0_83, %c0_84, %c0_85, %c8_86] : memref<2x10x16x200xf32, #tpu.memory_space<vmem>>, vector<2x10x10x8xf32>
    tpu.vector_store %arg14[%c0_83, %c0_84, %c0_85, %c8_86], %76 {strides = array<i32>} : memref<2x10x16x200xf32, #tpu.memory_space<vmem>>, vector<2x10x10x8xf32>,
    %78 = vector.extract_strided_slice %71 {offsets = [0, 0, 2, 0], sizes = [2, 10, 10, 8], strides = [1, 1, 1, 1]} : vector<2x14x14x8xf32> to vector<2x10x10x8xf32>
    %c0_87 = arith.constant 0 : index
    %c0_88 = arith.constant 0 : index
    %c0_89 = arith.constant 0 : index
    %c16_90 = arith.constant 16 : index
    %79 = vector.load %arg14[%c0_87, %c0_88, %c0_89, %c16_90] : memref<2x10x16x200xf32, #tpu.memory_space<vmem>>, vector<2x10x10x8xf32>
    tpu.vector_store %arg14[%c0_87, %c0_88, %c0_89, %c16_90], %78 {strides = array<i32>} : memref<2x10x16x200xf32, #tpu.memory_space<vmem>>, vector<2x10x10x8xf32>,
    %80 = vector.extract_strided_slice %71 {offsets = [0, 0, 3, 0], sizes = [2, 10, 10, 8], strides = [1, 1, 1, 1]} : vector<2x14x14x8xf32> to vector<2x10x10x8xf32>
    %c0_91 = arith.constant 0 : index
    %c0_92 = arith.constant 0 : index
    %c0_93 = arith.constant 0 : index
    %c24_94 = arith.constant 24 : index
    %81 = vector.load %arg14[%c0_91, %c0_92, %c0_93, %c24_94] : memref<2x10x16x200xf32, #tpu.memory_space<vmem>>, vector<2x10x10x8xf32>
    tpu.vector_store %arg14[%c0_91, %c0_92, %c0_93, %c24_94], %80 {strides = array<i32>} : memref<2x10x16x200xf32, #tpu.memory_space<vmem>>, vector<2x10x10x8xf32>,
    %82 = vector.extract_strided_slice %71 {offsets = [0, 0, 4, 0], sizes = [2, 10, 10, 8], strides = [1, 1, 1, 1]} : vector<2x14x14x8xf32> to vector<2x10x10x8xf32>
    %c0_95 = arith.constant 0 : index
    %c0_96 = arith.constant 0 : index
    %c0_97 = arith.constant 0 : index
    %c32_98 = arith.constant 32 : index
    %83 = vector.load %arg14[%c0_95, %c0_96, %c0_97, %c32_98] : memref<2x10x16x200xf32, #tpu.memory_space<vmem>>, vector<2x10x10x8xf32>
    tpu.vector_store %arg14[%c0_95, %c0_96, %c0_97, %c32_98], %82 {strides = array<i32>} : memref<2x10x16x200xf32, #tpu.memory_space<vmem>>, vector<2x10x10x8xf32>,
    %84 = vector.extract_strided_slice %71 {offsets = [0, 1, 0, 0], sizes = [2, 10, 10, 8], strides = [1, 1, 1, 1]} : vector<2x14x14x8xf32> to vector<2x10x10x8xf32>
    %c0_99 = arith.constant 0 : index
    %c0_100 = arith.constant 0 : index
    %c0_101 = arith.constant 0 : index
    %c40 = arith.constant 40 : index
    %85 = vector.load %arg14[%c0_99, %c0_100, %c0_101, %c40] : memref<2x10x16x200xf32, #tpu.memory_space<vmem>>, vector<2x10x10x8xf32>
    tpu.vector_store %arg14[%c0_99, %c0_100, %c0_101, %c40], %84 {strides = array<i32>} : memref<2x10x16x200xf32, #tpu.memory_space<vmem>>, vector<2x10x10x8xf32>,
    %86 = vector.extract_strided_slice %71 {offsets = [0, 1, 1, 0], sizes = [2, 10, 10, 8], strides = [1, 1, 1, 1]} : vector<2x14x14x8xf32> to vector<2x10x10x8xf32>
    %c0_102 = arith.constant 0 : index
    %c0_103 = arith.constant 0 : index
    %c0_104 = arith.constant 0 : index
    %c48 = arith.constant 48 : index
    %87 = vector.load %arg14[%c0_102, %c0_103, %c0_104, %c48] : memref<2x10x16x200xf32, #tpu.memory_space<vmem>>, vector<2x10x10x8xf32>
    tpu.vector_store %arg14[%c0_102, %c0_103, %c0_104, %c48], %86 {strides = array<i32>} : memref<2x10x16x200xf32, #tpu.memory_space<vmem>>, vector<2x10x10x8xf32>,
    %88 = vector.extract_strided_slice %71 {offsets = [0, 1, 2, 0], sizes = [2, 10, 10, 8], strides = [1, 1, 1, 1]} : vector<2x14x14x8xf32> to vector<2x10x10x8xf32>
    %c0_105 = arith.constant 0 : index
    %c0_106 = arith.constant 0 : index
    %c0_107 = arith.constant 0 : index
    %c56 = arith.constant 56 : index
    %89 = vector.load %arg14[%c0_105, %c0_106, %c0_107, %c56] : memref<2x10x16x200xf32, #tpu.memory_space<vmem>>, vector<2x10x10x8xf32>
    tpu.vector_store %arg14[%c0_105, %c0_106, %c0_107, %c56], %88 {strides = array<i32>} : memref<2x10x16x200xf32, #tpu.memory_space<vmem>>, vector<2x10x10x8xf32>,
    %90 = vector.extract_strided_slice %71 {offsets = [0, 1, 3, 0], sizes = [2, 10, 10, 8], strides = [1, 1, 1, 1]} : vector<2x14x14x8xf32> to vector<2x10x10x8xf32>
    %c0_108 = arith.constant 0 : index
    %c0_109 = arith.constant 0 : index
    %c0_110 = arith.constant 0 : index
    %c64_111 = arith.constant 64 : index
    %91 = vector.load %arg14[%c0_108, %c0_109, %c0_110, %c64_111] : memref<2x10x16x200xf32, #tpu.memory_space<vmem>>, vector<2x10x10x8xf32>
    tpu.vector_store %arg14[%c0_108, %c0_109, %c0_110, %c64_111], %90 {strides = array<i32>} : memref<2x10x16x200xf32, #tpu.memory_space<vmem>>, vector<2x10x10x8xf32>,
    %92 = vector.extract_strided_slice %71 {offsets = [0, 1, 4, 0], sizes = [2, 10, 10, 8], strides = [1, 1, 1, 1]} : vector<2x14x14x8xf32> to vector<2x10x10x8xf32>
    %c0_112 = arith.constant 0 : index
    %c0_113 = arith.constant 0 : index
    %c0_114 = arith.constant 0 : index
    %c72 = arith.constant 72 : index
    %93 = vector.load %arg14[%c0_112, %c0_113, %c0_114, %c72] : memref<2x10x16x200xf32, #tpu.memory_space<vmem>>, vector<2x10x10x8xf32>
    tpu.vector_store %arg14[%c0_112, %c0_113, %c0_114, %c72], %92 {strides = array<i32>} : memref<2x10x16x200xf32, #tpu.memory_space<vmem>>, vector<2x10x10x8xf32>,
    %94 = vector.extract_strided_slice %71 {offsets = [0, 2, 0, 0], sizes = [2, 10, 10, 8], strides = [1, 1, 1, 1]} : vector<2x14x14x8xf32> to vector<2x10x10x8xf32>
    %c0_115 = arith.constant 0 : index
    %c0_116 = arith.constant 0 : index
    %c0_117 = arith.constant 0 : index
    %c80 = arith.constant 80 : index
    %95 = vector.load %arg14[%c0_115, %c0_116, %c0_117, %c80] : memref<2x10x16x200xf32, #tpu.memory_space<vmem>>, vector<2x10x10x8xf32>
    tpu.vector_store %arg14[%c0_115, %c0_116, %c0_117, %c80], %94 {strides = array<i32>} : memref<2x10x16x200xf32, #tpu.memory_space<vmem>>, vector<2x10x10x8xf32>,
    %96 = vector.extract_strided_slice %71 {offsets = [0, 2, 1, 0], sizes = [2, 10, 10, 8], strides = [1, 1, 1, 1]} : vector<2x14x14x8xf32> to vector<2x10x10x8xf32>
    %c0_118 = arith.constant 0 : index
    %c0_119 = arith.constant 0 : index
    %c0_120 = arith.constant 0 : index
    %c88 = arith.constant 88 : index
    %97 = vector.load %arg14[%c0_118, %c0_119, %c0_120, %c88] : memref<2x10x16x200xf32, #tpu.memory_space<vmem>>, vector<2x10x10x8xf32>
    tpu.vector_store %arg14[%c0_118, %c0_119, %c0_120, %c88], %96 {strides = array<i32>} : memref<2x10x16x200xf32, #tpu.memory_space<vmem>>, vector<2x10x10x8xf32>,
    %98 = vector.extract_strided_slice %71 {offsets = [0, 2, 2, 0], sizes = [2, 10, 10, 8], strides = [1, 1, 1, 1]} : vector<2x14x14x8xf32> to vector<2x10x10x8xf32>
    %c0_121 = arith.constant 0 : index
    %c0_122 = arith.constant 0 : index
    %c0_123 = arith.constant 0 : index
    %c96_124 = arith.constant 96 : index
    %99 = vector.load %arg14[%c0_121, %c0_122, %c0_123, %c96_124] : memref<2x10x16x200xf32, #tpu.memory_space<vmem>>, vector<2x10x10x8xf32>
    tpu.vector_store %arg14[%c0_121, %c0_122, %c0_123, %c96_124], %98 {strides = array<i32>} : memref<2x10x16x200xf32, #tpu.memory_space<vmem>>, vector<2x10x10x8xf32>,
    %100 = vector.extract_strided_slice %71 {offsets = [0, 2, 3, 0], sizes = [2, 10, 10, 8], strides = [1, 1, 1, 1]} : vector<2x14x14x8xf32> to vector<2x10x10x8xf32>
    %c0_125 = arith.constant 0 : index
    %c0_126 = arith.constant 0 : index
    %c0_127 = arith.constant 0 : index
    %c104 = arith.constant 104 : index
    %101 = vector.load %arg14[%c0_125, %c0_126, %c0_127, %c104] : memref<2x10x16x200xf32, #tpu.memory_space<vmem>>, vector<2x10x10x8xf32>
    tpu.vector_store %arg14[%c0_125, %c0_126, %c0_127, %c104], %100 {strides = array<i32>} : memref<2x10x16x200xf32, #tpu.memory_space<vmem>>, vector<2x10x10x8xf32>,
    %102 = vector.extract_strided_slice %71 {offsets = [0, 2, 4, 0], sizes = [2, 10, 10, 8], strides = [1, 1, 1, 1]} : vector<2x14x14x8xf32> to vector<2x10x10x8xf32>
    %c0_128 = arith.constant 0 : index
    %c0_129 = arith.constant 0 : index
    %c0_130 = arith.constant 0 : index
    %c112 = arith.constant 112 : index
    %103 = vector.load %arg14[%c0_128, %c0_129, %c0_130, %c112] : memref<2x10x16x200xf32, #tpu.memory_space<vmem>>, vector<2x10x10x8xf32>
    tpu.vector_store %arg14[%c0_128, %c0_129, %c0_130, %c112], %102 {strides = array<i32>} : memref<2x10x16x200xf32, #tpu.memory_space<vmem>>, vector<2x10x10x8xf32>,
    %104 = vector.extract_strided_slice %71 {offsets = [0, 3, 0, 0], sizes = [2, 10, 10, 8], strides = [1, 1, 1, 1]} : vector<2x14x14x8xf32> to vector<2x10x10x8xf32>
    %c0_131 = arith.constant 0 : index
    %c0_132 = arith.constant 0 : index
    %c0_133 = arith.constant 0 : index
    %c120 = arith.constant 120 : index
    %105 = vector.load %arg14[%c0_131, %c0_132, %c0_133, %c120] : memref<2x10x16x200xf32, #tpu.memory_space<vmem>>, vector<2x10x10x8xf32>
    tpu.vector_store %arg14[%c0_131, %c0_132, %c0_133, %c120], %104 {strides = array<i32>} : memref<2x10x16x200xf32, #tpu.memory_space<vmem>>, vector<2x10x10x8xf32>,
    %106 = vector.extract_strided_slice %71 {offsets = [0, 3, 1, 0], sizes = [2, 10, 10, 8], strides = [1, 1, 1, 1]} : vector<2x14x14x8xf32> to vector<2x10x10x8xf32>
    %c0_134 = arith.constant 0 : index
    %c0_135 = arith.constant 0 : index
    %c0_136 = arith.constant 0 : index
    %c128_137 = arith.constant 128 : index
    %107 = vector.load %arg14[%c0_134, %c0_135, %c0_136, %c128_137] : memref<2x10x16x200xf32, #tpu.memory_space<vmem>>, vector<2x10x10x8xf32>
    tpu.vector_store %arg14[%c0_134, %c0_135, %c0_136, %c128_137], %106 {strides = array<i32>} : memref<2x10x16x200xf32, #tpu.memory_space<vmem>>, vector<2x10x10x8xf32>,
    %108 = vector.extract_strided_slice %71 {offsets = [0, 3, 2, 0], sizes = [2, 10, 10, 8], strides = [1, 1, 1, 1]} : vector<2x14x14x8xf32> to vector<2x10x10x8xf32>
    %c0_138 = arith.constant 0 : index
    %c0_139 = arith.constant 0 : index
    %c0_140 = arith.constant 0 : index
    %c136 = arith.constant 136 : index
    %109 = vector.load %arg14[%c0_138, %c0_139, %c0_140, %c136] : memref<2x10x16x200xf32, #tpu.memory_space<vmem>>, vector<2x10x10x8xf32>
    tpu.vector_store %arg14[%c0_138, %c0_139, %c0_140, %c136], %108 {strides = array<i32>} : memref<2x10x16x200xf32, #tpu.memory_space<vmem>>, vector<2x10x10x8xf32>,
    %110 = vector.extract_strided_slice %71 {offsets = [0, 3, 3, 0], sizes = [2, 10, 10, 8], strides = [1, 1, 1, 1]} : vector<2x14x14x8xf32> to vector<2x10x10x8xf32>
    %c0_141 = arith.constant 0 : index
    %c0_142 = arith.constant 0 : index
    %c0_143 = arith.constant 0 : index
    %c144 = arith.constant 144 : index
    %111 = vector.load %arg14[%c0_141, %c0_142, %c0_143, %c144] : memref<2x10x16x200xf32, #tpu.memory_space<vmem>>, vector<2x10x10x8xf32>
    tpu.vector_store %arg14[%c0_141, %c0_142, %c0_143, %c144], %110 {strides = array<i32>} : memref<2x10x16x200xf32, #tpu.memory_space<vmem>>, vector<2x10x10x8xf32>,
    %112 = vector.extract_strided_slice %71 {offsets = [0, 3, 4, 0], sizes = [2, 10, 10, 8], strides = [1, 1, 1, 1]} : vector<2x14x14x8xf32> to vector<2x10x10x8xf32>
    %c0_144 = arith.constant 0 : index
    %c0_145 = arith.constant 0 : index
    %c0_146 = arith.constant 0 : index
    %c152 = arith.constant 152 : index
    %113 = vector.load %arg14[%c0_144, %c0_145, %c0_146, %c152] : memref<2x10x16x200xf32, #tpu.memory_space<vmem>>, vector<2x10x10x8xf32>
    tpu.vector_store %arg14[%c0_144, %c0_145, %c0_146, %c152], %112 {strides = array<i32>} : memref<2x10x16x200xf32, #tpu.memory_space<vmem>>, vector<2x10x10x8xf32>,
    %114 = vector.extract_strided_slice %71 {offsets = [0, 4, 0, 0], sizes = [2, 10, 10, 8], strides = [1, 1, 1, 1]} : vector<2x14x14x8xf32> to vector<2x10x10x8xf32>
    %c0_147 = arith.constant 0 : index
    %c0_148 = arith.constant 0 : index
    %c0_149 = arith.constant 0 : index
    %c160 = arith.constant 160 : index
    %115 = vector.load %arg14[%c0_147, %c0_148, %c0_149, %c160] : memref<2x10x16x200xf32, #tpu.memory_space<vmem>>, vector<2x10x10x8xf32>
    tpu.vector_store %arg14[%c0_147, %c0_148, %c0_149, %c160], %114 {strides = array<i32>} : memref<2x10x16x200xf32, #tpu.memory_space<vmem>>, vector<2x10x10x8xf32>,
    %116 = vector.extract_strided_slice %71 {offsets = [0, 4, 1, 0], sizes = [2, 10, 10, 8], strides = [1, 1, 1, 1]} : vector<2x14x14x8xf32> to vector<2x10x10x8xf32>
    %c0_150 = arith.constant 0 : index
    %c0_151 = arith.constant 0 : index
    %c0_152 = arith.constant 0 : index
    %c168 = arith.constant 168 : index
    %117 = vector.load %arg14[%c0_150, %c0_151, %c0_152, %c168] : memref<2x10x16x200xf32, #tpu.memory_space<vmem>>, vector<2x10x10x8xf32>
    tpu.vector_store %arg14[%c0_150, %c0_151, %c0_152, %c168], %116 {strides = array<i32>} : memref<2x10x16x200xf32, #tpu.memory_space<vmem>>, vector<2x10x10x8xf32>,
    %118 = vector.extract_strided_slice %71 {offsets = [0, 4, 2, 0], sizes = [2, 10, 10, 8], strides = [1, 1, 1, 1]} : vector<2x14x14x8xf32> to vector<2x10x10x8xf32>
    %c0_153 = arith.constant 0 : index
    %c0_154 = arith.constant 0 : index
    %c0_155 = arith.constant 0 : index
    %c176 = arith.constant 176 : index
    %119 = vector.load %arg14[%c0_153, %c0_154, %c0_155, %c176] : memref<2x10x16x200xf32, #tpu.memory_space<vmem>>, vector<2x10x10x8xf32>
    tpu.vector_store %arg14[%c0_153, %c0_154, %c0_155, %c176], %118 {strides = array<i32>} : memref<2x10x16x200xf32, #tpu.memory_space<vmem>>, vector<2x10x10x8xf32>,
    %120 = vector.extract_strided_slice %71 {offsets = [0, 4, 3, 0], sizes = [2, 10, 10, 8], strides = [1, 1, 1, 1]} : vector<2x14x14x8xf32> to vector<2x10x10x8xf32>
    %c0_156 = arith.constant 0 : index
    %c0_157 = arith.constant 0 : index
    %c0_158 = arith.constant 0 : index
    %c184 = arith.constant 184 : index
    %121 = vector.load %arg14[%c0_156, %c0_157, %c0_158, %c184] : memref<2x10x16x200xf32, #tpu.memory_space<vmem>>, vector<2x10x10x8xf32>
    tpu.vector_store %arg14[%c0_156, %c0_157, %c0_158, %c184], %120 {strides = array<i32>} : memref<2x10x16x200xf32, #tpu.memory_space<vmem>>, vector<2x10x10x8xf32>,
    %122 = vector.extract_strided_slice %71 {offsets = [0, 4, 4, 0], sizes = [2, 10, 10, 8], strides = [1, 1, 1, 1]} : vector<2x14x14x8xf32> to vector<2x10x10x8xf32>
    %c0_159 = arith.constant 0 : index
    %c0_160 = arith.constant 0 : index
    %c0_161 = arith.constant 0 : index
    %c192 = arith.constant 192 : index
    %123 = vector.load %arg14[%c0_159, %c0_160, %c0_161, %c192] : memref<2x10x16x200xf32, #tpu.memory_space<vmem>>, vector<2x10x10x8xf32>
    tpu.vector_store %arg14[%c0_159, %c0_160, %c0_161, %c192], %122 {strides = array<i32>} : memref<2x10x16x200xf32, #tpu.memory_space<vmem>>, vector<2x10x10x8xf32>,
    %c0_162 = arith.constant 0 : index
    %c0_163 = arith.constant 0 : index
    %c0_164 = arith.constant 0 : index
    %c0_165 = arith.constant 0 : index
    %124 = vector.load %arg14[%c0_162, %c0_163, %c0_164, %c0_165] : memref<2x10x16x200xf32, #tpu.memory_space<vmem>>, vector<2x10x16x200xf32>
    %125 = vector.shape_cast %124 : vector<2x10x16x200xf32> to vector<320x200xf32>
    %126 = arith.truncf %125 : vector<320x200xf32> to vector<320x200xbf16>
    %c0_166 = arith.constant 0 : index
    %c0_167 = arith.constant 0 : index
    %127 = vector.load %arg3[%c0_166, %c0_167] : memref<200x112xbf16, #tpu.memory_space<vmem>>, vector<200x112xbf16>
    %cst_168 = arith.constant dense<0.000000e+00> : vector<320x112xf32>
    %128 = tpu.matmul %126, %127, %cst_168 {dimension_numbers = #tpu.dot_dimension_numbers<[1], [0], [0], [1], [0, 0, 1, 1], [], []>} : vector<320x200xbf16>, vector<200x112xbf16>, vector<320x112xf32> -> vector<320x112xf32>
    %129 = vector.shape_cast %128 : vector<320x112xf32> to vector<2x10x16x112xf32>
    %130 = vector.extract_strided_slice %129 {offsets = [0, 0, 0, 0], sizes = [2, 10, 10, 112], strides = [1, 1, 1, 1]} : vector<2x10x16x112xf32> to vector<2x10x10x112xf32>
    %131 = vector.shape_cast %130 : vector<2x10x10x112xf32> to vector<2x5x2x10x112xf32>
    %132 = vector.extract_strided_slice %131 {offsets = [0, 0, 0, 0, 0], sizes = [2, 5, 1, 10, 112], strides = [1, 1, 1, 1, 1]} : vector<2x5x2x10x112xf32> to vector<2x5x1x10x112xf32>
    %133 = vector.shape_cast %132 : vector<2x5x1x10x112xf32> to vector<2x5x10x112xf32>
    %134 = vector.extract_strided_slice %131 {offsets = [0, 0, 1, 0, 0], sizes = [2, 5, 1, 10, 112], strides = [1, 1, 1, 1, 1]} : vector<2x5x2x10x112xf32> to vector<2x5x1x10x112xf32>
    %135 = vector.shape_cast %134 : vector<2x5x1x10x112xf32> to vector<2x5x10x112xf32>
    %136 = arith.maximumf %133, %135 : vector<2x5x10x112xf32>
    %c0_169 = arith.constant 0 : index
    %c0_170 = arith.constant 0 : index
    %c0_171 = arith.constant 0 : index
    %c0_172 = arith.constant 0 : index
    %137 = vector.load %arg15[%c0_169, %c0_170, %c0_171, %c0_172] : memref<2x5x10x112xf32, #tpu.memory_space<vmem>>, vector<2x5x10x112xf32>
    tpu.vector_store %arg15[%c0_169, %c0_170, %c0_171, %c0_172], %136 {strides = array<i32>} : memref<2x5x10x112xf32, #tpu.memory_space<vmem>>, vector<2x5x10x112xf32>,
    %c0_173 = arith.constant 0 : index
    %c0_174 = arith.constant 0 : index
    %c0_175 = arith.constant 0 : index
    %c0_176 = arith.constant 0 : index
    %138 = tpu.strided_load %arg15[%c0_173, %c0_174, %c0_175, %c0_176] {strides = array<i32: 1, 1, 2, 1>} : memref<2x5x10x112xf32, #tpu.memory_space<vmem>>, vector<2x5x5x112xf32>
    %c0_177 = arith.constant 0 : index
    %c0_178 = arith.constant 0 : index
    %c1_179 = arith.constant 1 : index
    %c0_180 = arith.constant 0 : index
    %139 = tpu.strided_load %arg15[%c0_177, %c0_178, %c1_179, %c0_180] {strides = array<i32: 1, 1, 2, 1>} : memref<2x5x10x112xf32, #tpu.memory_space<vmem>>, vector<2x5x5x112xf32>
    %140 = arith.maximumf %138, %139 : vector<2x5x5x112xf32>
    %c0_181 = arith.constant 0 : index
    %c0_182 = arith.constant 0 : index
    %141 = vector.load %arg4[%c0_181, %c0_182] : memref<1x112xf32, #tpu.memory_space<vmem>>, vector<1x112xf32>
    %142 = vector.shape_cast %141 : vector<1x112xf32> to vector<1x1x1x112xf32>
    %143 = vector.broadcast %142 : vector<1x1x1x112xf32> to vector<2x5x5x112xf32>
    %144 = arith.addf %140, %143 : vector<2x5x5x112xf32>
    %cst_183 = arith.constant 0.000000e+00 : f32
    %145 = vector.broadcast %cst_183 : f32 to vector<2x5x5x112xf32>
    %146 = arith.maximumf %144, %145 : vector<2x5x5x112xf32>
    %cst_184 = arith.constant 0.000000e+00 : f32
    %147 = vector.broadcast %cst_184 : f32 to vector<2x3200xf32>
    %c0_185 = arith.constant 0 : index
    %c0_186 = arith.constant 0 : index
    %148 = vector.load %arg16[%c0_185, %c0_186] : memref<2x3200xf32, #tpu.memory_space<vmem>>, vector<2x3200xf32>
    tpu.vector_store %arg16[%c0_185, %c0_186], %147 {strides = array<i32>} : memref<2x3200xf32, #tpu.memory_space<vmem>>, vector<2x3200xf32>,
    %149 = vector.extract_strided_slice %146 {offsets = [0, 0, 0, 0], sizes = [2, 1, 1, 112], strides = [1, 1, 1, 1]} : vector<2x5x5x112xf32> to vector<2x1x1x112xf32>
    %150 = vector.shape_cast %149 : vector<2x1x1x112xf32> to vector<2x112xf32>
    %c0_187 = arith.constant 0 : index
    %c0_188 = arith.constant 0 : index
    %151 = vector.load %arg16[%c0_187, %c0_188] : memref<2x3200xf32, #tpu.memory_space<vmem>>, vector<2x112xf32>
    tpu.vector_store %arg16[%c0_187, %c0_188], %150 {strides = array<i32>} : memref<2x3200xf32, #tpu.memory_space<vmem>>, vector<2x112xf32>,
    %152 = vector.extract_strided_slice %146 {offsets = [0, 0, 1, 0], sizes = [2, 1, 1, 112], strides = [1, 1, 1, 1]} : vector<2x5x5x112xf32> to vector<2x1x1x112xf32>
    %153 = vector.shape_cast %152 : vector<2x1x1x112xf32> to vector<2x112xf32>
    %c0_189 = arith.constant 0 : index
    %c128_190 = arith.constant 128 : index
    %154 = vector.load %arg16[%c0_189, %c128_190] : memref<2x3200xf32, #tpu.memory_space<vmem>>, vector<2x112xf32>
    tpu.vector_store %arg16[%c0_189, %c128_190], %153 {strides = array<i32>} : memref<2x3200xf32, #tpu.memory_space<vmem>>, vector<2x112xf32>,
    %155 = vector.extract_strided_slice %146 {offsets = [0, 0, 2, 0], sizes = [2, 1, 1, 112], strides = [1, 1, 1, 1]} : vector<2x5x5x112xf32> to vector<2x1x1x112xf32>
    %156 = vector.shape_cast %155 : vector<2x1x1x112xf32> to vector<2x112xf32>
    %c0_191 = arith.constant 0 : index
    %c256 = arith.constant 256 : index
    %157 = vector.load %arg16[%c0_191, %c256] : memref<2x3200xf32, #tpu.memory_space<vmem>>, vector<2x112xf32>
    tpu.vector_store %arg16[%c0_191, %c256], %156 {strides = array<i32>} : memref<2x3200xf32, #tpu.memory_space<vmem>>, vector<2x112xf32>,
    %158 = vector.extract_strided_slice %146 {offsets = [0, 0, 3, 0], sizes = [2, 1, 1, 112], strides = [1, 1, 1, 1]} : vector<2x5x5x112xf32> to vector<2x1x1x112xf32>
    %159 = vector.shape_cast %158 : vector<2x1x1x112xf32> to vector<2x112xf32>
    %c0_192 = arith.constant 0 : index
    %c384 = arith.constant 384 : index
    %160 = vector.load %arg16[%c0_192, %c384] : memref<2x3200xf32, #tpu.memory_space<vmem>>, vector<2x112xf32>
    tpu.vector_store %arg16[%c0_192, %c384], %159 {strides = array<i32>} : memref<2x3200xf32, #tpu.memory_space<vmem>>, vector<2x112xf32>,
    %161 = vector.extract_strided_slice %146 {offsets = [0, 0, 4, 0], sizes = [2, 1, 1, 112], strides = [1, 1, 1, 1]} : vector<2x5x5x112xf32> to vector<2x1x1x112xf32>
    %162 = vector.shape_cast %161 : vector<2x1x1x112xf32> to vector<2x112xf32>
    %c0_193 = arith.constant 0 : index
    %c512 = arith.constant 512 : index
    %163 = vector.load %arg16[%c0_193, %c512] : memref<2x3200xf32, #tpu.memory_space<vmem>>, vector<2x112xf32>
    tpu.vector_store %arg16[%c0_193, %c512], %162 {strides = array<i32>} : memref<2x3200xf32, #tpu.memory_space<vmem>>, vector<2x112xf32>,
    %164 = vector.extract_strided_slice %146 {offsets = [0, 1, 0, 0], sizes = [2, 1, 1, 112], strides = [1, 1, 1, 1]} : vector<2x5x5x112xf32> to vector<2x1x1x112xf32>
    %165 = vector.shape_cast %164 : vector<2x1x1x112xf32> to vector<2x112xf32>
    %c0_194 = arith.constant 0 : index
    %c640 = arith.constant 640 : index
    %166 = vector.load %arg16[%c0_194, %c640] : memref<2x3200xf32, #tpu.memory_space<vmem>>, vector<2x112xf32>
    tpu.vector_store %arg16[%c0_194, %c640], %165 {strides = array<i32>} : memref<2x3200xf32, #tpu.memory_space<vmem>>, vector<2x112xf32>,
    %167 = vector.extract_strided_slice %146 {offsets = [0, 1, 1, 0], sizes = [2, 1, 1, 112], strides = [1, 1, 1, 1]} : vector<2x5x5x112xf32> to vector<2x1x1x112xf32>
    %168 = vector.shape_cast %167 : vector<2x1x1x112xf32> to vector<2x112xf32>
    %c0_195 = arith.constant 0 : index
    %c768 = arith.constant 768 : index
    %169 = vector.load %arg16[%c0_195, %c768] : memref<2x3200xf32, #tpu.memory_space<vmem>>, vector<2x112xf32>
    tpu.vector_store %arg16[%c0_195, %c768], %168 {strides = array<i32>} : memref<2x3200xf32, #tpu.memory_space<vmem>>, vector<2x112xf32>,
    %170 = vector.extract_strided_slice %146 {offsets = [0, 1, 2, 0], sizes = [2, 1, 1, 112], strides = [1, 1, 1, 1]} : vector<2x5x5x112xf32> to vector<2x1x1x112xf32>
    %171 = vector.shape_cast %170 : vector<2x1x1x112xf32> to vector<2x112xf32>
    %c0_196 = arith.constant 0 : index
    %c896 = arith.constant 896 : index
    %172 = vector.load %arg16[%c0_196, %c896] : memref<2x3200xf32, #tpu.memory_space<vmem>>, vector<2x112xf32>
    tpu.vector_store %arg16[%c0_196, %c896], %171 {strides = array<i32>} : memref<2x3200xf32, #tpu.memory_space<vmem>>, vector<2x112xf32>,
    %173 = vector.extract_strided_slice %146 {offsets = [0, 1, 3, 0], sizes = [2, 1, 1, 112], strides = [1, 1, 1, 1]} : vector<2x5x5x112xf32> to vector<2x1x1x112xf32>
    %174 = vector.shape_cast %173 : vector<2x1x1x112xf32> to vector<2x112xf32>
    %c0_197 = arith.constant 0 : index
    %c1024 = arith.constant 1024 : index
    %175 = vector.load %arg16[%c0_197, %c1024] : memref<2x3200xf32, #tpu.memory_space<vmem>>, vector<2x112xf32>
    tpu.vector_store %arg16[%c0_197, %c1024], %174 {strides = array<i32>} : memref<2x3200xf32, #tpu.memory_space<vmem>>, vector<2x112xf32>,
    %176 = vector.extract_strided_slice %146 {offsets = [0, 1, 4, 0], sizes = [2, 1, 1, 112], strides = [1, 1, 1, 1]} : vector<2x5x5x112xf32> to vector<2x1x1x112xf32>
    %177 = vector.shape_cast %176 : vector<2x1x1x112xf32> to vector<2x112xf32>
    %c0_198 = arith.constant 0 : index
    %c1152 = arith.constant 1152 : index
    %178 = vector.load %arg16[%c0_198, %c1152] : memref<2x3200xf32, #tpu.memory_space<vmem>>, vector<2x112xf32>
    tpu.vector_store %arg16[%c0_198, %c1152], %177 {strides = array<i32>} : memref<2x3200xf32, #tpu.memory_space<vmem>>, vector<2x112xf32>,
    %179 = vector.extract_strided_slice %146 {offsets = [0, 2, 0, 0], sizes = [2, 1, 1, 112], strides = [1, 1, 1, 1]} : vector<2x5x5x112xf32> to vector<2x1x1x112xf32>
    %180 = vector.shape_cast %179 : vector<2x1x1x112xf32> to vector<2x112xf32>
    %c0_199 = arith.constant 0 : index
    %c1280 = arith.constant 1280 : index
    %181 = vector.load %arg16[%c0_199, %c1280] : memref<2x3200xf32, #tpu.memory_space<vmem>>, vector<2x112xf32>
    tpu.vector_store %arg16[%c0_199, %c1280], %180 {strides = array<i32>} : memref<2x3200xf32, #tpu.memory_space<vmem>>, vector<2x112xf32>,
    %182 = vector.extract_strided_slice %146 {offsets = [0, 2, 1, 0], sizes = [2, 1, 1, 112], strides = [1, 1, 1, 1]} : vector<2x5x5x112xf32> to vector<2x1x1x112xf32>
    %183 = vector.shape_cast %182 : vector<2x1x1x112xf32> to vector<2x112xf32>
    %c0_200 = arith.constant 0 : index
    %c1408 = arith.constant 1408 : index
    %184 = vector.load %arg16[%c0_200, %c1408] : memref<2x3200xf32, #tpu.memory_space<vmem>>, vector<2x112xf32>
    tpu.vector_store %arg16[%c0_200, %c1408], %183 {strides = array<i32>} : memref<2x3200xf32, #tpu.memory_space<vmem>>, vector<2x112xf32>,
    %185 = vector.extract_strided_slice %146 {offsets = [0, 2, 2, 0], sizes = [2, 1, 1, 112], strides = [1, 1, 1, 1]} : vector<2x5x5x112xf32> to vector<2x1x1x112xf32>
    %186 = vector.shape_cast %185 : vector<2x1x1x112xf32> to vector<2x112xf32>
    %c0_201 = arith.constant 0 : index
    %c1536 = arith.constant 1536 : index
    %187 = vector.load %arg16[%c0_201, %c1536] : memref<2x3200xf32, #tpu.memory_space<vmem>>, vector<2x112xf32>
    tpu.vector_store %arg16[%c0_201, %c1536], %186 {strides = array<i32>} : memref<2x3200xf32, #tpu.memory_space<vmem>>, vector<2x112xf32>,
    %188 = vector.extract_strided_slice %146 {offsets = [0, 2, 3, 0], sizes = [2, 1, 1, 112], strides = [1, 1, 1, 1]} : vector<2x5x5x112xf32> to vector<2x1x1x112xf32>
    %189 = vector.shape_cast %188 : vector<2x1x1x112xf32> to vector<2x112xf32>
    %c0_202 = arith.constant 0 : index
    %c1664 = arith.constant 1664 : index
    %190 = vector.load %arg16[%c0_202, %c1664] : memref<2x3200xf32, #tpu.memory_space<vmem>>, vector<2x112xf32>
    tpu.vector_store %arg16[%c0_202, %c1664], %189 {strides = array<i32>} : memref<2x3200xf32, #tpu.memory_space<vmem>>, vector<2x112xf32>,
    %191 = vector.extract_strided_slice %146 {offsets = [0, 2, 4, 0], sizes = [2, 1, 1, 112], strides = [1, 1, 1, 1]} : vector<2x5x5x112xf32> to vector<2x1x1x112xf32>
    %192 = vector.shape_cast %191 : vector<2x1x1x112xf32> to vector<2x112xf32>
    %c0_203 = arith.constant 0 : index
    %c1792 = arith.constant 1792 : index
    %193 = vector.load %arg16[%c0_203, %c1792] : memref<2x3200xf32, #tpu.memory_space<vmem>>, vector<2x112xf32>
    tpu.vector_store %arg16[%c0_203, %c1792], %192 {strides = array<i32>} : memref<2x3200xf32, #tpu.memory_space<vmem>>, vector<2x112xf32>,
    %194 = vector.extract_strided_slice %146 {offsets = [0, 3, 0, 0], sizes = [2, 1, 1, 112], strides = [1, 1, 1, 1]} : vector<2x5x5x112xf32> to vector<2x1x1x112xf32>
    %195 = vector.shape_cast %194 : vector<2x1x1x112xf32> to vector<2x112xf32>
    %c0_204 = arith.constant 0 : index
    %c1920 = arith.constant 1920 : index
    %196 = vector.load %arg16[%c0_204, %c1920] : memref<2x3200xf32, #tpu.memory_space<vmem>>, vector<2x112xf32>
    tpu.vector_store %arg16[%c0_204, %c1920], %195 {strides = array<i32>} : memref<2x3200xf32, #tpu.memory_space<vmem>>, vector<2x112xf32>,
    %197 = vector.extract_strided_slice %146 {offsets = [0, 3, 1, 0], sizes = [2, 1, 1, 112], strides = [1, 1, 1, 1]} : vector<2x5x5x112xf32> to vector<2x1x1x112xf32>
    %198 = vector.shape_cast %197 : vector<2x1x1x112xf32> to vector<2x112xf32>
    %c0_205 = arith.constant 0 : index
    %c2048 = arith.constant 2048 : index
    %199 = vector.load %arg16[%c0_205, %c2048] : memref<2x3200xf32, #tpu.memory_space<vmem>>, vector<2x112xf32>
    tpu.vector_store %arg16[%c0_205, %c2048], %198 {strides = array<i32>} : memref<2x3200xf32, #tpu.memory_space<vmem>>, vector<2x112xf32>,
    %200 = vector.extract_strided_slice %146 {offsets = [0, 3, 2, 0], sizes = [2, 1, 1, 112], strides = [1, 1, 1, 1]} : vector<2x5x5x112xf32> to vector<2x1x1x112xf32>
    %201 = vector.shape_cast %200 : vector<2x1x1x112xf32> to vector<2x112xf32>
    %c0_206 = arith.constant 0 : index
    %c2176 = arith.constant 2176 : index
    %202 = vector.load %arg16[%c0_206, %c2176] : memref<2x3200xf32, #tpu.memory_space<vmem>>, vector<2x112xf32>
    tpu.vector_store %arg16[%c0_206, %c2176], %201 {strides = array<i32>} : memref<2x3200xf32, #tpu.memory_space<vmem>>, vector<2x112xf32>,
    %203 = vector.extract_strided_slice %146 {offsets = [0, 3, 3, 0], sizes = [2, 1, 1, 112], strides = [1, 1, 1, 1]} : vector<2x5x5x112xf32> to vector<2x1x1x112xf32>
    %204 = vector.shape_cast %203 : vector<2x1x1x112xf32> to vector<2x112xf32>
    %c0_207 = arith.constant 0 : index
    %c2304 = arith.constant 2304 : index
    %205 = vector.load %arg16[%c0_207, %c2304] : memref<2x3200xf32, #tpu.memory_space<vmem>>, vector<2x112xf32>
    tpu.vector_store %arg16[%c0_207, %c2304], %204 {strides = array<i32>} : memref<2x3200xf32, #tpu.memory_space<vmem>>, vector<2x112xf32>,
    %206 = vector.extract_strided_slice %146 {offsets = [0, 3, 4, 0], sizes = [2, 1, 1, 112], strides = [1, 1, 1, 1]} : vector<2x5x5x112xf32> to vector<2x1x1x112xf32>
    %207 = vector.shape_cast %206 : vector<2x1x1x112xf32> to vector<2x112xf32>
    %c0_208 = arith.constant 0 : index
    %c2432 = arith.constant 2432 : index
    %208 = vector.load %arg16[%c0_208, %c2432] : memref<2x3200xf32, #tpu.memory_space<vmem>>, vector<2x112xf32>
    tpu.vector_store %arg16[%c0_208, %c2432], %207 {strides = array<i32>} : memref<2x3200xf32, #tpu.memory_space<vmem>>, vector<2x112xf32>,
    %209 = vector.extract_strided_slice %146 {offsets = [0, 4, 0, 0], sizes = [2, 1, 1, 112], strides = [1, 1, 1, 1]} : vector<2x5x5x112xf32> to vector<2x1x1x112xf32>
    %210 = vector.shape_cast %209 : vector<2x1x1x112xf32> to vector<2x112xf32>
    %c0_209 = arith.constant 0 : index
    %c2560 = arith.constant 2560 : index
    %211 = vector.load %arg16[%c0_209, %c2560] : memref<2x3200xf32, #tpu.memory_space<vmem>>, vector<2x112xf32>
    tpu.vector_store %arg16[%c0_209, %c2560], %210 {strides = array<i32>} : memref<2x3200xf32, #tpu.memory_space<vmem>>, vector<2x112xf32>,
    %212 = vector.extract_strided_slice %146 {offsets = [0, 4, 1, 0], sizes = [2, 1, 1, 112], strides = [1, 1, 1, 1]} : vector<2x5x5x112xf32> to vector<2x1x1x112xf32>
    %213 = vector.shape_cast %212 : vector<2x1x1x112xf32> to vector<2x112xf32>
    %c0_210 = arith.constant 0 : index
    %c2688 = arith.constant 2688 : index
    %214 = vector.load %arg16[%c0_210, %c2688] : memref<2x3200xf32, #tpu.memory_space<vmem>>, vector<2x112xf32>
    tpu.vector_store %arg16[%c0_210, %c2688], %213 {strides = array<i32>} : memref<2x3200xf32, #tpu.memory_space<vmem>>, vector<2x112xf32>,
    %215 = vector.extract_strided_slice %146 {offsets = [0, 4, 2, 0], sizes = [2, 1, 1, 112], strides = [1, 1, 1, 1]} : vector<2x5x5x112xf32> to vector<2x1x1x112xf32>
    %216 = vector.shape_cast %215 : vector<2x1x1x112xf32> to vector<2x112xf32>
    %c0_211 = arith.constant 0 : index
    %c2816 = arith.constant 2816 : index
    %217 = vector.load %arg16[%c0_211, %c2816] : memref<2x3200xf32, #tpu.memory_space<vmem>>, vector<2x112xf32>
    tpu.vector_store %arg16[%c0_211, %c2816], %216 {strides = array<i32>} : memref<2x3200xf32, #tpu.memory_space<vmem>>, vector<2x112xf32>,
    %218 = vector.extract_strided_slice %146 {offsets = [0, 4, 3, 0], sizes = [2, 1, 1, 112], strides = [1, 1, 1, 1]} : vector<2x5x5x112xf32> to vector<2x1x1x112xf32>
    %219 = vector.shape_cast %218 : vector<2x1x1x112xf32> to vector<2x112xf32>
    %c0_212 = arith.constant 0 : index
    %c2944 = arith.constant 2944 : index
    %220 = vector.load %arg16[%c0_212, %c2944] : memref<2x3200xf32, #tpu.memory_space<vmem>>, vector<2x112xf32>
    tpu.vector_store %arg16[%c0_212, %c2944], %219 {strides = array<i32>} : memref<2x3200xf32, #tpu.memory_space<vmem>>, vector<2x112xf32>,
    %221 = vector.extract_strided_slice %146 {offsets = [0, 4, 4, 0], sizes = [2, 1, 1, 112], strides = [1, 1, 1, 1]} : vector<2x5x5x112xf32> to vector<2x1x1x112xf32>
    %222 = vector.shape_cast %221 : vector<2x1x1x112xf32> to vector<2x112xf32>
    %c0_213 = arith.constant 0 : index
    %c3072 = arith.constant 3072 : index
    %223 = vector.load %arg16[%c0_213, %c3072] : memref<2x3200xf32, #tpu.memory_space<vmem>>, vector<2x112xf32>
    tpu.vector_store %arg16[%c0_213, %c3072], %222 {strides = array<i32>} : memref<2x3200xf32, #tpu.memory_space<vmem>>, vector<2x112xf32>,
    %c0_214 = arith.constant 0 : index
    %c0_215 = arith.constant 0 : index
    %224 = vector.load %arg16[%c0_214, %c0_215] : memref<2x3200xf32, #tpu.memory_space<vmem>>, vector<2x3200xf32>
    %225 = arith.truncf %224 : vector<2x3200xf32> to vector<2x3200xbf16>
    %c0_216 = arith.constant 0 : index
    %c0_217 = arith.constant 0 : index
    %226 = vector.load %arg5[%c0_216, %c0_217] : memref<3200x120xbf16, #tpu.memory_space<vmem>>, vector<3200x120xbf16>
    %cst_218 = arith.constant dense<0.000000e+00> : vector<2x120xf32>
    %227 = tpu.matmul %225, %226, %cst_218 {dimension_numbers = #tpu.dot_dimension_numbers<[1], [0], [0], [1], [0, 0, 1, 1], [], []>} : vector<2x3200xbf16>, vector<3200x120xbf16>, vector<2x120xf32> -> vector<2x120xf32>
    %c0_219 = arith.constant 0 : index
    %c0_220 = arith.constant 0 : index
    %228 = vector.load %arg6[%c0_219, %c0_220] : memref<1x120xf32, #tpu.memory_space<vmem>>, vector<1x120xf32>
    %229 = vector.broadcast %228 : vector<1x120xf32> to vector<2x120xf32>
    %230 = arith.addf %227, %229 : vector<2x120xf32>
    %cst_221 = arith.constant 0.000000e+00 : f32
    %231 = vector.broadcast %cst_221 : f32 to vector<2x120xf32>
    %232 = arith.maximumf %230, %231 : vector<2x120xf32>
    %233 = arith.truncf %232 : vector<2x120xf32> to vector<2x120xbf16>
    %c0_222 = arith.constant 0 : index
    %c0_223 = arith.constant 0 : index
    %234 = vector.load %arg7[%c0_222, %c0_223] : memref<120x84xbf16, #tpu.memory_space<vmem>>, vector<120x84xbf16>
    %cst_224 = arith.constant dense<0.000000e+00> : vector<2x84xf32>
    %235 = tpu.matmul %233, %234, %cst_224 {dimension_numbers = #tpu.dot_dimension_numbers<[1], [0], [0], [1], [0, 0, 1, 1], [], []>} : vector<2x120xbf16>, vector<120x84xbf16>, vector<2x84xf32> -> vector<2x84xf32>
    %c0_225 = arith.constant 0 : index
    %c0_226 = arith.constant 0 : index
    %236 = vector.load %arg8[%c0_225, %c0_226] : memref<1x84xf32, #tpu.memory_space<vmem>>, vector<1x84xf32>
    %237 = vector.broadcast %236 : vector<1x84xf32> to vector<2x84xf32>
    %238 = arith.addf %235, %237 : vector<2x84xf32>
    %cst_227 = arith.constant 0.000000e+00 : f32
    %239 = vector.broadcast %cst_227 : f32 to vector<2x84xf32>
    %240 = arith.maximumf %238, %239 : vector<2x84xf32>
    %241 = arith.truncf %240 : vector<2x84xf32> to vector<2x84xbf16>
    %c0_228 = arith.constant 0 : index
    %c0_229 = arith.constant 0 : index
    %242 = vector.load %arg9[%c0_228, %c0_229] : memref<84x31xbf16, #tpu.memory_space<vmem>>, vector<84x31xbf16>
    %cst_230 = arith.constant dense<0.000000e+00> : vector<2x31xf32>
    %243 = tpu.matmul %241, %242, %cst_230 {dimension_numbers = #tpu.dot_dimension_numbers<[1], [0], [0], [1], [0, 0, 1, 1], [], []>} : vector<2x84xbf16>, vector<84x31xbf16>, vector<2x31xf32> -> vector<2x31xf32>
    %c0_231 = arith.constant 0 : index
    %c0_232 = arith.constant 0 : index
    %244 = vector.load %arg10[%c0_231, %c0_232] : memref<1x31xf32, #tpu.memory_space<vmem>>, vector<1x31xf32>
    %245 = vector.broadcast %244 : vector<1x31xf32> to vector<2x31xf32>
    %246 = arith.addf %243, %245 : vector<2x31xf32>
    %c0_233 = arith.constant 0 : index
    %c0_234 = arith.constant 0 : index
    %247 = vector.load %arg11[%c0_233, %c0_234] : memref<2x31xf32, #tpu.memory_space<vmem>>, vector<2x31xf32>
    tpu.vector_store %arg11[%c0_233, %c0_234], %246 {strides = array<i32>} : memref<2x31xf32, #tpu.memory_space<vmem>>, vector<2x31xf32>,
    return
  }
}

</mosaic_0001>

<llo_original>
// kernel: net_forward.1
$region0: #{net_forward.1}
  #allocation0 [shape = 'u32[]', space=smem, size = 0x4, offset = 0x4, fixed_abs, tag = 'smem constant byte address 0x4 - core index']
  #allocation1 [shape = 'u32[144,128]{1,0:T(1,128)}', space=vmem, size = 0x12000, scoped, tag = 'internal scratch']
  #allocation2 [shape = 'f32[25,2048]{1,0:T(8,128)}', space=vmem, size = 0x40000, scoped, tag = 'scratch operand']
  #allocation3 [shape = 'f32[2,14,32,8]{3,2,1,0:T(8,128)}', space=vmem, size = 0x70000, scoped, tag = 'scratch operand']
  #allocation4 [shape = 'f32[2,10,16,200]{3,2,1,0:T(8,128)}', space=vmem, size = 0x50000, scoped, tag = 'scratch operand']
  #allocation5 [shape = 'f32[2,5,10,112]{3,2,1,0:T(8,128)}', space=vmem, size = 0x14000, scoped, tag = 'scratch operand']
  #allocation6 [shape = 'f32[2,3200]{1,0:T(2,128)}', space=vmem, size = 0x6400, scoped, tag = 'scratch operand']
  %s0 = inlined_call_operand.vmem [shape: f32[1,2304], index: 0, kind: input, shape index: {}]
  %s1 = inlined_call_operand.vmem [shape: bf16[8,25], index: 1, kind: input, shape index: {}]
  %s2 = inlined_call_operand.vmem [shape: f32[8,1], index: 2, kind: input, shape index: {}]
  %s3 = inlined_call_operand.vmem [shape: bf16[200,112], index: 3, kind: input, shape index: {}]
  %s4 = inlined_call_operand.vmem [shape: f32[1,112], index: 4, kind: input, shape index: {}]
  %s5 = inlined_call_operand.vmem [shape: bf16[3200,120], index: 5, kind: input, shape index: {}]
  %s6 = inlined_call_operand.vmem [shape: f32[1,120], index: 6, kind: input, shape index: {}]
  %s7 = inlined_call_operand.vmem [shape: bf16[120,84], index: 7, kind: input, shape index: {}]
  %s8 = inlined_call_operand.vmem [shape: f32[1,84], index: 8, kind: input, shape index: {}]
  %s9 = inlined_call_operand.vmem [shape: bf16[84,31], index: 9, kind: input, shape index: {}]
  %s10 = inlined_call_operand.vmem [shape: f32[1,31], index: 10, kind: input, shape index: {}]
  %s11 = inlined_call_operand.hbm [shape: f32[2,31], index: 11, kind: output, shape index: {}]
  %s12 = sld [smem:[#allocation0]]
  $region54: #{net_forward.1} parent=0
    _
  %s14 = ssub.s32 1, %s12
  %s15 = scalar_select 0, %s14, %s12
  $region1: #{net_forward.1} parent=0
    #allocation7 [shape = 'u8[1024]{0}', space=vmem, size = 0x400, scoped, tag = 'output window, operand 0, single buffered']
    #allocation8 [shape = 's32[1]{0}', space=sflag, size = 0x4, scoped, tag = 'scoped memory for net_forward.1']
    %16 = vsyncpa [#allocation8], 0
    // Predicated region
    $region2: #{net_forward.1} parent=1 // pred_check
      _
    $region3: #{net_forward.1} parent=1 // pred_check_branch
      %18 = sbr.rel (0) target = $region5
    $region4: #{net_forward.1} parent=1 // pred_region
      _
    $region5: #{net_forward.1} parent=1 // pred_fallthru
      _
    // Predicated region
    $region6: #{net_forward.1} parent=1 // pred_check
      _
    $region7: #{net_forward.1} parent=1 // pred_check_branch
      %20 = sbr.rel (0) target = $region9
    $region8: #{net_forward.1} parent=1 // pred_region
      _
    $region9: #{net_forward.1} parent=1 // pred_fallthru
      _
    // Predicated region
    $region10: #{net_forward.1} parent=1 // pred_check
      _
    $region11: #{net_forward.1} parent=1 // pred_check_branch
      %22 = sbr.rel (0) target = $region13
    $region12: #{net_forward.1} parent=1 // pred_region
      _
    $region13: #{net_forward.1} parent=1 // pred_fallthru
      _
    // Predicated region
    $region14: #{net_forward.1} parent=1 // pred_check
      _
    $region15: #{net_forward.1} parent=1 // pred_check_branch
      %24 = sbr.rel (0) target = $region17
    $region16: #{net_forward.1} parent=1 // pred_region
      _
    $region17: #{net_forward.1} parent=1 // pred_fallthru
      _
    // Predicated region
    $region18: #{net_forward.1} parent=1 // pred_check
      _
    $region19: #{net_forward.1} parent=1 // pred_check_branch
      %26 = sbr.rel (0) target = $region21
    $region20: #{net_forward.1} parent=1 // pred_region
      _
    $region21: #{net_forward.1} parent=1 // pred_fallthru
      _
    // Predicated region
    $region22: #{net_forward.1} parent=1 // pred_check
      _
    $region23: #{net_forward.1} parent=1 // pred_check_branch
      %28 = sbr.rel (0) target = $region25
    $region24: #{net_forward.1} parent=1 // pred_region
      _
    $region25: #{net_forward.1} parent=1 // pred_fallthru
      _
    // Predicated region
    $region26: #{net_forward.1} parent=1 // pred_check
      _
    $region27: #{net_forward.1} parent=1 // pred_check_branch
      %30 = sbr.rel (0) target = $region29
    $region28: #{net_forward.1} parent=1 // pred_region
      _
    $region29: #{net_forward.1} parent=1 // pred_fallthru
      _
    // Predicated region
    $region30: #{net_forward.1} parent=1 // pred_check
      _
    $region31: #{net_forward.1} parent=1 // pred_check_branch
      %32 = sbr.rel (0) target = $region33
    $region32: #{net_forward.1} parent=1 // pred_region
      _
    $region33: #{net_forward.1} parent=1 // pred_fallthru
      _
    // Predicated region
    $region34: #{net_forward.1} parent=1 // pred_check
      _
    $region35: #{net_forward.1} parent=1 // pred_check_branch
      %34 = sbr.rel (0) target = $region37
    $region36: #{net_forward.1} parent=1 // pred_region
      _
    $region37: #{net_forward.1} parent=1 // pred_fallthru
      _
    // Predicated region
    $region38: #{net_forward.1} parent=1 // pred_check
      _
    $region39: #{net_forward.1} parent=1 // pred_check_branch
      %36 = sbr.rel (0) target = $region41
    $region40: #{net_forward.1} parent=1 // pred_region
      _
    $region41: #{net_forward.1} parent=1 // pred_fallthru
      _
    // Predicated region
    $region42: #{net_forward.1} parent=1 // pred_check
      _
    $region43: #{net_forward.1} parent=1 // pred_check_branch
      %38 = sbr.rel (0) target = $region45
    $region44: #{net_forward.1} parent=1 // pred_region
      _
    $region45: #{net_forward.1} parent=1 // pred_fallthru
      _
    %v40 = vld [vmem:[%s0] sm:$0xff]
    %v41 = vld [vmem:[%s0 + $0x8] sm:$0xff]
    %42 = vst [vmem:[#allocation2] ss:$8 sm:$0xf] %v40
    %43 = vst [vmem:[#allocation2] ss:$8 sm:$0xf0] %v40
    %s44 = scalar_lea.vmem [#allocation2], 64
    %45 = vst [vmem:[%s44] ss:$8 sm:$0xf] %v41
    %46 = vst [vmem:[%s44] ss:$8 sm:$0xf0] %v41
    %v47 = vld [vmem:[%s0] sm:$0xff]
    %v48 = vld [vmem:[%s0 + $0x8] sm:$0xff]
    %v49 = vld [vmem:[%s0 + $0x10] sm:$0x1]
    %53 = vrot.lane.b32.xlu0 %v47, 127
    %v54 = vpop.permute.xlu0 %53
    %55 = vrot.lane.b32.xlu0 %v48, 127
    %v56 = vpop.permute.xlu0 %55
    %57 = vrot.lane.b32.xlu0 %v49, 127
    %v58 = vpop.permute.xlu0 %57
    %v59 = vrot.slane %v54, 1
    %v60 = vrot.slane %v56, 1
    %v61 = vrot.slane %v58, 1
    %vm62 = vcmask 1046528
    %v63 = vsel %vm62, %v59, %v60
    %vm64 = vcmask 1039360
    %v65 = vsel %vm64, %v54, %v63
    %v66 = vsel %vm62, %v60, %v61
    %v67 = vsel %vm64, %v56, %v66
    %s70 = scalar_lea.vmem [#allocation2], 1
    %71 = vst [vmem:[%s70] ss:$8 sm:$0xf] %v65
    %72 = vst [vmem:[%s70] ss:$8 sm:$0xf0] %v65
    %s73 = scalar_lea.vmem [#allocation2], 65
    %74 = vst [vmem:[%s73] ss:$8 sm:$0xf] %v67
    %75 = vst [vmem:[%s73] ss:$8 sm:$0xf0] %v67
    %v76 = vld [vmem:[%s0] sm:$0xff]
    %v77 = vld [vmem:[%s0 + $0x8] sm:$0xff]
    %v78 = vld [vmem:[%s0 + $0x10] sm:$0x1]
    %82 = vrot.lane.b32.xlu0 %v76, 126
    %v83 = vpop.permute.xlu0 %82
    %84 = vrot.lane.b32.xlu0 %v77, 126
    %v85 = vpop.permute.xlu0 %84
    %86 = vrot.lane.b32.xlu0 %v78, 126
    %v87 = vpop.permute.xlu0 %86
    %v88 = vrot.slane %v83, 1
    %v89 = vrot.slane %v85, 1
    %v90 = vrot.slane %v87, 1
    %v91 = vsel %vm62, %v88, %v89
    %vm92 = vcmask 1031168
    %v93 = vsel %vm92, %v83, %v91
    %v94 = vsel %vm62, %v89, %v90
    %v95 = vsel %vm92, %v85, %v94
    %s98 = scalar_lea.vmem [#allocation2], 2
    %99 = vst [vmem:[%s98] ss:$8 sm:$0xf] %v93
    %100 = vst [vmem:[%s98] ss:$8 sm:$0xf0] %v93
    %s101 = scalar_lea.vmem [#allocation2], 66
    %102 = vst [vmem:[%s101] ss:$8 sm:$0xf] %v95
    %103 = vst [vmem:[%s101] ss:$8 sm:$0xf0] %v95
    %v104 = vld [vmem:[%s0] sm:$0xff]
    %v105 = vld [vmem:[%s0 + $0x8] sm:$0xff]
    %v106 = vld [vmem:[%s0 + $0x10] sm:$0x1]
    %110 = vrot.lane.b32.xlu0 %v104, 125
    %v111 = vpop.permute.xlu0 %110
    %112 = vrot.lane.b32.xlu0 %v105, 125
    %v113 = vpop.permute.xlu0 %112
    %114 = vrot.lane.b32.xlu0 %v106, 125
    %v115 = vpop.permute.xlu0 %114
    %v116 = vrot.slane %v111, 1
    %v117 = vrot.slane %v113, 1
    %v118 = vrot.slane %v115, 1
    %v119 = vsel %vm62, %v116, %v117
    %vm120 = vcmask 1022976
    %v121 = vsel %vm120, %v111, %v119
    %v122 = vsel %vm62, %v117, %v118
    %v123 = vsel %vm120, %v113, %v122
    %s126 = scalar_lea.vmem [#allocation2], 3
    %127 = vst [vmem:[%s126] ss:$8 sm:$0xf] %v121
    %128 = vst [vmem:[%s126] ss:$8 sm:$0xf0] %v121
    %s129 = scalar_lea.vmem [#allocation2], 67
    %130 = vst [vmem:[%s129] ss:$8 sm:$0xf] %v123
    %131 = vst [vmem:[%s129] ss:$8 sm:$0xf0] %v123
    %v132 = vld [vmem:[%s0] sm:$0xff]
    %v133 = vld [vmem:[%s0 + $0x8] sm:$0xff]
    %v134 = vld [vmem:[%s0 + $0x10] sm:$0x1]
    %138 = vrot.lane.b32.xlu0 %v132, 124
    %v139 = vpop.permute.xlu0 %138
    %140 = vrot.lane.b32.xlu0 %v133, 124
    %v141 = vpop.permute.xlu0 %140
    %142 = vrot.lane.b32.xlu0 %v134, 124
    %v143 = vpop.permute.xlu0 %142
    %v144 = vrot.slane %v139, 1
    %v145 = vrot.slane %v141, 1
    %v146 = vrot.slane %v143, 1
    %v147 = vsel %vm62, %v144, %v145
    %vm148 = vcmask 1014784
    %v149 = vsel %vm148, %v139, %v147
    %v150 = vsel %vm62, %v145, %v146
    %v151 = vsel %vm148, %v141, %v150
    %s154 = scalar_lea.vmem [#allocation2], 4
    %155 = vst [vmem:[%s154] ss:$8 sm:$0xf] %v149
    %156 = vst [vmem:[%s154] ss:$8 sm:$0xf0] %v149
    %s157 = scalar_lea.vmem [#allocation2], 68
    %158 = vst [vmem:[%s157] ss:$8 sm:$0xf] %v151
    %159 = vst [vmem:[%s157] ss:$8 sm:$0xf0] %v151
    %v160 = vld [vmem:[%s0] sm:$0xff]
    %v161 = vld [vmem:[%s0 + $0x8] sm:$0xff]
    %v162 = vld [vmem:[%s0 + $0x10] sm:$0x1]
    %166 = vrot.lane.b32.xlu0 %v160, 96
    %v167 = vpop.permute.xlu0 %166
    %168 = vrot.lane.b32.xlu0 %v161, 96
    %v169 = vpop.permute.xlu0 %168
    %170 = vrot.lane.b32.xlu0 %v162, 96
    %v171 = vpop.permute.xlu0 %170
    %v172 = vrot.slane %v167, 1
    %v173 = vrot.slane %v169, 1
    %v174 = vrot.slane %v171, 1
    %v175 = vsel %vm62, %v172, %v173
    %vm176 = vcmask 785408
    %v177 = vsel %vm176, %v167, %v175
    %v178 = vsel %vm62, %v173, %v174
    %v179 = vsel %vm176, %v169, %v178
    %s182 = scalar_lea.vmem [#allocation2], 5
    %183 = vst [vmem:[%s182] ss:$8 sm:$0xf] %v177
    %184 = vst [vmem:[%s182] ss:$8 sm:$0xf0] %v177
    %s185 = scalar_lea.vmem [#allocation2], 69
    %186 = vst [vmem:[%s185] ss:$8 sm:$0xf] %v179
    %187 = vst [vmem:[%s185] ss:$8 sm:$0xf0] %v179
    %v188 = vld [vmem:[%s0] sm:$0xff]
    %v189 = vld [vmem:[%s0 + $0x8] sm:$0xff]
    %v190 = vld [vmem:[%s0 + $0x10] sm:$0x1]
    %194 = vrot.lane.b32.xlu0 %v188, 95
    %v195 = vpop.permute.xlu0 %194
    %196 = vrot.lane.b32.xlu0 %v189, 95
    %v197 = vpop.permute.xlu0 %196
    %198 = vrot.lane.b32.xlu0 %v190, 95
    %v199 = vpop.permute.xlu0 %198
    %v200 = vrot.slane %v195, 1
    %v201 = vrot.slane %v197, 1
    %v202 = vrot.slane %v199, 1
    %v203 = vsel %vm62, %v200, %v201
    %vm204 = vcmask 777216
    %v205 = vsel %vm204, %v195, %v203
    %v206 = vsel %vm62, %v201, %v202
    %v207 = vsel %vm204, %v197, %v206
    %s210 = scalar_lea.vmem [#allocation2], 6
    %211 = vst [vmem:[%s210] ss:$8 sm:$0xf] %v205
    %212 = vst [vmem:[%s210] ss:$8 sm:$0xf0] %v205
    %s213 = scalar_lea.vmem [#allocation2], 70
    %214 = vst [vmem:[%s213] ss:$8 sm:$0xf] %v207
    %215 = vst [vmem:[%s213] ss:$8 sm:$0xf0] %v207
    %v216 = vld [vmem:[%s0] sm:$0xff]
    %v217 = vld [vmem:[%s0 + $0x8] sm:$0xff]
    %v218 = vld [vmem:[%s0 + $0x10] sm:$0x1]
    %222 = vrot.lane.b32.xlu0 %v216, 94
    %v223 = vpop.permute.xlu0 %222
    %224 = vrot.lane.b32.xlu0 %v217, 94
    %v225 = vpop.permute.xlu0 %224
    %226 = vrot.lane.b32.xlu0 %v218, 94
    %v227 = vpop.permute.xlu0 %226
    %v228 = vrot.slane %v223, 1
    %v229 = vrot.slane %v225, 1
    %v230 = vrot.slane %v227, 1
    %v231 = vsel %vm62, %v228, %v229
    %vm232 = vcmask 769024
    %v233 = vsel %vm232, %v223, %v231
    %v234 = vsel %vm62, %v229, %v230
    %v235 = vsel %vm232, %v225, %v234
    %s238 = scalar_lea.vmem [#allocation2], 7
    %239 = vst [vmem:[%s238] ss:$8 sm:$0xf] %v233
    %240 = vst [vmem:[%s238] ss:$8 sm:$0xf0] %v233
    %s241 = scalar_lea.vmem [#allocation2], 71
    %242 = vst [vmem:[%s241] ss:$8 sm:$0xf] %v235
    %243 = vst [vmem:[%s241] ss:$8 sm:$0xf0] %v235
    %v244 = vld [vmem:[%s0] sm:$0xff]
    %v245 = vld [vmem:[%s0 + $0x8] sm:$0xff]
    %v246 = vld [vmem:[%s0 + $0x10] sm:$0x1]
    %250 = vrot.lane.b32.xlu0 %v244, 93
    %v251 = vpop.permute.xlu0 %250
    %252 = vrot.lane.b32.xlu0 %v245, 93
    %v253 = vpop.permute.xlu0 %252
    %254 = vrot.lane.b32.xlu0 %v246, 93
    %v255 = vpop.permute.xlu0 %254
    %v256 = vrot.slane %v251, 1
    %v257 = vrot.slane %v253, 1
    %v258 = vrot.slane %v255, 1
    %v259 = vsel %vm62, %v256, %v257
    %vm260 = vcmask 760832
    %v261 = vsel %vm260, %v251, %v259
    %v262 = vsel %vm62, %v257, %v258
    %v263 = vsel %vm260, %v253, %v262
    %s266 = scalar_lea.vmem [#allocation2], 128
    %267 = vst [vmem:[%s266] ss:$8 sm:$0xf] %v261
    %268 = vst [vmem:[%s266] ss:$8 sm:$0xf0] %v261
    %s269 = scalar_lea.vmem [#allocation2], 192
    %270 = vst [vmem:[%s269] ss:$8 sm:$0xf] %v263
    %271 = vst [vmem:[%s269] ss:$8 sm:$0xf0] %v263
    %v272 = vld [vmem:[%s0] sm:$0xff]
    %v273 = vld [vmem:[%s0 + $0x8] sm:$0xff]
    %v274 = vld [vmem:[%s0 + $0x10] sm:$0x1]
    %278 = vrot.lane.b32.xlu0 %v272, 92
    %v279 = vpop.permute.xlu0 %278
    %280 = vrot.lane.b32.xlu0 %v273, 92
    %v281 = vpop.permute.xlu0 %280
    %282 = vrot.lane.b32.xlu0 %v274, 92
    %v283 = vpop.permute.xlu0 %282
    %v284 = vrot.slane %v279, 1
    %v285 = vrot.slane %v281, 1
    %v286 = vrot.slane %v283, 1
    %v287 = vsel %vm62, %v284, %v285
    %vm288 = vcmask 752640
    %v289 = vsel %vm288, %v279, %v287
    %v290 = vsel %vm62, %v285, %v286
    %v291 = vsel %vm288, %v281, %v290
    %s294 = scalar_lea.vmem [#allocation2], 129
    %295 = vst [vmem:[%s294] ss:$8 sm:$0xf] %v289
    %296 = vst [vmem:[%s294] ss:$8 sm:$0xf0] %v289
    %s297 = scalar_lea.vmem [#allocation2], 193
    %298 = vst [vmem:[%s297] ss:$8 sm:$0xf] %v291
    %299 = vst [vmem:[%s297] ss:$8 sm:$0xf0] %v291
    %v300 = vld [vmem:[%s0] sm:$0xff]
    %v301 = vld [vmem:[%s0 + $0x8] sm:$0xff]
    %v302 = vld [vmem:[%s0 + $0x10] sm:$0x1]
    %306 = vrot.lane.b32.xlu0 %v300, 64
    %v307 = vpop.permute.xlu0 %306
    %308 = vrot.lane.b32.xlu0 %v301, 64
    %v309 = vpop.permute.xlu0 %308
    %310 = vrot.lane.b32.xlu0 %v302, 64
    %v311 = vpop.permute.xlu0 %310
    %v312 = vrot.slane %v307, 1
    %v313 = vrot.slane %v309, 1
    %v314 = vrot.slane %v311, 1
    %v315 = vsel %vm62, %v312, %v313
    %vm316 = vcmask 523264
    %v317 = vsel %vm316, %v307, %v315
    %v318 = vsel %vm62, %v313, %v314
    %v319 = vsel %vm316, %v309, %v318
    %s322 = scalar_lea.vmem [#allocation2], 130
    %323 = vst [vmem:[%s322] ss:$8 sm:$0xf] %v317
    %324 = vst [vmem:[%s322] ss:$8 sm:$0xf0] %v317
    %s325 = scalar_lea.vmem [#allocation2], 194
    %326 = vst [vmem:[%s325] ss:$8 sm:$0xf] %v319
    %327 = vst [vmem:[%s325] ss:$8 sm:$0xf0] %v319
    %v328 = vld [vmem:[%s0] sm:$0xff]
    %v329 = vld [vmem:[%s0 + $0x8] sm:$0xff]
    %v330 = vld [vmem:[%s0 + $0x10] sm:$0x1]
    %334 = vrot.lane.b32.xlu0 %v328, 63
    %v335 = vpop.permute.xlu0 %334
    %336 = vrot.lane.b32.xlu0 %v329, 63
    %v337 = vpop.permute.xlu0 %336
    %338 = vrot.lane.b32.xlu0 %v330, 63
    %v339 = vpop.permute.xlu0 %338
    %v340 = vrot.slane %v335, 1
    %v341 = vrot.slane %v337, 1
    %v342 = vrot.slane %v339, 1
    %v343 = vsel %vm62, %v340, %v341
    %vm344 = vcmask 515072
    %v345 = vsel %vm344, %v335, %v343
    %v346 = vsel %vm62, %v341, %v342
    %v347 = vsel %vm344, %v337, %v346
    %s350 = scalar_lea.vmem [#allocation2], 131
    %351 = vst [vmem:[%s350] ss:$8 sm:$0xf] %v345
    %352 = vst [vmem:[%s350] ss:$8 sm:$0xf0] %v345
    %s353 = scalar_lea.vmem [#allocation2], 195
    %354 = vst [vmem:[%s353] ss:$8 sm:$0xf] %v347
    %355 = vst [vmem:[%s353] ss:$8 sm:$0xf0] %v347
    %v356 = vld [vmem:[%s0] sm:$0xff]
    %v357 = vld [vmem:[%s0 + $0x8] sm:$0xff]
    %v358 = vld [vmem:[%s0 + $0x10] sm:$0x1]
    %362 = vrot.lane.b32.xlu0 %v356, 62
    %v363 = vpop.permute.xlu0 %362
    %364 = vrot.lane.b32.xlu0 %v357, 62
    %v365 = vpop.permute.xlu0 %364
    %366 = vrot.lane.b32.xlu0 %v358, 62
    %v367 = vpop.permute.xlu0 %366
    %v368 = vrot.slane %v363, 1
    %v369 = vrot.slane %v365, 1
    %v370 = vrot.slane %v367, 1
    %v371 = vsel %vm62, %v368, %v369
    %vm372 = vcmask 506880
    %v373 = vsel %vm372, %v363, %v371
    %v374 = vsel %vm62, %v369, %v370
    %v375 = vsel %vm372, %v365, %v374
    %s378 = scalar_lea.vmem [#allocation2], 132
    %379 = vst [vmem:[%s378] ss:$8 sm:$0xf] %v373
    %380 = vst [vmem:[%s378] ss:$8 sm:$0xf0] %v373
    %s381 = scalar_lea.vmem [#allocation2], 196
    %382 = vst [vmem:[%s381] ss:$8 sm:$0xf] %v375
    %383 = vst [vmem:[%s381] ss:$8 sm:$0xf0] %v375
    %v384 = vld [vmem:[%s0] sm:$0xff]
    %v385 = vld [vmem:[%s0 + $0x8] sm:$0xff]
    %v386 = vld [vmem:[%s0 + $0x10] sm:$0x1]
    %390 = vrot.lane.b32.xlu0 %v384, 61
    %v391 = vpop.permute.xlu0 %390
    %392 = vrot.lane.b32.xlu0 %v385, 61
    %v393 = vpop.permute.xlu0 %392
    %394 = vrot.lane.b32.xlu0 %v386, 61
    %v395 = vpop.permute.xlu0 %394
    %v396 = vrot.slane %v391, 1
    %v397 = vrot.slane %v393, 1
    %v398 = vrot.slane %v395, 1
    %v399 = vsel %vm62, %v396, %v397
    %vm400 = vcmask 498688
    %v401 = vsel %vm400, %v391, %v399
    %v402 = vsel %vm62, %v397, %v398
    %v403 = vsel %vm400, %v393, %v402
    %s406 = scalar_lea.vmem [#allocation2], 133
    %407 = vst [vmem:[%s406] ss:$8 sm:$0xf] %v401
    %408 = vst [vmem:[%s406] ss:$8 sm:$0xf0] %v401
    %s409 = scalar_lea.vmem [#allocation2], 197
    %410 = vst [vmem:[%s409] ss:$8 sm:$0xf] %v403
    %411 = vst [vmem:[%s409] ss:$8 sm:$0xf0] %v403
    %v412 = vld [vmem:[%s0] sm:$0xff]
    %v413 = vld [vmem:[%s0 + $0x8] sm:$0xff]
    %v414 = vld [vmem:[%s0 + $0x10] sm:$0x1]
    %418 = vrot.lane.b32.xlu0 %v412, 60
    %v419 = vpop.permute.xlu0 %418
    %420 = vrot.lane.b32.xlu0 %v413, 60
    %v421 = vpop.permute.xlu0 %420
    %422 = vrot.lane.b32.xlu0 %v414, 60
    %v423 = vpop.permute.xlu0 %422
    %v424 = vrot.slane %v419, 1
    %v425 = vrot.slane %v421, 1
    %v426 = vrot.slane %v423, 1
    %v427 = vsel %vm62, %v424, %v425
    %vm428 = vcmask 490496
    %v429 = vsel %vm428, %v419, %v427
    %v430 = vsel %vm62, %v425, %v426
    %v431 = vsel %vm428, %v421, %v430
    %s434 = scalar_lea.vmem [#allocation2], 134
    %435 = vst [vmem:[%s434] ss:$8 sm:$0xf] %v429
    %436 = vst [vmem:[%s434] ss:$8 sm:$0xf0] %v429
    %s437 = scalar_lea.vmem [#allocation2], 198
    %438 = vst [vmem:[%s437] ss:$8 sm:$0xf] %v431
    %439 = vst [vmem:[%s437] ss:$8 sm:$0xf0] %v431
    %v440 = vld [vmem:[%s0] sm:$0xff]
    %v441 = vld [vmem:[%s0 + $0x8] sm:$0xff]
    %v442 = vld [vmem:[%s0 + $0x10] sm:$0x1]
    %446 = vrot.lane.b32.xlu0 %v440, 32
    %v447 = vpop.permute.xlu0 %446
    %448 = vrot.lane.b32.xlu0 %v441, 32
    %v449 = vpop.permute.xlu0 %448
    %450 = vrot.lane.b32.xlu0 %v442, 32
    %v451 = vpop.permute.xlu0 %450
    %v452 = vrot.slane %v447, 1
    %v453 = vrot.slane %v449, 1
    %v454 = vrot.slane %v451, 1
    %v455 = vsel %vm62, %v452, %v453
    %vm456 = vcmask 261120
    %v457 = vsel %vm456, %v447, %v455
    %v458 = vsel %vm62, %v453, %v454
    %v459 = vsel %vm456, %v449, %v458
    %s462 = scalar_lea.vmem [#allocation2], 135
    %463 = vst [vmem:[%s462] ss:$8 sm:$0xf] %v457
    %464 = vst [vmem:[%s462] ss:$8 sm:$0xf0] %v457
    %s465 = scalar_lea.vmem [#allocation2], 199
    %466 = vst [vmem:[%s465] ss:$8 sm:$0xf] %v459
    %467 = vst [vmem:[%s465] ss:$8 sm:$0xf0] %v459
    %v468 = vld [vmem:[%s0] sm:$0xff]
    %v469 = vld [vmem:[%s0 + $0x8] sm:$0xff]
    %v470 = vld [vmem:[%s0 + $0x10] sm:$0x1]
    %474 = vrot.lane.b32.xlu0 %v468, 31
    %v475 = vpop.permute.xlu0 %474
    %476 = vrot.lane.b32.xlu0 %v469, 31
    %v477 = vpop.permute.xlu0 %476
    %478 = vrot.lane.b32.xlu0 %v470, 31
    %v479 = vpop.permute.xlu0 %478
    %v480 = vrot.slane %v475, 1
    %v481 = vrot.slane %v477, 1
    %v482 = vrot.slane %v479, 1
    %v483 = vsel %vm62, %v480, %v481
    %vm484 = vcmask 252928
    %v485 = vsel %vm484, %v475, %v483
    %v486 = vsel %vm62, %v481, %v482
    %v487 = vsel %vm484, %v477, %v486
    %s490 = scalar_lea.vmem [#allocation2], 256
    %491 = vst [vmem:[%s490] ss:$8 sm:$0xf] %v485
    %492 = vst [vmem:[%s490] ss:$8 sm:$0xf0] %v485
    %s493 = scalar_lea.vmem [#allocation2], 320
    %494 = vst [vmem:[%s493] ss:$8 sm:$0xf] %v487
    %495 = vst [vmem:[%s493] ss:$8 sm:$0xf0] %v487
    %v496 = vld [vmem:[%s0] sm:$0xff]
    %v497 = vld [vmem:[%s0 + $0x8] sm:$0xff]
    %v498 = vld [vmem:[%s0 + $0x10] sm:$0x1]
    %502 = vrot.lane.b32.xlu0 %v496, 30
    %v503 = vpop.permute.xlu0 %502
    %504 = vrot.lane.b32.xlu0 %v497, 30
    %v505 = vpop.permute.xlu0 %504
    %506 = vrot.lane.b32.xlu0 %v498, 30
    %v507 = vpop.permute.xlu0 %506
    %v508 = vrot.slane %v503, 1
    %v509 = vrot.slane %v505, 1
    %v510 = vrot.slane %v507, 1
    %v511 = vsel %vm62, %v508, %v509
    %vm512 = vcmask 244736
    %v513 = vsel %vm512, %v503, %v511
    %v514 = vsel %vm62, %v509, %v510
    %v515 = vsel %vm512, %v505, %v514
    %s518 = scalar_lea.vmem [#allocation2], 257
    %519 = vst [vmem:[%s518] ss:$8 sm:$0xf] %v513
    %520 = vst [vmem:[%s518] ss:$8 sm:$0xf0] %v513
    %s521 = scalar_lea.vmem [#allocation2], 321
    %522 = vst [vmem:[%s521] ss:$8 sm:$0xf] %v515
    %523 = vst [vmem:[%s521] ss:$8 sm:$0xf0] %v515
    %v524 = vld [vmem:[%s0] sm:$0xff]
    %v525 = vld [vmem:[%s0 + $0x8] sm:$0xff]
    %v526 = vld [vmem:[%s0 + $0x10] sm:$0x1]
    %530 = vrot.lane.b32.xlu0 %v524, 29
    %v531 = vpop.permute.xlu0 %530
    %532 = vrot.lane.b32.xlu0 %v525, 29
    %v533 = vpop.permute.xlu0 %532
    %534 = vrot.lane.b32.xlu0 %v526, 29
    %v535 = vpop.permute.xlu0 %534
    %v536 = vrot.slane %v531, 1
    %v537 = vrot.slane %v533, 1
    %v538 = vrot.slane %v535, 1
    %v539 = vsel %vm62, %v536, %v537
    %vm540 = vcmask 236544
    %v541 = vsel %vm540, %v531, %v539
    %v542 = vsel %vm62, %v537, %v538
    %v543 = vsel %vm540, %v533, %v542
    %s546 = scalar_lea.vmem [#allocation2], 258
    %547 = vst [vmem:[%s546] ss:$8 sm:$0xf] %v541
    %548 = vst [vmem:[%s546] ss:$8 sm:$0xf0] %v541
    %s549 = scalar_lea.vmem [#allocation2], 322
    %550 = vst [vmem:[%s549] ss:$8 sm:$0xf] %v543
    %551 = vst [vmem:[%s549] ss:$8 sm:$0xf0] %v543
    %v552 = vld [vmem:[%s0] sm:$0xff]
    %v553 = vld [vmem:[%s0 + $0x8] sm:$0xff]
    %v554 = vld [vmem:[%s0 + $0x10] sm:$0x1]
    %558 = vrot.lane.b32.xlu0 %v552, 28
    %v559 = vpop.permute.xlu0 %558
    %560 = vrot.lane.b32.xlu0 %v553, 28
    %v561 = vpop.permute.xlu0 %560
    %562 = vrot.lane.b32.xlu0 %v554, 28
    %v563 = vpop.permute.xlu0 %562
    %v564 = vrot.slane %v559, 1
    %v565 = vrot.slane %v561, 1
    %v566 = vrot.slane %v563, 1
    %v567 = vsel %vm62, %v564, %v565
    %vm568 = vcmask 228352
    %v569 = vsel %vm568, %v559, %v567
    %v570 = vsel %vm62, %v565, %v566
    %v571 = vsel %vm568, %v561, %v570
    %s574 = scalar_lea.vmem [#allocation2], 259
    %575 = vst [vmem:[%s574] ss:$8 sm:$0xf] %v569
    %576 = vst [vmem:[%s574] ss:$8 sm:$0xf0] %v569
    %s577 = scalar_lea.vmem [#allocation2], 323
    %578 = vst [vmem:[%s577] ss:$8 sm:$0xf] %v571
    %579 = vst [vmem:[%s577] ss:$8 sm:$0xf0] %v571
    %v580 = vld [vmem:[%s0 + $0x1] sm:$0xff]
    %v581 = vld [vmem:[%s0 + $0x9] sm:$0xff]
    %s582 = scalar_lea.vmem [#allocation2], 260
    %583 = vst [vmem:[%s582] ss:$8 sm:$0xf] %v580
    %584 = vst [vmem:[%s582] ss:$8 sm:$0xf0] %v580
    %s585 = scalar_lea.vmem [#allocation2], 324
    %586 = vst [vmem:[%s585] ss:$8 sm:$0xf] %v581
    %587 = vst [vmem:[%s585] ss:$8 sm:$0xf0] %v581
    %v588 = vld [vmem:[%s0 + $0x1] sm:$0xff]
    %v589 = vld [vmem:[%s0 + $0x9] sm:$0xff]
    %v590 = vld [vmem:[%s0 + $0x11] sm:$0x1]
    %594 = vrot.lane.b32.xlu0 %v588, 127
    %v595 = vpop.permute.xlu0 %594
    %596 = vrot.lane.b32.xlu0 %v589, 127
    %v597 = vpop.permute.xlu0 %596
    %598 = vrot.lane.b32.xlu0 %v590, 127
    %v599 = vpop.permute.xlu0 %598
    %v600 = vrot.slane %v595, 1
    %v601 = vrot.slane %v597, 1
    %v602 = vrot.slane %v599, 1
    %v603 = vsel %vm62, %v600, %v601
    %v604 = vsel %vm64, %v595, %v603
    %v605 = vsel %vm62, %v601, %v602
    %v606 = vsel %vm64, %v597, %v605
    %s609 = scalar_lea.vmem [#allocation2], 261
    %610 = vst [vmem:[%s609] ss:$8 sm:$0xf] %v604
    %611 = vst [vmem:[%s609] ss:$8 sm:$0xf0] %v604
    %s612 = scalar_lea.vmem [#allocation2], 325
    %613 = vst [vmem:[%s612] ss:$8 sm:$0xf] %v606
    %614 = vst [vmem:[%s612] ss:$8 sm:$0xf0] %v606
    %v615 = vld [vmem:[%s0 + $0x1] sm:$0xff]
    %v616 = vld [vmem:[%s0 + $0x9] sm:$0xff]
    %v617 = vld [vmem:[%s0 + $0x11] sm:$0x1]
    %621 = vrot.lane.b32.xlu0 %v615, 126
    %v622 = vpop.permute.xlu0 %621
    %623 = vrot.lane.b32.xlu0 %v616, 126
    %v624 = vpop.permute.xlu0 %623
    %625 = vrot.lane.b32.xlu0 %v617, 126
    %v626 = vpop.permute.xlu0 %625
    %v627 = vrot.slane %v622, 1
    %v628 = vrot.slane %v624, 1
    %v629 = vrot.slane %v626, 1
    %v630 = vsel %vm62, %v627, %v628
    %v631 = vsel %vm92, %v622, %v630
    %v632 = vsel %vm62, %v628, %v629
    %v633 = vsel %vm92, %v624, %v632
    %s636 = scalar_lea.vmem [#allocation2], 262
    %637 = vst [vmem:[%s636] ss:$8 sm:$0xf] %v631
    %638 = vst [vmem:[%s636] ss:$8 sm:$0xf0] %v631
    %s639 = scalar_lea.vmem [#allocation2], 326
    %640 = vst [vmem:[%s639] ss:$8 sm:$0xf] %v633
    %641 = vst [vmem:[%s639] ss:$8 sm:$0xf0] %v633
    %v642 = vld [vmem:[%s0 + $0x1] sm:$0xff]
    %v643 = vld [vmem:[%s0 + $0x9] sm:$0xff]
    %v644 = vld [vmem:[%s0 + $0x11] sm:$0x1]
    %648 = vrot.lane.b32.xlu0 %v642, 125
    %v649 = vpop.permute.xlu0 %648
    %650 = vrot.lane.b32.xlu0 %v643, 125
    %v651 = vpop.permute.xlu0 %650
    %652 = vrot.lane.b32.xlu0 %v644, 125
    %v653 = vpop.permute.xlu0 %652
    %v654 = vrot.slane %v649, 1
    %v655 = vrot.slane %v651, 1
    %v656 = vrot.slane %v653, 1
    %v657 = vsel %vm62, %v654, %v655
    %v658 = vsel %vm120, %v649, %v657
    %v659 = vsel %vm62, %v655, %v656
    %v660 = vsel %vm120, %v651, %v659
    %s663 = scalar_lea.vmem [#allocation2], 263
    %664 = vst [vmem:[%s663] ss:$8 sm:$0xf] %v658
    %665 = vst [vmem:[%s663] ss:$8 sm:$0xf0] %v658
    %s666 = scalar_lea.vmem [#allocation2], 327
    %667 = vst [vmem:[%s666] ss:$8 sm:$0xf] %v660
    %668 = vst [vmem:[%s666] ss:$8 sm:$0xf0] %v660
    %v669 = vld [vmem:[%s0 + $0x1] sm:$0xff]
    %v670 = vld [vmem:[%s0 + $0x9] sm:$0xff]
    %v671 = vld [vmem:[%s0 + $0x11] sm:$0x1]
    %675 = vrot.lane.b32.xlu0 %v669, 124
    %v676 = vpop.permute.xlu0 %675
    %677 = vrot.lane.b32.xlu0 %v670, 124
    %v678 = vpop.permute.xlu0 %677
    %679 = vrot.lane.b32.xlu0 %v671, 124
    %v680 = vpop.permute.xlu0 %679
    %v681 = vrot.slane %v676, 1
    %v682 = vrot.slane %v678, 1
    %v683 = vrot.slane %v680, 1
    %v684 = vsel %vm62, %v681, %v682
    %v685 = vsel %vm148, %v676, %v684
    %v686 = vsel %vm62, %v682, %v683
    %v687 = vsel %vm148, %v678, %v686
    %s690 = scalar_lea.vmem [#allocation2], 384
    %691 = vst [vmem:[%s690] ss:$8 sm:$0xf] %v685
    %692 = vst [vmem:[%s690] ss:$8 sm:$0xf0] %v685
    %s693 = scalar_lea.vmem [#allocation2], 448
    %694 = vst [vmem:[%s693] ss:$8 sm:$0xf] %v687
    %695 = vst [vmem:[%s693] ss:$8 sm:$0xf0] %v687
    %v696 = vld [vmem:[%s1] sm:$0xf]
    %v697 = vld [vmem:[#allocation2] sm:$0xff]
    %v698 = vld [vmem:[#allocation2 + $0x8] sm:$0xff]
    %v699 = vld [vmem:[#allocation2 + $0x10] sm:$0xff]
    %v700 = vld [vmem:[#allocation2 + $0x18] sm:$0xff]
    %v701 = vld [vmem:[#allocation2 + $0x20] sm:$0xff]
    %v702 = vld [vmem:[#allocation2 + $0x28] sm:$0xff]
    %v703 = vld [vmem:[#allocation2 + $0x30] sm:$0xff]
    %v704 = vld [vmem:[#allocation2 + $0x38] sm:$0xff]
    %v705 = vld [vmem:[#allocation2 + $0x40] sm:$0xff]
    %v706 = vld [vmem:[#allocation2 + $0x48] sm:$0xff]
    %v707 = vld [vmem:[#allocation2 + $0x50] sm:$0xff]
    %v708 = vld [vmem:[#allocation2 + $0x58] sm:$0xff]
    %v709 = vld [vmem:[#allocation2 + $0x60] sm:$0xff]
    %v710 = vld [vmem:[#allocation2 + $0x68] sm:$0xff]
    %v711 = vld [vmem:[#allocation2 + $0x70] sm:$0xff]
    %v712 = vld [vmem:[#allocation2 + $0x78] sm:$0xff]
    %v713 = vld [vmem:[#allocation2 + $0x80] sm:$0xff]
    %v714 = vld [vmem:[#allocation2 + $0x88] sm:$0xff]
    %v715 = vld [vmem:[#allocation2 + $0x90] sm:$0xff]
    %v716 = vld [vmem:[#allocation2 + $0x98] sm:$0xff]
    %v717 = vld [vmem:[#allocation2 + $0xa0] sm:$0xff]
    %v718 = vld [vmem:[#allocation2 + $0xa8] sm:$0xff]
    %v719 = vld [vmem:[#allocation2 + $0xb0] sm:$0xff]
    %v720 = vld [vmem:[#allocation2 + $0xb8] sm:$0xff]
    %v721 = vld [vmem:[#allocation2 + $0xc0] sm:$0xff]
    %v722 = vld [vmem:[#allocation2 + $0xc8] sm:$0xff]
    %v723 = vld [vmem:[#allocation2 + $0xd0] sm:$0xff]
    %v724 = vld [vmem:[#allocation2 + $0xd8] sm:$0xff]
    %v725 = vld [vmem:[#allocation2 + $0xe0] sm:$0xff]
    %v726 = vld [vmem:[#allocation2 + $0xe8] sm:$0xff]
    %v727 = vld [vmem:[#allocation2 + $0xf0] sm:$0xff]
    %v728 = vld [vmem:[#allocation2 + $0xf8] sm:$0xff]
    %v729 = vld [vmem:[#allocation2 + $0x100] sm:$0xff]
    %v730 = vld [vmem:[#allocation2 + $0x108] sm:$0xff]
    %v731 = vld [vmem:[#allocation2 + $0x110] sm:$0xff]
    %v732 = vld [vmem:[#allocation2 + $0x118] sm:$0xff]
    %v733 = vld [vmem:[#allocation2 + $0x120] sm:$0xff]
    %v734 = vld [vmem:[#allocation2 + $0x128] sm:$0xff]
    %v735 = vld [vmem:[#allocation2 + $0x130] sm:$0xff]
    %v736 = vld [vmem:[#allocation2 + $0x138] sm:$0xff]
    %v737 = vld [vmem:[#allocation2 + $0x140] sm:$0xff]
    %v738 = vld [vmem:[#allocation2 + $0x148] sm:$0xff]
    %v739 = vld [vmem:[#allocation2 + $0x150] sm:$0xff]
    %v740 = vld [vmem:[#allocation2 + $0x158] sm:$0xff]
    %v741 = vld [vmem:[#allocation2 + $0x160] sm:$0xff]
    %v742 = vld [vmem:[#allocation2 + $0x168] sm:$0xff]
    %v743 = vld [vmem:[#allocation2 + $0x170] sm:$0xff]
    %v744 = vld [vmem:[#allocation2 + $0x178] sm:$0xff]
    %v745 = vld [vmem:[#allocation2 + $0x180] sm:$0x1]
    %v746 = vld [vmem:[#allocation2 + $0x188] sm:$0x1]
    %v747 = vld [vmem:[#allocation2 + $0x190] sm:$0x1]
    %v748 = vld [vmem:[#allocation2 + $0x198] sm:$0x1]
    %v749 = vld [vmem:[#allocation2 + $0x1a0] sm:$0x1]
    %v750 = vld [vmem:[#allocation2 + $0x1a8] sm:$0x1]
    %v751 = vld [vmem:[#allocation2 + $0x1b0] sm:$0x1]
    %v752 = vld [vmem:[#allocation2 + $0x1b8] sm:$0x1]
    %v753 = vld [vmem:[#allocation2 + $0x1c0] sm:$0x1]
    %v754 = vld [vmem:[#allocation2 + $0x1c8] sm:$0x1]
    %v755 = vld [vmem:[#allocation2 + $0x1d0] sm:$0x1]
    %v756 = vld [vmem:[#allocation2 + $0x1d8] sm:$0x1]
    %v757 = vld [vmem:[#allocation2 + $0x1e0] sm:$0x1]
    %v758 = vld [vmem:[#allocation2 + $0x1e8] sm:$0x1]
    %v759 = vld [vmem:[#allocation2 + $0x1f0] sm:$0x1]
    %v760 = vld [vmem:[#allocation2 + $0x1f8] sm:$0x1]
    %v761 = vpack.c.bf16 %v713, %v697
    %v762 = vpack.c.bf16 %v714, %v698
    %v763 = vpack.c.bf16 %v715, %v699
    %v764 = vpack.c.bf16 %v716, %v700
    %v765 = vpack.c.bf16 %v717, %v701
    %v766 = vpack.c.bf16 %v718, %v702
    %v767 = vpack.c.bf16 %v719, %v703
    %v768 = vpack.c.bf16 %v720, %v704
    %v769 = vpack.c.bf16 %v721, %v705
    %v770 = vpack.c.bf16 %v722, %v706
    %v771 = vpack.c.bf16 %v723, %v707
    %v772 = vpack.c.bf16 %v724, %v708
    %v773 = vpack.c.bf16 %v725, %v709
    %v774 = vpack.c.bf16 %v726, %v710
    %v775 = vpack.c.bf16 %v727, %v711
    %v776 = vpack.c.bf16 %v728, %v712
    %v777 = vpack.c.bf16 %v745, %v729
    %v778 = vpack.c.bf16 %v746, %v730
    %v779 = vpack.c.bf16 %v747, %v731
    %v780 = vpack.c.bf16 %v748, %v732
    %v781 = vpack.c.bf16 %v749, %v733
    %v782 = vpack.c.bf16 %v750, %v734
    %v783 = vpack.c.bf16 %v751, %v735
    %v784 = vpack.c.bf16 %v752, %v736
    %v785 = vpack.c.bf16 %v753, %v737
    %v786 = vpack.c.bf16 %v754, %v738
    %v787 = vpack.c.bf16 %v755, %v739
    %v788 = vpack.c.bf16 %v756, %v740
    %v789 = vpack.c.bf16 %v757, %v741
    %v790 = vpack.c.bf16 %v758, %v742
    %v791 = vpack.c.bf16 %v759, %v743
    %v792 = vpack.c.bf16 %v760, %v744
    %v793 = vld [vmem:[%s2] sm:$0xff]
    %795 = vset.pattern.permute.xlu0 0
    %796 = vperm.xlu0 %795, %v793
    %v797 = vpop.permute.xlu0 %796
    %vm799 = vcmask 203776
    %v801 = vsel %vm799, %v696, 0
    %vm803 = vcmask 1043456
    %vm804 = vcmask 1044480
    %v805 = vsel %vm803, 4294967295, 65535
    %v806 = vsel %vm804, %v805, 0
    %v808 = vand.u32 %v777, %v806
    %v811 = vand.u32 %v778, %v806
    %v814 = vand.u32 %v779, %v806
    %v817 = vand.u32 %v780, %v806
    %v820 = vand.u32 %v781, %v806
    %v823 = vand.u32 %v782, %v806
    %v826 = vand.u32 %v783, %v806
    %v829 = vand.u32 %v784, %v806
    %v832 = vand.u32 %v785, %v806
    %v835 = vand.u32 %v786, %v806
    %v838 = vand.u32 %v787, %v806
    %v841 = vand.u32 %v788, %v806
    %v844 = vand.u32 %v789, %v806
    %v847 = vand.u32 %v790, %v806
    %v850 = vand.u32 %v791, %v806
    %v853 = vand.u32 %v792, %v806
    %855 = vmatprep.subr.bf16.mxu0 0
    %856 = vmatpush1.bf16.msra.mxu0 0
    %857 = vmatprep.subr.bf16.mxu0 0
    %858 = vmatpush1.bf16.msra.mxu0 0
    %859 = vmatprep.subr.bf16.mxu0 0
    %860 = vmatpush1.bf16.msra.mxu0 0
    %861 = vmatprep.subr.bf16.mxu0 0
    %862 = vmatpush1.bf16.msra.mxu0 0
    %863 = vmatprep.subr.bf16.mxu0 0
    %864 = vmatpush1.bf16.msra.mxu0 0
    %865 = vmatprep.subr.bf16.mxu0 0
    %866 = vmatpush1.bf16.msra.mxu0 0
    %867 = vmatprep.subr.bf16.mxu0 %v811
    %868 = vmatpush1.bf16.msra.mxu0 %v808
    %869 = vmatprep.subr.bf16.mxu0 %v762
    %870 = vmatpush1.bf16.msra.mxu0 %v761
    %871 = vmatprep.subr.bf16.mxu0 0
    %872 = vmatpush2.bf16.msra.mxu0 0
    %873 = vmatprep.subr.bf16.mxu0 0
    %874 = vmatpush2.bf16.msra.mxu0 0
    %875 = vmatprep.subr.bf16.mxu0 0
    %876 = vmatpush2.bf16.msra.mxu0 0
    %877 = vmatprep.subr.bf16.mxu0 0
    %878 = vmatpush2.bf16.msra.mxu0 0
    %879 = vmatprep.subr.bf16.mxu0 0
    %880 = vmatpush2.bf16.msra.mxu0 0
    %881 = vmatprep.subr.bf16.mxu0 0
    %882 = vmatpush2.bf16.msra.mxu0 0
    %883 = vmatprep.subr.bf16.mxu0 0
    %884 = vmatpush2.bf16.msra.mxu0 0
    %885 = vmatprep.subr.bf16.mxu0 0
    %886 = vmatpush2.bf16.msra.mxu0 0
    %887 = vmatprep.mubr.bf16.mxu0 0
    %888 = vmatmul.mubr.bf16.gmra.mxu0 %v801
    %v889 = vpop.f32.mrf.mxu0
    %v890 = vadd.f32 %v797, %v889
    %v891 = vpop.f32.mrf.mxu0
    %v892 = vadd.f32 %v797, %v891
    %v893 = vpop.f32.mrf.mxu0
    %v894 = vpop.f32.mrf.mxu0
    %895 = vdwg.mxu0
    %896 = vmatprep.subr.bf16.mxu0 0
    %897 = vmatpush1.bf16.msra.mxu0 0
    %898 = vmatprep.subr.bf16.mxu0 0
    %899 = vmatpush1.bf16.msra.mxu0 0
    %900 = vmatprep.subr.bf16.mxu0 0
    %901 = vmatpush1.bf16.msra.mxu0 0
    %902 = vmatprep.subr.bf16.mxu0 0
    %903 = vmatpush1.bf16.msra.mxu0 0
    %904 = vmatprep.subr.bf16.mxu0 0
    %905 = vmatpush1.bf16.msra.mxu0 0
    %906 = vmatprep.subr.bf16.mxu0 0
    %907 = vmatpush1.bf16.msra.mxu0 0
    %908 = vmatprep.subr.bf16.mxu0 %v817
    %909 = vmatpush1.bf16.msra.mxu0 %v814
    %910 = vmatprep.subr.bf16.mxu0 %v764
    %911 = vmatpush1.bf16.msra.mxu0 %v763
    %912 = vmatprep.subr.bf16.mxu0 0
    %913 = vmatpush2.bf16.msra.mxu0 0
    %914 = vmatprep.subr.bf16.mxu0 0
    %915 = vmatpush2.bf16.msra.mxu0 0
    %916 = vmatprep.subr.bf16.mxu0 0
    %917 = vmatpush2.bf16.msra.mxu0 0
    %918 = vmatprep.subr.bf16.mxu0 0
    %919 = vmatpush2.bf16.msra.mxu0 0
    %920 = vmatprep.subr.bf16.mxu0 0
    %921 = vmatpush2.bf16.msra.mxu0 0
    %922 = vmatprep.subr.bf16.mxu0 0
    %923 = vmatpush2.bf16.msra.mxu0 0
    %924 = vmatprep.subr.bf16.mxu0 0
    %925 = vmatpush2.bf16.msra.mxu0 0
    %926 = vmatprep.subr.bf16.mxu0 0
    %927 = vmatpush2.bf16.msra.mxu0 0
    %928 = vmatprep.mubr.bf16.mxu0 0
    %929 = vmatmul.mubr.bf16.gmra.mxu0 %v801
    %v930 = vpop.f32.mrf.mxu0
    %v931 = vadd.f32 %v797, %v930
    %v932 = vpop.f32.mrf.mxu0
    %v933 = vadd.f32 %v797, %v932
    %v934 = vpop.f32.mrf.mxu0
    %v935 = vpop.f32.mrf.mxu0
    %936 = vdwg.mxu0
    %937 = vmatprep.subr.bf16.mxu0 0
    %938 = vmatpush1.bf16.msra.mxu0 0
    %939 = vmatprep.subr.bf16.mxu0 0
    %940 = vmatpush1.bf16.msra.mxu0 0
    %941 = vmatprep.subr.bf16.mxu0 0
    %942 = vmatpush1.bf16.msra.mxu0 0
    %943 = vmatprep.subr.bf16.mxu0 0
    %944 = vmatpush1.bf16.msra.mxu0 0
    %945 = vmatprep.subr.bf16.mxu0 0
    %946 = vmatpush1.bf16.msra.mxu0 0
    %947 = vmatprep.subr.bf16.mxu0 0
    %948 = vmatpush1.bf16.msra.mxu0 0
    %949 = vmatprep.subr.bf16.mxu0 %v823
    %950 = vmatpush1.bf16.msra.mxu0 %v820
    %951 = vmatprep.subr.bf16.mxu0 %v766
    %952 = vmatpush1.bf16.msra.mxu0 %v765
    %953 = vmatprep.subr.bf16.mxu0 0
    %954 = vmatpush2.bf16.msra.mxu0 0
    %955 = vmatprep.subr.bf16.mxu0 0
    %956 = vmatpush2.bf16.msra.mxu0 0
    %957 = vmatprep.subr.bf16.mxu0 0
    %958 = vmatpush2.bf16.msra.mxu0 0
    %959 = vmatprep.subr.bf16.mxu0 0
    %960 = vmatpush2.bf16.msra.mxu0 0
    %961 = vmatprep.subr.bf16.mxu0 0
    %962 = vmatpush2.bf16.msra.mxu0 0
    %963 = vmatprep.subr.bf16.mxu0 0
    %964 = vmatpush2.bf16.msra.mxu0 0
    %965 = vmatprep.subr.bf16.mxu0 0
    %966 = vmatpush2.bf16.msra.mxu0 0
    %967 = vmatprep.subr.bf16.mxu0 0
    %968 = vmatpush2.bf16.msra.mxu0 0
    %969 = vmatprep.mubr.bf16.mxu0 0
    %970 = vmatmul.mubr.bf16.gmra.mxu0 %v801
    %v971 = vpop.f32.mrf.mxu0
    %v972 = vadd.f32 %v797, %v971
    %v973 = vpop.f32.mrf.mxu0
    %v974 = vadd.f32 %v797, %v973
    %v975 = vpop.f32.mrf.mxu0
    %v976 = vpop.f32.mrf.mxu0
    %977 = vdwg.mxu0
    %978 = vmatprep.subr.bf16.mxu0 0
    %979 = vmatpush1.bf16.msra.mxu0 0
    %980 = vmatprep.subr.bf16.mxu0 0
    %981 = vmatpush1.bf16.msra.mxu0 0
    %982 = vmatprep.subr.bf16.mxu0 0
    %983 = vmatpush1.bf16.msra.mxu0 0
    %984 = vmatprep.subr.bf16.mxu0 0
    %985 = vmatpush1.bf16.msra.mxu0 0
    %986 = vmatprep.subr.bf16.mxu0 0
    %987 = vmatpush1.bf16.msra.mxu0 0
    %988 = vmatprep.subr.bf16.mxu0 0
    %989 = vmatpush1.bf16.msra.mxu0 0
    %990 = vmatprep.subr.bf16.mxu0 %v829
    %991 = vmatpush1.bf16.msra.mxu0 %v826
    %992 = vmatprep.subr.bf16.mxu0 %v768
    %993 = vmatpush1.bf16.msra.mxu0 %v767
    %994 = vmatprep.subr.bf16.mxu0 0
    %995 = vmatpush2.bf16.msra.mxu0 0
    %996 = vmatprep.subr.bf16.mxu0 0
    %997 = vmatpush2.bf16.msra.mxu0 0
    %998 = vmatprep.subr.bf16.mxu0 0
    %999 = vmatpush2.bf16.msra.mxu0 0
    %1000 = vmatprep.subr.bf16.mxu0 0
    %1001 = vmatpush2.bf16.msra.mxu0 0
    %1002 = vmatprep.subr.bf16.mxu0 0
    %1003 = vmatpush2.bf16.msra.mxu0 0
    %1004 = vmatprep.subr.bf16.mxu0 0
    %1005 = vmatpush2.bf16.msra.mxu0 0
    %1006 = vmatprep.subr.bf16.mxu0 0
    %1007 = vmatpush2.bf16.msra.mxu0 0
    %1008 = vmatprep.subr.bf16.mxu0 0
    %1009 = vmatpush2.bf16.msra.mxu0 0
    %1010 = vmatprep.mubr.bf16.mxu0 0
    %1011 = vmatmul.mubr.bf16.gmra.mxu0 %v801
    %v1012 = vpop.f32.mrf.mxu0
    %v1013 = vadd.f32 %v797, %v1012
    %v1014 = vpop.f32.mrf.mxu0
    %v1015 = vpop.f32.mrf.mxu0
    %v1016 = vpop.f32.mrf.mxu0
    %1017 = vdwg.mxu0
    %1018 = vmatprep.subr.bf16.mxu0 0
    %1019 = vmatpush1.bf16.msra.mxu0 0
    %1020 = vmatprep.subr.bf16.mxu0 0
    %1021 = vmatpush1.bf16.msra.mxu0 0
    %1022 = vmatprep.subr.bf16.mxu0 0
    %1023 = vmatpush1.bf16.msra.mxu0 0
    %1024 = vmatprep.subr.bf16.mxu0 0
    %1025 = vmatpush1.bf16.msra.mxu0 0
    %1026 = vmatprep.subr.bf16.mxu0 0
    %1027 = vmatpush1.bf16.msra.mxu0 0
    %1028 = vmatprep.subr.bf16.mxu0 0
    %1029 = vmatpush1.bf16.msra.mxu0 0
    %1030 = vmatprep.subr.bf16.mxu0 %v835
    %1031 = vmatpush1.bf16.msra.mxu0 %v832
    %1032 = vmatprep.subr.bf16.mxu0 %v770
    %1033 = vmatpush1.bf16.msra.mxu0 %v769
    %1034 = vmatprep.subr.bf16.mxu0 0
    %1035 = vmatpush2.bf16.msra.mxu0 0
    %1036 = vmatprep.subr.bf16.mxu0 0
    %1037 = vmatpush2.bf16.msra.mxu0 0
    %1038 = vmatprep.subr.bf16.mxu0 0
    %1039 = vmatpush2.bf16.msra.mxu0 0
    %1040 = vmatprep.subr.bf16.mxu0 0
    %1041 = vmatpush2.bf16.msra.mxu0 0
    %1042 = vmatprep.subr.bf16.mxu0 0
    %1043 = vmatpush2.bf16.msra.mxu0 0
    %1044 = vmatprep.subr.bf16.mxu0 0
    %1045 = vmatpush2.bf16.msra.mxu0 0
    %1046 = vmatprep.subr.bf16.mxu0 0
    %1047 = vmatpush2.bf16.msra.mxu0 0
    %1048 = vmatprep.subr.bf16.mxu0 0
    %1049 = vmatpush2.bf16.msra.mxu0 0
    %1050 = vmatprep.mubr.bf16.mxu0 0
    %1051 = vmatmul.mubr.bf16.gmra.mxu0 %v801
    %v1052 = vpop.f32.mrf.mxu0
    %v1053 = vadd.f32 %v797, %v1052
    %v1054 = vpop.f32.mrf.mxu0
    %v1055 = vadd.f32 %v797, %v1054
    %v1056 = vpop.f32.mrf.mxu0
    %v1057 = vpop.f32.mrf.mxu0
    %1058 = vdwg.mxu0
    %1059 = vmatprep.subr.bf16.mxu0 0
    %1060 = vmatpush1.bf16.msra.mxu0 0
    %1061 = vmatprep.subr.bf16.mxu0 0
    %1062 = vmatpush1.bf16.msra.mxu0 0
    %1063 = vmatprep.subr.bf16.mxu0 0
    %1064 = vmatpush1.bf16.msra.mxu0 0
    %1065 = vmatprep.subr.bf16.mxu0 0
    %1066 = vmatpush1.bf16.msra.mxu0 0
    %1067 = vmatprep.subr.bf16.mxu0 0
    %1068 = vmatpush1.bf16.msra.mxu0 0
    %1069 = vmatprep.subr.bf16.mxu0 0
    %1070 = vmatpush1.bf16.msra.mxu0 0
    %1071 = vmatprep.subr.bf16.mxu0 %v841
    %1072 = vmatpush1.bf16.msra.mxu0 %v838
    %1073 = vmatprep.subr.bf16.mxu0 %v772
    %1074 = vmatpush1.bf16.msra.mxu0 %v771
    %1075 = vmatprep.subr.bf16.mxu0 0
    %1076 = vmatpush2.bf16.msra.mxu0 0
    %1077 = vmatprep.subr.bf16.mxu0 0
    %1078 = vmatpush2.bf16.msra.mxu0 0
    %1079 = vmatprep.subr.bf16.mxu0 0
    %1080 = vmatpush2.bf16.msra.mxu0 0
    %1081 = vmatprep.subr.bf16.mxu0 0
    %1082 = vmatpush2.bf16.msra.mxu0 0
    %1083 = vmatprep.subr.bf16.mxu0 0
    %1084 = vmatpush2.bf16.msra.mxu0 0
    %1085 = vmatprep.subr.bf16.mxu0 0
    %1086 = vmatpush2.bf16.msra.mxu0 0
    %1087 = vmatprep.subr.bf16.mxu0 0
    %1088 = vmatpush2.bf16.msra.mxu0 0
    %1089 = vmatprep.subr.bf16.mxu0 0
    %1090 = vmatpush2.bf16.msra.mxu0 0
    %1091 = vmatprep.mubr.bf16.mxu0 0
    %1092 = vmatmul.mubr.bf16.gmra.mxu0 %v801
    %v1093 = vpop.f32.mrf.mxu0
    %v1094 = vadd.f32 %v797, %v1093
    %v1095 = vpop.f32.mrf.mxu0
    %v1096 = vadd.f32 %v797, %v1095
    %v1097 = vpop.f32.mrf.mxu0
    %v1098 = vpop.f32.mrf.mxu0
    %1099 = vdwg.mxu0
    %1100 = vmatprep.subr.bf16.mxu0 0
    %1101 = vmatpush1.bf16.msra.mxu0 0
    %1102 = vmatprep.subr.bf16.mxu0 0
    %1103 = vmatpush1.bf16.msra.mxu0 0
    %1104 = vmatprep.subr.bf16.mxu0 0
    %1105 = vmatpush1.bf16.msra.mxu0 0
    %1106 = vmatprep.subr.bf16.mxu0 0
    %1107 = vmatpush1.bf16.msra.mxu0 0
    %1108 = vmatprep.subr.bf16.mxu0 0
    %1109 = vmatpush1.bf16.msra.mxu0 0
    %1110 = vmatprep.subr.bf16.mxu0 0
    %1111 = vmatpush1.bf16.msra.mxu0 0
    %1112 = vmatprep.subr.bf16.mxu0 %v847
    %1113 = vmatpush1.bf16.msra.mxu0 %v844
    %1114 = vmatprep.subr.bf16.mxu0 %v774
    %1115 = vmatpush1.bf16.msra.mxu0 %v773
    %1116 = vmatprep.subr.bf16.mxu0 0
    %1117 = vmatpush2.bf16.msra.mxu0 0
    %1118 = vmatprep.subr.bf16.mxu0 0
    %1119 = vmatpush2.bf16.msra.mxu0 0
    %1120 = vmatprep.subr.bf16.mxu0 0
    %1121 = vmatpush2.bf16.msra.mxu0 0
    %1122 = vmatprep.subr.bf16.mxu0 0
    %1123 = vmatpush2.bf16.msra.mxu0 0
    %1124 = vmatprep.subr.bf16.mxu0 0
    %1125 = vmatpush2.bf16.msra.mxu0 0
    %1126 = vmatprep.subr.bf16.mxu0 0
    %1127 = vmatpush2.bf16.msra.mxu0 0
    %1128 = vmatprep.subr.bf16.mxu0 0
    %1129 = vmatpush2.bf16.msra.mxu0 0
    %1130 = vmatprep.subr.bf16.mxu0 0
    %1131 = vmatpush2.bf16.msra.mxu0 0
    %1132 = vmatprep.mubr.bf16.mxu0 0
    %1133 = vmatmul.mubr.bf16.gmra.mxu0 %v801
    %v1134 = vpop.f32.mrf.mxu0
    %v1135 = vadd.f32 %v797, %v1134
    %v1136 = vpop.f32.mrf.mxu0
    %v1137 = vadd.f32 %v797, %v1136
    %v1138 = vpop.f32.mrf.mxu0
    %v1139 = vpop.f32.mrf.mxu0
    %1140 = vdwg.mxu0
    %1141 = vmatprep.subr.bf16.mxu0 0
    %1142 = vmatpush1.bf16.msra.mxu0 0
    %1143 = vmatprep.subr.bf16.mxu0 0
    %1144 = vmatpush1.bf16.msra.mxu0 0
    %1145 = vmatprep.subr.bf16.mxu0 0
    %1146 = vmatpush1.bf16.msra.mxu0 0
    %1147 = vmatprep.subr.bf16.mxu0 0
    %1148 = vmatpush1.bf16.msra.mxu0 0
    %1149 = vmatprep.subr.bf16.mxu0 0
    %1150 = vmatpush1.bf16.msra.mxu0 0
    %1151 = vmatprep.subr.bf16.mxu0 0
    %1152 = vmatpush1.bf16.msra.mxu0 0
    %1153 = vmatprep.subr.bf16.mxu0 %v853
    %1154 = vmatpush1.bf16.msra.mxu0 %v850
    %1155 = vmatprep.subr.bf16.mxu0 %v776
    %1156 = vmatpush1.bf16.msra.mxu0 %v775
    %1157 = vmatprep.subr.bf16.mxu0 0
    %1158 = vmatpush2.bf16.msra.mxu0 0
    %1159 = vmatprep.subr.bf16.mxu0 0
    %1160 = vmatpush2.bf16.msra.mxu0 0
    %1161 = vmatprep.subr.bf16.mxu0 0
    %1162 = vmatpush2.bf16.msra.mxu0 0
    %1163 = vmatprep.subr.bf16.mxu0 0
    %1164 = vmatpush2.bf16.msra.mxu0 0
    %1165 = vmatprep.subr.bf16.mxu0 0
    %1166 = vmatpush2.bf16.msra.mxu0 0
    %1167 = vmatprep.subr.bf16.mxu0 0
    %1168 = vmatpush2.bf16.msra.mxu0 0
    %1169 = vmatprep.subr.bf16.mxu0 0
    %1170 = vmatpush2.bf16.msra.mxu0 0
    %1171 = vmatprep.subr.bf16.mxu0 0
    %1172 = vmatpush2.bf16.msra.mxu0 0
    %1173 = vmatprep.mubr.bf16.mxu0 0
    %1174 = vmatmul.mubr.bf16.gmra.mxu0 %v801
    %v1175 = vpop.f32.mrf.mxu0
    %v1176 = vadd.f32 %v797, %v1175
    %v1177 = vpop.f32.mrf.mxu0
    %v1178 = vpop.f32.mrf.mxu0
    %v1179 = vpop.f32.mrf.mxu0
    %1180 = vdwg.mxu0
    %v1181 = vmax.f32 %v890, 0.0
    %v1182 = vmax.f32 %v892, 0.0
    %v1183 = vmax.f32 %v931, 0.0
    %v1184 = vmax.f32 %v933, 0.0
    %v1185 = vmax.f32 %v972, 0.0
    %v1186 = vmax.f32 %v974, 0.0
    %v1187 = vmax.f32 %v1013, 0.0
    %v1188 = vmax.f32 %v1053, 0.0
    %v1189 = vmax.f32 %v1055, 0.0
    %v1190 = vmax.f32 %v1094, 0.0
    %v1191 = vmax.f32 %v1096, 0.0
    %v1192 = vmax.f32 %v1135, 0.0
    %v1193 = vmax.f32 %v1137, 0.0
    %v1194 = vmax.f32 %v1176, 0.0
    %1195 = vxpose.xlu0.b32.start [1/16] %v1181, 128
    %1196 = vxpose.xlu0.b32.cont [2/16] 0.0, 128
    %1197 = vxpose.xlu0.b32.cont [3/16] 0.0, 128
    %1198 = vxpose.xlu0.b32.cont [4/16] 0.0, 128
    %1199 = vxpose.xlu0.b32.cont [5/16] 0.0, 128
    %1200 = vxpose.xlu0.b32.cont [6/16] 0.0, 128
    %1201 = vxpose.xlu0.b32.cont [7/16] 0.0, 128
    %1202 = vxpose.xlu0.b32.cont [8/16] 0.0, 128
    %1203 = vxpose.xlu0.b32.cont [9/16] 0.0, 128
    %1204 = vxpose.xlu0.b32.cont [10/16] 0.0, 128
    %1205 = vxpose.xlu0.b32.cont [11/16] 0.0, 128
    %1206 = vxpose.xlu0.b32.cont [12/16] 0.0, 128
    %1207 = vxpose.xlu0.b32.cont [13/16] 0.0, 128
    %1208 = vxpose.xlu0.b32.cont [14/16] 0.0, 128
    %1209 = vxpose.xlu0.b32.cont [15/16] 0.0, 128
    %1210 = vxpose.xlu0.b32.end [16/16] 0.0, 128
    %v1211 = vpop.trf.xlu0
    %v1212 = vpop.trf.xlu0
    %v1213 = vpop.trf.xlu0
    %v1214 = vpop.trf.xlu0
    %v1215 = vpop.trf.xlu0
    %v1216 = vpop.trf.xlu0
    %v1217 = vpop.trf.xlu0
    %v1218 = vpop.trf.xlu0
    %v1219 = vpop.trf.xlu0
    %v1220 = vpop.trf.xlu0
    %v1221 = vpop.trf.xlu0
    %v1222 = vpop.trf.xlu0
    %v1223 = vpop.trf.xlu0
    %v1224 = vpop.trf.xlu0
    %v1225 = vpop.trf.xlu0
    %v1226 = vpop.trf.xlu0
    %1227 = vxpose.xlu0.b32.start [1/16] %v1182, 128
    %1228 = vxpose.xlu0.b32.cont [2/16] 0.0, 128
    %1229 = vxpose.xlu0.b32.cont [3/16] 0.0, 128
    %1230 = vxpose.xlu0.b32.cont [4/16] 0.0, 128
    %1231 = vxpose.xlu0.b32.cont [5/16] 0.0, 128
    %1232 = vxpose.xlu0.b32.cont [6/16] 0.0, 128
    %1233 = vxpose.xlu0.b32.cont [7/16] 0.0, 128
    %1234 = vxpose.xlu0.b32.cont [8/16] 0.0, 128
    %1235 = vxpose.xlu0.b32.cont [9/16] 0.0, 128
    %1236 = vxpose.xlu0.b32.cont [10/16] 0.0, 128
    %1237 = vxpose.xlu0.b32.cont [11/16] 0.0, 128
    %1238 = vxpose.xlu0.b32.cont [12/16] 0.0, 128
    %1239 = vxpose.xlu0.b32.cont [13/16] 0.0, 128
    %1240 = vxpose.xlu0.b32.cont [14/16] 0.0, 128
    %1241 = vxpose.xlu0.b32.cont [15/16] 0.0, 128
    %1242 = vxpose.xlu0.b32.end [16/16] 0.0, 128
    %v1243 = vpop.trf.xlu0
    %v1244 = vpop.trf.xlu0
    %v1245 = vpop.trf.xlu0
    %v1246 = vpop.trf.xlu0
    %v1247 = vpop.trf.xlu0
    %v1248 = vpop.trf.xlu0
    %v1249 = vpop.trf.xlu0
    %v1250 = vpop.trf.xlu0
    %v1251 = vpop.trf.xlu0
    %v1252 = vpop.trf.xlu0
    %v1253 = vpop.trf.xlu0
    %v1254 = vpop.trf.xlu0
    %v1255 = vpop.trf.xlu0
    %v1256 = vpop.trf.xlu0
    %v1257 = vpop.trf.xlu0
    %v1258 = vpop.trf.xlu0
    %1259 = vxpose.xlu0.b32.start [1/16] %v1183, 128
    %1260 = vxpose.xlu0.b32.cont [2/16] 0.0, 128
    %1261 = vxpose.xlu0.b32.cont [3/16] 0.0, 128
    %1262 = vxpose.xlu0.b32.cont [4/16] 0.0, 128
    %1263 = vxpose.xlu0.b32.cont [5/16] 0.0, 128
    %1264 = vxpose.xlu0.b32.cont [6/16] 0.0, 128
    %1265 = vxpose.xlu0.b32.cont [7/16] 0.0, 128
    %1266 = vxpose.xlu0.b32.cont [8/16] 0.0, 128
    %1267 = vxpose.xlu0.b32.cont [9/16] 0.0, 128
    %1268 = vxpose.xlu0.b32.cont [10/16] 0.0, 128
    %1269 = vxpose.xlu0.b32.cont [11/16] 0.0, 128
    %1270 = vxpose.xlu0.b32.cont [12/16] 0.0, 128
    %1271 = vxpose.xlu0.b32.cont [13/16] 0.0, 128
    %1272 = vxpose.xlu0.b32.cont [14/16] 0.0, 128
    %1273 = vxpose.xlu0.b32.cont [15/16] 0.0, 128
    %1274 = vxpose.xlu0.b32.end [16/16] 0.0, 128
    %v1275 = vpop.trf.xlu0
    %v1276 = vpop.trf.xlu0
    %v1277 = vpop.trf.xlu0
    %v1278 = vpop.trf.xlu0
    %v1279 = vpop.trf.xlu0
    %v1280 = vpop.trf.xlu0
    %v1281 = vpop.trf.xlu0
    %v1282 = vpop.trf.xlu0
    %v1283 = vpop.trf.xlu0
    %v1284 = vpop.trf.xlu0
    %v1285 = vpop.trf.xlu0
    %v1286 = vpop.trf.xlu0
    %v1287 = vpop.trf.xlu0
    %v1288 = vpop.trf.xlu0
    %v1289 = vpop.trf.xlu0
    %v1290 = vpop.trf.xlu0
    %1291 = vxpose.xlu0.b32.start [1/16] %v1184, 128
    %1292 = vxpose.xlu0.b32.cont [2/16] 0.0, 128
    %1293 = vxpose.xlu0.b32.cont [3/16] 0.0, 128
    %1294 = vxpose.xlu0.b32.cont [4/16] 0.0, 128
    %1295 = vxpose.xlu0.b32.cont [5/16] 0.0, 128
    %1296 = vxpose.xlu0.b32.cont [6/16] 0.0, 128
    %1297 = vxpose.xlu0.b32.cont [7/16] 0.0, 128
    %1298 = vxpose.xlu0.b32.cont [8/16] 0.0, 128
    %1299 = vxpose.xlu0.b32.cont [9/16] 0.0, 128
    %1300 = vxpose.xlu0.b32.cont [10/16] 0.0, 128
    %1301 = vxpose.xlu0.b32.cont [11/16] 0.0, 128
    %1302 = vxpose.xlu0.b32.cont [12/16] 0.0, 128
    %1303 = vxpose.xlu0.b32.cont [13/16] 0.0, 128
    %1304 = vxpose.xlu0.b32.cont [14/16] 0.0, 128
    %1305 = vxpose.xlu0.b32.cont [15/16] 0.0, 128
    %1306 = vxpose.xlu0.b32.end [16/16] 0.0, 128
    %v1307 = vpop.trf.xlu0
    %v1308 = vpop.trf.xlu0
    %v1309 = vpop.trf.xlu0
    %v1310 = vpop.trf.xlu0
    %v1311 = vpop.trf.xlu0
    %v1312 = vpop.trf.xlu0
    %v1313 = vpop.trf.xlu0
    %v1314 = vpop.trf.xlu0
    %v1315 = vpop.trf.xlu0
    %v1316 = vpop.trf.xlu0
    %v1317 = vpop.trf.xlu0
    %v1318 = vpop.trf.xlu0
    %v1319 = vpop.trf.xlu0
    %v1320 = vpop.trf.xlu0
    %v1321 = vpop.trf.xlu0
    %v1322 = vpop.trf.xlu0
    %1323 = vxpose.xlu0.b32.start [1/16] %v1185, 128
    %1324 = vxpose.xlu0.b32.cont [2/16] 0.0, 128
    %1325 = vxpose.xlu0.b32.cont [3/16] 0.0, 128
    %1326 = vxpose.xlu0.b32.cont [4/16] 0.0, 128
    %1327 = vxpose.xlu0.b32.cont [5/16] 0.0, 128
    %1328 = vxpose.xlu0.b32.cont [6/16] 0.0, 128
    %1329 = vxpose.xlu0.b32.cont [7/16] 0.0, 128
    %1330 = vxpose.xlu0.b32.cont [8/16] 0.0, 128
    %1331 = vxpose.xlu0.b32.cont [9/16] 0.0, 128
    %1332 = vxpose.xlu0.b32.cont [10/16] 0.0, 128
    %1333 = vxpose.xlu0.b32.cont [11/16] 0.0, 128
    %1334 = vxpose.xlu0.b32.cont [12/16] 0.0, 128
    %1335 = vxpose.xlu0.b32.cont [13/16] 0.0, 128
    %1336 = vxpose.xlu0.b32.cont [14/16] 0.0, 128
    %1337 = vxpose.xlu0.b32.cont [15/16] 0.0, 128
    %1338 = vxpose.xlu0.b32.end [16/16] 0.0, 128
    %v1339 = vpop.trf.xlu0
    %v1340 = vpop.trf.xlu0
    %v1341 = vpop.trf.xlu0
    %v1342 = vpop.trf.xlu0
    %v1343 = vpop.trf.xlu0
    %v1344 = vpop.trf.xlu0
    %v1345 = vpop.trf.xlu0
    %v1346 = vpop.trf.xlu0
    %v1347 = vpop.trf.xlu0
    %v1348 = vpop.trf.xlu0
    %v1349 = vpop.trf.xlu0
    %v1350 = vpop.trf.xlu0
    %v1351 = vpop.trf.xlu0
    %v1352 = vpop.trf.xlu0
    %v1353 = vpop.trf.xlu0
    %v1354 = vpop.trf.xlu0
    %1355 = vxpose.xlu0.b32.start [1/16] %v1186, 128
    %1356 = vxpose.xlu0.b32.cont [2/16] 0.0, 128
    %1357 = vxpose.xlu0.b32.cont [3/16] 0.0, 128
    %1358 = vxpose.xlu0.b32.cont [4/16] 0.0, 128
    %1359 = vxpose.xlu0.b32.cont [5/16] 0.0, 128
    %1360 = vxpose.xlu0.b32.cont [6/16] 0.0, 128
    %1361 = vxpose.xlu0.b32.cont [7/16] 0.0, 128
    %1362 = vxpose.xlu0.b32.cont [8/16] 0.0, 128
    %1363 = vxpose.xlu0.b32.cont [9/16] 0.0, 128
    %1364 = vxpose.xlu0.b32.cont [10/16] 0.0, 128
    %1365 = vxpose.xlu0.b32.cont [11/16] 0.0, 128
    %1366 = vxpose.xlu0.b32.cont [12/16] 0.0, 128
    %1367 = vxpose.xlu0.b32.cont [13/16] 0.0, 128
    %1368 = vxpose.xlu0.b32.cont [14/16] 0.0, 128
    %1369 = vxpose.xlu0.b32.cont [15/16] 0.0, 128
    %1370 = vxpose.xlu0.b32.end [16/16] 0.0, 128
    %v1371 = vpop.trf.xlu0
    %v1372 = vpop.trf.xlu0
    %v1373 = vpop.trf.xlu0
    %v1374 = vpop.trf.xlu0
    %v1375 = vpop.trf.xlu0
    %v1376 = vpop.trf.xlu0
    %v1377 = vpop.trf.xlu0
    %v1378 = vpop.trf.xlu0
    %v1379 = vpop.trf.xlu0
    %v1380 = vpop.trf.xlu0
    %v1381 = vpop.trf.xlu0
    %v1382 = vpop.trf.xlu0
    %v1383 = vpop.trf.xlu0
    %v1384 = vpop.trf.xlu0
    %v1385 = vpop.trf.xlu0
    %v1386 = vpop.trf.xlu0
    %1387 = vxpose.xlu0.b32.start [1/16] %v1187, 128
    %1388 = vxpose.xlu0.b32.cont [2/16] 0.0, 128
    %1389 = vxpose.xlu0.b32.cont [3/16] 0.0, 128
    %1390 = vxpose.xlu0.b32.cont [4/16] 0.0, 128
    %1391 = vxpose.xlu0.b32.cont [5/16] 0.0, 128
    %1392 = vxpose.xlu0.b32.cont [6/16] 0.0, 128
    %1393 = vxpose.xlu0.b32.cont [7/16] 0.0, 128
    %1394 = vxpose.xlu0.b32.cont [8/16] 0.0, 128
    %1395 = vxpose.xlu0.b32.cont [9/16] 0.0, 128
    %1396 = vxpose.xlu0.b32.cont [10/16] 0.0, 128
    %1397 = vxpose.xlu0.b32.cont [11/16] 0.0, 128
    %1398 = vxpose.xlu0.b32.cont [12/16] 0.0, 128
    %1399 = vxpose.xlu0.b32.cont [13/16] 0.0, 128
    %1400 = vxpose.xlu0.b32.cont [14/16] 0.0, 128
    %1401 = vxpose.xlu0.b32.cont [15/16] 0.0, 128
    %1402 = vxpose.xlu0.b32.end [16/16] 0.0, 128
    %v1403 = vpop.trf.xlu0
    %v1404 = vpop.trf.xlu0
    %v1405 = vpop.trf.xlu0
    %v1406 = vpop.trf.xlu0
    %v1407 = vpop.trf.xlu0
    %v1408 = vpop.trf.xlu0
    %v1409 = vpop.trf.xlu0
    %v1410 = vpop.trf.xlu0
    %v1411 = vpop.trf.xlu0
    %v1412 = vpop.trf.xlu0
    %v1413 = vpop.trf.xlu0
    %v1414 = vpop.trf.xlu0
    %v1415 = vpop.trf.xlu0
    %v1416 = vpop.trf.xlu0
    %v1417 = vpop.trf.xlu0
    %v1418 = vpop.trf.xlu0
    %1419 = vxpose.xlu0.b32.start [1/16] %v1188, 128
    %1420 = vxpose.xlu0.b32.cont [2/16] 0.0, 128
    %1421 = vxpose.xlu0.b32.cont [3/16] 0.0, 128
    %1422 = vxpose.xlu0.b32.cont [4/16] 0.0, 128
    %1423 = vxpose.xlu0.b32.cont [5/16] 0.0, 128
    %1424 = vxpose.xlu0.b32.cont [6/16] 0.0, 128
    %1425 = vxpose.xlu0.b32.cont [7/16] 0.0, 128
    %1426 = vxpose.xlu0.b32.cont [8/16] 0.0, 128
    %1427 = vxpose.xlu0.b32.cont [9/16] 0.0, 128
    %1428 = vxpose.xlu0.b32.cont [10/16] 0.0, 128
    %1429 = vxpose.xlu0.b32.cont [11/16] 0.0, 128
    %1430 = vxpose.xlu0.b32.cont [12/16] 0.0, 128
    %1431 = vxpose.xlu0.b32.cont [13/16] 0.0, 128
    %1432 = vxpose.xlu0.b32.cont [14/16] 0.0, 128
    %1433 = vxpose.xlu0.b32.cont [15/16] 0.0, 128
    %1434 = vxpose.xlu0.b32.end [16/16] 0.0, 128
    %v1435 = vpop.trf.xlu0
    %v1436 = vpop.trf.xlu0
    %v1437 = vpop.trf.xlu0
    %v1438 = vpop.trf.xlu0
    %v1439 = vpop.trf.xlu0
    %v1440 = vpop.trf.xlu0
    %v1441 = vpop.trf.xlu0
    %v1442 = vpop.trf.xlu0
    %v1443 = vpop.trf.xlu0
    %v1444 = vpop.trf.xlu0
    %v1445 = vpop.trf.xlu0
    %v1446 = vpop.trf.xlu0
    %v1447 = vpop.trf.xlu0
    %v1448 = vpop.trf.xlu0
    %v1449 = vpop.trf.xlu0
    %v1450 = vpop.trf.xlu0
    %1451 = vxpose.xlu0.b32.start [1/16] %v1189, 128
    %1452 = vxpose.xlu0.b32.cont [2/16] 0.0, 128
    %1453 = vxpose.xlu0.b32.cont [3/16] 0.0, 128
    %1454 = vxpose.xlu0.b32.cont [4/16] 0.0, 128
    %1455 = vxpose.xlu0.b32.cont [5/16] 0.0, 128
    %1456 = vxpose.xlu0.b32.cont [6/16] 0.0, 128
    %1457 = vxpose.xlu0.b32.cont [7/16] 0.0, 128
    %1458 = vxpose.xlu0.b32.cont [8/16] 0.0, 128
    %1459 = vxpose.xlu0.b32.cont [9/16] 0.0, 128
    %1460 = vxpose.xlu0.b32.cont [10/16] 0.0, 128
    %1461 = vxpose.xlu0.b32.cont [11/16] 0.0, 128
    %1462 = vxpose.xlu0.b32.cont [12/16] 0.0, 128
    %1463 = vxpose.xlu0.b32.cont [13/16] 0.0, 128
    %1464 = vxpose.xlu0.b32.cont [14/16] 0.0, 128
    %1465 = vxpose.xlu0.b32.cont [15/16] 0.0, 128
    %1466 = vxpose.xlu0.b32.end [16/16] 0.0, 128
    %v1467 = vpop.trf.xlu0
    %v1468 = vpop.trf.xlu0
    %v1469 = vpop.trf.xlu0
    %v1470 = vpop.trf.xlu0
    %v1471 = vpop.trf.xlu0
    %v1472 = vpop.trf.xlu0
    %v1473 = vpop.trf.xlu0
    %v1474 = vpop.trf.xlu0
    %v1475 = vpop.trf.xlu0
    %v1476 = vpop.trf.xlu0
    %v1477 = vpop.trf.xlu0
    %v1478 = vpop.trf.xlu0
    %v1479 = vpop.trf.xlu0
    %v1480 = vpop.trf.xlu0
    %v1481 = vpop.trf.xlu0
    %v1482 = vpop.trf.xlu0
    %1483 = vxpose.xlu0.b32.start [1/16] %v1190, 128
    %1484 = vxpose.xlu0.b32.cont [2/16] 0.0, 128
    %1485 = vxpose.xlu0.b32.cont [3/16] 0.0, 128
    %1486 = vxpose.xlu0.b32.cont [4/16] 0.0, 128
    %1487 = vxpose.xlu0.b32.cont [5/16] 0.0, 128
    %1488 = vxpose.xlu0.b32.cont [6/16] 0.0, 128
    %1489 = vxpose.xlu0.b32.cont [7/16] 0.0, 128
    %1490 = vxpose.xlu0.b32.cont [8/16] 0.0, 128
    %1491 = vxpose.xlu0.b32.cont [9/16] 0.0, 128
    %1492 = vxpose.xlu0.b32.cont [10/16] 0.0, 128
    %1493 = vxpose.xlu0.b32.cont [11/16] 0.0, 128
    %1494 = vxpose.xlu0.b32.cont [12/16] 0.0, 128
    %1495 = vxpose.xlu0.b32.cont [13/16] 0.0, 128
    %1496 = vxpose.xlu0.b32.cont [14/16] 0.0, 128
    %1497 = vxpose.xlu0.b32.cont [15/16] 0.0, 128
    %1498 = vxpose.xlu0.b32.end [16/16] 0.0, 128
    %v1499 = vpop.trf.xlu0
    %v1500 = vpop.trf.xlu0
    %v1501 = vpop.trf.xlu0
    %v1502 = vpop.trf.xlu0
    %v1503 = vpop.trf.xlu0
    %v1504 = vpop.trf.xlu0
    %v1505 = vpop.trf.xlu0
    %v1506 = vpop.trf.xlu0
    %v1507 = vpop.trf.xlu0
    %v1508 = vpop.trf.xlu0
    %v1509 = vpop.trf.xlu0
    %v1510 = vpop.trf.xlu0
    %v1511 = vpop.trf.xlu0
    %v1512 = vpop.trf.xlu0
    %v1513 = vpop.trf.xlu0
    %v1514 = vpop.trf.xlu0
    %1515 = vxpose.xlu0.b32.start [1/16] %v1191, 128
    %1516 = vxpose.xlu0.b32.cont [2/16] 0.0, 128
    %1517 = vxpose.xlu0.b32.cont [3/16] 0.0, 128
    %1518 = vxpose.xlu0.b32.cont [4/16] 0.0, 128
    %1519 = vxpose.xlu0.b32.cont [5/16] 0.0, 128
    %1520 = vxpose.xlu0.b32.cont [6/16] 0.0, 128
    %1521 = vxpose.xlu0.b32.cont [7/16] 0.0, 128
    %1522 = vxpose.xlu0.b32.cont [8/16] 0.0, 128
    %1523 = vxpose.xlu0.b32.cont [9/16] 0.0, 128
    %1524 = vxpose.xlu0.b32.cont [10/16] 0.0, 128
    %1525 = vxpose.xlu0.b32.cont [11/16] 0.0, 128
    %1526 = vxpose.xlu0.b32.cont [12/16] 0.0, 128
    %1527 = vxpose.xlu0.b32.cont [13/16] 0.0, 128
    %1528 = vxpose.xlu0.b32.cont [14/16] 0.0, 128
    %1529 = vxpose.xlu0.b32.cont [15/16] 0.0, 128
    %1530 = vxpose.xlu0.b32.end [16/16] 0.0, 128
    %v1531 = vpop.trf.xlu0
    %v1532 = vpop.trf.xlu0
    %v1533 = vpop.trf.xlu0
    %v1534 = vpop.trf.xlu0
    %v1535 = vpop.trf.xlu0
    %v1536 = vpop.trf.xlu0
    %v1537 = vpop.trf.xlu0
    %v1538 = vpop.trf.xlu0
    %v1539 = vpop.trf.xlu0
    %v1540 = vpop.trf.xlu0
    %v1541 = vpop.trf.xlu0
    %v1542 = vpop.trf.xlu0
    %v1543 = vpop.trf.xlu0
    %v1544 = vpop.trf.xlu0
    %v1545 = vpop.trf.xlu0
    %v1546 = vpop.trf.xlu0
    %1547 = vxpose.xlu0.b32.start [1/16] %v1192, 128
    %1548 = vxpose.xlu0.b32.cont [2/16] 0.0, 128
    %1549 = vxpose.xlu0.b32.cont [3/16] 0.0, 128
    %1550 = vxpose.xlu0.b32.cont [4/16] 0.0, 128
    %1551 = vxpose.xlu0.b32.cont [5/16] 0.0, 128
    %1552 = vxpose.xlu0.b32.cont [6/16] 0.0, 128
    %1553 = vxpose.xlu0.b32.cont [7/16] 0.0, 128
    %1554 = vxpose.xlu0.b32.cont [8/16] 0.0, 128
    %1555 = vxpose.xlu0.b32.cont [9/16] 0.0, 128
    %1556 = vxpose.xlu0.b32.cont [10/16] 0.0, 128
    %1557 = vxpose.xlu0.b32.cont [11/16] 0.0, 128
    %1558 = vxpose.xlu0.b32.cont [12/16] 0.0, 128
    %1559 = vxpose.xlu0.b32.cont [13/16] 0.0, 128
    %1560 = vxpose.xlu0.b32.cont [14/16] 0.0, 128
    %1561 = vxpose.xlu0.b32.cont [15/16] 0.0, 128
    %1562 = vxpose.xlu0.b32.end [16/16] 0.0, 128
    %v1563 = vpop.trf.xlu0
    %v1564 = vpop.trf.xlu0
    %v1565 = vpop.trf.xlu0
    %v1566 = vpop.trf.xlu0
    %v1567 = vpop.trf.xlu0
    %v1568 = vpop.trf.xlu0
    %v1569 = vpop.trf.xlu0
    %v1570 = vpop.trf.xlu0
    %v1571 = vpop.trf.xlu0
    %v1572 = vpop.trf.xlu0
    %v1573 = vpop.trf.xlu0
    %v1574 = vpop.trf.xlu0
    %v1575 = vpop.trf.xlu0
    %v1576 = vpop.trf.xlu0
    %v1577 = vpop.trf.xlu0
    %v1578 = vpop.trf.xlu0
    %1579 = vxpose.xlu0.b32.start [1/16] %v1193, 128
    %1580 = vxpose.xlu0.b32.cont [2/16] 0.0, 128
    %1581 = vxpose.xlu0.b32.cont [3/16] 0.0, 128
    %1582 = vxpose.xlu0.b32.cont [4/16] 0.0, 128
    %1583 = vxpose.xlu0.b32.cont [5/16] 0.0, 128
    %1584 = vxpose.xlu0.b32.cont [6/16] 0.0, 128
    %1585 = vxpose.xlu0.b32.cont [7/16] 0.0, 128
    %1586 = vxpose.xlu0.b32.cont [8/16] 0.0, 128
    %1587 = vxpose.xlu0.b32.cont [9/16] 0.0, 128
    %1588 = vxpose.xlu0.b32.cont [10/16] 0.0, 128
    %1589 = vxpose.xlu0.b32.cont [11/16] 0.0, 128
    %1590 = vxpose.xlu0.b32.cont [12/16] 0.0, 128
    %1591 = vxpose.xlu0.b32.cont [13/16] 0.0, 128
    %1592 = vxpose.xlu0.b32.cont [14/16] 0.0, 128
    %1593 = vxpose.xlu0.b32.cont [15/16] 0.0, 128
    %1594 = vxpose.xlu0.b32.end [16/16] 0.0, 128
    %v1595 = vpop.trf.xlu0
    %v1596 = vpop.trf.xlu0
    %v1597 = vpop.trf.xlu0
    %v1598 = vpop.trf.xlu0
    %v1599 = vpop.trf.xlu0
    %v1600 = vpop.trf.xlu0
    %v1601 = vpop.trf.xlu0
    %v1602 = vpop.trf.xlu0
    %v1603 = vpop.trf.xlu0
    %v1604 = vpop.trf.xlu0
    %v1605 = vpop.trf.xlu0
    %v1606 = vpop.trf.xlu0
    %v1607 = vpop.trf.xlu0
    %v1608 = vpop.trf.xlu0
    %v1609 = vpop.trf.xlu0
    %v1610 = vpop.trf.xlu0
    %1611 = vxpose.xlu0.b32.start [1/16] %v1194, 128
    %1612 = vxpose.xlu0.b32.cont [2/16] 0.0, 128
    %1613 = vxpose.xlu0.b32.cont [3/16] 0.0, 128
    %1614 = vxpose.xlu0.b32.cont [4/16] 0.0, 128
    %1615 = vxpose.xlu0.b32.cont [5/16] 0.0, 128
    %1616 = vxpose.xlu0.b32.cont [6/16] 0.0, 128
    %1617 = vxpose.xlu0.b32.cont [7/16] 0.0, 128
    %1618 = vxpose.xlu0.b32.cont [8/16] 0.0, 128
    %1619 = vxpose.xlu0.b32.cont [9/16] 0.0, 128
    %1620 = vxpose.xlu0.b32.cont [10/16] 0.0, 128
    %1621 = vxpose.xlu0.b32.cont [11/16] 0.0, 128
    %1622 = vxpose.xlu0.b32.cont [12/16] 0.0, 128
    %1623 = vxpose.xlu0.b32.cont [13/16] 0.0, 128
    %1624 = vxpose.xlu0.b32.cont [14/16] 0.0, 128
    %1625 = vxpose.xlu0.b32.cont [15/16] 0.0, 128
    %1626 = vxpose.xlu0.b32.end [16/16] 0.0, 128
    %v1627 = vpop.trf.xlu0
    %v1628 = vpop.trf.xlu0
    %v1629 = vpop.trf.xlu0
    %v1630 = vpop.trf.xlu0
    %v1631 = vpop.trf.xlu0
    %v1632 = vpop.trf.xlu0
    %v1633 = vpop.trf.xlu0
    %v1634 = vpop.trf.xlu0
    %v1635 = vpop.trf.xlu0
    %v1636 = vpop.trf.xlu0
    %v1637 = vpop.trf.xlu0
    %v1638 = vpop.trf.xlu0
    %v1639 = vpop.trf.xlu0
    %v1640 = vpop.trf.xlu0
    %v1641 = vpop.trf.xlu0
    %v1642 = vpop.trf.xlu0
    %v1643 = vmax.f32 %v1211, %v1215
    %v1644 = vmax.f32 %v1212, %v1216
    %v1645 = vmax.f32 %v1213, %v1217
    %v1646 = vmax.f32 %v1214, %v1218
    %v1647 = vmax.f32 %v1219, %v1223
    %v1648 = vmax.f32 %v1220, %v1224
    %v1649 = vmax.f32 %v1221, %v1225
    %v1650 = vmax.f32 %v1222, %v1226
    %v1651 = vmax.f32 %v1243, %v1247
    %v1652 = vmax.f32 %v1244, %v1248
    %v1653 = vmax.f32 %v1245, %v1249
    %v1654 = vmax.f32 %v1246, %v1250
    %v1655 = vmax.f32 %v1251, %v1255
    %v1656 = vmax.f32 %v1252, %v1256
    %v1657 = vmax.f32 %v1253, %v1257
    %v1658 = vmax.f32 %v1254, %v1258
    %v1659 = vmax.f32 %v1275, %v1279
    %v1660 = vmax.f32 %v1276, %v1280
    %v1661 = vmax.f32 %v1277, %v1281
    %v1662 = vmax.f32 %v1278, %v1282
    %v1663 = vmax.f32 %v1283, %v1287
    %v1664 = vmax.f32 %v1284, %v1288
    %v1665 = vmax.f32 %v1285, %v1289
    %v1666 = vmax.f32 %v1286, %v1290
    %v1667 = vmax.f32 %v1307, %v1311
    %v1668 = vmax.f32 %v1308, %v1312
    %v1669 = vmax.f32 %v1309, %v1313
    %v1670 = vmax.f32 %v1310, %v1314
    %v1671 = vmax.f32 %v1315, %v1319
    %v1672 = vmax.f32 %v1316, %v1320
    %v1673 = vmax.f32 %v1317, %v1321
    %v1674 = vmax.f32 %v1318, %v1322
    %v1675 = vmax.f32 %v1339, %v1343
    %v1676 = vmax.f32 %v1340, %v1344
    %v1677 = vmax.f32 %v1341, %v1345
    %v1678 = vmax.f32 %v1342, %v1346
    %v1679 = vmax.f32 %v1347, %v1351
    %v1680 = vmax.f32 %v1348, %v1352
    %v1681 = vmax.f32 %v1349, %v1353
    %v1682 = vmax.f32 %v1350, %v1354
    %v1683 = vmax.f32 %v1371, %v1375
    %v1684 = vmax.f32 %v1372, %v1376
    %v1685 = vmax.f32 %v1373, %v1377
    %v1686 = vmax.f32 %v1374, %v1378
    %v1687 = vmax.f32 %v1379, %v1383
    %v1688 = vmax.f32 %v1380, %v1384
    %v1689 = vmax.f32 %v1381, %v1385
    %v1690 = vmax.f32 %v1382, %v1386
    %v1691 = vmax.f32 %v1403, %v1407
    %v1692 = vmax.f32 %v1404, %v1408
    %v1693 = vmax.f32 %v1405, %v1409
    %v1694 = vmax.f32 %v1406, %v1410
    %v1695 = vmax.f32 %v1411, %v1415
    %v1696 = vmax.f32 %v1412, %v1416
    %v1697 = vmax.f32 %v1413, %v1417
    %v1698 = vmax.f32 %v1414, %v1418
    %v1699 = vmax.f32 %v1435, %v1439
    %v1700 = vmax.f32 %v1436, %v1440
    %v1701 = vmax.f32 %v1437, %v1441
    %v1702 = vmax.f32 %v1438, %v1442
    %v1703 = vmax.f32 %v1443, %v1447
    %v1704 = vmax.f32 %v1444, %v1448
    %v1705 = vmax.f32 %v1445, %v1449
    %v1706 = vmax.f32 %v1446, %v1450
    %v1707 = vmax.f32 %v1467, %v1471
    %v1708 = vmax.f32 %v1468, %v1472
    %v1709 = vmax.f32 %v1469, %v1473
    %v1710 = vmax.f32 %v1470, %v1474
    %v1711 = vmax.f32 %v1475, %v1479
    %v1712 = vmax.f32 %v1476, %v1480
    %v1713 = vmax.f32 %v1477, %v1481
    %v1714 = vmax.f32 %v1478, %v1482
    %v1715 = vmax.f32 %v1499, %v1503
    %v1716 = vmax.f32 %v1500, %v1504
    %v1717 = vmax.f32 %v1501, %v1505
    %v1718 = vmax.f32 %v1502, %v1506
    %v1719 = vmax.f32 %v1507, %v1511
    %v1720 = vmax.f32 %v1508, %v1512
    %v1721 = vmax.f32 %v1509, %v1513
    %v1722 = vmax.f32 %v1510, %v1514
    %v1723 = vmax.f32 %v1531, %v1535
    %v1724 = vmax.f32 %v1532, %v1536
    %v1725 = vmax.f32 %v1533, %v1537
    %v1726 = vmax.f32 %v1534, %v1538
    %v1727 = vmax.f32 %v1539, %v1543
    %v1728 = vmax.f32 %v1540, %v1544
    %v1729 = vmax.f32 %v1541, %v1545
    %v1730 = vmax.f32 %v1542, %v1546
    %v1731 = vmax.f32 %v1563, %v1567
    %v1732 = vmax.f32 %v1564, %v1568
    %v1733 = vmax.f32 %v1565, %v1569
    %v1734 = vmax.f32 %v1566, %v1570
    %v1735 = vmax.f32 %v1571, %v1575
    %v1736 = vmax.f32 %v1572, %v1576
    %v1737 = vmax.f32 %v1573, %v1577
    %v1738 = vmax.f32 %v1574, %v1578
    %v1739 = vmax.f32 %v1595, %v1599
    %v1740 = vmax.f32 %v1596, %v1600
    %v1741 = vmax.f32 %v1597, %v1601
    %v1742 = vmax.f32 %v1598, %v1602
    %v1743 = vmax.f32 %v1603, %v1607
    %v1744 = vmax.f32 %v1604, %v1608
    %v1745 = vmax.f32 %v1605, %v1609
    %v1746 = vmax.f32 %v1606, %v1610
    %v1747 = vmax.f32 %v1627, %v1631
    %v1748 = vmax.f32 %v1628, %v1632
    %v1749 = vmax.f32 %v1629, %v1633
    %v1750 = vmax.f32 %v1630, %v1634
    %v1751 = vmax.f32 %v1635, %v1639
    %v1752 = vmax.f32 %v1636, %v1640
    %v1753 = vmax.f32 %v1637, %v1641
    %v1754 = vmax.f32 %v1638, %v1642
    %vm1755 = vcmask 64512
    %1756 = vst.msk [vmem:[#allocation3] sm:$0xff] %vm1755, %v1643
    %1757 = vst.msk [vmem:[#allocation3 + $0x8] sm:$0xff] %vm1755, %v1644
    %1758 = vst.msk [vmem:[#allocation3 + $0x10] sm:$0xff] %vm1755, %v1645
    %1759 = vst.msk [vmem:[#allocation3 + $0x18] sm:$0xff] %vm1755, %v1646
    %1760 = vst.msk [vmem:[#allocation3 + $0x20] sm:$0xff] %vm1755, %v1647
    %1761 = vst.msk [vmem:[#allocation3 + $0x28] sm:$0xff] %vm1755, %v1648
    %1762 = vst.msk [vmem:[#allocation3 + $0x30] sm:$0xff] %vm1755, %v1649
    %1763 = vst.msk [vmem:[#allocation3 + $0x38] sm:$0xff] %vm1755, %v1650
    %1764 = vst.msk [vmem:[#allocation3 + $0x40] sm:$0xff] %vm1755, %v1651
    %1765 = vst.msk [vmem:[#allocation3 + $0x48] sm:$0xff] %vm1755, %v1652
    %1766 = vst.msk [vmem:[#allocation3 + $0x50] sm:$0xff] %vm1755, %v1653
    %1767 = vst.msk [vmem:[#allocation3 + $0x58] sm:$0xff] %vm1755, %v1654
    %1768 = vst.msk [vmem:[#allocation3 + $0x60] sm:$0xff] %vm1755, %v1655
    %1769 = vst.msk [vmem:[#allocation3 + $0x68] sm:$0xff] %vm1755, %v1656
    %1770 = vst.msk [vmem:[#allocation3 + $0x70] sm:$0xff] %vm1755, %v1657
    %1771 = vst.msk [vmem:[#allocation3 + $0x78] sm:$0xff] %vm1755, %v1658
    %1772 = vst.msk [vmem:[#allocation3 + $0x80] sm:$0xff] %vm1755, %v1659
    %1773 = vst.msk [vmem:[#allocation3 + $0x88] sm:$0xff] %vm1755, %v1660
    %1774 = vst.msk [vmem:[#allocation3 + $0x90] sm:$0xff] %vm1755, %v1661
    %1775 = vst.msk [vmem:[#allocation3 + $0x98] sm:$0xff] %vm1755, %v1662
    %1776 = vst.msk [vmem:[#allocation3 + $0xa0] sm:$0xff] %vm1755, %v1663
    %1777 = vst.msk [vmem:[#allocation3 + $0xa8] sm:$0xff] %vm1755, %v1664
    %1778 = vst.msk [vmem:[#allocation3 + $0xb0] sm:$0xff] %vm1755, %v1665
    %1779 = vst.msk [vmem:[#allocation3 + $0xb8] sm:$0xff] %vm1755, %v1666
    %1780 = vst.msk [vmem:[#allocation3 + $0xc0] sm:$0xff] %vm1755, %v1667
    %1781 = vst.msk [vmem:[#allocation3 + $0xc8] sm:$0xff] %vm1755, %v1668
    %1782 = vst.msk [vmem:[#allocation3 + $0xd0] sm:$0xff] %vm1755, %v1669
    %1783 = vst.msk [vmem:[#allocation3 + $0xd8] sm:$0xff] %vm1755, %v1670
    %1784 = vst.msk [vmem:[#allocation3 + $0xe0] sm:$0xff] %vm1755, %v1671
    %1785 = vst.msk [vmem:[#allocation3 + $0xe8] sm:$0xff] %vm1755, %v1672
    %1786 = vst.msk [vmem:[#allocation3 + $0xf0] sm:$0xff] %vm1755, %v1673
    %1787 = vst.msk [vmem:[#allocation3 + $0xf8] sm:$0xff] %vm1755, %v1674
    %1788 = vst.msk [vmem:[#allocation3 + $0x100] sm:$0xff] %vm1755, %v1675
    %1789 = vst.msk [vmem:[#allocation3 + $0x108] sm:$0xff] %vm1755, %v1676
    %1790 = vst.msk [vmem:[#allocation3 + $0x110] sm:$0xff] %vm1755, %v1677
    %1791 = vst.msk [vmem:[#allocation3 + $0x118] sm:$0xff] %vm1755, %v1678
    %1792 = vst.msk [vmem:[#allocation3 + $0x120] sm:$0xff] %vm1755, %v1679
    %1793 = vst.msk [vmem:[#allocation3 + $0x128] sm:$0xff] %vm1755, %v1680
    %1794 = vst.msk [vmem:[#allocation3 + $0x130] sm:$0xff] %vm1755, %v1681
    %1795 = vst.msk [vmem:[#allocation3 + $0x138] sm:$0xff] %vm1755, %v1682
    %1796 = vst.msk [vmem:[#allocation3 + $0x140] sm:$0xff] %vm1755, %v1683
    %1797 = vst.msk [vmem:[#allocation3 + $0x148] sm:$0xff] %vm1755, %v1684
    %1798 = vst.msk [vmem:[#allocation3 + $0x150] sm:$0xff] %vm1755, %v1685
    %1799 = vst.msk [vmem:[#allocation3 + $0x158] sm:$0xff] %vm1755, %v1686
    %1800 = vst.msk [vmem:[#allocation3 + $0x160] sm:$0xff] %vm1755, %v1687
    %1801 = vst.msk [vmem:[#allocation3 + $0x168] sm:$0xff] %vm1755, %v1688
    %1802 = vst.msk [vmem:[#allocation3 + $0x170] sm:$0xff] %vm1755, %v1689
    %1803 = vst.msk [vmem:[#allocation3 + $0x178] sm:$0xff] %vm1755, %v1690
    %1804 = vst.msk [vmem:[#allocation3 + $0x180] sm:$0xff] %vm1755, %v1691
    %1805 = vst.msk [vmem:[#allocation3 + $0x188] sm:$0xff] %vm1755, %v1692
    %1806 = vst.msk [vmem:[#allocation3 + $0x190] sm:$0xff] %vm1755, %v1693
    %1807 = vst.msk [vmem:[#allocation3 + $0x198] sm:$0xff] %vm1755, %v1694
    %1808 = vst.msk [vmem:[#allocation3 + $0x1a0] sm:$0xff] %vm1755, %v1695
    %1809 = vst.msk [vmem:[#allocation3 + $0x1a8] sm:$0xff] %vm1755, %v1696
    %1810 = vst.msk [vmem:[#allocation3 + $0x1b0] sm:$0xff] %vm1755, %v1697
    %1811 = vst.msk [vmem:[#allocation3 + $0x1b8] sm:$0xff] %vm1755, %v1698
    %1812 = vst.msk [vmem:[#allocation3 + $0x1c0] sm:$0xff] %vm1755, %v1699
    %1813 = vst.msk [vmem:[#allocation3 + $0x1c8] sm:$0xff] %vm1755, %v1700
    %1814 = vst.msk [vmem:[#allocation3 + $0x1d0] sm:$0xff] %vm1755, %v1701
    %1815 = vst.msk [vmem:[#allocation3 + $0x1d8] sm:$0xff] %vm1755, %v1702
    %1816 = vst.msk [vmem:[#allocation3 + $0x1e0] sm:$0xff] %vm1755, %v1703
    %1817 = vst.msk [vmem:[#allocation3 + $0x1e8] sm:$0xff] %vm1755, %v1704
    %1818 = vst.msk [vmem:[#allocation3 + $0x1f0] sm:$0xff] %vm1755, %v1705
    %1819 = vst.msk [vmem:[#allocation3 + $0x1f8] sm:$0xff] %vm1755, %v1706
    %1820 = vst.msk [vmem:[#allocation3 + $0x200] sm:$0xff] %vm1755, %v1707
    %1821 = vst.msk [vmem:[#allocation3 + $0x208] sm:$0xff] %vm1755, %v1708
    %1822 = vst.msk [vmem:[#allocation3 + $0x210] sm:$0xff] %vm1755, %v1709
    %1823 = vst.msk [vmem:[#allocation3 + $0x218] sm:$0xff] %vm1755, %v1710
    %1824 = vst.msk [vmem:[#allocation3 + $0x220] sm:$0xff] %vm1755, %v1711
    %1825 = vst.msk [vmem:[#allocation3 + $0x228] sm:$0xff] %vm1755, %v1712
    %1826 = vst.msk [vmem:[#allocation3 + $0x230] sm:$0xff] %vm1755, %v1713
    %1827 = vst.msk [vmem:[#allocation3 + $0x238] sm:$0xff] %vm1755, %v1714
    %1828 = vst.msk [vmem:[#allocation3 + $0x240] sm:$0xff] %vm1755, %v1715
    %1829 = vst.msk [vmem:[#allocation3 + $0x248] sm:$0xff] %vm1755, %v1716
    %1830 = vst.msk [vmem:[#allocation3 + $0x250] sm:$0xff] %vm1755, %v1717
    %1831 = vst.msk [vmem:[#allocation3 + $0x258] sm:$0xff] %vm1755, %v1718
    %1832 = vst.msk [vmem:[#allocation3 + $0x260] sm:$0xff] %vm1755, %v1719
    %1833 = vst.msk [vmem:[#allocation3 + $0x268] sm:$0xff] %vm1755, %v1720
    %1834 = vst.msk [vmem:[#allocation3 + $0x270] sm:$0xff] %vm1755, %v1721
    %1835 = vst.msk [vmem:[#allocation3 + $0x278] sm:$0xff] %vm1755, %v1722
    %1836 = vst.msk [vmem:[#allocation3 + $0x280] sm:$0xff] %vm1755, %v1723
    %1837 = vst.msk [vmem:[#allocation3 + $0x288] sm:$0xff] %vm1755, %v1724
    %1838 = vst.msk [vmem:[#allocation3 + $0x290] sm:$0xff] %vm1755, %v1725
    %1839 = vst.msk [vmem:[#allocation3 + $0x298] sm:$0xff] %vm1755, %v1726
    %1840 = vst.msk [vmem:[#allocation3 + $0x2a0] sm:$0xff] %vm1755, %v1727
    %1841 = vst.msk [vmem:[#allocation3 + $0x2a8] sm:$0xff] %vm1755, %v1728
    %1842 = vst.msk [vmem:[#allocation3 + $0x2b0] sm:$0xff] %vm1755, %v1729
    %1843 = vst.msk [vmem:[#allocation3 + $0x2b8] sm:$0xff] %vm1755, %v1730
    %1844 = vst.msk [vmem:[#allocation3 + $0x2c0] sm:$0xff] %vm1755, %v1731
    %1845 = vst.msk [vmem:[#allocation3 + $0x2c8] sm:$0xff] %vm1755, %v1732
    %1846 = vst.msk [vmem:[#allocation3 + $0x2d0] sm:$0xff] %vm1755, %v1733
    %1847 = vst.msk [vmem:[#allocation3 + $0x2d8] sm:$0xff] %vm1755, %v1734
    %1848 = vst.msk [vmem:[#allocation3 + $0x2e0] sm:$0xff] %vm1755, %v1735
    %1849 = vst.msk [vmem:[#allocation3 + $0x2e8] sm:$0xff] %vm1755, %v1736
    %1850 = vst.msk [vmem:[#allocation3 + $0x2f0] sm:$0xff] %vm1755, %v1737
    %1851 = vst.msk [vmem:[#allocation3 + $0x2f8] sm:$0xff] %vm1755, %v1738
    %1852 = vst.msk [vmem:[#allocation3 + $0x300] sm:$0xff] %vm1755, %v1739
    %1853 = vst.msk [vmem:[#allocation3 + $0x308] sm:$0xff] %vm1755, %v1740
    %1854 = vst.msk [vmem:[#allocation3 + $0x310] sm:$0xff] %vm1755, %v1741
    %1855 = vst.msk [vmem:[#allocation3 + $0x318] sm:$0xff] %vm1755, %v1742
    %1856 = vst.msk [vmem:[#allocation3 + $0x320] sm:$0xff] %vm1755, %v1743
    %1857 = vst.msk [vmem:[#allocation3 + $0x328] sm:$0xff] %vm1755, %v1744
    %1858 = vst.msk [vmem:[#allocation3 + $0x330] sm:$0xff] %vm1755, %v1745
    %1859 = vst.msk [vmem:[#allocation3 + $0x338] sm:$0xff] %vm1755, %v1746
    %1860 = vst.msk [vmem:[#allocation3 + $0x340] sm:$0xff] %vm1755, %v1747
    %1861 = vst.msk [vmem:[#allocation3 + $0x348] sm:$0xff] %vm1755, %v1748
    %1862 = vst.msk [vmem:[#allocation3 + $0x350] sm:$0xff] %vm1755, %v1749
    %1863 = vst.msk [vmem:[#allocation3 + $0x358] sm:$0xff] %vm1755, %v1750
    %1864 = vst.msk [vmem:[#allocation3 + $0x360] sm:$0xff] %vm1755, %v1751
    %1865 = vst.msk [vmem:[#allocation3 + $0x368] sm:$0xff] %vm1755, %v1752
    %1866 = vst.msk [vmem:[#allocation3 + $0x370] sm:$0xff] %vm1755, %v1753
    %1867 = vst.msk [vmem:[#allocation3 + $0x378] sm:$0xff] %vm1755, %v1754
    %v1868 = vld [vmem:[#allocation3] ss:$2 sm:$0xff]
    %s1869 = scalar_lea.vmem [#allocation3], 16
    %v1870 = vld [vmem:[%s1869] ss:$2 sm:$0x3f]
    %s1871 = scalar_lea.vmem [#allocation3], 32
    %v1872 = vld [vmem:[%s1871] ss:$2 sm:$0xff]
    %s1873 = scalar_lea.vmem [#allocation3], 48
    %v1874 = vld [vmem:[%s1873] ss:$2 sm:$0x3f]
    %s1875 = scalar_lea.vmem [#allocation3], 64
    %v1876 = vld [vmem:[%s1875] ss:$2 sm:$0xff]
    %s1877 = scalar_lea.vmem [#allocation3], 80
    %v1878 = vld [vmem:[%s1877] ss:$2 sm:$0x3f]
    %s1879 = scalar_lea.vmem [#allocation3], 96
    %v1880 = vld [vmem:[%s1879] ss:$2 sm:$0xff]
    %s1881 = scalar_lea.vmem [#allocation3], 112
    %v1882 = vld [vmem:[%s1881] ss:$2 sm:$0x3f]
    %s1883 = scalar_lea.vmem [#allocation3], 128
    %v1884 = vld [vmem:[%s1883] ss:$2 sm:$0xff]
    %s1885 = scalar_lea.vmem [#allocation3], 144
    %v1886 = vld [vmem:[%s1885] ss:$2 sm:$0x3f]
    %s1887 = scalar_lea.vmem [#allocation3], 160
    %v1888 = vld [vmem:[%s1887] ss:$2 sm:$0xff]
    %s1889 = scalar_lea.vmem [#allocation3], 176
    %v1890 = vld [vmem:[%s1889] ss:$2 sm:$0x3f]
    %s1891 = scalar_lea.vmem [#allocation3], 192
    %v1892 = vld [vmem:[%s1891] ss:$2 sm:$0xff]
    %s1893 = scalar_lea.vmem [#allocation3], 208
    %v1894 = vld [vmem:[%s1893] ss:$2 sm:$0x3f]
    %s1895 = scalar_lea.vmem [#allocation3], 224
    %v1896 = vld [vmem:[%s1895] ss:$2 sm:$0xff]
    %s1897 = scalar_lea.vmem [#allocation3], 240
    %v1898 = vld [vmem:[%s1897] ss:$2 sm:$0x3f]
    %s1899 = scalar_lea.vmem [#allocation3], 256
    %v1900 = vld [vmem:[%s1899] ss:$2 sm:$0xff]
    %s1901 = scalar_lea.vmem [#allocation3], 272
    %v1902 = vld [vmem:[%s1901] ss:$2 sm:$0x3f]
    %s1903 = scalar_lea.vmem [#allocation3], 288
    %v1904 = vld [vmem:[%s1903] ss:$2 sm:$0xff]
    %s1905 = scalar_lea.vmem [#allocation3], 304
    %v1906 = vld [vmem:[%s1905] ss:$2 sm:$0x3f]
    %s1907 = scalar_lea.vmem [#allocation3], 320
    %v1908 = vld [vmem:[%s1907] ss:$2 sm:$0xff]
    %s1909 = scalar_lea.vmem [#allocation3], 336
    %v1910 = vld [vmem:[%s1909] ss:$2 sm:$0x3f]
    %s1911 = scalar_lea.vmem [#allocation3], 352
    %v1912 = vld [vmem:[%s1911] ss:$2 sm:$0xff]
    %s1913 = scalar_lea.vmem [#allocation3], 368
    %v1914 = vld [vmem:[%s1913] ss:$2 sm:$0x3f]
    %s1915 = scalar_lea.vmem [#allocation3], 384
    %v1916 = vld [vmem:[%s1915] ss:$2 sm:$0xff]
    %s1917 = scalar_lea.vmem [#allocation3], 400
    %v1918 = vld [vmem:[%s1917] ss:$2 sm:$0x3f]
    %s1919 = scalar_lea.vmem [#allocation3], 416
    %v1920 = vld [vmem:[%s1919] ss:$2 sm:$0xff]
    %s1921 = scalar_lea.vmem [#allocation3], 432
    %v1922 = vld [vmem:[%s1921] ss:$2 sm:$0x3f]
    %s1923 = scalar_lea.vmem [#allocation3], 448
    %v1924 = vld [vmem:[%s1923] ss:$2 sm:$0xff]
    %s1925 = scalar_lea.vmem [#allocation3], 464
    %v1926 = vld [vmem:[%s1925] ss:$2 sm:$0x3f]
    %s1927 = scalar_lea.vmem [#allocation3], 480
    %v1928 = vld [vmem:[%s1927] ss:$2 sm:$0xff]
    %s1929 = scalar_lea.vmem [#allocation3], 496
    %v1930 = vld [vmem:[%s1929] ss:$2 sm:$0x3f]
    %s1931 = scalar_lea.vmem [#allocation3], 512
    %v1932 = vld [vmem:[%s1931] ss:$2 sm:$0xff]
    %s1933 = scalar_lea.vmem [#allocation3], 528
    %v1934 = vld [vmem:[%s1933] ss:$2 sm:$0x3f]
    %s1935 = scalar_lea.vmem [#allocation3], 544
    %v1936 = vld [vmem:[%s1935] ss:$2 sm:$0xff]
    %s1937 = scalar_lea.vmem [#allocation3], 560
    %v1938 = vld [vmem:[%s1937] ss:$2 sm:$0x3f]
    %s1939 = scalar_lea.vmem [#allocation3], 576
    %v1940 = vld [vmem:[%s1939] ss:$2 sm:$0xff]
    %s1941 = scalar_lea.vmem [#allocation3], 592
    %v1942 = vld [vmem:[%s1941] ss:$2 sm:$0x3f]
    %s1943 = scalar_lea.vmem [#allocation3], 608
    %v1944 = vld [vmem:[%s1943] ss:$2 sm:$0xff]
    %s1945 = scalar_lea.vmem [#allocation3], 624
    %v1946 = vld [vmem:[%s1945] ss:$2 sm:$0x3f]
    %s1947 = scalar_lea.vmem [#allocation3], 640
    %v1948 = vld [vmem:[%s1947] ss:$2 sm:$0xff]
    %s1949 = scalar_lea.vmem [#allocation3], 656
    %v1950 = vld [vmem:[%s1949] ss:$2 sm:$0x3f]
    %s1951 = scalar_lea.vmem [#allocation3], 672
    %v1952 = vld [vmem:[%s1951] ss:$2 sm:$0xff]
    %s1953 = scalar_lea.vmem [#allocation3], 688
    %v1954 = vld [vmem:[%s1953] ss:$2 sm:$0x3f]
    %s1955 = scalar_lea.vmem [#allocation3], 704
    %v1956 = vld [vmem:[%s1955] ss:$2 sm:$0xff]
    %s1957 = scalar_lea.vmem [#allocation3], 720
    %v1958 = vld [vmem:[%s1957] ss:$2 sm:$0x3f]
    %s1959 = scalar_lea.vmem [#allocation3], 736
    %v1960 = vld [vmem:[%s1959] ss:$2 sm:$0xff]
    %s1961 = scalar_lea.vmem [#allocation3], 752
    %v1962 = vld [vmem:[%s1961] ss:$2 sm:$0x3f]
    %s1963 = scalar_lea.vmem [#allocation3], 768
    %v1964 = vld [vmem:[%s1963] ss:$2 sm:$0xff]
    %s1965 = scalar_lea.vmem [#allocation3], 784
    %v1966 = vld [vmem:[%s1965] ss:$2 sm:$0x3f]
    %s1967 = scalar_lea.vmem [#allocation3], 800
    %v1968 = vld [vmem:[%s1967] ss:$2 sm:$0xff]
    %s1969 = scalar_lea.vmem [#allocation3], 816
    %v1970 = vld [vmem:[%s1969] ss:$2 sm:$0x3f]
    %s1971 = scalar_lea.vmem [#allocation3], 832
    %v1972 = vld [vmem:[%s1971] ss:$2 sm:$0xff]
    %s1973 = scalar_lea.vmem [#allocation3], 848
    %v1974 = vld [vmem:[%s1973] ss:$2 sm:$0x3f]
    %s1975 = scalar_lea.vmem [#allocation3], 864
    %v1976 = vld [vmem:[%s1975] ss:$2 sm:$0xff]
    %s1977 = scalar_lea.vmem [#allocation3], 880
    %v1978 = vld [vmem:[%s1977] ss:$2 sm:$0x3f]
    %s1979 = scalar_lea.vmem [#allocation3], 1
    %v1980 = vld [vmem:[%s1979] ss:$2 sm:$0xff]
    %s1981 = scalar_lea.vmem [#allocation3], 17
    %v1982 = vld [vmem:[%s1981] ss:$2 sm:$0x3f]
    %s1983 = scalar_lea.vmem [#allocation3], 33
    %v1984 = vld [vmem:[%s1983] ss:$2 sm:$0xff]
    %s1985 = scalar_lea.vmem [#allocation3], 49
    %v1986 = vld [vmem:[%s1985] ss:$2 sm:$0x3f]
    %s1987 = scalar_lea.vmem [#allocation3], 65
    %v1988 = vld [vmem:[%s1987] ss:$2 sm:$0xff]
    %s1989 = scalar_lea.vmem [#allocation3], 81
    %v1990 = vld [vmem:[%s1989] ss:$2 sm:$0x3f]
    %s1991 = scalar_lea.vmem [#allocation3], 97
    %v1992 = vld [vmem:[%s1991] ss:$2 sm:$0xff]
    %s1993 = scalar_lea.vmem [#allocation3], 113
    %v1994 = vld [vmem:[%s1993] ss:$2 sm:$0x3f]
    %s1995 = scalar_lea.vmem [#allocation3], 129
    %v1996 = vld [vmem:[%s1995] ss:$2 sm:$0xff]
    %s1997 = scalar_lea.vmem [#allocation3], 145
    %v1998 = vld [vmem:[%s1997] ss:$2 sm:$0x3f]
    %s1999 = scalar_lea.vmem [#allocation3], 161
    %v2000 = vld [vmem:[%s1999] ss:$2 sm:$0xff]
    %s2001 = scalar_lea.vmem [#allocation3], 177
    %v2002 = vld [vmem:[%s2001] ss:$2 sm:$0x3f]
    %s2003 = scalar_lea.vmem [#allocation3], 193
    %v2004 = vld [vmem:[%s2003] ss:$2 sm:$0xff]
    %s2005 = scalar_lea.vmem [#allocation3], 209
    %v2006 = vld [vmem:[%s2005] ss:$2 sm:$0x3f]
    %s2007 = scalar_lea.vmem [#allocation3], 225
    %v2008 = vld [vmem:[%s2007] ss:$2 sm:$0xff]
    %s2009 = scalar_lea.vmem [#allocation3], 241
    %v2010 = vld [vmem:[%s2009] ss:$2 sm:$0x3f]
    %s2011 = scalar_lea.vmem [#allocation3], 257
    %v2012 = vld [vmem:[%s2011] ss:$2 sm:$0xff]
    %s2013 = scalar_lea.vmem [#allocation3], 273
    %v2014 = vld [vmem:[%s2013] ss:$2 sm:$0x3f]
    %s2015 = scalar_lea.vmem [#allocation3], 289
    %v2016 = vld [vmem:[%s2015] ss:$2 sm:$0xff]
    %s2017 = scalar_lea.vmem [#allocation3], 305
    %v2018 = vld [vmem:[%s2017] ss:$2 sm:$0x3f]
    %s2019 = scalar_lea.vmem [#allocation3], 321
    %v2020 = vld [vmem:[%s2019] ss:$2 sm:$0xff]
    %s2021 = scalar_lea.vmem [#allocation3], 337
    %v2022 = vld [vmem:[%s2021] ss:$2 sm:$0x3f]
    %s2023 = scalar_lea.vmem [#allocation3], 353
    %v2024 = vld [vmem:[%s2023] ss:$2 sm:$0xff]
    %s2025 = scalar_lea.vmem [#allocation3], 369
    %v2026 = vld [vmem:[%s2025] ss:$2 sm:$0x3f]
    %s2027 = scalar_lea.vmem [#allocation3], 385
    %v2028 = vld [vmem:[%s2027] ss:$2 sm:$0xff]
    %s2029 = scalar_lea.vmem [#allocation3], 401
    %v2030 = vld [vmem:[%s2029] ss:$2 sm:$0x3f]
    %s2031 = scalar_lea.vmem [#allocation3], 417
    %v2032 = vld [vmem:[%s2031] ss:$2 sm:$0xff]
    %s2033 = scalar_lea.vmem [#allocation3], 433
    %v2034 = vld [vmem:[%s2033] ss:$2 sm:$0x3f]
    %s2035 = scalar_lea.vmem [#allocation3], 449
    %v2036 = vld [vmem:[%s2035] ss:$2 sm:$0xff]
    %s2037 = scalar_lea.vmem [#allocation3], 465
    %v2038 = vld [vmem:[%s2037] ss:$2 sm:$0x3f]
    %s2039 = scalar_lea.vmem [#allocation3], 481
    %v2040 = vld [vmem:[%s2039] ss:$2 sm:$0xff]
    %s2041 = scalar_lea.vmem [#allocation3], 497
    %v2042 = vld [vmem:[%s2041] ss:$2 sm:$0x3f]
    %s2043 = scalar_lea.vmem [#allocation3], 513
    %v2044 = vld [vmem:[%s2043] ss:$2 sm:$0xff]
    %s2045 = scalar_lea.vmem [#allocation3], 529
    %v2046 = vld [vmem:[%s2045] ss:$2 sm:$0x3f]
    %s2047 = scalar_lea.vmem [#allocation3], 545
    %v2048 = vld [vmem:[%s2047] ss:$2 sm:$0xff]
    %s2049 = scalar_lea.vmem [#allocation3], 561
    %v2050 = vld [vmem:[%s2049] ss:$2 sm:$0x3f]
    %s2051 = scalar_lea.vmem [#allocation3], 577
    %v2052 = vld [vmem:[%s2051] ss:$2 sm:$0xff]
    %s2053 = scalar_lea.vmem [#allocation3], 593
    %v2054 = vld [vmem:[%s2053] ss:$2 sm:$0x3f]
    %s2055 = scalar_lea.vmem [#allocation3], 609
    %v2056 = vld [vmem:[%s2055] ss:$2 sm:$0xff]
    %s2057 = scalar_lea.vmem [#allocation3], 625
    %v2058 = vld [vmem:[%s2057] ss:$2 sm:$0x3f]
    %s2059 = scalar_lea.vmem [#allocation3], 641
    %v2060 = vld [vmem:[%s2059] ss:$2 sm:$0xff]
    %s2061 = scalar_lea.vmem [#allocation3], 657
    %v2062 = vld [vmem:[%s2061] ss:$2 sm:$0x3f]
    %s2063 = scalar_lea.vmem [#allocation3], 673
    %v2064 = vld [vmem:[%s2063] ss:$2 sm:$0xff]
    %s2065 = scalar_lea.vmem [#allocation3], 689
    %v2066 = vld [vmem:[%s2065] ss:$2 sm:$0x3f]
    %s2067 = scalar_lea.vmem [#allocation3], 705
    %v2068 = vld [vmem:[%s2067] ss:$2 sm:$0xff]
    %s2069 = scalar_lea.vmem [#allocation3], 721
    %v2070 = vld [vmem:[%s2069] ss:$2 sm:$0x3f]
    %s2071 = scalar_lea.vmem [#allocation3], 737
    %v2072 = vld [vmem:[%s2071] ss:$2 sm:$0xff]
    %s2073 = scalar_lea.vmem [#allocation3], 753
    %v2074 = vld [vmem:[%s2073] ss:$2 sm:$0x3f]
    %s2075 = scalar_lea.vmem [#allocation3], 769
    %v2076 = vld [vmem:[%s2075] ss:$2 sm:$0xff]
    %s2077 = scalar_lea.vmem [#allocation3], 785
    %v2078 = vld [vmem:[%s2077] ss:$2 sm:$0x3f]
    %s2079 = scalar_lea.vmem [#allocation3], 801
    %v2080 = vld [vmem:[%s2079] ss:$2 sm:$0xff]
    %s2081 = scalar_lea.vmem [#allocation3], 817
    %v2082 = vld [vmem:[%s2081] ss:$2 sm:$0x3f]
    %s2083 = scalar_lea.vmem [#allocation3], 833
    %v2084 = vld [vmem:[%s2083] ss:$2 sm:$0xff]
    %s2085 = scalar_lea.vmem [#allocation3], 849
    %v2086 = vld [vmem:[%s2085] ss:$2 sm:$0x3f]
    %s2087 = scalar_lea.vmem [#allocation3], 865
    %v2088 = vld [vmem:[%s2087] ss:$2 sm:$0xff]
    %s2089 = scalar_lea.vmem [#allocation3], 881
    %v2090 = vld [vmem:[%s2089] ss:$2 sm:$0x3f]
    %v2091 = vmax.f32 %v1868, %v1980
    %v2092 = vmax.f32 %v1870, %v1982
    %v2093 = vmax.f32 %v1872, %v1984
    %v2094 = vmax.f32 %v1874, %v1986
    %v2095 = vmax.f32 %v1876, %v1988
    %v2096 = vmax.f32 %v1878, %v1990
    %v2097 = vmax.f32 %v1880, %v1992
    %v2098 = vmax.f32 %v1882, %v1994
    %v2099 = vmax.f32 %v1884, %v1996
    %v2100 = vmax.f32 %v1886, %v1998
    %v2101 = vmax.f32 %v1888, %v2000
    %v2102 = vmax.f32 %v1890, %v2002
    %v2103 = vmax.f32 %v1892, %v2004
    %v2104 = vmax.f32 %v1894, %v2006
    %v2105 = vmax.f32 %v1896, %v2008
    %v2106 = vmax.f32 %v1898, %v2010
    %v2107 = vmax.f32 %v1900, %v2012
    %v2108 = vmax.f32 %v1902, %v2014
    %v2109 = vmax.f32 %v1904, %v2016
    %v2110 = vmax.f32 %v1906, %v2018
    %v2111 = vmax.f32 %v1908, %v2020
    %v2112 = vmax.f32 %v1910, %v2022
    %v2113 = vmax.f32 %v1912, %v2024
    %v2114 = vmax.f32 %v1914, %v2026
    %v2115 = vmax.f32 %v1916, %v2028
    %v2116 = vmax.f32 %v1918, %v2030
    %v2117 = vmax.f32 %v1920, %v2032
    %v2118 = vmax.f32 %v1922, %v2034
    %v2119 = vmax.f32 %v1924, %v2036
    %v2120 = vmax.f32 %v1926, %v2038
    %v2121 = vmax.f32 %v1928, %v2040
    %v2122 = vmax.f32 %v1930, %v2042
    %v2123 = vmax.f32 %v1932, %v2044
    %v2124 = vmax.f32 %v1934, %v2046
    %v2125 = vmax.f32 %v1936, %v2048
    %v2126 = vmax.f32 %v1938, %v2050
    %v2127 = vmax.f32 %v1940, %v2052
    %v2128 = vmax.f32 %v1942, %v2054
    %v2129 = vmax.f32 %v1944, %v2056
    %v2130 = vmax.f32 %v1946, %v2058
    %v2131 = vmax.f32 %v1948, %v2060
    %v2132 = vmax.f32 %v1950, %v2062
    %v2133 = vmax.f32 %v1952, %v2064
    %v2134 = vmax.f32 %v1954, %v2066
    %v2135 = vmax.f32 %v1956, %v2068
    %v2136 = vmax.f32 %v1958, %v2070
    %v2137 = vmax.f32 %v1960, %v2072
    %v2138 = vmax.f32 %v1962, %v2074
    %v2139 = vmax.f32 %v1964, %v2076
    %v2140 = vmax.f32 %v1966, %v2078
    %v2141 = vmax.f32 %v1968, %v2080
    %v2142 = vmax.f32 %v1970, %v2082
    %v2143 = vmax.f32 %v1972, %v2084
    %v2144 = vmax.f32 %v1974, %v2086
    %v2145 = vmax.f32 %v1976, %v2088
    %v2146 = vmax.f32 %v1978, %v2090
    %2147 = vst [vmem:[#allocation4] sm:$0xff] 0.0
    %vm2148 = vcmask 588800
    %2149 = vst.msk [vmem:[#allocation4 + $0x8] sm:$0xff] %vm2148, 0.0
    %2150 = vst [vmem:[#allocation4 + $0x10] sm:$0xff] 0.0
    %2151 = vst.msk [vmem:[#allocation4 + $0x18] sm:$0xff] %vm2148, 0.0
    %2152 = vst [vmem:[#allocation4 + $0x20] sm:$0xff] 0.0
    %2153 = vst.msk [vmem:[#allocation4 + $0x28] sm:$0xff] %vm2148, 0.0
    %2154 = vst [vmem:[#allocation4 + $0x30] sm:$0xff] 0.0
    %2155 = vst.msk [vmem:[#allocation4 + $0x38] sm:$0xff] %vm2148, 0.0
    %2156 = vst [vmem:[#allocation4 + $0x40] sm:$0xff] 0.0
    %2157 = vst.msk [vmem:[#allocation4 + $0x48] sm:$0xff] %vm2148, 0.0
    %2158 = vst [vmem:[#allocation4 + $0x50] sm:$0xff] 0.0
    %2159 = vst.msk [vmem:[#allocation4 + $0x58] sm:$0xff] %vm2148, 0.0
    %2160 = vst [vmem:[#allocation4 + $0x60] sm:$0xff] 0.0
    %2161 = vst.msk [vmem:[#allocation4 + $0x68] sm:$0xff] %vm2148, 0.0
    %2162 = vst [vmem:[#allocation4 + $0x70] sm:$0xff] 0.0
    %2163 = vst.msk [vmem:[#allocation4 + $0x78] sm:$0xff] %vm2148, 0.0
    %2164 = vst [vmem:[#allocation4 + $0x80] sm:$0xff] 0.0
    %2165 = vst.msk [vmem:[#allocation4 + $0x88] sm:$0xff] %vm2148, 0.0
    %2166 = vst [vmem:[#allocation4 + $0x90] sm:$0xff] 0.0
    %2167 = vst.msk [vmem:[#allocation4 + $0x98] sm:$0xff] %vm2148, 0.0
    %2168 = vst [vmem:[#allocation4 + $0xa0] sm:$0xff] 0.0
    %2169 = vst.msk [vmem:[#allocation4 + $0xa8] sm:$0xff] %vm2148, 0.0
    %2170 = vst [vmem:[#allocation4 + $0xb0] sm:$0xff] 0.0
    %2171 = vst.msk [vmem:[#allocation4 + $0xb8] sm:$0xff] %vm2148, 0.0
    %2172 = vst [vmem:[#allocation4 + $0xc0] sm:$0xff] 0.0
    %2173 = vst.msk [vmem:[#allocation4 + $0xc8] sm:$0xff] %vm2148, 0.0
    %2174 = vst [vmem:[#allocation4 + $0xd0] sm:$0xff] 0.0
    %2175 = vst.msk [vmem:[#allocation4 + $0xd8] sm:$0xff] %vm2148, 0.0
    %2176 = vst [vmem:[#allocation4 + $0xe0] sm:$0xff] 0.0
    %2177 = vst.msk [vmem:[#allocation4 + $0xe8] sm:$0xff] %vm2148, 0.0
    %2178 = vst [vmem:[#allocation4 + $0xf0] sm:$0xff] 0.0
    %2179 = vst.msk [vmem:[#allocation4 + $0xf8] sm:$0xff] %vm2148, 0.0
    %2180 = vst [vmem:[#allocation4 + $0x100] sm:$0xff] 0.0
    %2181 = vst.msk [vmem:[#allocation4 + $0x108] sm:$0xff] %vm2148, 0.0
    %2182 = vst [vmem:[#allocation4 + $0x110] sm:$0xff] 0.0
    %2183 = vst.msk [vmem:[#allocation4 + $0x118] sm:$0xff] %vm2148, 0.0
    %2184 = vst [vmem:[#allocation4 + $0x120] sm:$0xff] 0.0
    %2185 = vst.msk [vmem:[#allocation4 + $0x128] sm:$0xff] %vm2148, 0.0
    %2186 = vst [vmem:[#allocation4 + $0x130] sm:$0xff] 0.0
    %2187 = vst.msk [vmem:[#allocation4 + $0x138] sm:$0xff] %vm2148, 0.0
    %2188 = vst [vmem:[#allocation4 + $0x140] sm:$0xff] 0.0
    %2189 = vst.msk [vmem:[#allocation4 + $0x148] sm:$0xff] %vm2148, 0.0
    %2190 = vst [vmem:[#allocation4 + $0x150] sm:$0xff] 0.0
    %2191 = vst.msk [vmem:[#allocation4 + $0x158] sm:$0xff] %vm2148, 0.0
    %2192 = vst [vmem:[#allocation4 + $0x160] sm:$0xff] 0.0
    %2193 = vst.msk [vmem:[#allocation4 + $0x168] sm:$0xff] %vm2148, 0.0
    %2194 = vst [vmem:[#allocation4 + $0x170] sm:$0xff] 0.0
    %2195 = vst.msk [vmem:[#allocation4 + $0x178] sm:$0xff] %vm2148, 0.0
    %2196 = vst [vmem:[#allocation4 + $0x180] sm:$0xff] 0.0
    %2197 = vst.msk [vmem:[#allocation4 + $0x188] sm:$0xff] %vm2148, 0.0
    %2198 = vst [vmem:[#allocation4 + $0x190] sm:$0xff] 0.0
    %2199 = vst.msk [vmem:[#allocation4 + $0x198] sm:$0xff] %vm2148, 0.0
    %2200 = vst [vmem:[#allocation4 + $0x1a0] sm:$0xff] 0.0
    %2201 = vst.msk [vmem:[#allocation4 + $0x1a8] sm:$0xff] %vm2148, 0.0
    %2202 = vst [vmem:[#allocation4 + $0x1b0] sm:$0xff] 0.0
    %2203 = vst.msk [vmem:[#allocation4 + $0x1b8] sm:$0xff] %vm2148, 0.0
    %2204 = vst [vmem:[#allocation4 + $0x1c0] sm:$0xff] 0.0
    %2205 = vst.msk [vmem:[#allocation4 + $0x1c8] sm:$0xff] %vm2148, 0.0
    %2206 = vst [vmem:[#allocation4 + $0x1d0] sm:$0xff] 0.0
    %2207 = vst.msk [vmem:[#allocation4 + $0x1d8] sm:$0xff] %vm2148, 0.0
    %2208 = vst [vmem:[#allocation4 + $0x1e0] sm:$0xff] 0.0
    %2209 = vst.msk [vmem:[#allocation4 + $0x1e8] sm:$0xff] %vm2148, 0.0
    %2210 = vst [vmem:[#allocation4 + $0x1f0] sm:$0xff] 0.0
    %2211 = vst.msk [vmem:[#allocation4 + $0x1f8] sm:$0xff] %vm2148, 0.0
    %2212 = vst [vmem:[#allocation4 + $0x200] sm:$0xff] 0.0
    %2213 = vst.msk [vmem:[#allocation4 + $0x208] sm:$0xff] %vm2148, 0.0
    %2214 = vst [vmem:[#allocation4 + $0x210] sm:$0xff] 0.0
    %2215 = vst.msk [vmem:[#allocation4 + $0x218] sm:$0xff] %vm2148, 0.0
    %2216 = vst [vmem:[#allocation4 + $0x220] sm:$0xff] 0.0
    %2217 = vst.msk [vmem:[#allocation4 + $0x228] sm:$0xff] %vm2148, 0.0
    %2218 = vst [vmem:[#allocation4 + $0x230] sm:$0xff] 0.0
    %2219 = vst.msk [vmem:[#allocation4 + $0x238] sm:$0xff] %vm2148, 0.0
    %2220 = vst [vmem:[#allocation4 + $0x240] sm:$0xff] 0.0
    %2221 = vst.msk [vmem:[#allocation4 + $0x248] sm:$0xff] %vm2148, 0.0
    %2222 = vst [vmem:[#allocation4 + $0x250] sm:$0xff] 0.0
    %2223 = vst.msk [vmem:[#allocation4 + $0x258] sm:$0xff] %vm2148, 0.0
    %2224 = vst [vmem:[#allocation4 + $0x260] sm:$0xff] 0.0
    %2225 = vst.msk [vmem:[#allocation4 + $0x268] sm:$0xff] %vm2148, 0.0
    %2226 = vst [vmem:[#allocation4 + $0x270] sm:$0xff] 0.0
    %2227 = vst.msk [vmem:[#allocation4 + $0x278] sm:$0xff] %vm2148, 0.0
    %2228 = vst.msk [vmem:[#allocation4] sm:$0xff] %vm1755, %v2091
    %vm2229 = vcmask 58368
    %2230 = vst.msk [vmem:[#allocation4 + $0x10] sm:$0x3] %vm2229, %v2092
    %2231 = vst.msk [vmem:[#allocation4 + $0x20] sm:$0xff] %vm1755, %v2093
    %2232 = vst.msk [vmem:[#allocation4 + $0x30] sm:$0x3] %vm2229, %v2094
    %2233 = vst.msk [vmem:[#allocation4 + $0x40] sm:$0xff] %vm1755, %v2095
    %2234 = vst.msk [vmem:[#allocation4 + $0x50] sm:$0x3] %vm2229, %v2096
    %2235 = vst.msk [vmem:[#allocation4 + $0x60] sm:$0xff] %vm1755, %v2097
    %2236 = vst.msk [vmem:[#allocation4 + $0x70] sm:$0x3] %vm2229, %v2098
    %2237 = vst.msk [vmem:[#allocation4 + $0x80] sm:$0xff] %vm1755, %v2099
    %2238 = vst.msk [vmem:[#allocation4 + $0x90] sm:$0x3] %vm2229, %v2100
    %2239 = vst.msk [vmem:[#allocation4 + $0xa0] sm:$0xff] %vm1755, %v2101
    %2240 = vst.msk [vmem:[#allocation4 + $0xb0] sm:$0x3] %vm2229, %v2102
    %2241 = vst.msk [vmem:[#allocation4 + $0xc0] sm:$0xff] %vm1755, %v2103
    %2242 = vst.msk [vmem:[#allocation4 + $0xd0] sm:$0x3] %vm2229, %v2104
    %2243 = vst.msk [vmem:[#allocation4 + $0xe0] sm:$0xff] %vm1755, %v2105
    %2244 = vst.msk [vmem:[#allocation4 + $0xf0] sm:$0x3] %vm2229, %v2106
    %2245 = vst.msk [vmem:[#allocation4 + $0x100] sm:$0xff] %vm1755, %v2107
    %2246 = vst.msk [vmem:[#allocation4 + $0x110] sm:$0x3] %vm2229, %v2108
    %2247 = vst.msk [vmem:[#allocation4 + $0x120] sm:$0xff] %vm1755, %v2109
    %2248 = vst.msk [vmem:[#allocation4 + $0x130] sm:$0x3] %vm2229, %v2110
    %2249 = vst.msk [vmem:[#allocation4 + $0x140] sm:$0xff] %vm1755, %v2119
    %2250 = vst.msk [vmem:[#allocation4 + $0x150] sm:$0x3] %vm2229, %v2120
    %2251 = vst.msk [vmem:[#allocation4 + $0x160] sm:$0xff] %vm1755, %v2121
    %2252 = vst.msk [vmem:[#allocation4 + $0x170] sm:$0x3] %vm2229, %v2122
    %2253 = vst.msk [vmem:[#allocation4 + $0x180] sm:$0xff] %vm1755, %v2123
    %2254 = vst.msk [vmem:[#allocation4 + $0x190] sm:$0x3] %vm2229, %v2124
    %2255 = vst.msk [vmem:[#allocation4 + $0x1a0] sm:$0xff] %vm1755, %v2125
    %2256 = vst.msk [vmem:[#allocation4 + $0x1b0] sm:$0x3] %vm2229, %v2126
    %2257 = vst.msk [vmem:[#allocation4 + $0x1c0] sm:$0xff] %vm1755, %v2127
    %2258 = vst.msk [vmem:[#allocation4 + $0x1d0] sm:$0x3] %vm2229, %v2128
    %2259 = vst.msk [vmem:[#allocation4 + $0x1e0] sm:$0xff] %vm1755, %v2129
    %2260 = vst.msk [vmem:[#allocation4 + $0x1f0] sm:$0x3] %vm2229, %v2130
    %2261 = vst.msk [vmem:[#allocation4 + $0x200] sm:$0xff] %vm1755, %v2131
    %2262 = vst.msk [vmem:[#allocation4 + $0x210] sm:$0x3] %vm2229, %v2132
    %2263 = vst.msk [vmem:[#allocation4 + $0x220] sm:$0xff] %vm1755, %v2133
    %2264 = vst.msk [vmem:[#allocation4 + $0x230] sm:$0x3] %vm2229, %v2134
    %2265 = vst.msk [vmem:[#allocation4 + $0x240] sm:$0xff] %vm1755, %v2135
    %2266 = vst.msk [vmem:[#allocation4 + $0x250] sm:$0x3] %vm2229, %v2136
    %2267 = vst.msk [vmem:[#allocation4 + $0x260] sm:$0xff] %vm1755, %v2137
    %2268 = vst.msk [vmem:[#allocation4 + $0x270] sm:$0x3] %vm2229, %v2138
    %v2309 = vrot.slane %v2091, 1
    %v2310 = vrot.slane %v2092, 1
    %v2311 = vsel %vm62, %v2309, %v2310
    %v2312 = vrot.slane %v2093, 1
    %v2313 = vrot.slane %v2094, 1
    %v2314 = vsel %vm62, %v2312, %v2313
    %v2315 = vrot.slane %v2095, 1
    %v2316 = vrot.slane %v2096, 1
    %v2317 = vsel %vm62, %v2315, %v2316
    %v2318 = vrot.slane %v2097, 1
    %v2319 = vrot.slane %v2098, 1
    %v2320 = vsel %vm62, %v2318, %v2319
    %v2321 = vrot.slane %v2099, 1
    %v2322 = vrot.slane %v2100, 1
    %v2323 = vsel %vm62, %v2321, %v2322
    %v2324 = vrot.slane %v2101, 1
    %v2325 = vrot.slane %v2102, 1
    %v2326 = vsel %vm62, %v2324, %v2325
    %v2327 = vrot.slane %v2103, 1
    %v2328 = vrot.slane %v2104, 1
    %v2329 = vsel %vm62, %v2327, %v2328
    %v2330 = vrot.slane %v2105, 1
    %v2331 = vrot.slane %v2106, 1
    %v2332 = vsel %vm62, %v2330, %v2331
    %v2333 = vrot.slane %v2107, 1
    %v2334 = vrot.slane %v2108, 1
    %v2335 = vsel %vm62, %v2333, %v2334
    %v2336 = vrot.slane %v2109, 1
    %v2337 = vrot.slane %v2110, 1
    %v2338 = vsel %vm62, %v2336, %v2337
    %v2339 = vrot.slane %v2119, 1
    %v2340 = vrot.slane %v2120, 1
    %v2341 = vsel %vm62, %v2339, %v2340
    %v2342 = vrot.slane %v2121, 1
    %v2343 = vrot.slane %v2122, 1
    %v2344 = vsel %vm62, %v2342, %v2343
    %v2345 = vrot.slane %v2123, 1
    %v2346 = vrot.slane %v2124, 1
    %v2347 = vsel %vm62, %v2345, %v2346
    %v2348 = vrot.slane %v2125, 1
    %v2349 = vrot.slane %v2126, 1
    %v2350 = vsel %vm62, %v2348, %v2349
    %v2351 = vrot.slane %v2127, 1
    %v2352 = vrot.slane %v2128, 1
    %v2353 = vsel %vm62, %v2351, %v2352
    %v2354 = vrot.slane %v2129, 1
    %v2355 = vrot.slane %v2130, 1
    %v2356 = vsel %vm62, %v2354, %v2355
    %v2357 = vrot.slane %v2131, 1
    %v2358 = vrot.slane %v2132, 1
    %v2359 = vsel %vm62, %v2357, %v2358
    %v2360 = vrot.slane %v2133, 1
    %v2361 = vrot.slane %v2134, 1
    %v2362 = vsel %vm62, %v2360, %v2361
    %v2363 = vrot.slane %v2135, 1
    %v2364 = vrot.slane %v2136, 1
    %v2365 = vsel %vm62, %v2363, %v2364
    %v2366 = vrot.slane %v2137, 1
    %v2367 = vrot.slane %v2138, 1
    %v2368 = vsel %vm62, %v2366, %v2367
    %2369 = vrot.lane.b32.xlu0 %v2311, 8
    %v2370 = vpop.permute.xlu0 %2369
    %2371 = vrot.lane.b32.xlu0 %v2310, 8
    %v2372 = vpop.permute.xlu0 %2371
    %2373 = vrot.lane.b32.xlu0 %v2314, 8
    %v2374 = vpop.permute.xlu0 %2373
    %2375 = vrot.lane.b32.xlu0 %v2313, 8
    %v2376 = vpop.permute.xlu0 %2375
    %2377 = vrot.lane.b32.xlu0 %v2317, 8
    %v2378 = vpop.permute.xlu0 %2377
    %2379 = vrot.lane.b32.xlu0 %v2316, 8
    %v2380 = vpop.permute.xlu0 %2379
    %2381 = vrot.lane.b32.xlu0 %v2320, 8
    %v2382 = vpop.permute.xlu0 %2381
    %2383 = vrot.lane.b32.xlu0 %v2319, 8
    %v2384 = vpop.permute.xlu0 %2383
    %2385 = vrot.lane.b32.xlu0 %v2323, 8
    %v2386 = vpop.permute.xlu0 %2385
    %2387 = vrot.lane.b32.xlu0 %v2322, 8
    %v2388 = vpop.permute.xlu0 %2387
    %2389 = vrot.lane.b32.xlu0 %v2326, 8
    %v2390 = vpop.permute.xlu0 %2389
    %2391 = vrot.lane.b32.xlu0 %v2325, 8
    %v2392 = vpop.permute.xlu0 %2391
    %2393 = vrot.lane.b32.xlu0 %v2329, 8
    %v2394 = vpop.permute.xlu0 %2393
    %2395 = vrot.lane.b32.xlu0 %v2328, 8
    %v2396 = vpop.permute.xlu0 %2395
    %2397 = vrot.lane.b32.xlu0 %v2332, 8
    %v2398 = vpop.permute.xlu0 %2397
    %2399 = vrot.lane.b32.xlu0 %v2331, 8
    %v2400 = vpop.permute.xlu0 %2399
    %2401 = vrot.lane.b32.xlu0 %v2335, 8
    %v2402 = vpop.permute.xlu0 %2401
    %2403 = vrot.lane.b32.xlu0 %v2334, 8
    %v2404 = vpop.permute.xlu0 %2403
    %2405 = vrot.lane.b32.xlu0 %v2338, 8
    %v2406 = vpop.permute.xlu0 %2405
    %2407 = vrot.lane.b32.xlu0 %v2337, 8
    %v2408 = vpop.permute.xlu0 %2407
    %2409 = vrot.lane.b32.xlu0 %v2341, 8
    %v2410 = vpop.permute.xlu0 %2409
    %2411 = vrot.lane.b32.xlu0 %v2340, 8
    %v2412 = vpop.permute.xlu0 %2411
    %2413 = vrot.lane.b32.xlu0 %v2344, 8
    %v2414 = vpop.permute.xlu0 %2413
    %2415 = vrot.lane.b32.xlu0 %v2343, 8
    %v2416 = vpop.permute.xlu0 %2415
    %2417 = vrot.lane.b32.xlu0 %v2347, 8
    %v2418 = vpop.permute.xlu0 %2417
    %2419 = vrot.lane.b32.xlu0 %v2346, 8
    %v2420 = vpop.permute.xlu0 %2419
    %2421 = vrot.lane.b32.xlu0 %v2350, 8
    %v2422 = vpop.permute.xlu0 %2421
    %2423 = vrot.lane.b32.xlu0 %v2349, 8
    %v2424 = vpop.permute.xlu0 %2423
    %2425 = vrot.lane.b32.xlu0 %v2353, 8
    %v2426 = vpop.permute.xlu0 %2425
    %2427 = vrot.lane.b32.xlu0 %v2352, 8
    %v2428 = vpop.permute.xlu0 %2427
    %2429 = vrot.lane.b32.xlu0 %v2356, 8
    %v2430 = vpop.permute.xlu0 %2429
    %2431 = vrot.lane.b32.xlu0 %v2355, 8
    %v2432 = vpop.permute.xlu0 %2431
    %2433 = vrot.lane.b32.xlu0 %v2359, 8
    %v2434 = vpop.permute.xlu0 %2433
    %2435 = vrot.lane.b32.xlu0 %v2358, 8
    %v2436 = vpop.permute.xlu0 %2435
    %2437 = vrot.lane.b32.xlu0 %v2362, 8
    %v2438 = vpop.permute.xlu0 %2437
    %2439 = vrot.lane.b32.xlu0 %v2361, 8
    %v2440 = vpop.permute.xlu0 %2439
    %2441 = vrot.lane.b32.xlu0 %v2365, 8
    %v2442 = vpop.permute.xlu0 %2441
    %2443 = vrot.lane.b32.xlu0 %v2364, 8
    %v2444 = vpop.permute.xlu0 %2443
    %2445 = vrot.lane.b32.xlu0 %v2368, 8
    %v2446 = vpop.permute.xlu0 %2445
    %2447 = vrot.lane.b32.xlu0 %v2367, 8
    %v2448 = vpop.permute.xlu0 %2447
    %vm2489 = vcmask 130112
    %2490 = vst.msk [vmem:[#allocation4] sm:$0xff] %vm2489, %v2370
    %vm2491 = vcmask 123968
    %2492 = vst.msk [vmem:[#allocation4 + $0x10] sm:$0x3] %vm2491, %v2372
    %2493 = vst.msk [vmem:[#allocation4 + $0x20] sm:$0xff] %vm2489, %v2374
    %2494 = vst.msk [vmem:[#allocation4 + $0x30] sm:$0x3] %vm2491, %v2376
    %2495 = vst.msk [vmem:[#allocation4 + $0x40] sm:$0xff] %vm2489, %v2378
    %2496 = vst.msk [vmem:[#allocation4 + $0x50] sm:$0x3] %vm2491, %v2380
    %2497 = vst.msk [vmem:[#allocation4 + $0x60] sm:$0xff] %vm2489, %v2382
    %2498 = vst.msk [vmem:[#allocation4 + $0x70] sm:$0x3] %vm2491, %v2384
    %2499 = vst.msk [vmem:[#allocation4 + $0x80] sm:$0xff] %vm2489, %v2386
    %2500 = vst.msk [vmem:[#allocation4 + $0x90] sm:$0x3] %vm2491, %v2388
    %2501 = vst.msk [vmem:[#allocation4 + $0xa0] sm:$0xff] %vm2489, %v2390
    %2502 = vst.msk [vmem:[#allocation4 + $0xb0] sm:$0x3] %vm2491, %v2392
    %2503 = vst.msk [vmem:[#allocation4 + $0xc0] sm:$0xff] %vm2489, %v2394
    %2504 = vst.msk [vmem:[#allocation4 + $0xd0] sm:$0x3] %vm2491, %v2396
    %2505 = vst.msk [vmem:[#allocation4 + $0xe0] sm:$0xff] %vm2489, %v2398
    %2506 = vst.msk [vmem:[#allocation4 + $0xf0] sm:$0x3] %vm2491, %v2400
    %2507 = vst.msk [vmem:[#allocation4 + $0x100] sm:$0xff] %vm2489, %v2402
    %2508 = vst.msk [vmem:[#allocation4 + $0x110] sm:$0x3] %vm2491, %v2404
    %2509 = vst.msk [vmem:[#allocation4 + $0x120] sm:$0xff] %vm2489, %v2406
    %2510 = vst.msk [vmem:[#allocation4 + $0x130] sm:$0x3] %vm2491, %v2408
    %2511 = vst.msk [vmem:[#allocation4 + $0x140] sm:$0xff] %vm2489, %v2410
    %2512 = vst.msk [vmem:[#allocation4 + $0x150] sm:$0x3] %vm2491, %v2412
    %2513 = vst.msk [vmem:[#allocation4 + $0x160] sm:$0xff] %vm2489, %v2414
    %2514 = vst.msk [vmem:[#allocation4 + $0x170] sm:$0x3] %vm2491, %v2416
    %2515 = vst.msk [vmem:[#allocation4 + $0x180] sm:$0xff] %vm2489, %v2418
    %2516 = vst.msk [vmem:[#allocation4 + $0x190] sm:$0x3] %vm2491, %v2420
    %2517 = vst.msk [vmem:[#allocation4 + $0x1a0] sm:$0xff] %vm2489, %v2422
    %2518 = vst.msk [vmem:[#allocation4 + $0x1b0] sm:$0x3] %vm2491, %v2424
    %2519 = vst.msk [vmem:[#allocation4 + $0x1c0] sm:$0xff] %vm2489, %v2426
    %2520 = vst.msk [vmem:[#allocation4 + $0x1d0] sm:$0x3] %vm2491, %v2428
    %2521 = vst.msk [vmem:[#allocation4 + $0x1e0] sm:$0xff] %vm2489, %v2430
    %2522 = vst.msk [vmem:[#allocation4 + $0x1f0] sm:$0x3] %vm2491, %v2432
    %2523 = vst.msk [vmem:[#allocation4 + $0x200] sm:$0xff] %vm2489, %v2434
    %2524 = vst.msk [vmem:[#allocation4 + $0x210] sm:$0x3] %vm2491, %v2436
    %2525 = vst.msk [vmem:[#allocation4 + $0x220] sm:$0xff] %vm2489, %v2438
    %2526 = vst.msk [vmem:[#allocation4 + $0x230] sm:$0x3] %vm2491, %v2440
    %2527 = vst.msk [vmem:[#allocation4 + $0x240] sm:$0xff] %vm2489, %v2442
    %2528 = vst.msk [vmem:[#allocation4 + $0x250] sm:$0x3] %vm2491, %v2444
    %2529 = vst.msk [vmem:[#allocation4 + $0x260] sm:$0xff] %vm2489, %v2446
    %2530 = vst.msk [vmem:[#allocation4 + $0x270] sm:$0x3] %vm2491, %v2448
    %vm2531 = vcmask 1045504
    %v2532 = vrot.slane %v2091, 2
    %v2533 = vrot.slane %v2092, 2
    %v2534 = vsel %vm2531, %v2532, %v2533
    %v2535 = vrot.slane %v2093, 2
    %v2536 = vrot.slane %v2094, 2
    %v2537 = vsel %vm2531, %v2535, %v2536
    %v2538 = vrot.slane %v2095, 2
    %v2539 = vrot.slane %v2096, 2
    %v2540 = vsel %vm2531, %v2538, %v2539
    %v2541 = vrot.slane %v2097, 2
    %v2542 = vrot.slane %v2098, 2
    %v2543 = vsel %vm2531, %v2541, %v2542
    %v2544 = vrot.slane %v2099, 2
    %v2545 = vrot.slane %v2100, 2
    %v2546 = vsel %vm2531, %v2544, %v2545
    %v2547 = vrot.slane %v2101, 2
    %v2548 = vrot.slane %v2102, 2
    %v2549 = vsel %vm2531, %v2547, %v2548
    %v2550 = vrot.slane %v2103, 2
    %v2551 = vrot.slane %v2104, 2
    %v2552 = vsel %vm2531, %v2550, %v2551
    %v2553 = vrot.slane %v2105, 2
    %v2554 = vrot.slane %v2106, 2
    %v2555 = vsel %vm2531, %v2553, %v2554
    %v2556 = vrot.slane %v2107, 2
    %v2557 = vrot.slane %v2108, 2
    %v2558 = vsel %vm2531, %v2556, %v2557
    %v2559 = vrot.slane %v2109, 2
    %v2560 = vrot.slane %v2110, 2
    %v2561 = vsel %vm2531, %v2559, %v2560
    %v2562 = vrot.slane %v2119, 2
    %v2563 = vrot.slane %v2120, 2
    %v2564 = vsel %vm2531, %v2562, %v2563
    %v2565 = vrot.slane %v2121, 2
    %v2566 = vrot.slane %v2122, 2
    %v2567 = vsel %vm2531, %v2565, %v2566
    %v2568 = vrot.slane %v2123, 2
    %v2569 = vrot.slane %v2124, 2
    %v2570 = vsel %vm2531, %v2568, %v2569
    %v2571 = vrot.slane %v2125, 2
    %v2572 = vrot.slane %v2126, 2
    %v2573 = vsel %vm2531, %v2571, %v2572
    %v2574 = vrot.slane %v2127, 2
    %v2575 = vrot.slane %v2128, 2
    %v2576 = vsel %vm2531, %v2574, %v2575
    %v2577 = vrot.slane %v2129, 2
    %v2578 = vrot.slane %v2130, 2
    %v2579 = vsel %vm2531, %v2577, %v2578
    %v2580 = vrot.slane %v2131, 2
    %v2581 = vrot.slane %v2132, 2
    %v2582 = vsel %vm2531, %v2580, %v2581
    %v2583 = vrot.slane %v2133, 2
    %v2584 = vrot.slane %v2134, 2
    %v2585 = vsel %vm2531, %v2583, %v2584
    %v2586 = vrot.slane %v2135, 2
    %v2587 = vrot.slane %v2136, 2
    %v2588 = vsel %vm2531, %v2586, %v2587
    %v2589 = vrot.slane %v2137, 2
    %v2590 = vrot.slane %v2138, 2
    %v2591 = vsel %vm2531, %v2589, %v2590
    %2592 = vrot.lane.b32.xlu0 %v2534, 16
    %v2593 = vpop.permute.xlu0 %2592
    %2594 = vrot.lane.b32.xlu0 %v2533, 16
    %v2595 = vpop.permute.xlu0 %2594
    %2596 = vrot.lane.b32.xlu0 %v2537, 16
    %v2597 = vpop.permute.xlu0 %2596
    %2598 = vrot.lane.b32.xlu0 %v2536, 16
    %v2599 = vpop.permute.xlu0 %2598
    %2600 = vrot.lane.b32.xlu0 %v2540, 16
    %v2601 = vpop.permute.xlu0 %2600
    %2602 = vrot.lane.b32.xlu0 %v2539, 16
    %v2603 = vpop.permute.xlu0 %2602
    %2604 = vrot.lane.b32.xlu0 %v2543, 16
    %v2605 = vpop.permute.xlu0 %2604
    %2606 = vrot.lane.b32.xlu0 %v2542, 16
    %v2607 = vpop.permute.xlu0 %2606
    %2608 = vrot.lane.b32.xlu0 %v2546, 16
    %v2609 = vpop.permute.xlu0 %2608
    %2610 = vrot.lane.b32.xlu0 %v2545, 16
    %v2611 = vpop.permute.xlu0 %2610
    %2612 = vrot.lane.b32.xlu0 %v2549, 16
    %v2613 = vpop.permute.xlu0 %2612
    %2614 = vrot.lane.b32.xlu0 %v2548, 16
    %v2615 = vpop.permute.xlu0 %2614
    %2616 = vrot.lane.b32.xlu0 %v2552, 16
    %v2617 = vpop.permute.xlu0 %2616
    %2618 = vrot.lane.b32.xlu0 %v2551, 16
    %v2619 = vpop.permute.xlu0 %2618
    %2620 = vrot.lane.b32.xlu0 %v2555, 16
    %v2621 = vpop.permute.xlu0 %2620
    %2622 = vrot.lane.b32.xlu0 %v2554, 16
    %v2623 = vpop.permute.xlu0 %2622
    %2624 = vrot.lane.b32.xlu0 %v2558, 16
    %v2625 = vpop.permute.xlu0 %2624
    %2626 = vrot.lane.b32.xlu0 %v2557, 16
    %v2627 = vpop.permute.xlu0 %2626
    %2628 = vrot.lane.b32.xlu0 %v2561, 16
    %v2629 = vpop.permute.xlu0 %2628
    %2630 = vrot.lane.b32.xlu0 %v2560, 16
    %v2631 = vpop.permute.xlu0 %2630
    %2632 = vrot.lane.b32.xlu0 %v2564, 16
    %v2633 = vpop.permute.xlu0 %2632
    %2634 = vrot.lane.b32.xlu0 %v2563, 16
    %v2635 = vpop.permute.xlu0 %2634
    %2636 = vrot.lane.b32.xlu0 %v2567, 16
    %v2637 = vpop.permute.xlu0 %2636
    %2638 = vrot.lane.b32.xlu0 %v2566, 16
    %v2639 = vpop.permute.xlu0 %2638
    %2640 = vrot.lane.b32.xlu0 %v2570, 16
    %v2641 = vpop.permute.xlu0 %2640
    %2642 = vrot.lane.b32.xlu0 %v2569, 16
    %v2643 = vpop.permute.xlu0 %2642
    %2644 = vrot.lane.b32.xlu0 %v2573, 16
    %v2645 = vpop.permute.xlu0 %2644
    %2646 = vrot.lane.b32.xlu0 %v2572, 16
    %v2647 = vpop.permute.xlu0 %2646
    %2648 = vrot.lane.b32.xlu0 %v2576, 16
    %v2649 = vpop.permute.xlu0 %2648
    %2650 = vrot.lane.b32.xlu0 %v2575, 16
    %v2651 = vpop.permute.xlu0 %2650
    %2652 = vrot.lane.b32.xlu0 %v2579, 16
    %v2653 = vpop.permute.xlu0 %2652
    %2654 = vrot.lane.b32.xlu0 %v2578, 16
    %v2655 = vpop.permute.xlu0 %2654
    %2656 = vrot.lane.b32.xlu0 %v2582, 16
    %v2657 = vpop.permute.xlu0 %2656
    %2658 = vrot.lane.b32.xlu0 %v2581, 16
    %v2659 = vpop.permute.xlu0 %2658
    %2660 = vrot.lane.b32.xlu0 %v2585, 16
    %v2661 = vpop.permute.xlu0 %2660
    %2662 = vrot.lane.b32.xlu0 %v2584, 16
    %v2663 = vpop.permute.xlu0 %2662
    %2664 = vrot.lane.b32.xlu0 %v2588, 16
    %v2665 = vpop.permute.xlu0 %2664
    %2666 = vrot.lane.b32.xlu0 %v2587, 16
    %v2667 = vpop.permute.xlu0 %2666
    %2668 = vrot.lane.b32.xlu0 %v2591, 16
    %v2669 = vpop.permute.xlu0 %2668
    %2670 = vrot.lane.b32.xlu0 %v2590, 16
    %v2671 = vpop.permute.xlu0 %2670
    %vm2712 = vcmask 195712
    %2713 = vst.msk [vmem:[#allocation4] sm:$0xff] %vm2712, %v2593
    %vm2714 = vcmask 189568
    %2715 = vst.msk [vmem:[#allocation4 + $0x10] sm:$0x3] %vm2714, %v2595
    %2716 = vst.msk [vmem:[#allocation4 + $0x20] sm:$0xff] %vm2712, %v2597
    %2717 = vst.msk [vmem:[#allocation4 + $0x30] sm:$0x3] %vm2714, %v2599
    %2718 = vst.msk [vmem:[#allocation4 + $0x40] sm:$0xff] %vm2712, %v2601
    %2719 = vst.msk [vmem:[#allocation4 + $0x50] sm:$0x3] %vm2714, %v2603
    %2720 = vst.msk [vmem:[#allocation4 + $0x60] sm:$0xff] %vm2712, %v2605
    %2721 = vst.msk [vmem:[#allocation4 + $0x70] sm:$0x3] %vm2714, %v2607
    %2722 = vst.msk [vmem:[#allocation4 + $0x80] sm:$0xff] %vm2712, %v2609
    %2723 = vst.msk [vmem:[#allocation4 + $0x90] sm:$0x3] %vm2714, %v2611
    %2724 = vst.msk [vmem:[#allocation4 + $0xa0] sm:$0xff] %vm2712, %v2613
    %2725 = vst.msk [vmem:[#allocation4 + $0xb0] sm:$0x3] %vm2714, %v2615
    %2726 = vst.msk [vmem:[#allocation4 + $0xc0] sm:$0xff] %vm2712, %v2617
    %2727 = vst.msk [vmem:[#allocation4 + $0xd0] sm:$0x3] %vm2714, %v2619
    %2728 = vst.msk [vmem:[#allocation4 + $0xe0] sm:$0xff] %vm2712, %v2621
    %2729 = vst.msk [vmem:[#allocation4 + $0xf0] sm:$0x3] %vm2714, %v2623
    %2730 = vst.msk [vmem:[#allocation4 + $0x100] sm:$0xff] %vm2712, %v2625
    %2731 = vst.msk [vmem:[#allocation4 + $0x110] sm:$0x3] %vm2714, %v2627
    %2732 = vst.msk [vmem:[#allocation4 + $0x120] sm:$0xff] %vm2712, %v2629
    %2733 = vst.msk [vmem:[#allocation4 + $0x130] sm:$0x3] %vm2714, %v2631
    %2734 = vst.msk [vmem:[#allocation4 + $0x140] sm:$0xff] %vm2712, %v2633
    %2735 = vst.msk [vmem:[#allocation4 + $0x150] sm:$0x3] %vm2714, %v2635
    %2736 = vst.msk [vmem:[#allocation4 + $0x160] sm:$0xff] %vm2712, %v2637
    %2737 = vst.msk [vmem:[#allocation4 + $0x170] sm:$0x3] %vm2714, %v2639
    %2738 = vst.msk [vmem:[#allocation4 + $0x180] sm:$0xff] %vm2712, %v2641
    %2739 = vst.msk [vmem:[#allocation4 + $0x190] sm:$0x3] %vm2714, %v2643
    %2740 = vst.msk [vmem:[#allocation4 + $0x1a0] sm:$0xff] %vm2712, %v2645
    %2741 = vst.msk [vmem:[#allocation4 + $0x1b0] sm:$0x3] %vm2714, %v2647
    %2742 = vst.msk [vmem:[#allocation4 + $0x1c0] sm:$0xff] %vm2712, %v2649
    %2743 = vst.msk [vmem:[#allocation4 + $0x1d0] sm:$0x3] %vm2714, %v2651
    %2744 = vst.msk [vmem:[#allocation4 + $0x1e0] sm:$0xff] %vm2712, %v2653
    %2745 = vst.msk [vmem:[#allocation4 + $0x1f0] sm:$0x3] %vm2714, %v2655
    %2746 = vst.msk [vmem:[#allocation4 + $0x200] sm:$0xff] %vm2712, %v2657
    %2747 = vst.msk [vmem:[#allocation4 + $0x210] sm:$0x3] %vm2714, %v2659
    %2748 = vst.msk [vmem:[#allocation4 + $0x220] sm:$0xff] %vm2712, %v2661
    %2749 = vst.msk [vmem:[#allocation4 + $0x230] sm:$0x3] %vm2714, %v2663
    %2750 = vst.msk [vmem:[#allocation4 + $0x240] sm:$0xff] %vm2712, %v2665
    %2751 = vst.msk [vmem:[#allocation4 + $0x250] sm:$0x3] %vm2714, %v2667
    %2752 = vst.msk [vmem:[#allocation4 + $0x260] sm:$0xff] %vm2712, %v2669
    %2753 = vst.msk [vmem:[#allocation4 + $0x270] sm:$0x3] %vm2714, %v2671
    %v2754 = vrot.slane %v2091, 3
    %v2755 = vrot.slane %v2092, 3
    %v2756 = vsel %vm804, %v2754, %v2755
    %v2757 = vrot.slane %v2093, 3
    %v2758 = vrot.slane %v2094, 3
    %v2759 = vsel %vm804, %v2757, %v2758
    %v2760 = vrot.slane %v2095, 3
    %v2761 = vrot.slane %v2096, 3
    %v2762 = vsel %vm804, %v2760, %v2761
    %v2763 = vrot.slane %v2097, 3
    %v2764 = vrot.slane %v2098, 3
    %v2765 = vsel %vm804, %v2763, %v2764
    %v2766 = vrot.slane %v2099, 3
    %v2767 = vrot.slane %v2100, 3
    %v2768 = vsel %vm804, %v2766, %v2767
    %v2769 = vrot.slane %v2101, 3
    %v2770 = vrot.slane %v2102, 3
    %v2771 = vsel %vm804, %v2769, %v2770
    %v2772 = vrot.slane %v2103, 3
    %v2773 = vrot.slane %v2104, 3
    %v2774 = vsel %vm804, %v2772, %v2773
    %v2775 = vrot.slane %v2105, 3
    %v2776 = vrot.slane %v2106, 3
    %v2777 = vsel %vm804, %v2775, %v2776
    %v2778 = vrot.slane %v2107, 3
    %v2779 = vrot.slane %v2108, 3
    %v2780 = vsel %vm804, %v2778, %v2779
    %v2781 = vrot.slane %v2109, 3
    %v2782 = vrot.slane %v2110, 3
    %v2783 = vsel %vm804, %v2781, %v2782
    %v2784 = vrot.slane %v2119, 3
    %v2785 = vrot.slane %v2120, 3
    %v2786 = vsel %vm804, %v2784, %v2785
    %v2787 = vrot.slane %v2121, 3
    %v2788 = vrot.slane %v2122, 3
    %v2789 = vsel %vm804, %v2787, %v2788
    %v2790 = vrot.slane %v2123, 3
    %v2791 = vrot.slane %v2124, 3
    %v2792 = vsel %vm804, %v2790, %v2791
    %v2793 = vrot.slane %v2125, 3
    %v2794 = vrot.slane %v2126, 3
    %v2795 = vsel %vm804, %v2793, %v2794
    %v2796 = vrot.slane %v2127, 3
    %v2797 = vrot.slane %v2128, 3
    %v2798 = vsel %vm804, %v2796, %v2797
    %v2799 = vrot.slane %v2129, 3
    %v2800 = vrot.slane %v2130, 3
    %v2801 = vsel %vm804, %v2799, %v2800
    %v2802 = vrot.slane %v2131, 3
    %v2803 = vrot.slane %v2132, 3
    %v2804 = vsel %vm804, %v2802, %v2803
    %v2805 = vrot.slane %v2133, 3
    %v2806 = vrot.slane %v2134, 3
    %v2807 = vsel %vm804, %v2805, %v2806
    %v2808 = vrot.slane %v2135, 3
    %v2809 = vrot.slane %v2136, 3
    %v2810 = vsel %vm804, %v2808, %v2809
    %v2811 = vrot.slane %v2137, 3
    %v2812 = vrot.slane %v2138, 3
    %v2813 = vsel %vm804, %v2811, %v2812
    %2814 = vrot.lane.b32.xlu0 %v2756, 24
    %v2815 = vpop.permute.xlu0 %2814
    %2816 = vrot.lane.b32.xlu0 %v2755, 24
    %v2817 = vpop.permute.xlu0 %2816
    %2818 = vrot.lane.b32.xlu0 %v2759, 24
    %v2819 = vpop.permute.xlu0 %2818
    %2820 = vrot.lane.b32.xlu0 %v2758, 24
    %v2821 = vpop.permute.xlu0 %2820
    %2822 = vrot.lane.b32.xlu0 %v2762, 24
    %v2823 = vpop.permute.xlu0 %2822
    %2824 = vrot.lane.b32.xlu0 %v2761, 24
    %v2825 = vpop.permute.xlu0 %2824
    %2826 = vrot.lane.b32.xlu0 %v2765, 24
    %v2827 = vpop.permute.xlu0 %2826
    %2828 = vrot.lane.b32.xlu0 %v2764, 24
    %v2829 = vpop.permute.xlu0 %2828
    %2830 = vrot.lane.b32.xlu0 %v2768, 24
    %v2831 = vpop.permute.xlu0 %2830
    %2832 = vrot.lane.b32.xlu0 %v2767, 24
    %v2833 = vpop.permute.xlu0 %2832
    %2834 = vrot.lane.b32.xlu0 %v2771, 24
    %v2835 = vpop.permute.xlu0 %2834
    %2836 = vrot.lane.b32.xlu0 %v2770, 24
    %v2837 = vpop.permute.xlu0 %2836
    %2838 = vrot.lane.b32.xlu0 %v2774, 24
    %v2839 = vpop.permute.xlu0 %2838
    %2840 = vrot.lane.b32.xlu0 %v2773, 24
    %v2841 = vpop.permute.xlu0 %2840
    %2842 = vrot.lane.b32.xlu0 %v2777, 24
    %v2843 = vpop.permute.xlu0 %2842
    %2844 = vrot.lane.b32.xlu0 %v2776, 24
    %v2845 = vpop.permute.xlu0 %2844
    %2846 = vrot.lane.b32.xlu0 %v2780, 24
    %v2847 = vpop.permute.xlu0 %2846
    %2848 = vrot.lane.b32.xlu0 %v2779, 24
    %v2849 = vpop.permute.xlu0 %2848
    %2850 = vrot.lane.b32.xlu0 %v2783, 24
    %v2851 = vpop.permute.xlu0 %2850
    %2852 = vrot.lane.b32.xlu0 %v2782, 24
    %v2853 = vpop.permute.xlu0 %2852
    %2854 = vrot.lane.b32.xlu0 %v2786, 24
    %v2855 = vpop.permute.xlu0 %2854
    %2856 = vrot.lane.b32.xlu0 %v2785, 24
    %v2857 = vpop.permute.xlu0 %2856
    %2858 = vrot.lane.b32.xlu0 %v2789, 24
    %v2859 = vpop.permute.xlu0 %2858
    %2860 = vrot.lane.b32.xlu0 %v2788, 24
    %v2861 = vpop.permute.xlu0 %2860
    %2862 = vrot.lane.b32.xlu0 %v2792, 24
    %v2863 = vpop.permute.xlu0 %2862
    %2864 = vrot.lane.b32.xlu0 %v2791, 24
    %v2865 = vpop.permute.xlu0 %2864
    %2866 = vrot.lane.b32.xlu0 %v2795, 24
    %v2867 = vpop.permute.xlu0 %2866
    %2868 = vrot.lane.b32.xlu0 %v2794, 24
    %v2869 = vpop.permute.xlu0 %2868
    %2870 = vrot.lane.b32.xlu0 %v2798, 24
    %v2871 = vpop.permute.xlu0 %2870
    %2872 = vrot.lane.b32.xlu0 %v2797, 24
    %v2873 = vpop.permute.xlu0 %2872
    %2874 = vrot.lane.b32.xlu0 %v2801, 24
    %v2875 = vpop.permute.xlu0 %2874
    %2876 = vrot.lane.b32.xlu0 %v2800, 24
    %v2877 = vpop.permute.xlu0 %2876
    %2878 = vrot.lane.b32.xlu0 %v2804, 24
    %v2879 = vpop.permute.xlu0 %2878
    %2880 = vrot.lane.b32.xlu0 %v2803, 24
    %v2881 = vpop.permute.xlu0 %2880
    %2882 = vrot.lane.b32.xlu0 %v2807, 24
    %v2883 = vpop.permute.xlu0 %2882
    %2884 = vrot.lane.b32.xlu0 %v2806, 24
    %v2885 = vpop.permute.xlu0 %2884
    %2886 = vrot.lane.b32.xlu0 %v2810, 24
    %v2887 = vpop.permute.xlu0 %2886
    %2888 = vrot.lane.b32.xlu0 %v2809, 24
    %v2889 = vpop.permute.xlu0 %2888
    %2890 = vrot.lane.b32.xlu0 %v2813, 24
    %v2891 = vpop.permute.xlu0 %2890
    %2892 = vrot.lane.b32.xlu0 %v2812, 24
    %v2893 = vpop.permute.xlu0 %2892
    %vm2934 = vcmask 261312
    %2935 = vst.msk [vmem:[#allocation4] sm:$0xff] %vm2934, %v2815
    %vm2936 = vcmask 255168
    %2937 = vst.msk [vmem:[#allocation4 + $0x10] sm:$0x3] %vm2936, %v2817
    %2938 = vst.msk [vmem:[#allocation4 + $0x20] sm:$0xff] %vm2934, %v2819
    %2939 = vst.msk [vmem:[#allocation4 + $0x30] sm:$0x3] %vm2936, %v2821
    %2940 = vst.msk [vmem:[#allocation4 + $0x40] sm:$0xff] %vm2934, %v2823
    %2941 = vst.msk [vmem:[#allocation4 + $0x50] sm:$0x3] %vm2936, %v2825
    %2942 = vst.msk [vmem:[#allocation4 + $0x60] sm:$0xff] %vm2934, %v2827
    %2943 = vst.msk [vmem:[#allocation4 + $0x70] sm:$0x3] %vm2936, %v2829
    %2944 = vst.msk [vmem:[#allocation4 + $0x80] sm:$0xff] %vm2934, %v2831
    %2945 = vst.msk [vmem:[#allocation4 + $0x90] sm:$0x3] %vm2936, %v2833
    %2946 = vst.msk [vmem:[#allocation4 + $0xa0] sm:$0xff] %vm2934, %v2835
    %2947 = vst.msk [vmem:[#allocation4 + $0xb0] sm:$0x3] %vm2936, %v2837
    %2948 = vst.msk [vmem:[#allocation4 + $0xc0] sm:$0xff] %vm2934, %v2839
    %2949 = vst.msk [vmem:[#allocation4 + $0xd0] sm:$0x3] %vm2936, %v2841
    %2950 = vst.msk [vmem:[#allocation4 + $0xe0] sm:$0xff] %vm2934, %v2843
    %2951 = vst.msk [vmem:[#allocation4 + $0xf0] sm:$0x3] %vm2936, %v2845
    %2952 = vst.msk [vmem:[#allocation4 + $0x100] sm:$0xff] %vm2934, %v2847
    %2953 = vst.msk [vmem:[#allocation4 + $0x110] sm:$0x3] %vm2936, %v2849
    %2954 = vst.msk [vmem:[#allocation4 + $0x120] sm:$0xff] %vm2934, %v2851
    %2955 = vst.msk [vmem:[#allocation4 + $0x130] sm:$0x3] %vm2936, %v2853
    %2956 = vst.msk [vmem:[#allocation4 + $0x140] sm:$0xff] %vm2934, %v2855
    %2957 = vst.msk [vmem:[#allocation4 + $0x150] sm:$0x3] %vm2936, %v2857
    %2958 = vst.msk [vmem:[#allocation4 + $0x160] sm:$0xff] %vm2934, %v2859
    %2959 = vst.msk [vmem:[#allocation4 + $0x170] sm:$0x3] %vm2936, %v2861
    %2960 = vst.msk [vmem:[#allocation4 + $0x180] sm:$0xff] %vm2934, %v2863
    %2961 = vst.msk [vmem:[#allocation4 + $0x190] sm:$0x3] %vm2936, %v2865
    %2962 = vst.msk [vmem:[#allocation4 + $0x1a0] sm:$0xff] %vm2934, %v2867
    %2963 = vst.msk [vmem:[#allocation4 + $0x1b0] sm:$0x3] %vm2936, %v2869
    %2964 = vst.msk [vmem:[#allocation4 + $0x1c0] sm:$0xff] %vm2934, %v2871
    %2965 = vst.msk [vmem:[#allocation4 + $0x1d0] sm:$0x3] %vm2936, %v2873
    %2966 = vst.msk [vmem:[#allocation4 + $0x1e0] sm:$0xff] %vm2934, %v2875
    %2967 = vst.msk [vmem:[#allocation4 + $0x1f0] sm:$0x3] %vm2936, %v2877
    %2968 = vst.msk [vmem:[#allocation4 + $0x200] sm:$0xff] %vm2934, %v2879
    %2969 = vst.msk [vmem:[#allocation4 + $0x210] sm:$0x3] %vm2936, %v2881
    %2970 = vst.msk [vmem:[#allocation4 + $0x220] sm:$0xff] %vm2934, %v2883
    %2971 = vst.msk [vmem:[#allocation4 + $0x230] sm:$0x3] %vm2936, %v2885
    %2972 = vst.msk [vmem:[#allocation4 + $0x240] sm:$0xff] %vm2934, %v2887
    %2973 = vst.msk [vmem:[#allocation4 + $0x250] sm:$0x3] %vm2936, %v2889
    %2974 = vst.msk [vmem:[#allocation4 + $0x260] sm:$0xff] %vm2934, %v2891
    %2975 = vst.msk [vmem:[#allocation4 + $0x270] sm:$0x3] %vm2936, %v2893
    %v2976 = vrot.slane %v2091, 4
    %v2977 = vrot.slane %v2092, 4
    %v2978 = vsel %vm803, %v2976, %v2977
    %v2979 = vrot.slane %v2093, 4
    %v2980 = vrot.slane %v2094, 4
    %v2981 = vsel %vm803, %v2979, %v2980
    %v2982 = vrot.slane %v2095, 4
    %v2983 = vrot.slane %v2096, 4
    %v2984 = vsel %vm803, %v2982, %v2983
    %v2985 = vrot.slane %v2097, 4
    %v2986 = vrot.slane %v2098, 4
    %v2987 = vsel %vm803, %v2985, %v2986
    %v2988 = vrot.slane %v2099, 4
    %v2989 = vrot.slane %v2100, 4
    %v2990 = vsel %vm803, %v2988, %v2989
    %v2991 = vrot.slane %v2101, 4
    %v2992 = vrot.slane %v2102, 4
    %v2993 = vsel %vm803, %v2991, %v2992
    %v2994 = vrot.slane %v2103, 4
    %v2995 = vrot.slane %v2104, 4
    %v2996 = vsel %vm803, %v2994, %v2995
    %v2997 = vrot.slane %v2105, 4
    %v2998 = vrot.slane %v2106, 4
    %v2999 = vsel %vm803, %v2997, %v2998
    %v3000 = vrot.slane %v2107, 4
    %v3001 = vrot.slane %v2108, 4
    %v3002 = vsel %vm803, %v3000, %v3001
    %v3003 = vrot.slane %v2109, 4
    %v3004 = vrot.slane %v2110, 4
    %v3005 = vsel %vm803, %v3003, %v3004
    %v3006 = vrot.slane %v2119, 4
    %v3007 = vrot.slane %v2120, 4
    %v3008 = vsel %vm803, %v3006, %v3007
    %v3009 = vrot.slane %v2121, 4
    %v3010 = vrot.slane %v2122, 4
    %v3011 = vsel %vm803, %v3009, %v3010
    %v3012 = vrot.slane %v2123, 4
    %v3013 = vrot.slane %v2124, 4
    %v3014 = vsel %vm803, %v3012, %v3013
    %v3015 = vrot.slane %v2125, 4
    %v3016 = vrot.slane %v2126, 4
    %v3017 = vsel %vm803, %v3015, %v3016
    %v3018 = vrot.slane %v2127, 4
    %v3019 = vrot.slane %v2128, 4
    %v3020 = vsel %vm803, %v3018, %v3019
    %v3021 = vrot.slane %v2129, 4
    %v3022 = vrot.slane %v2130, 4
    %v3023 = vsel %vm803, %v3021, %v3022
    %v3024 = vrot.slane %v2131, 4
    %v3025 = vrot.slane %v2132, 4
    %v3026 = vsel %vm803, %v3024, %v3025
    %v3027 = vrot.slane %v2133, 4
    %v3028 = vrot.slane %v2134, 4
    %v3029 = vsel %vm803, %v3027, %v3028
    %v3030 = vrot.slane %v2135, 4
    %v3031 = vrot.slane %v2136, 4
    %v3032 = vsel %vm803, %v3030, %v3031
    %v3033 = vrot.slane %v2137, 4
    %v3034 = vrot.slane %v2138, 4
    %v3035 = vsel %vm803, %v3033, %v3034
    %3036 = vrot.lane.b32.xlu0 %v2978, 32
    %v3037 = vpop.permute.xlu0 %3036
    %3038 = vrot.lane.b32.xlu0 %v2977, 32
    %v3039 = vpop.permute.xlu0 %3038
    %3040 = vrot.lane.b32.xlu0 %v2981, 32
    %v3041 = vpop.permute.xlu0 %3040
    %3042 = vrot.lane.b32.xlu0 %v2980, 32
    %v3043 = vpop.permute.xlu0 %3042
    %3044 = vrot.lane.b32.xlu0 %v2984, 32
    %v3045 = vpop.permute.xlu0 %3044
    %3046 = vrot.lane.b32.xlu0 %v2983, 32
    %v3047 = vpop.permute.xlu0 %3046
    %3048 = vrot.lane.b32.xlu0 %v2987, 32
    %v3049 = vpop.permute.xlu0 %3048
    %3050 = vrot.lane.b32.xlu0 %v2986, 32
    %v3051 = vpop.permute.xlu0 %3050
    %3052 = vrot.lane.b32.xlu0 %v2990, 32
    %v3053 = vpop.permute.xlu0 %3052
    %3054 = vrot.lane.b32.xlu0 %v2989, 32
    %v3055 = vpop.permute.xlu0 %3054
    %3056 = vrot.lane.b32.xlu0 %v2993, 32
    %v3057 = vpop.permute.xlu0 %3056
    %3058 = vrot.lane.b32.xlu0 %v2992, 32
    %v3059 = vpop.permute.xlu0 %3058
    %3060 = vrot.lane.b32.xlu0 %v2996, 32
    %v3061 = vpop.permute.xlu0 %3060
    %3062 = vrot.lane.b32.xlu0 %v2995, 32
    %v3063 = vpop.permute.xlu0 %3062
    %3064 = vrot.lane.b32.xlu0 %v2999, 32
    %v3065 = vpop.permute.xlu0 %3064
    %3066 = vrot.lane.b32.xlu0 %v2998, 32
    %v3067 = vpop.permute.xlu0 %3066
    %3068 = vrot.lane.b32.xlu0 %v3002, 32
    %v3069 = vpop.permute.xlu0 %3068
    %3070 = vrot.lane.b32.xlu0 %v3001, 32
    %v3071 = vpop.permute.xlu0 %3070
    %3072 = vrot.lane.b32.xlu0 %v3005, 32
    %v3073 = vpop.permute.xlu0 %3072
    %3074 = vrot.lane.b32.xlu0 %v3004, 32
    %v3075 = vpop.permute.xlu0 %3074
    %3076 = vrot.lane.b32.xlu0 %v3008, 32
    %v3077 = vpop.permute.xlu0 %3076
    %3078 = vrot.lane.b32.xlu0 %v3007, 32
    %v3079 = vpop.permute.xlu0 %3078
    %3080 = vrot.lane.b32.xlu0 %v3011, 32
    %v3081 = vpop.permute.xlu0 %3080
    %3082 = vrot.lane.b32.xlu0 %v3010, 32
    %v3083 = vpop.permute.xlu0 %3082
    %3084 = vrot.lane.b32.xlu0 %v3014, 32
    %v3085 = vpop.permute.xlu0 %3084
    %3086 = vrot.lane.b32.xlu0 %v3013, 32
    %v3087 = vpop.permute.xlu0 %3086
    %3088 = vrot.lane.b32.xlu0 %v3017, 32
    %v3089 = vpop.permute.xlu0 %3088
    %3090 = vrot.lane.b32.xlu0 %v3016, 32
    %v3091 = vpop.permute.xlu0 %3090
    %3092 = vrot.lane.b32.xlu0 %v3020, 32
    %v3093 = vpop.permute.xlu0 %3092
    %3094 = vrot.lane.b32.xlu0 %v3019, 32
    %v3095 = vpop.permute.xlu0 %3094
    %3096 = vrot.lane.b32.xlu0 %v3023, 32
    %v3097 = vpop.permute.xlu0 %3096
    %3098 = vrot.lane.b32.xlu0 %v3022, 32
    %v3099 = vpop.permute.xlu0 %3098
    %3100 = vrot.lane.b32.xlu0 %v3026, 32
    %v3101 = vpop.permute.xlu0 %3100
    %3102 = vrot.lane.b32.xlu0 %v3025, 32
    %v3103 = vpop.permute.xlu0 %3102
    %3104 = vrot.lane.b32.xlu0 %v3029, 32
    %v3105 = vpop.permute.xlu0 %3104
    %3106 = vrot.lane.b32.xlu0 %v3028, 32
    %v3107 = vpop.permute.xlu0 %3106
    %3108 = vrot.lane.b32.xlu0 %v3032, 32
    %v3109 = vpop.permute.xlu0 %3108
    %3110 = vrot.lane.b32.xlu0 %v3031, 32
    %v3111 = vpop.permute.xlu0 %3110
    %3112 = vrot.lane.b32.xlu0 %v3035, 32
    %v3113 = vpop.permute.xlu0 %3112
    %3114 = vrot.lane.b32.xlu0 %v3034, 32
    %v3115 = vpop.permute.xlu0 %3114
    %vm3156 = vcmask 326912
    %3157 = vst.msk [vmem:[#allocation4] sm:$0xff] %vm3156, %v3037
    %vm3158 = vcmask 320768
    %3159 = vst.msk [vmem:[#allocation4 + $0x10] sm:$0x3] %vm3158, %v3039
    %3160 = vst.msk [vmem:[#allocation4 + $0x20] sm:$0xff] %vm3156, %v3041
    %3161 = vst.msk [vmem:[#allocation4 + $0x30] sm:$0x3] %vm3158, %v3043
    %3162 = vst.msk [vmem:[#allocation4 + $0x40] sm:$0xff] %vm3156, %v3045
    %3163 = vst.msk [vmem:[#allocation4 + $0x50] sm:$0x3] %vm3158, %v3047
    %3164 = vst.msk [vmem:[#allocation4 + $0x60] sm:$0xff] %vm3156, %v3049
    %3165 = vst.msk [vmem:[#allocation4 + $0x70] sm:$0x3] %vm3158, %v3051
    %3166 = vst.msk [vmem:[#allocation4 + $0x80] sm:$0xff] %vm3156, %v3053
    %3167 = vst.msk [vmem:[#allocation4 + $0x90] sm:$0x3] %vm3158, %v3055
    %3168 = vst.msk [vmem:[#allocation4 + $0xa0] sm:$0xff] %vm3156, %v3057
    %3169 = vst.msk [vmem:[#allocation4 + $0xb0] sm:$0x3] %vm3158, %v3059
    %3170 = vst.msk [vmem:[#allocation4 + $0xc0] sm:$0xff] %vm3156, %v3061
    %3171 = vst.msk [vmem:[#allocation4 + $0xd0] sm:$0x3] %vm3158, %v3063
    %3172 = vst.msk [vmem:[#allocation4 + $0xe0] sm:$0xff] %vm3156, %v3065
    %3173 = vst.msk [vmem:[#allocation4 + $0xf0] sm:$0x3] %vm3158, %v3067
    %3174 = vst.msk [vmem:[#allocation4 + $0x100] sm:$0xff] %vm3156, %v3069
    %3175 = vst.msk [vmem:[#allocation4 + $0x110] sm:$0x3] %vm3158, %v3071
    %3176 = vst.msk [vmem:[#allocation4 + $0x120] sm:$0xff] %vm3156, %v3073
    %3177 = vst.msk [vmem:[#allocation4 + $0x130] sm:$0x3] %vm3158, %v3075
    %3178 = vst.msk [vmem:[#allocation4 + $0x140] sm:$0xff] %vm3156, %v3077
    %3179 = vst.msk [vmem:[#allocation4 + $0x150] sm:$0x3] %vm3158, %v3079
    %3180 = vst.msk [vmem:[#allocation4 + $0x160] sm:$0xff] %vm3156, %v3081
    %3181 = vst.msk [vmem:[#allocation4 + $0x170] sm:$0x3] %vm3158, %v3083
    %3182 = vst.msk [vmem:[#allocation4 + $0x180] sm:$0xff] %vm3156, %v3085
    %3183 = vst.msk [vmem:[#allocation4 + $0x190] sm:$0x3] %vm3158, %v3087
    %3184 = vst.msk [vmem:[#allocation4 + $0x1a0] sm:$0xff] %vm3156, %v3089
    %3185 = vst.msk [vmem:[#allocation4 + $0x1b0] sm:$0x3] %vm3158, %v3091
    %3186 = vst.msk [vmem:[#allocation4 + $0x1c0] sm:$0xff] %vm3156, %v3093
    %3187 = vst.msk [vmem:[#allocation4 + $0x1d0] sm:$0x3] %vm3158, %v3095
    %3188 = vst.msk [vmem:[#allocation4 + $0x1e0] sm:$0xff] %vm3156, %v3097
    %3189 = vst.msk [vmem:[#allocation4 + $0x1f0] sm:$0x3] %vm3158, %v3099
    %3190 = vst.msk [vmem:[#allocation4 + $0x200] sm:$0xff] %vm3156, %v3101
    %3191 = vst.msk [vmem:[#allocation4 + $0x210] sm:$0x3] %vm3158, %v3103
    %3192 = vst.msk [vmem:[#allocation4 + $0x220] sm:$0xff] %vm3156, %v3105
    %3193 = vst.msk [vmem:[#allocation4 + $0x230] sm:$0x3] %vm3158, %v3107
    %3194 = vst.msk [vmem:[#allocation4 + $0x240] sm:$0xff] %vm3156, %v3109
    %3195 = vst.msk [vmem:[#allocation4 + $0x250] sm:$0x3] %vm3158, %v3111
    %3196 = vst.msk [vmem:[#allocation4 + $0x260] sm:$0xff] %vm3156, %v3113
    %3197 = vst.msk [vmem:[#allocation4 + $0x270] sm:$0x3] %vm3158, %v3115
    %3202 = vrot.lane.b32.xlu0 %v2093, 40
    %v3203 = vpop.permute.xlu0 %3202
    %3204 = vrot.lane.b32.xlu0 %v2094, 40
    %v3205 = vpop.permute.xlu0 %3204
    %3206 = vrot.lane.b32.xlu0 %v2095, 40
    %v3207 = vpop.permute.xlu0 %3206
    %3208 = vrot.lane.b32.xlu0 %v2096, 40
    %v3209 = vpop.permute.xlu0 %3208
    %3210 = vrot.lane.b32.xlu0 %v2097, 40
    %v3211 = vpop.permute.xlu0 %3210
    %3212 = vrot.lane.b32.xlu0 %v2098, 40
    %v3213 = vpop.permute.xlu0 %3212
    %3214 = vrot.lane.b32.xlu0 %v2099, 40
    %v3215 = vpop.permute.xlu0 %3214
    %3216 = vrot.lane.b32.xlu0 %v2100, 40
    %v3217 = vpop.permute.xlu0 %3216
    %3218 = vrot.lane.b32.xlu0 %v2101, 40
    %v3219 = vpop.permute.xlu0 %3218
    %3220 = vrot.lane.b32.xlu0 %v2102, 40
    %v3221 = vpop.permute.xlu0 %3220
    %3222 = vrot.lane.b32.xlu0 %v2103, 40
    %v3223 = vpop.permute.xlu0 %3222
    %3224 = vrot.lane.b32.xlu0 %v2104, 40
    %v3225 = vpop.permute.xlu0 %3224
    %3226 = vrot.lane.b32.xlu0 %v2105, 40
    %v3227 = vpop.permute.xlu0 %3226
    %3228 = vrot.lane.b32.xlu0 %v2106, 40
    %v3229 = vpop.permute.xlu0 %3228
    %3230 = vrot.lane.b32.xlu0 %v2107, 40
    %v3231 = vpop.permute.xlu0 %3230
    %3232 = vrot.lane.b32.xlu0 %v2108, 40
    %v3233 = vpop.permute.xlu0 %3232
    %3234 = vrot.lane.b32.xlu0 %v2109, 40
    %v3235 = vpop.permute.xlu0 %3234
    %3236 = vrot.lane.b32.xlu0 %v2110, 40
    %v3237 = vpop.permute.xlu0 %3236
    %3238 = vrot.lane.b32.xlu0 %v2111, 40
    %v3239 = vpop.permute.xlu0 %3238
    %3240 = vrot.lane.b32.xlu0 %v2112, 40
    %v3241 = vpop.permute.xlu0 %3240
    %3242 = vrot.lane.b32.xlu0 %v2121, 40
    %v3243 = vpop.permute.xlu0 %3242
    %3244 = vrot.lane.b32.xlu0 %v2122, 40
    %v3245 = vpop.permute.xlu0 %3244
    %3246 = vrot.lane.b32.xlu0 %v2123, 40
    %v3247 = vpop.permute.xlu0 %3246
    %3248 = vrot.lane.b32.xlu0 %v2124, 40
    %v3249 = vpop.permute.xlu0 %3248
    %3250 = vrot.lane.b32.xlu0 %v2125, 40
    %v3251 = vpop.permute.xlu0 %3250
    %3252 = vrot.lane.b32.xlu0 %v2126, 40
    %v3253 = vpop.permute.xlu0 %3252
    %3254 = vrot.lane.b32.xlu0 %v2127, 40
    %v3255 = vpop.permute.xlu0 %3254
    %3256 = vrot.lane.b32.xlu0 %v2128, 40
    %v3257 = vpop.permute.xlu0 %3256
    %3258 = vrot.lane.b32.xlu0 %v2129, 40
    %v3259 = vpop.permute.xlu0 %3258
    %3260 = vrot.lane.b32.xlu0 %v2130, 40
    %v3261 = vpop.permute.xlu0 %3260
    %3262 = vrot.lane.b32.xlu0 %v2131, 40
    %v3263 = vpop.permute.xlu0 %3262
    %3264 = vrot.lane.b32.xlu0 %v2132, 40
    %v3265 = vpop.permute.xlu0 %3264
    %3266 = vrot.lane.b32.xlu0 %v2133, 40
    %v3267 = vpop.permute.xlu0 %3266
    %3268 = vrot.lane.b32.xlu0 %v2134, 40
    %v3269 = vpop.permute.xlu0 %3268
    %3270 = vrot.lane.b32.xlu0 %v2135, 40
    %v3271 = vpop.permute.xlu0 %3270
    %3272 = vrot.lane.b32.xlu0 %v2136, 40
    %v3273 = vpop.permute.xlu0 %3272
    %3274 = vrot.lane.b32.xlu0 %v2137, 40
    %v3275 = vpop.permute.xlu0 %3274
    %3276 = vrot.lane.b32.xlu0 %v2138, 40
    %v3277 = vpop.permute.xlu0 %3276
    %3278 = vrot.lane.b32.xlu0 %v2139, 40
    %v3279 = vpop.permute.xlu0 %3278
    %3280 = vrot.lane.b32.xlu0 %v2140, 40
    %v3281 = vpop.permute.xlu0 %3280
    %vm3322 = vcmask 392512
    %3323 = vst.msk [vmem:[#allocation4] sm:$0xff] %vm3322, %v3203
    %vm3324 = vcmask 386368
    %3325 = vst.msk [vmem:[#allocation4 + $0x10] sm:$0x3] %vm3324, %v3205
    %3326 = vst.msk [vmem:[#allocation4 + $0x20] sm:$0xff] %vm3322, %v3207
    %3327 = vst.msk [vmem:[#allocation4 + $0x30] sm:$0x3] %vm3324, %v3209
    %3328 = vst.msk [vmem:[#allocation4 + $0x40] sm:$0xff] %vm3322, %v3211
    %3329 = vst.msk [vmem:[#allocation4 + $0x50] sm:$0x3] %vm3324, %v3213
    %3330 = vst.msk [vmem:[#allocation4 + $0x60] sm:$0xff] %vm3322, %v3215
    %3331 = vst.msk [vmem:[#allocation4 + $0x70] sm:$0x3] %vm3324, %v3217
    %3332 = vst.msk [vmem:[#allocation4 + $0x80] sm:$0xff] %vm3322, %v3219
    %3333 = vst.msk [vmem:[#allocation4 + $0x90] sm:$0x3] %vm3324, %v3221
    %3334 = vst.msk [vmem:[#allocation4 + $0xa0] sm:$0xff] %vm3322, %v3223
    %3335 = vst.msk [vmem:[#allocation4 + $0xb0] sm:$0x3] %vm3324, %v3225
    %3336 = vst.msk [vmem:[#allocation4 + $0xc0] sm:$0xff] %vm3322, %v3227
    %3337 = vst.msk [vmem:[#allocation4 + $0xd0] sm:$0x3] %vm3324, %v3229
    %3338 = vst.msk [vmem:[#allocation4 + $0xe0] sm:$0xff] %vm3322, %v3231
    %3339 = vst.msk [vmem:[#allocation4 + $0xf0] sm:$0x3] %vm3324, %v3233
    %3340 = vst.msk [vmem:[#allocation4 + $0x100] sm:$0xff] %vm3322, %v3235
    %3341 = vst.msk [vmem:[#allocation4 + $0x110] sm:$0x3] %vm3324, %v3237
    %3342 = vst.msk [vmem:[#allocation4 + $0x120] sm:$0xff] %vm3322, %v3239
    %3343 = vst.msk [vmem:[#allocation4 + $0x130] sm:$0x3] %vm3324, %v3241
    %3344 = vst.msk [vmem:[#allocation4 + $0x140] sm:$0xff] %vm3322, %v3243
    %3345 = vst.msk [vmem:[#allocation4 + $0x150] sm:$0x3] %vm3324, %v3245
    %3346 = vst.msk [vmem:[#allocation4 + $0x160] sm:$0xff] %vm3322, %v3247
    %3347 = vst.msk [vmem:[#allocation4 + $0x170] sm:$0x3] %vm3324, %v3249
    %3348 = vst.msk [vmem:[#allocation4 + $0x180] sm:$0xff] %vm3322, %v3251
    %3349 = vst.msk [vmem:[#allocation4 + $0x190] sm:$0x3] %vm3324, %v3253
    %3350 = vst.msk [vmem:[#allocation4 + $0x1a0] sm:$0xff] %vm3322, %v3255
    %3351 = vst.msk [vmem:[#allocation4 + $0x1b0] sm:$0x3] %vm3324, %v3257
    %3352 = vst.msk [vmem:[#allocation4 + $0x1c0] sm:$0xff] %vm3322, %v3259
    %3353 = vst.msk [vmem:[#allocation4 + $0x1d0] sm:$0x3] %vm3324, %v3261
    %3354 = vst.msk [vmem:[#allocation4 + $0x1e0] sm:$0xff] %vm3322, %v3263
    %3355 = vst.msk [vmem:[#allocation4 + $0x1f0] sm:$0x3] %vm3324, %v3265
    %3356 = vst.msk [vmem:[#allocation4 + $0x200] sm:$0xff] %vm3322, %v3267
    %3357 = vst.msk [vmem:[#allocation4 + $0x210] sm:$0x3] %vm3324, %v3269
    %3358 = vst.msk [vmem:[#allocation4 + $0x220] sm:$0xff] %vm3322, %v3271
    %3359 = vst.msk [vmem:[#allocation4 + $0x230] sm:$0x3] %vm3324, %v3273
    %3360 = vst.msk [vmem:[#allocation4 + $0x240] sm:$0xff] %vm3322, %v3275
    %3361 = vst.msk [vmem:[#allocation4 + $0x250] sm:$0x3] %vm3324, %v3277
    %3362 = vst.msk [vmem:[#allocation4 + $0x260] sm:$0xff] %vm3322, %v3279
    %3363 = vst.msk [vmem:[#allocation4 + $0x270] sm:$0x3] %vm3324, %v3281
    %v3364 = vrot.slane %v2111, 1
    %v3365 = vrot.slane %v2112, 1
    %v3366 = vsel %vm62, %v3364, %v3365
    %v3367 = vrot.slane %v2139, 1
    %v3368 = vrot.slane %v2140, 1
    %v3369 = vsel %vm62, %v3367, %v3368
    %3370 = vrot.lane.b32.xlu0 %v2314, 48
    %v3371 = vpop.permute.xlu0 %3370
    %3372 = vrot.lane.b32.xlu0 %v2313, 48
    %v3373 = vpop.permute.xlu0 %3372
    %3374 = vrot.lane.b32.xlu0 %v2317, 48
    %v3375 = vpop.permute.xlu0 %3374
    %3376 = vrot.lane.b32.xlu0 %v2316, 48
    %v3377 = vpop.permute.xlu0 %3376
    %3378 = vrot.lane.b32.xlu0 %v2320, 48
    %v3379 = vpop.permute.xlu0 %3378
    %3380 = vrot.lane.b32.xlu0 %v2319, 48
    %v3381 = vpop.permute.xlu0 %3380
    %3382 = vrot.lane.b32.xlu0 %v2323, 48
    %v3383 = vpop.permute.xlu0 %3382
    %3384 = vrot.lane.b32.xlu0 %v2322, 48
    %v3385 = vpop.permute.xlu0 %3384
    %3386 = vrot.lane.b32.xlu0 %v2326, 48
    %v3387 = vpop.permute.xlu0 %3386
    %3388 = vrot.lane.b32.xlu0 %v2325, 48
    %v3389 = vpop.permute.xlu0 %3388
    %3390 = vrot.lane.b32.xlu0 %v2329, 48
    %v3391 = vpop.permute.xlu0 %3390
    %3392 = vrot.lane.b32.xlu0 %v2328, 48
    %v3393 = vpop.permute.xlu0 %3392
    %3394 = vrot.lane.b32.xlu0 %v2332, 48
    %v3395 = vpop.permute.xlu0 %3394
    %3396 = vrot.lane.b32.xlu0 %v2331, 48
    %v3397 = vpop.permute.xlu0 %3396
    %3398 = vrot.lane.b32.xlu0 %v2335, 48
    %v3399 = vpop.permute.xlu0 %3398
    %3400 = vrot.lane.b32.xlu0 %v2334, 48
    %v3401 = vpop.permute.xlu0 %3400
    %3402 = vrot.lane.b32.xlu0 %v2338, 48
    %v3403 = vpop.permute.xlu0 %3402
    %3404 = vrot.lane.b32.xlu0 %v2337, 48
    %v3405 = vpop.permute.xlu0 %3404
    %3406 = vrot.lane.b32.xlu0 %v3366, 48
    %v3407 = vpop.permute.xlu0 %3406
    %3408 = vrot.lane.b32.xlu0 %v3365, 48
    %v3409 = vpop.permute.xlu0 %3408
    %3410 = vrot.lane.b32.xlu0 %v2344, 48
    %v3411 = vpop.permute.xlu0 %3410
    %3412 = vrot.lane.b32.xlu0 %v2343, 48
    %v3413 = vpop.permute.xlu0 %3412
    %3414 = vrot.lane.b32.xlu0 %v2347, 48
    %v3415 = vpop.permute.xlu0 %3414
    %3416 = vrot.lane.b32.xlu0 %v2346, 48
    %v3417 = vpop.permute.xlu0 %3416
    %3418 = vrot.lane.b32.xlu0 %v2350, 48
    %v3419 = vpop.permute.xlu0 %3418
    %3420 = vrot.lane.b32.xlu0 %v2349, 48
    %v3421 = vpop.permute.xlu0 %3420
    %3422 = vrot.lane.b32.xlu0 %v2353, 48
    %v3423 = vpop.permute.xlu0 %3422
    %3424 = vrot.lane.b32.xlu0 %v2352, 48
    %v3425 = vpop.permute.xlu0 %3424
    %3426 = vrot.lane.b32.xlu0 %v2356, 48
    %v3427 = vpop.permute.xlu0 %3426
    %3428 = vrot.lane.b32.xlu0 %v2355, 48
    %v3429 = vpop.permute.xlu0 %3428
    %3430 = vrot.lane.b32.xlu0 %v2359, 48
    %v3431 = vpop.permute.xlu0 %3430
    %3432 = vrot.lane.b32.xlu0 %v2358, 48
    %v3433 = vpop.permute.xlu0 %3432
    %3434 = vrot.lane.b32.xlu0 %v2362, 48
    %v3435 = vpop.permute.xlu0 %3434
    %3436 = vrot.lane.b32.xlu0 %v2361, 48
    %v3437 = vpop.permute.xlu0 %3436
    %3438 = vrot.lane.b32.xlu0 %v2365, 48
    %v3439 = vpop.permute.xlu0 %3438
    %3440 = vrot.lane.b32.xlu0 %v2364, 48
    %v3441 = vpop.permute.xlu0 %3440
    %3442 = vrot.lane.b32.xlu0 %v2368, 48
    %v3443 = vpop.permute.xlu0 %3442
    %3444 = vrot.lane.b32.xlu0 %v2367, 48
    %v3445 = vpop.permute.xlu0 %3444
    %3446 = vrot.lane.b32.xlu0 %v3369, 48
    %v3447 = vpop.permute.xlu0 %3446
    %3448 = vrot.lane.b32.xlu0 %v3368, 48
    %v3449 = vpop.permute.xlu0 %3448
    %vm3490 = vcmask 458112
    %3491 = vst.msk [vmem:[#allocation4] sm:$0xff] %vm3490, %v3371
    %vm3492 = vcmask 451968
    %3493 = vst.msk [vmem:[#allocation4 + $0x10] sm:$0x3] %vm3492, %v3373
    %3494 = vst.msk [vmem:[#allocation4 + $0x20] sm:$0xff] %vm3490, %v3375
    %3495 = vst.msk [vmem:[#allocation4 + $0x30] sm:$0x3] %vm3492, %v3377
    %3496 = vst.msk [vmem:[#allocation4 + $0x40] sm:$0xff] %vm3490, %v3379
    %3497 = vst.msk [vmem:[#allocation4 + $0x50] sm:$0x3] %vm3492, %v3381
    %3498 = vst.msk [vmem:[#allocation4 + $0x60] sm:$0xff] %vm3490, %v3383
    %3499 = vst.msk [vmem:[#allocation4 + $0x70] sm:$0x3] %vm3492, %v3385
    %3500 = vst.msk [vmem:[#allocation4 + $0x80] sm:$0xff] %vm3490, %v3387
    %3501 = vst.msk [vmem:[#allocation4 + $0x90] sm:$0x3] %vm3492, %v3389
    %3502 = vst.msk [vmem:[#allocation4 + $0xa0] sm:$0xff] %vm3490, %v3391
    %3503 = vst.msk [vmem:[#allocation4 + $0xb0] sm:$0x3] %vm3492, %v3393
    %3504 = vst.msk [vmem:[#allocation4 + $0xc0] sm:$0xff] %vm3490, %v3395
    %3505 = vst.msk [vmem:[#allocation4 + $0xd0] sm:$0x3] %vm3492, %v3397
    %3506 = vst.msk [vmem:[#allocation4 + $0xe0] sm:$0xff] %vm3490, %v3399
    %3507 = vst.msk [vmem:[#allocation4 + $0xf0] sm:$0x3] %vm3492, %v3401
    %3508 = vst.msk [vmem:[#allocation4 + $0x100] sm:$0xff] %vm3490, %v3403
    %3509 = vst.msk [vmem:[#allocation4 + $0x110] sm:$0x3] %vm3492, %v3405
    %3510 = vst.msk [vmem:[#allocation4 + $0x120] sm:$0xff] %vm3490, %v3407
    %3511 = vst.msk [vmem:[#allocation4 + $0x130] sm:$0x3] %vm3492, %v3409
    %3512 = vst.msk [vmem:[#allocation4 + $0x140] sm:$0xff] %vm3490, %v3411
    %3513 = vst.msk [vmem:[#allocation4 + $0x150] sm:$0x3] %vm3492, %v3413
    %3514 = vst.msk [vmem:[#allocation4 + $0x160] sm:$0xff] %vm3490, %v3415
    %3515 = vst.msk [vmem:[#allocation4 + $0x170] sm:$0x3] %vm3492, %v3417
    %3516 = vst.msk [vmem:[#allocation4 + $0x180] sm:$0xff] %vm3490, %v3419
    %3517 = vst.msk [vmem:[#allocation4 + $0x190] sm:$0x3] %vm3492, %v3421
    %3518 = vst.msk [vmem:[#allocation4 + $0x1a0] sm:$0xff] %vm3490, %v3423
    %3519 = vst.msk [vmem:[#allocation4 + $0x1b0] sm:$0x3] %vm3492, %v3425
    %3520 = vst.msk [vmem:[#allocation4 + $0x1c0] sm:$0xff] %vm3490, %v3427
    %3521 = vst.msk [vmem:[#allocation4 + $0x1d0] sm:$0x3] %vm3492, %v3429
    %3522 = vst.msk [vmem:[#allocation4 + $0x1e0] sm:$0xff] %vm3490, %v3431
    %3523 = vst.msk [vmem:[#allocation4 + $0x1f0] sm:$0x3] %vm3492, %v3433
    %3524 = vst.msk [vmem:[#allocation4 + $0x200] sm:$0xff] %vm3490, %v3435
    %3525 = vst.msk [vmem:[#allocation4 + $0x210] sm:$0x3] %vm3492, %v3437
    %3526 = vst.msk [vmem:[#allocation4 + $0x220] sm:$0xff] %vm3490, %v3439
    %3527 = vst.msk [vmem:[#allocation4 + $0x230] sm:$0x3] %vm3492, %v3441
    %3528 = vst.msk [vmem:[#allocation4 + $0x240] sm:$0xff] %vm3490, %v3443
    %3529 = vst.msk [vmem:[#allocation4 + $0x250] sm:$0x3] %vm3492, %v3445
    %3530 = vst.msk [vmem:[#allocation4 + $0x260] sm:$0xff] %vm3490, %v3447
    %3531 = vst.msk [vmem:[#allocation4 + $0x270] sm:$0x3] %vm3492, %v3449
    %v3532 = vrot.slane %v2111, 2
    %v3533 = vrot.slane %v2112, 2
    %v3534 = vsel %vm2531, %v3532, %v3533
    %v3535 = vrot.slane %v2139, 2
    %v3536 = vrot.slane %v2140, 2
    %v3537 = vsel %vm2531, %v3535, %v3536
    %3538 = vrot.lane.b32.xlu0 %v2537, 56
    %v3539 = vpop.permute.xlu0 %3538
    %3540 = vrot.lane.b32.xlu0 %v2536, 56
    %v3541 = vpop.permute.xlu0 %3540
    %3542 = vrot.lane.b32.xlu0 %v2540, 56
    %v3543 = vpop.permute.xlu0 %3542
    %3544 = vrot.lane.b32.xlu0 %v2539, 56
    %v3545 = vpop.permute.xlu0 %3544
    %3546 = vrot.lane.b32.xlu0 %v2543, 56
    %v3547 = vpop.permute.xlu0 %3546
    %3548 = vrot.lane.b32.xlu0 %v2542, 56
    %v3549 = vpop.permute.xlu0 %3548
    %3550 = vrot.lane.b32.xlu0 %v2546, 56
    %v3551 = vpop.permute.xlu0 %3550
    %3552 = vrot.lane.b32.xlu0 %v2545, 56
    %v3553 = vpop.permute.xlu0 %3552
    %3554 = vrot.lane.b32.xlu0 %v2549, 56
    %v3555 = vpop.permute.xlu0 %3554
    %3556 = vrot.lane.b32.xlu0 %v2548, 56
    %v3557 = vpop.permute.xlu0 %3556
    %3558 = vrot.lane.b32.xlu0 %v2552, 56
    %v3559 = vpop.permute.xlu0 %3558
    %3560 = vrot.lane.b32.xlu0 %v2551, 56
    %v3561 = vpop.permute.xlu0 %3560
    %3562 = vrot.lane.b32.xlu0 %v2555, 56
    %v3563 = vpop.permute.xlu0 %3562
    %3564 = vrot.lane.b32.xlu0 %v2554, 56
    %v3565 = vpop.permute.xlu0 %3564
    %3566 = vrot.lane.b32.xlu0 %v2558, 56
    %v3567 = vpop.permute.xlu0 %3566
    %3568 = vrot.lane.b32.xlu0 %v2557, 56
    %v3569 = vpop.permute.xlu0 %3568
    %3570 = vrot.lane.b32.xlu0 %v2561, 56
    %v3571 = vpop.permute.xlu0 %3570
    %3572 = vrot.lane.b32.xlu0 %v2560, 56
    %v3573 = vpop.permute.xlu0 %3572
    %3574 = vrot.lane.b32.xlu0 %v3534, 56
    %v3575 = vpop.permute.xlu0 %3574
    %3576 = vrot.lane.b32.xlu0 %v3533, 56
    %v3577 = vpop.permute.xlu0 %3576
    %3578 = vrot.lane.b32.xlu0 %v2567, 56
    %v3579 = vpop.permute.xlu0 %3578
    %3580 = vrot.lane.b32.xlu0 %v2566, 56
    %v3581 = vpop.permute.xlu0 %3580
    %3582 = vrot.lane.b32.xlu0 %v2570, 56
    %v3583 = vpop.permute.xlu0 %3582
    %3584 = vrot.lane.b32.xlu0 %v2569, 56
    %v3585 = vpop.permute.xlu0 %3584
    %3586 = vrot.lane.b32.xlu0 %v2573, 56
    %v3587 = vpop.permute.xlu0 %3586
    %3588 = vrot.lane.b32.xlu0 %v2572, 56
    %v3589 = vpop.permute.xlu0 %3588
    %3590 = vrot.lane.b32.xlu0 %v2576, 56
    %v3591 = vpop.permute.xlu0 %3590
    %3592 = vrot.lane.b32.xlu0 %v2575, 56
    %v3593 = vpop.permute.xlu0 %3592
    %3594 = vrot.lane.b32.xlu0 %v2579, 56
    %v3595 = vpop.permute.xlu0 %3594
    %3596 = vrot.lane.b32.xlu0 %v2578, 56
    %v3597 = vpop.permute.xlu0 %3596
    %3598 = vrot.lane.b32.xlu0 %v2582, 56
    %v3599 = vpop.permute.xlu0 %3598
    %3600 = vrot.lane.b32.xlu0 %v2581, 56
    %v3601 = vpop.permute.xlu0 %3600
    %3602 = vrot.lane.b32.xlu0 %v2585, 56
    %v3603 = vpop.permute.xlu0 %3602
    %3604 = vrot.lane.b32.xlu0 %v2584, 56
    %v3605 = vpop.permute.xlu0 %3604
    %3606 = vrot.lane.b32.xlu0 %v2588, 56
    %v3607 = vpop.permute.xlu0 %3606
    %3608 = vrot.lane.b32.xlu0 %v2587, 56
    %v3609 = vpop.permute.xlu0 %3608
    %3610 = vrot.lane.b32.xlu0 %v2591, 56
    %v3611 = vpop.permute.xlu0 %3610
    %3612 = vrot.lane.b32.xlu0 %v2590, 56
    %v3613 = vpop.permute.xlu0 %3612
    %3614 = vrot.lane.b32.xlu0 %v3537, 56
    %v3615 = vpop.permute.xlu0 %3614
    %3616 = vrot.lane.b32.xlu0 %v3536, 56
    %v3617 = vpop.permute.xlu0 %3616
    %vm3658 = vcmask 523712
    %3659 = vst.msk [vmem:[#allocation4] sm:$0xff] %vm3658, %v3539
    %vm3660 = vcmask 517568
    %3661 = vst.msk [vmem:[#allocation4 + $0x10] sm:$0x3] %vm3660, %v3541
    %3662 = vst.msk [vmem:[#allocation4 + $0x20] sm:$0xff] %vm3658, %v3543
    %3663 = vst.msk [vmem:[#allocation4 + $0x30] sm:$0x3] %vm3660, %v3545
    %3664 = vst.msk [vmem:[#allocation4 + $0x40] sm:$0xff] %vm3658, %v3547
    %3665 = vst.msk [vmem:[#allocation4 + $0x50] sm:$0x3] %vm3660, %v3549
    %3666 = vst.msk [vmem:[#allocation4 + $0x60] sm:$0xff] %vm3658, %v3551
    %3667 = vst.msk [vmem:[#allocation4 + $0x70] sm:$0x3] %vm3660, %v3553
    %3668 = vst.msk [vmem:[#allocation4 + $0x80] sm:$0xff] %vm3658, %v3555
    %3669 = vst.msk [vmem:[#allocation4 + $0x90] sm:$0x3] %vm3660, %v3557
    %3670 = vst.msk [vmem:[#allocation4 + $0xa0] sm:$0xff] %vm3658, %v3559
    %3671 = vst.msk [vmem:[#allocation4 + $0xb0] sm:$0x3] %vm3660, %v3561
    %3672 = vst.msk [vmem:[#allocation4 + $0xc0] sm:$0xff] %vm3658, %v3563
    %3673 = vst.msk [vmem:[#allocation4 + $0xd0] sm:$0x3] %vm3660, %v3565
    %3674 = vst.msk [vmem:[#allocation4 + $0xe0] sm:$0xff] %vm3658, %v3567
    %3675 = vst.msk [vmem:[#allocation4 + $0xf0] sm:$0x3] %vm3660, %v3569
    %3676 = vst.msk [vmem:[#allocation4 + $0x100] sm:$0xff] %vm3658, %v3571
    %3677 = vst.msk [vmem:[#allocation4 + $0x110] sm:$0x3] %vm3660, %v3573
    %3678 = vst.msk [vmem:[#allocation4 + $0x120] sm:$0xff] %vm3658, %v3575
    %3679 = vst.msk [vmem:[#allocation4 + $0x130] sm:$0x3] %vm3660, %v3577
    %3680 = vst.msk [vmem:[#allocation4 + $0x140] sm:$0xff] %vm3658, %v3579
    %3681 = vst.msk [vmem:[#allocation4 + $0x150] sm:$0x3] %vm3660, %v3581
    %3682 = vst.msk [vmem:[#allocation4 + $0x160] sm:$0xff] %vm3658, %v3583
    %3683 = vst.msk [vmem:[#allocation4 + $0x170] sm:$0x3] %vm3660, %v3585
    %3684 = vst.msk [vmem:[#allocation4 + $0x180] sm:$0xff] %vm3658, %v3587
    %3685 = vst.msk [vmem:[#allocation4 + $0x190] sm:$0x3] %vm3660, %v3589
    %3686 = vst.msk [vmem:[#allocation4 + $0x1a0] sm:$0xff] %vm3658, %v3591
    %3687 = vst.msk [vmem:[#allocation4 + $0x1b0] sm:$0x3] %vm3660, %v3593
    %3688 = vst.msk [vmem:[#allocation4 + $0x1c0] sm:$0xff] %vm3658, %v3595
    %3689 = vst.msk [vmem:[#allocation4 + $0x1d0] sm:$0x3] %vm3660, %v3597
    %3690 = vst.msk [vmem:[#allocation4 + $0x1e0] sm:$0xff] %vm3658, %v3599
    %3691 = vst.msk [vmem:[#allocation4 + $0x1f0] sm:$0x3] %vm3660, %v3601
    %3692 = vst.msk [vmem:[#allocation4 + $0x200] sm:$0xff] %vm3658, %v3603
    %3693 = vst.msk [vmem:[#allocation4 + $0x210] sm:$0x3] %vm3660, %v3605
    %3694 = vst.msk [vmem:[#allocation4 + $0x220] sm:$0xff] %vm3658, %v3607
    %3695 = vst.msk [vmem:[#allocation4 + $0x230] sm:$0x3] %vm3660, %v3609
    %3696 = vst.msk [vmem:[#allocation4 + $0x240] sm:$0xff] %vm3658, %v3611
    %3697 = vst.msk [vmem:[#allocation4 + $0x250] sm:$0x3] %vm3660, %v3613
    %3698 = vst.msk [vmem:[#allocation4 + $0x260] sm:$0xff] %vm3658, %v3615
    %3699 = vst.msk [vmem:[#allocation4 + $0x270] sm:$0x3] %vm3660, %v3617
    %v3700 = vrot.slane %v2111, 3
    %v3701 = vrot.slane %v2112, 3
    %v3702 = vsel %vm804, %v3700, %v3701
    %v3703 = vrot.slane %v2139, 3
    %v3704 = vrot.slane %v2140, 3
    %v3705 = vsel %vm804, %v3703, %v3704
    %3706 = vrot.lane.b32.xlu0 %v2759, 64
    %v3707 = vpop.permute.xlu0 %3706
    %3708 = vrot.lane.b32.xlu0 %v2758, 64
    %v3709 = vpop.permute.xlu0 %3708
    %3710 = vrot.lane.b32.xlu0 %v2762, 64
    %v3711 = vpop.permute.xlu0 %3710
    %3712 = vrot.lane.b32.xlu0 %v2761, 64
    %v3713 = vpop.permute.xlu0 %3712
    %3714 = vrot.lane.b32.xlu0 %v2765, 64
    %v3715 = vpop.permute.xlu0 %3714
    %3716 = vrot.lane.b32.xlu0 %v2764, 64
    %v3717 = vpop.permute.xlu0 %3716
    %3718 = vrot.lane.b32.xlu0 %v2768, 64
    %v3719 = vpop.permute.xlu0 %3718
    %3720 = vrot.lane.b32.xlu0 %v2767, 64
    %v3721 = vpop.permute.xlu0 %3720
    %3722 = vrot.lane.b32.xlu0 %v2771, 64
    %v3723 = vpop.permute.xlu0 %3722
    %3724 = vrot.lane.b32.xlu0 %v2770, 64
    %v3725 = vpop.permute.xlu0 %3724
    %3726 = vrot.lane.b32.xlu0 %v2774, 64
    %v3727 = vpop.permute.xlu0 %3726
    %3728 = vrot.lane.b32.xlu0 %v2773, 64
    %v3729 = vpop.permute.xlu0 %3728
    %3730 = vrot.lane.b32.xlu0 %v2777, 64
    %v3731 = vpop.permute.xlu0 %3730
    %3732 = vrot.lane.b32.xlu0 %v2776, 64
    %v3733 = vpop.permute.xlu0 %3732
    %3734 = vrot.lane.b32.xlu0 %v2780, 64
    %v3735 = vpop.permute.xlu0 %3734
    %3736 = vrot.lane.b32.xlu0 %v2779, 64
    %v3737 = vpop.permute.xlu0 %3736
    %3738 = vrot.lane.b32.xlu0 %v2783, 64
    %v3739 = vpop.permute.xlu0 %3738
    %3740 = vrot.lane.b32.xlu0 %v2782, 64
    %v3741 = vpop.permute.xlu0 %3740
    %3742 = vrot.lane.b32.xlu0 %v3702, 64
    %v3743 = vpop.permute.xlu0 %3742
    %3744 = vrot.lane.b32.xlu0 %v3701, 64
    %v3745 = vpop.permute.xlu0 %3744
    %3746 = vrot.lane.b32.xlu0 %v2789, 64
    %v3747 = vpop.permute.xlu0 %3746
    %3748 = vrot.lane.b32.xlu0 %v2788, 64
    %v3749 = vpop.permute.xlu0 %3748
    %3750 = vrot.lane.b32.xlu0 %v2792, 64
    %v3751 = vpop.permute.xlu0 %3750
    %3752 = vrot.lane.b32.xlu0 %v2791, 64
    %v3753 = vpop.permute.xlu0 %3752
    %3754 = vrot.lane.b32.xlu0 %v2795, 64
    %v3755 = vpop.permute.xlu0 %3754
    %3756 = vrot.lane.b32.xlu0 %v2794, 64
    %v3757 = vpop.permute.xlu0 %3756
    %3758 = vrot.lane.b32.xlu0 %v2798, 64
    %v3759 = vpop.permute.xlu0 %3758
    %3760 = vrot.lane.b32.xlu0 %v2797, 64
    %v3761 = vpop.permute.xlu0 %3760
    %3762 = vrot.lane.b32.xlu0 %v2801, 64
    %v3763 = vpop.permute.xlu0 %3762
    %3764 = vrot.lane.b32.xlu0 %v2800, 64
    %v3765 = vpop.permute.xlu0 %3764
    %3766 = vrot.lane.b32.xlu0 %v2804, 64
    %v3767 = vpop.permute.xlu0 %3766
    %3768 = vrot.lane.b32.xlu0 %v2803, 64
    %v3769 = vpop.permute.xlu0 %3768
    %3770 = vrot.lane.b32.xlu0 %v2807, 64
    %v3771 = vpop.permute.xlu0 %3770
    %3772 = vrot.lane.b32.xlu0 %v2806, 64
    %v3773 = vpop.permute.xlu0 %3772
    %3774 = vrot.lane.b32.xlu0 %v2810, 64
    %v3775 = vpop.permute.xlu0 %3774
    %3776 = vrot.lane.b32.xlu0 %v2809, 64
    %v3777 = vpop.permute.xlu0 %3776
    %3778 = vrot.lane.b32.xlu0 %v2813, 64
    %v3779 = vpop.permute.xlu0 %3778
    %3780 = vrot.lane.b32.xlu0 %v2812, 64
    %v3781 = vpop.permute.xlu0 %3780
    %3782 = vrot.lane.b32.xlu0 %v3705, 64
    %v3783 = vpop.permute.xlu0 %3782
    %3784 = vrot.lane.b32.xlu0 %v3704, 64
    %v3785 = vpop.permute.xlu0 %3784
    %vm3826 = vcmask 589312
    %3827 = vst.msk [vmem:[#allocation4] sm:$0xff] %vm3826, %v3707
    %vm3828 = vcmask 583168
    %3829 = vst.msk [vmem:[#allocation4 + $0x10] sm:$0x3] %vm3828, %v3709
    %3830 = vst.msk [vmem:[#allocation4 + $0x20] sm:$0xff] %vm3826, %v3711
    %3831 = vst.msk [vmem:[#allocation4 + $0x30] sm:$0x3] %vm3828, %v3713
    %3832 = vst.msk [vmem:[#allocation4 + $0x40] sm:$0xff] %vm3826, %v3715
    %3833 = vst.msk [vmem:[#allocation4 + $0x50] sm:$0x3] %vm3828, %v3717
    %3834 = vst.msk [vmem:[#allocation4 + $0x60] sm:$0xff] %vm3826, %v3719
    %3835 = vst.msk [vmem:[#allocation4 + $0x70] sm:$0x3] %vm3828, %v3721
    %3836 = vst.msk [vmem:[#allocation4 + $0x80] sm:$0xff] %vm3826, %v3723
    %3837 = vst.msk [vmem:[#allocation4 + $0x90] sm:$0x3] %vm3828, %v3725
    %3838 = vst.msk [vmem:[#allocation4 + $0xa0] sm:$0xff] %vm3826, %v3727
    %3839 = vst.msk [vmem:[#allocation4 + $0xb0] sm:$0x3] %vm3828, %v3729
    %3840 = vst.msk [vmem:[#allocation4 + $0xc0] sm:$0xff] %vm3826, %v3731
    %3841 = vst.msk [vmem:[#allocation4 + $0xd0] sm:$0x3] %vm3828, %v3733
    %3842 = vst.msk [vmem:[#allocation4 + $0xe0] sm:$0xff] %vm3826, %v3735
    %3843 = vst.msk [vmem:[#allocation4 + $0xf0] sm:$0x3] %vm3828, %v3737
    %3844 = vst.msk [vmem:[#allocation4 + $0x100] sm:$0xff] %vm3826, %v3739
    %3845 = vst.msk [vmem:[#allocation4 + $0x110] sm:$0x3] %vm3828, %v3741
    %3846 = vst.msk [vmem:[#allocation4 + $0x120] sm:$0xff] %vm3826, %v3743
    %3847 = vst.msk [vmem:[#allocation4 + $0x130] sm:$0x3] %vm3828, %v3745
    %3848 = vst.msk [vmem:[#allocation4 + $0x140] sm:$0xff] %vm3826, %v3747
    %3849 = vst.msk [vmem:[#allocation4 + $0x150] sm:$0x3] %vm3828, %v3749
    %3850 = vst.msk [vmem:[#allocation4 + $0x160] sm:$0xff] %vm3826, %v3751
    %3851 = vst.msk [vmem:[#allocation4 + $0x170] sm:$0x3] %vm3828, %v3753
    %3852 = vst.msk [vmem:[#allocation4 + $0x180] sm:$0xff] %vm3826, %v3755
    %3853 = vst.msk [vmem:[#allocation4 + $0x190] sm:$0x3] %vm3828, %v3757
    %3854 = vst.msk [vmem:[#allocation4 + $0x1a0] sm:$0xff] %vm3826, %v3759
    %3855 = vst.msk [vmem:[#allocation4 + $0x1b0] sm:$0x3] %vm3828, %v3761
    %3856 = vst.msk [vmem:[#allocation4 + $0x1c0] sm:$0xff] %vm3826, %v3763
    %3857 = vst.msk [vmem:[#allocation4 + $0x1d0] sm:$0x3] %vm3828, %v3765
    %3858 = vst.msk [vmem:[#allocation4 + $0x1e0] sm:$0xff] %vm3826, %v3767
    %3859 = vst.msk [vmem:[#allocation4 + $0x1f0] sm:$0x3] %vm3828, %v3769
    %3860 = vst.msk [vmem:[#allocation4 + $0x200] sm:$0xff] %vm3826, %v3771
    %3861 = vst.msk [vmem:[#allocation4 + $0x210] sm:$0x3] %vm3828, %v3773
    %3862 = vst.msk [vmem:[#allocation4 + $0x220] sm:$0xff] %vm3826, %v3775
    %3863 = vst.msk [vmem:[#allocation4 + $0x230] sm:$0x3] %vm3828, %v3777
    %3864 = vst.msk [vmem:[#allocation4 + $0x240] sm:$0xff] %vm3826, %v3779
    %3865 = vst.msk [vmem:[#allocation4 + $0x250] sm:$0x3] %vm3828, %v3781
    %3866 = vst.msk [vmem:[#allocation4 + $0x260] sm:$0xff] %vm3826, %v3783
    %3867 = vst.msk [vmem:[#allocation4 + $0x270] sm:$0x3] %vm3828, %v3785
    %v3868 = vrot.slane %v2111, 4
    %v3869 = vrot.slane %v2112, 4
    %v3870 = vsel %vm803, %v3868, %v3869
    %v3871 = vrot.slane %v2139, 4
    %v3872 = vrot.slane %v2140, 4
    %v3873 = vsel %vm803, %v3871, %v3872
    %3874 = vrot.lane.b32.xlu0 %v2981, 72
    %v3875 = vpop.permute.xlu0 %3874
    %3876 = vrot.lane.b32.xlu0 %v2980, 72
    %v3877 = vpop.permute.xlu0 %3876
    %3878 = vrot.lane.b32.xlu0 %v2984, 72
    %v3879 = vpop.permute.xlu0 %3878
    %3880 = vrot.lane.b32.xlu0 %v2983, 72
    %v3881 = vpop.permute.xlu0 %3880
    %3882 = vrot.lane.b32.xlu0 %v2987, 72
    %v3883 = vpop.permute.xlu0 %3882
    %3884 = vrot.lane.b32.xlu0 %v2986, 72
    %v3885 = vpop.permute.xlu0 %3884
    %3886 = vrot.lane.b32.xlu0 %v2990, 72
    %v3887 = vpop.permute.xlu0 %3886
    %3888 = vrot.lane.b32.xlu0 %v2989, 72
    %v3889 = vpop.permute.xlu0 %3888
    %3890 = vrot.lane.b32.xlu0 %v2993, 72
    %v3891 = vpop.permute.xlu0 %3890
    %3892 = vrot.lane.b32.xlu0 %v2992, 72
    %v3893 = vpop.permute.xlu0 %3892
    %3894 = vrot.lane.b32.xlu0 %v2996, 72
    %v3895 = vpop.permute.xlu0 %3894
    %3896 = vrot.lane.b32.xlu0 %v2995, 72
    %v3897 = vpop.permute.xlu0 %3896
    %3898 = vrot.lane.b32.xlu0 %v2999, 72
    %v3899 = vpop.permute.xlu0 %3898
    %3900 = vrot.lane.b32.xlu0 %v2998, 72
    %v3901 = vpop.permute.xlu0 %3900
    %3902 = vrot.lane.b32.xlu0 %v3002, 72
    %v3903 = vpop.permute.xlu0 %3902
    %3904 = vrot.lane.b32.xlu0 %v3001, 72
    %v3905 = vpop.permute.xlu0 %3904
    %3906 = vrot.lane.b32.xlu0 %v3005, 72
    %v3907 = vpop.permute.xlu0 %3906
    %3908 = vrot.lane.b32.xlu0 %v3004, 72
    %v3909 = vpop.permute.xlu0 %3908
    %3910 = vrot.lane.b32.xlu0 %v3870, 72
    %v3911 = vpop.permute.xlu0 %3910
    %3912 = vrot.lane.b32.xlu0 %v3869, 72
    %v3913 = vpop.permute.xlu0 %3912
    %3914 = vrot.lane.b32.xlu0 %v3011, 72
    %v3915 = vpop.permute.xlu0 %3914
    %3916 = vrot.lane.b32.xlu0 %v3010, 72
    %v3917 = vpop.permute.xlu0 %3916
    %3918 = vrot.lane.b32.xlu0 %v3014, 72
    %v3919 = vpop.permute.xlu0 %3918
    %3920 = vrot.lane.b32.xlu0 %v3013, 72
    %v3921 = vpop.permute.xlu0 %3920
    %3922 = vrot.lane.b32.xlu0 %v3017, 72
    %v3923 = vpop.permute.xlu0 %3922
    %3924 = vrot.lane.b32.xlu0 %v3016, 72
    %v3925 = vpop.permute.xlu0 %3924
    %3926 = vrot.lane.b32.xlu0 %v3020, 72
    %v3927 = vpop.permute.xlu0 %3926
    %3928 = vrot.lane.b32.xlu0 %v3019, 72
    %v3929 = vpop.permute.xlu0 %3928
    %3930 = vrot.lane.b32.xlu0 %v3023, 72
    %v3931 = vpop.permute.xlu0 %3930
    %3932 = vrot.lane.b32.xlu0 %v3022, 72
    %v3933 = vpop.permute.xlu0 %3932
    %3934 = vrot.lane.b32.xlu0 %v3026, 72
    %v3935 = vpop.permute.xlu0 %3934
    %3936 = vrot.lane.b32.xlu0 %v3025, 72
    %v3937 = vpop.permute.xlu0 %3936
    %3938 = vrot.lane.b32.xlu0 %v3029, 72
    %v3939 = vpop.permute.xlu0 %3938
    %3940 = vrot.lane.b32.xlu0 %v3028, 72
    %v3941 = vpop.permute.xlu0 %3940
    %3942 = vrot.lane.b32.xlu0 %v3032, 72
    %v3943 = vpop.permute.xlu0 %3942
    %3944 = vrot.lane.b32.xlu0 %v3031, 72
    %v3945 = vpop.permute.xlu0 %3944
    %3946 = vrot.lane.b32.xlu0 %v3035, 72
    %v3947 = vpop.permute.xlu0 %3946
    %3948 = vrot.lane.b32.xlu0 %v3034, 72
    %v3949 = vpop.permute.xlu0 %3948
    %3950 = vrot.lane.b32.xlu0 %v3873, 72
    %v3951 = vpop.permute.xlu0 %3950
    %3952 = vrot.lane.b32.xlu0 %v3872, 72
    %v3953 = vpop.permute.xlu0 %3952
    %vm3994 = vcmask 654912
    %3995 = vst.msk [vmem:[#allocation4] sm:$0xff] %vm3994, %v3875
    %vm3996 = vcmask 648768
    %3997 = vst.msk [vmem:[#allocation4 + $0x10] sm:$0x3] %vm3996, %v3877
    %3998 = vst.msk [vmem:[#allocation4 + $0x20] sm:$0xff] %vm3994, %v3879
    %3999 = vst.msk [vmem:[#allocation4 + $0x30] sm:$0x3] %vm3996, %v3881
    %4000 = vst.msk [vmem:[#allocation4 + $0x40] sm:$0xff] %vm3994, %v3883
    %4001 = vst.msk [vmem:[#allocation4 + $0x50] sm:$0x3] %vm3996, %v3885
    %4002 = vst.msk [vmem:[#allocation4 + $0x60] sm:$0xff] %vm3994, %v3887
    %4003 = vst.msk [vmem:[#allocation4 + $0x70] sm:$0x3] %vm3996, %v3889
    %4004 = vst.msk [vmem:[#allocation4 + $0x80] sm:$0xff] %vm3994, %v3891
    %4005 = vst.msk [vmem:[#allocation4 + $0x90] sm:$0x3] %vm3996, %v3893
    %4006 = vst.msk [vmem:[#allocation4 + $0xa0] sm:$0xff] %vm3994, %v3895
    %4007 = vst.msk [vmem:[#allocation4 + $0xb0] sm:$0x3] %vm3996, %v3897
    %4008 = vst.msk [vmem:[#allocation4 + $0xc0] sm:$0xff] %vm3994, %v3899
    %4009 = vst.msk [vmem:[#allocation4 + $0xd0] sm:$0x3] %vm3996, %v3901
    %4010 = vst.msk [vmem:[#allocation4 + $0xe0] sm:$0xff] %vm3994, %v3903
    %4011 = vst.msk [vmem:[#allocation4 + $0xf0] sm:$0x3] %vm3996, %v3905
    %4012 = vst.msk [vmem:[#allocation4 + $0x100] sm:$0xff] %vm3994, %v3907
    %4013 = vst.msk [vmem:[#allocation4 + $0x110] sm:$0x3] %vm3996, %v3909
    %4014 = vst.msk [vmem:[#allocation4 + $0x120] sm:$0xff] %vm3994, %v3911
    %4015 = vst.msk [vmem:[#allocation4 + $0x130] sm:$0x3] %vm3996, %v3913
    %4016 = vst.msk [vmem:[#allocation4 + $0x140] sm:$0xff] %vm3994, %v3915
    %4017 = vst.msk [vmem:[#allocation4 + $0x150] sm:$0x3] %vm3996, %v3917
    %4018 = vst.msk [vmem:[#allocation4 + $0x160] sm:$0xff] %vm3994, %v3919
    %4019 = vst.msk [vmem:[#allocation4 + $0x170] sm:$0x3] %vm3996, %v3921
    %4020 = vst.msk [vmem:[#allocation4 + $0x180] sm:$0xff] %vm3994, %v3923
    %4021 = vst.msk [vmem:[#allocation4 + $0x190] sm:$0x3] %vm3996, %v3925
    %4022 = vst.msk [vmem:[#allocation4 + $0x1a0] sm:$0xff] %vm3994, %v3927
    %4023 = vst.msk [vmem:[#allocation4 + $0x1b0] sm:$0x3] %vm3996, %v3929
    %4024 = vst.msk [vmem:[#allocation4 + $0x1c0] sm:$0xff] %vm3994, %v3931
    %4025 = vst.msk [vmem:[#allocation4 + $0x1d0] sm:$0x3] %vm3996, %v3933
    %4026 = vst.msk [vmem:[#allocation4 + $0x1e0] sm:$0xff] %vm3994, %v3935
    %4027 = vst.msk [vmem:[#allocation4 + $0x1f0] sm:$0x3] %vm3996, %v3937
    %4028 = vst.msk [vmem:[#allocation4 + $0x200] sm:$0xff] %vm3994, %v3939
    %4029 = vst.msk [vmem:[#allocation4 + $0x210] sm:$0x3] %vm3996, %v3941
    %4030 = vst.msk [vmem:[#allocation4 + $0x220] sm:$0xff] %vm3994, %v3943
    %4031 = vst.msk [vmem:[#allocation4 + $0x230] sm:$0x3] %vm3996, %v3945
    %4032 = vst.msk [vmem:[#allocation4 + $0x240] sm:$0xff] %vm3994, %v3947
    %4033 = vst.msk [vmem:[#allocation4 + $0x250] sm:$0x3] %vm3996, %v3949
    %4034 = vst.msk [vmem:[#allocation4 + $0x260] sm:$0xff] %vm3994, %v3951
    %4035 = vst.msk [vmem:[#allocation4 + $0x270] sm:$0x3] %vm3996, %v3953
    %4040 = vrot.lane.b32.xlu0 %v2095, 80
    %v4041 = vpop.permute.xlu0 %4040
    %4042 = vrot.lane.b32.xlu0 %v2096, 80
    %v4043 = vpop.permute.xlu0 %4042
    %4044 = vrot.lane.b32.xlu0 %v2097, 80
    %v4045 = vpop.permute.xlu0 %4044
    %4046 = vrot.lane.b32.xlu0 %v2098, 80
    %v4047 = vpop.permute.xlu0 %4046
    %4048 = vrot.lane.b32.xlu0 %v2099, 80
    %v4049 = vpop.permute.xlu0 %4048
    %4050 = vrot.lane.b32.xlu0 %v2100, 80
    %v4051 = vpop.permute.xlu0 %4050
    %4052 = vrot.lane.b32.xlu0 %v2101, 80
    %v4053 = vpop.permute.xlu0 %4052
    %4054 = vrot.lane.b32.xlu0 %v2102, 80
    %v4055 = vpop.permute.xlu0 %4054
    %4056 = vrot.lane.b32.xlu0 %v2103, 80
    %v4057 = vpop.permute.xlu0 %4056
    %4058 = vrot.lane.b32.xlu0 %v2104, 80
    %v4059 = vpop.permute.xlu0 %4058
    %4060 = vrot.lane.b32.xlu0 %v2105, 80
    %v4061 = vpop.permute.xlu0 %4060
    %4062 = vrot.lane.b32.xlu0 %v2106, 80
    %v4063 = vpop.permute.xlu0 %4062
    %4064 = vrot.lane.b32.xlu0 %v2107, 80
    %v4065 = vpop.permute.xlu0 %4064
    %4066 = vrot.lane.b32.xlu0 %v2108, 80
    %v4067 = vpop.permute.xlu0 %4066
    %4068 = vrot.lane.b32.xlu0 %v2109, 80
    %v4069 = vpop.permute.xlu0 %4068
    %4070 = vrot.lane.b32.xlu0 %v2110, 80
    %v4071 = vpop.permute.xlu0 %4070
    %4072 = vrot.lane.b32.xlu0 %v2111, 80
    %v4073 = vpop.permute.xlu0 %4072
    %4074 = vrot.lane.b32.xlu0 %v2112, 80
    %v4075 = vpop.permute.xlu0 %4074
    %4076 = vrot.lane.b32.xlu0 %v2113, 80
    %v4077 = vpop.permute.xlu0 %4076
    %4078 = vrot.lane.b32.xlu0 %v2114, 80
    %v4079 = vpop.permute.xlu0 %4078
    %4080 = vrot.lane.b32.xlu0 %v2123, 80
    %v4081 = vpop.permute.xlu0 %4080
    %4082 = vrot.lane.b32.xlu0 %v2124, 80
    %v4083 = vpop.permute.xlu0 %4082
    %4084 = vrot.lane.b32.xlu0 %v2125, 80
    %v4085 = vpop.permute.xlu0 %4084
    %4086 = vrot.lane.b32.xlu0 %v2126, 80
    %v4087 = vpop.permute.xlu0 %4086
    %4088 = vrot.lane.b32.xlu0 %v2127, 80
    %v4089 = vpop.permute.xlu0 %4088
    %4090 = vrot.lane.b32.xlu0 %v2128, 80
    %v4091 = vpop.permute.xlu0 %4090
    %4092 = vrot.lane.b32.xlu0 %v2129, 80
    %v4093 = vpop.permute.xlu0 %4092
    %4094 = vrot.lane.b32.xlu0 %v2130, 80
    %v4095 = vpop.permute.xlu0 %4094
    %4096 = vrot.lane.b32.xlu0 %v2131, 80
    %v4097 = vpop.permute.xlu0 %4096
    %4098 = vrot.lane.b32.xlu0 %v2132, 80
    %v4099 = vpop.permute.xlu0 %4098
    %4100 = vrot.lane.b32.xlu0 %v2133, 80
    %v4101 = vpop.permute.xlu0 %4100
    %4102 = vrot.lane.b32.xlu0 %v2134, 80
    %v4103 = vpop.permute.xlu0 %4102
    %4104 = vrot.lane.b32.xlu0 %v2135, 80
    %v4105 = vpop.permute.xlu0 %4104
    %4106 = vrot.lane.b32.xlu0 %v2136, 80
    %v4107 = vpop.permute.xlu0 %4106
    %4108 = vrot.lane.b32.xlu0 %v2137, 80
    %v4109 = vpop.permute.xlu0 %4108
    %4110 = vrot.lane.b32.xlu0 %v2138, 80
    %v4111 = vpop.permute.xlu0 %4110
    %4112 = vrot.lane.b32.xlu0 %v2139, 80
    %v4113 = vpop.permute.xlu0 %4112
    %4114 = vrot.lane.b32.xlu0 %v2140, 80
    %v4115 = vpop.permute.xlu0 %4114
    %4116 = vrot.lane.b32.xlu0 %v2141, 80
    %v4117 = vpop.permute.xlu0 %4116
    %4118 = vrot.lane.b32.xlu0 %v2142, 80
    %v4119 = vpop.permute.xlu0 %4118
    %vm4160 = vcmask 720512
    %4161 = vst.msk [vmem:[#allocation4] sm:$0xff] %vm4160, %v4041
    %vm4162 = vcmask 714368
    %4163 = vst.msk [vmem:[#allocation4 + $0x10] sm:$0x3] %vm4162, %v4043
    %4164 = vst.msk [vmem:[#allocation4 + $0x20] sm:$0xff] %vm4160, %v4045
    %4165 = vst.msk [vmem:[#allocation4 + $0x30] sm:$0x3] %vm4162, %v4047
    %4166 = vst.msk [vmem:[#allocation4 + $0x40] sm:$0xff] %vm4160, %v4049
    %4167 = vst.msk [vmem:[#allocation4 + $0x50] sm:$0x3] %vm4162, %v4051
    %4168 = vst.msk [vmem:[#allocation4 + $0x60] sm:$0xff] %vm4160, %v4053
    %4169 = vst.msk [vmem:[#allocation4 + $0x70] sm:$0x3] %vm4162, %v4055
    %4170 = vst.msk [vmem:[#allocation4 + $0x80] sm:$0xff] %vm4160, %v4057
    %4171 = vst.msk [vmem:[#allocation4 + $0x90] sm:$0x3] %vm4162, %v4059
    %4172 = vst.msk [vmem:[#allocation4 + $0xa0] sm:$0xff] %vm4160, %v4061
    %4173 = vst.msk [vmem:[#allocation4 + $0xb0] sm:$0x3] %vm4162, %v4063
    %4174 = vst.msk [vmem:[#allocation4 + $0xc0] sm:$0xff] %vm4160, %v4065
    %4175 = vst.msk [vmem:[#allocation4 + $0xd0] sm:$0x3] %vm4162, %v4067
    %4176 = vst.msk [vmem:[#allocation4 + $0xe0] sm:$0xff] %vm4160, %v4069
    %4177 = vst.msk [vmem:[#allocation4 + $0xf0] sm:$0x3] %vm4162, %v4071
    %4178 = vst.msk [vmem:[#allocation4 + $0x100] sm:$0xff] %vm4160, %v4073
    %4179 = vst.msk [vmem:[#allocation4 + $0x110] sm:$0x3] %vm4162, %v4075
    %4180 = vst.msk [vmem:[#allocation4 + $0x120] sm:$0xff] %vm4160, %v4077
    %4181 = vst.msk [vmem:[#allocation4 + $0x130] sm:$0x3] %vm4162, %v4079
    %4182 = vst.msk [vmem:[#allocation4 + $0x140] sm:$0xff] %vm4160, %v4081
    %4183 = vst.msk [vmem:[#allocation4 + $0x150] sm:$0x3] %vm4162, %v4083
    %4184 = vst.msk [vmem:[#allocation4 + $0x160] sm:$0xff] %vm4160, %v4085
    %4185 = vst.msk [vmem:[#allocation4 + $0x170] sm:$0x3] %vm4162, %v4087
    %4186 = vst.msk [vmem:[#allocation4 + $0x180] sm:$0xff] %vm4160, %v4089
    %4187 = vst.msk [vmem:[#allocation4 + $0x190] sm:$0x3] %vm4162, %v4091
    %4188 = vst.msk [vmem:[#allocation4 + $0x1a0] sm:$0xff] %vm4160, %v4093
    %4189 = vst.msk [vmem:[#allocation4 + $0x1b0] sm:$0x3] %vm4162, %v4095
    %4190 = vst.msk [vmem:[#allocation4 + $0x1c0] sm:$0xff] %vm4160, %v4097
    %4191 = vst.msk [vmem:[#allocation4 + $0x1d0] sm:$0x3] %vm4162, %v4099
    %4192 = vst.msk [vmem:[#allocation4 + $0x1e0] sm:$0xff] %vm4160, %v4101
    %4193 = vst.msk [vmem:[#allocation4 + $0x1f0] sm:$0x3] %vm4162, %v4103
    %4194 = vst.msk [vmem:[#allocation4 + $0x200] sm:$0xff] %vm4160, %v4105
    %4195 = vst.msk [vmem:[#allocation4 + $0x210] sm:$0x3] %vm4162, %v4107
    %4196 = vst.msk [vmem:[#allocation4 + $0x220] sm:$0xff] %vm4160, %v4109
    %4197 = vst.msk [vmem:[#allocation4 + $0x230] sm:$0x3] %vm4162, %v4111
    %4198 = vst.msk [vmem:[#allocation4 + $0x240] sm:$0xff] %vm4160, %v4113
    %4199 = vst.msk [vmem:[#allocation4 + $0x250] sm:$0x3] %vm4162, %v4115
    %4200 = vst.msk [vmem:[#allocation4 + $0x260] sm:$0xff] %vm4160, %v4117
    %4201 = vst.msk [vmem:[#allocation4 + $0x270] sm:$0x3] %vm4162, %v4119
    %v4202 = vrot.slane %v2113, 1
    %v4203 = vrot.slane %v2114, 1
    %v4204 = vsel %vm62, %v4202, %v4203
    %v4205 = vrot.slane %v2141, 1
    %v4206 = vrot.slane %v2142, 1
    %v4207 = vsel %vm62, %v4205, %v4206
    %4208 = vrot.lane.b32.xlu0 %v2317, 88
    %v4209 = vpop.permute.xlu0 %4208
    %4210 = vrot.lane.b32.xlu0 %v2316, 88
    %v4211 = vpop.permute.xlu0 %4210
    %4212 = vrot.lane.b32.xlu0 %v2320, 88
    %v4213 = vpop.permute.xlu0 %4212
    %4214 = vrot.lane.b32.xlu0 %v2319, 88
    %v4215 = vpop.permute.xlu0 %4214
    %4216 = vrot.lane.b32.xlu0 %v2323, 88
    %v4217 = vpop.permute.xlu0 %4216
    %4218 = vrot.lane.b32.xlu0 %v2322, 88
    %v4219 = vpop.permute.xlu0 %4218
    %4220 = vrot.lane.b32.xlu0 %v2326, 88
    %v4221 = vpop.permute.xlu0 %4220
    %4222 = vrot.lane.b32.xlu0 %v2325, 88
    %v4223 = vpop.permute.xlu0 %4222
    %4224 = vrot.lane.b32.xlu0 %v2329, 88
    %v4225 = vpop.permute.xlu0 %4224
    %4226 = vrot.lane.b32.xlu0 %v2328, 88
    %v4227 = vpop.permute.xlu0 %4226
    %4228 = vrot.lane.b32.xlu0 %v2332, 88
    %v4229 = vpop.permute.xlu0 %4228
    %4230 = vrot.lane.b32.xlu0 %v2331, 88
    %v4231 = vpop.permute.xlu0 %4230
    %4232 = vrot.lane.b32.xlu0 %v2335, 88
    %v4233 = vpop.permute.xlu0 %4232
    %4234 = vrot.lane.b32.xlu0 %v2334, 88
    %v4235 = vpop.permute.xlu0 %4234
    %4236 = vrot.lane.b32.xlu0 %v2338, 88
    %v4237 = vpop.permute.xlu0 %4236
    %4238 = vrot.lane.b32.xlu0 %v2337, 88
    %v4239 = vpop.permute.xlu0 %4238
    %4240 = vrot.lane.b32.xlu0 %v3366, 88
    %v4241 = vpop.permute.xlu0 %4240
    %4242 = vrot.lane.b32.xlu0 %v3365, 88
    %v4243 = vpop.permute.xlu0 %4242
    %4244 = vrot.lane.b32.xlu0 %v4204, 88
    %v4245 = vpop.permute.xlu0 %4244
    %4246 = vrot.lane.b32.xlu0 %v4203, 88
    %v4247 = vpop.permute.xlu0 %4246
    %4248 = vrot.lane.b32.xlu0 %v2347, 88
    %v4249 = vpop.permute.xlu0 %4248
    %4250 = vrot.lane.b32.xlu0 %v2346, 88
    %v4251 = vpop.permute.xlu0 %4250
    %4252 = vrot.lane.b32.xlu0 %v2350, 88
    %v4253 = vpop.permute.xlu0 %4252
    %4254 = vrot.lane.b32.xlu0 %v2349, 88
    %v4255 = vpop.permute.xlu0 %4254
    %4256 = vrot.lane.b32.xlu0 %v2353, 88
    %v4257 = vpop.permute.xlu0 %4256
    %4258 = vrot.lane.b32.xlu0 %v2352, 88
    %v4259 = vpop.permute.xlu0 %4258
    %4260 = vrot.lane.b32.xlu0 %v2356, 88
    %v4261 = vpop.permute.xlu0 %4260
    %4262 = vrot.lane.b32.xlu0 %v2355, 88
    %v4263 = vpop.permute.xlu0 %4262
    %4264 = vrot.lane.b32.xlu0 %v2359, 88
    %v4265 = vpop.permute.xlu0 %4264
    %4266 = vrot.lane.b32.xlu0 %v2358, 88
    %v4267 = vpop.permute.xlu0 %4266
    %4268 = vrot.lane.b32.xlu0 %v2362, 88
    %v4269 = vpop.permute.xlu0 %4268
    %4270 = vrot.lane.b32.xlu0 %v2361, 88
    %v4271 = vpop.permute.xlu0 %4270
    %4272 = vrot.lane.b32.xlu0 %v2365, 88
    %v4273 = vpop.permute.xlu0 %4272
    %4274 = vrot.lane.b32.xlu0 %v2364, 88
    %v4275 = vpop.permute.xlu0 %4274
    %4276 = vrot.lane.b32.xlu0 %v2368, 88
    %v4277 = vpop.permute.xlu0 %4276
    %4278 = vrot.lane.b32.xlu0 %v2367, 88
    %v4279 = vpop.permute.xlu0 %4278
    %4280 = vrot.lane.b32.xlu0 %v3369, 88
    %v4281 = vpop.permute.xlu0 %4280
    %4282 = vrot.lane.b32.xlu0 %v3368, 88
    %v4283 = vpop.permute.xlu0 %4282
    %4284 = vrot.lane.b32.xlu0 %v4207, 88
    %v4285 = vpop.permute.xlu0 %4284
    %4286 = vrot.lane.b32.xlu0 %v4206, 88
    %v4287 = vpop.permute.xlu0 %4286
    %vm4328 = vcmask 786112
    %4329 = vst.msk [vmem:[#allocation4] sm:$0xff] %vm4328, %v4209
    %vm4330 = vcmask 779968
    %4331 = vst.msk [vmem:[#allocation4 + $0x10] sm:$0x3] %vm4330, %v4211
    %4332 = vst.msk [vmem:[#allocation4 + $0x20] sm:$0xff] %vm4328, %v4213
    %4333 = vst.msk [vmem:[#allocation4 + $0x30] sm:$0x3] %vm4330, %v4215
    %4334 = vst.msk [vmem:[#allocation4 + $0x40] sm:$0xff] %vm4328, %v4217
    %4335 = vst.msk [vmem:[#allocation4 + $0x50] sm:$0x3] %vm4330, %v4219
    %4336 = vst.msk [vmem:[#allocation4 + $0x60] sm:$0xff] %vm4328, %v4221
    %4337 = vst.msk [vmem:[#allocation4 + $0x70] sm:$0x3] %vm4330, %v4223
    %4338 = vst.msk [vmem:[#allocation4 + $0x80] sm:$0xff] %vm4328, %v4225
    %4339 = vst.msk [vmem:[#allocation4 + $0x90] sm:$0x3] %vm4330, %v4227
    %4340 = vst.msk [vmem:[#allocation4 + $0xa0] sm:$0xff] %vm4328, %v4229
    %4341 = vst.msk [vmem:[#allocation4 + $0xb0] sm:$0x3] %vm4330, %v4231
    %4342 = vst.msk [vmem:[#allocation4 + $0xc0] sm:$0xff] %vm4328, %v4233
    %4343 = vst.msk [vmem:[#allocation4 + $0xd0] sm:$0x3] %vm4330, %v4235
    %4344 = vst.msk [vmem:[#allocation4 + $0xe0] sm:$0xff] %vm4328, %v4237
    %4345 = vst.msk [vmem:[#allocation4 + $0xf0] sm:$0x3] %vm4330, %v4239
    %4346 = vst.msk [vmem:[#allocation4 + $0x100] sm:$0xff] %vm4328, %v4241
    %4347 = vst.msk [vmem:[#allocation4 + $0x110] sm:$0x3] %vm4330, %v4243
    %4348 = vst.msk [vmem:[#allocation4 + $0x120] sm:$0xff] %vm4328, %v4245
    %4349 = vst.msk [vmem:[#allocation4 + $0x130] sm:$0x3] %vm4330, %v4247
    %4350 = vst.msk [vmem:[#allocation4 + $0x140] sm:$0xff] %vm4328, %v4249
    %4351 = vst.msk [vmem:[#allocation4 + $0x150] sm:$0x3] %vm4330, %v4251
    %4352 = vst.msk [vmem:[#allocation4 + $0x160] sm:$0xff] %vm4328, %v4253
    %4353 = vst.msk [vmem:[#allocation4 + $0x170] sm:$0x3] %vm4330, %v4255
    %4354 = vst.msk [vmem:[#allocation4 + $0x180] sm:$0xff] %vm4328, %v4257
    %4355 = vst.msk [vmem:[#allocation4 + $0x190] sm:$0x3] %vm4330, %v4259
    %4356 = vst.msk [vmem:[#allocation4 + $0x1a0] sm:$0xff] %vm4328, %v4261
    %4357 = vst.msk [vmem:[#allocation4 + $0x1b0] sm:$0x3] %vm4330, %v4263
    %4358 = vst.msk [vmem:[#allocation4 + $0x1c0] sm:$0xff] %vm4328, %v4265
    %4359 = vst.msk [vmem:[#allocation4 + $0x1d0] sm:$0x3] %vm4330, %v4267
    %4360 = vst.msk [vmem:[#allocation4 + $0x1e0] sm:$0xff] %vm4328, %v4269
    %4361 = vst.msk [vmem:[#allocation4 + $0x1f0] sm:$0x3] %vm4330, %v4271
    %4362 = vst.msk [vmem:[#allocation4 + $0x200] sm:$0xff] %vm4328, %v4273
    %4363 = vst.msk [vmem:[#allocation4 + $0x210] sm:$0x3] %vm4330, %v4275
    %4364 = vst.msk [vmem:[#allocation4 + $0x220] sm:$0xff] %vm4328, %v4277
    %4365 = vst.msk [vmem:[#allocation4 + $0x230] sm:$0x3] %vm4330, %v4279
    %4366 = vst.msk [vmem:[#allocation4 + $0x240] sm:$0xff] %vm4328, %v4281
    %4367 = vst.msk [vmem:[#allocation4 + $0x250] sm:$0x3] %vm4330, %v4283
    %4368 = vst.msk [vmem:[#allocation4 + $0x260] sm:$0xff] %vm4328, %v4285
    %4369 = vst.msk [vmem:[#allocation4 + $0x270] sm:$0x3] %vm4330, %v4287
    %v4370 = vrot.slane %v2113, 2
    %v4371 = vrot.slane %v2114, 2
    %v4372 = vsel %vm2531, %v4370, %v4371
    %v4373 = vrot.slane %v2141, 2
    %v4374 = vrot.slane %v2142, 2
    %v4375 = vsel %vm2531, %v4373, %v4374
    %4376 = vrot.lane.b32.xlu0 %v2540, 96
    %v4377 = vpop.permute.xlu0 %4376
    %4378 = vrot.lane.b32.xlu0 %v2539, 96
    %v4379 = vpop.permute.xlu0 %4378
    %4380 = vrot.lane.b32.xlu0 %v2543, 96
    %v4381 = vpop.permute.xlu0 %4380
    %4382 = vrot.lane.b32.xlu0 %v2542, 96
    %v4383 = vpop.permute.xlu0 %4382
    %4384 = vrot.lane.b32.xlu0 %v2546, 96
    %v4385 = vpop.permute.xlu0 %4384
    %4386 = vrot.lane.b32.xlu0 %v2545, 96
    %v4387 = vpop.permute.xlu0 %4386
    %4388 = vrot.lane.b32.xlu0 %v2549, 96
    %v4389 = vpop.permute.xlu0 %4388
    %4390 = vrot.lane.b32.xlu0 %v2548, 96
    %v4391 = vpop.permute.xlu0 %4390
    %4392 = vrot.lane.b32.xlu0 %v2552, 96
    %v4393 = vpop.permute.xlu0 %4392
    %4394 = vrot.lane.b32.xlu0 %v2551, 96
    %v4395 = vpop.permute.xlu0 %4394
    %4396 = vrot.lane.b32.xlu0 %v2555, 96
    %v4397 = vpop.permute.xlu0 %4396
    %4398 = vrot.lane.b32.xlu0 %v2554, 96
    %v4399 = vpop.permute.xlu0 %4398
    %4400 = vrot.lane.b32.xlu0 %v2558, 96
    %v4401 = vpop.permute.xlu0 %4400
    %4402 = vrot.lane.b32.xlu0 %v2557, 96
    %v4403 = vpop.permute.xlu0 %4402
    %4404 = vrot.lane.b32.xlu0 %v2561, 96
    %v4405 = vpop.permute.xlu0 %4404
    %4406 = vrot.lane.b32.xlu0 %v2560, 96
    %v4407 = vpop.permute.xlu0 %4406
    %4408 = vrot.lane.b32.xlu0 %v3534, 96
    %v4409 = vpop.permute.xlu0 %4408
    %4410 = vrot.lane.b32.xlu0 %v3533, 96
    %v4411 = vpop.permute.xlu0 %4410
    %4412 = vrot.lane.b32.xlu0 %v4372, 96
    %v4413 = vpop.permute.xlu0 %4412
    %4414 = vrot.lane.b32.xlu0 %v4371, 96
    %v4415 = vpop.permute.xlu0 %4414
    %4416 = vrot.lane.b32.xlu0 %v2570, 96
    %v4417 = vpop.permute.xlu0 %4416
    %4418 = vrot.lane.b32.xlu0 %v2569, 96
    %v4419 = vpop.permute.xlu0 %4418
    %4420 = vrot.lane.b32.xlu0 %v2573, 96
    %v4421 = vpop.permute.xlu0 %4420
    %4422 = vrot.lane.b32.xlu0 %v2572, 96
    %v4423 = vpop.permute.xlu0 %4422
    %4424 = vrot.lane.b32.xlu0 %v2576, 96
    %v4425 = vpop.permute.xlu0 %4424
    %4426 = vrot.lane.b32.xlu0 %v2575, 96
    %v4427 = vpop.permute.xlu0 %4426
    %4428 = vrot.lane.b32.xlu0 %v2579, 96
    %v4429 = vpop.permute.xlu0 %4428
    %4430 = vrot.lane.b32.xlu0 %v2578, 96
    %v4431 = vpop.permute.xlu0 %4430
    %4432 = vrot.lane.b32.xlu0 %v2582, 96
    %v4433 = vpop.permute.xlu0 %4432
    %4434 = vrot.lane.b32.xlu0 %v2581, 96
    %v4435 = vpop.permute.xlu0 %4434
    %4436 = vrot.lane.b32.xlu0 %v2585, 96
    %v4437 = vpop.permute.xlu0 %4436
    %4438 = vrot.lane.b32.xlu0 %v2584, 96
    %v4439 = vpop.permute.xlu0 %4438
    %4440 = vrot.lane.b32.xlu0 %v2588, 96
    %v4441 = vpop.permute.xlu0 %4440
    %4442 = vrot.lane.b32.xlu0 %v2587, 96
    %v4443 = vpop.permute.xlu0 %4442
    %4444 = vrot.lane.b32.xlu0 %v2591, 96
    %v4445 = vpop.permute.xlu0 %4444
    %4446 = vrot.lane.b32.xlu0 %v2590, 96
    %v4447 = vpop.permute.xlu0 %4446
    %4448 = vrot.lane.b32.xlu0 %v3537, 96
    %v4449 = vpop.permute.xlu0 %4448
    %4450 = vrot.lane.b32.xlu0 %v3536, 96
    %v4451 = vpop.permute.xlu0 %4450
    %4452 = vrot.lane.b32.xlu0 %v4375, 96
    %v4453 = vpop.permute.xlu0 %4452
    %4454 = vrot.lane.b32.xlu0 %v4374, 96
    %v4455 = vpop.permute.xlu0 %4454
    %vm4496 = vcmask 851712
    %4497 = vst.msk [vmem:[#allocation4] sm:$0xff] %vm4496, %v4377
    %vm4498 = vcmask 845568
    %4499 = vst.msk [vmem:[#allocation4 + $0x10] sm:$0x3] %vm4498, %v4379
    %4500 = vst.msk [vmem:[#allocation4 + $0x20] sm:$0xff] %vm4496, %v4381
    %4501 = vst.msk [vmem:[#allocation4 + $0x30] sm:$0x3] %vm4498, %v4383
    %4502 = vst.msk [vmem:[#allocation4 + $0x40] sm:$0xff] %vm4496, %v4385
    %4503 = vst.msk [vmem:[#allocation4 + $0x50] sm:$0x3] %vm4498, %v4387
    %4504 = vst.msk [vmem:[#allocation4 + $0x60] sm:$0xff] %vm4496, %v4389
    %4505 = vst.msk [vmem:[#allocation4 + $0x70] sm:$0x3] %vm4498, %v4391
    %4506 = vst.msk [vmem:[#allocation4 + $0x80] sm:$0xff] %vm4496, %v4393
    %4507 = vst.msk [vmem:[#allocation4 + $0x90] sm:$0x3] %vm4498, %v4395
    %4508 = vst.msk [vmem:[#allocation4 + $0xa0] sm:$0xff] %vm4496, %v4397
    %4509 = vst.msk [vmem:[#allocation4 + $0xb0] sm:$0x3] %vm4498, %v4399
    %4510 = vst.msk [vmem:[#allocation4 + $0xc0] sm:$0xff] %vm4496, %v4401
    %4511 = vst.msk [vmem:[#allocation4 + $0xd0] sm:$0x3] %vm4498, %v4403
    %4512 = vst.msk [vmem:[#allocation4 + $0xe0] sm:$0xff] %vm4496, %v4405
    %4513 = vst.msk [vmem:[#allocation4 + $0xf0] sm:$0x3] %vm4498, %v4407
    %4514 = vst.msk [vmem:[#allocation4 + $0x100] sm:$0xff] %vm4496, %v4409
    %4515 = vst.msk [vmem:[#allocation4 + $0x110] sm:$0x3] %vm4498, %v4411
    %4516 = vst.msk [vmem:[#allocation4 + $0x120] sm:$0xff] %vm4496, %v4413
    %4517 = vst.msk [vmem:[#allocation4 + $0x130] sm:$0x3] %vm4498, %v4415
    %4518 = vst.msk [vmem:[#allocation4 + $0x140] sm:$0xff] %vm4496, %v4417
    %4519 = vst.msk [vmem:[#allocation4 + $0x150] sm:$0x3] %vm4498, %v4419
    %4520 = vst.msk [vmem:[#allocation4 + $0x160] sm:$0xff] %vm4496, %v4421
    %4521 = vst.msk [vmem:[#allocation4 + $0x170] sm:$0x3] %vm4498, %v4423
    %4522 = vst.msk [vmem:[#allocation4 + $0x180] sm:$0xff] %vm4496, %v4425
    %4523 = vst.msk [vmem:[#allocation4 + $0x190] sm:$0x3] %vm4498, %v4427
    %4524 = vst.msk [vmem:[#allocation4 + $0x1a0] sm:$0xff] %vm4496, %v4429
    %4525 = vst.msk [vmem:[#allocation4 + $0x1b0] sm:$0x3] %vm4498, %v4431
    %4526 = vst.msk [vmem:[#allocation4 + $0x1c0] sm:$0xff] %vm4496, %v4433
    %4527 = vst.msk [vmem:[#allocation4 + $0x1d0] sm:$0x3] %vm4498, %v4435
    %4528 = vst.msk [vmem:[#allocation4 + $0x1e0] sm:$0xff] %vm4496, %v4437
    %4529 = vst.msk [vmem:[#allocation4 + $0x1f0] sm:$0x3] %vm4498, %v4439
    %4530 = vst.msk [vmem:[#allocation4 + $0x200] sm:$0xff] %vm4496, %v4441
    %4531 = vst.msk [vmem:[#allocation4 + $0x210] sm:$0x3] %vm4498, %v4443
    %4532 = vst.msk [vmem:[#allocation4 + $0x220] sm:$0xff] %vm4496, %v4445
    %4533 = vst.msk [vmem:[#allocation4 + $0x230] sm:$0x3] %vm4498, %v4447
    %4534 = vst.msk [vmem:[#allocation4 + $0x240] sm:$0xff] %vm4496, %v4449
    %4535 = vst.msk [vmem:[#allocation4 + $0x250] sm:$0x3] %vm4498, %v4451
    %4536 = vst.msk [vmem:[#allocation4 + $0x260] sm:$0xff] %vm4496, %v4453
    %4537 = vst.msk [vmem:[#allocation4 + $0x270] sm:$0x3] %vm4498, %v4455
    %v4538 = vrot.slane %v2113, 3
    %v4539 = vrot.slane %v2114, 3
    %v4540 = vsel %vm804, %v4538, %v4539
    %v4541 = vrot.slane %v2141, 3
    %v4542 = vrot.slane %v2142, 3
    %v4543 = vsel %vm804, %v4541, %v4542
    %4544 = vrot.lane.b32.xlu0 %v2762, 104
    %v4545 = vpop.permute.xlu0 %4544
    %4546 = vrot.lane.b32.xlu0 %v2761, 104
    %v4547 = vpop.permute.xlu0 %4546
    %4548 = vrot.lane.b32.xlu0 %v2765, 104
    %v4549 = vpop.permute.xlu0 %4548
    %4550 = vrot.lane.b32.xlu0 %v2764, 104
    %v4551 = vpop.permute.xlu0 %4550
    %4552 = vrot.lane.b32.xlu0 %v2768, 104
    %v4553 = vpop.permute.xlu0 %4552
    %4554 = vrot.lane.b32.xlu0 %v2767, 104
    %v4555 = vpop.permute.xlu0 %4554
    %4556 = vrot.lane.b32.xlu0 %v2771, 104
    %v4557 = vpop.permute.xlu0 %4556
    %4558 = vrot.lane.b32.xlu0 %v2770, 104
    %v4559 = vpop.permute.xlu0 %4558
    %4560 = vrot.lane.b32.xlu0 %v2774, 104
    %v4561 = vpop.permute.xlu0 %4560
    %4562 = vrot.lane.b32.xlu0 %v2773, 104
    %v4563 = vpop.permute.xlu0 %4562
    %4564 = vrot.lane.b32.xlu0 %v2777, 104
    %v4565 = vpop.permute.xlu0 %4564
    %4566 = vrot.lane.b32.xlu0 %v2776, 104
    %v4567 = vpop.permute.xlu0 %4566
    %4568 = vrot.lane.b32.xlu0 %v2780, 104
    %v4569 = vpop.permute.xlu0 %4568
    %4570 = vrot.lane.b32.xlu0 %v2779, 104
    %v4571 = vpop.permute.xlu0 %4570
    %4572 = vrot.lane.b32.xlu0 %v2783, 104
    %v4573 = vpop.permute.xlu0 %4572
    %4574 = vrot.lane.b32.xlu0 %v2782, 104
    %v4575 = vpop.permute.xlu0 %4574
    %4576 = vrot.lane.b32.xlu0 %v3702, 104
    %v4577 = vpop.permute.xlu0 %4576
    %4578 = vrot.lane.b32.xlu0 %v3701, 104
    %v4579 = vpop.permute.xlu0 %4578
    %4580 = vrot.lane.b32.xlu0 %v4540, 104
    %v4581 = vpop.permute.xlu0 %4580
    %4582 = vrot.lane.b32.xlu0 %v4539, 104
    %v4583 = vpop.permute.xlu0 %4582
    %4584 = vrot.lane.b32.xlu0 %v2792, 104
    %v4585 = vpop.permute.xlu0 %4584
    %4586 = vrot.lane.b32.xlu0 %v2791, 104
    %v4587 = vpop.permute.xlu0 %4586
    %4588 = vrot.lane.b32.xlu0 %v2795, 104
    %v4589 = vpop.permute.xlu0 %4588
    %4590 = vrot.lane.b32.xlu0 %v2794, 104
    %v4591 = vpop.permute.xlu0 %4590
    %4592 = vrot.lane.b32.xlu0 %v2798, 104
    %v4593 = vpop.permute.xlu0 %4592
    %4594 = vrot.lane.b32.xlu0 %v2797, 104
    %v4595 = vpop.permute.xlu0 %4594
    %4596 = vrot.lane.b32.xlu0 %v2801, 104
    %v4597 = vpop.permute.xlu0 %4596
    %4598 = vrot.lane.b32.xlu0 %v2800, 104
    %v4599 = vpop.permute.xlu0 %4598
    %4600 = vrot.lane.b32.xlu0 %v2804, 104
    %v4601 = vpop.permute.xlu0 %4600
    %4602 = vrot.lane.b32.xlu0 %v2803, 104
    %v4603 = vpop.permute.xlu0 %4602
    %4604 = vrot.lane.b32.xlu0 %v2807, 104
    %v4605 = vpop.permute.xlu0 %4604
    %4606 = vrot.lane.b32.xlu0 %v2806, 104
    %v4607 = vpop.permute.xlu0 %4606
    %4608 = vrot.lane.b32.xlu0 %v2810, 104
    %v4609 = vpop.permute.xlu0 %4608
    %4610 = vrot.lane.b32.xlu0 %v2809, 104
    %v4611 = vpop.permute.xlu0 %4610
    %4612 = vrot.lane.b32.xlu0 %v2813, 104
    %v4613 = vpop.permute.xlu0 %4612
    %4614 = vrot.lane.b32.xlu0 %v2812, 104
    %v4615 = vpop.permute.xlu0 %4614
    %4616 = vrot.lane.b32.xlu0 %v3705, 104
    %v4617 = vpop.permute.xlu0 %4616
    %4618 = vrot.lane.b32.xlu0 %v3704, 104
    %v4619 = vpop.permute.xlu0 %4618
    %4620 = vrot.lane.b32.xlu0 %v4543, 104
    %v4621 = vpop.permute.xlu0 %4620
    %4622 = vrot.lane.b32.xlu0 %v4542, 104
    %v4623 = vpop.permute.xlu0 %4622
    %vm4664 = vcmask 917312
    %4665 = vst.msk [vmem:[#allocation4] sm:$0xff] %vm4664, %v4545
    %vm4666 = vcmask 911168
    %4667 = vst.msk [vmem:[#allocation4 + $0x10] sm:$0x3] %vm4666, %v4547
    %4668 = vst.msk [vmem:[#allocation4 + $0x20] sm:$0xff] %vm4664, %v4549
    %4669 = vst.msk [vmem:[#allocation4 + $0x30] sm:$0x3] %vm4666, %v4551
    %4670 = vst.msk [vmem:[#allocation4 + $0x40] sm:$0xff] %vm4664, %v4553
    %4671 = vst.msk [vmem:[#allocation4 + $0x50] sm:$0x3] %vm4666, %v4555
    %4672 = vst.msk [vmem:[#allocation4 + $0x60] sm:$0xff] %vm4664, %v4557
    %4673 = vst.msk [vmem:[#allocation4 + $0x70] sm:$0x3] %vm4666, %v4559
    %4674 = vst.msk [vmem:[#allocation4 + $0x80] sm:$0xff] %vm4664, %v4561
    %4675 = vst.msk [vmem:[#allocation4 + $0x90] sm:$0x3] %vm4666, %v4563
    %4676 = vst.msk [vmem:[#allocation4 + $0xa0] sm:$0xff] %vm4664, %v4565
    %4677 = vst.msk [vmem:[#allocation4 + $0xb0] sm:$0x3] %vm4666, %v4567
    %4678 = vst.msk [vmem:[#allocation4 + $0xc0] sm:$0xff] %vm4664, %v4569
    %4679 = vst.msk [vmem:[#allocation4 + $0xd0] sm:$0x3] %vm4666, %v4571
    %4680 = vst.msk [vmem:[#allocation4 + $0xe0] sm:$0xff] %vm4664, %v4573
    %4681 = vst.msk [vmem:[#allocation4 + $0xf0] sm:$0x3] %vm4666, %v4575
    %4682 = vst.msk [vmem:[#allocation4 + $0x100] sm:$0xff] %vm4664, %v4577
    %4683 = vst.msk [vmem:[#allocation4 + $0x110] sm:$0x3] %vm4666, %v4579
    %4684 = vst.msk [vmem:[#allocation4 + $0x120] sm:$0xff] %vm4664, %v4581
    %4685 = vst.msk [vmem:[#allocation4 + $0x130] sm:$0x3] %vm4666, %v4583
    %4686 = vst.msk [vmem:[#allocation4 + $0x140] sm:$0xff] %vm4664, %v4585
    %4687 = vst.msk [vmem:[#allocation4 + $0x150] sm:$0x3] %vm4666, %v4587
    %4688 = vst.msk [vmem:[#allocation4 + $0x160] sm:$0xff] %vm4664, %v4589
    %4689 = vst.msk [vmem:[#allocation4 + $0x170] sm:$0x3] %vm4666, %v4591
    %4690 = vst.msk [vmem:[#allocation4 + $0x180] sm:$0xff] %vm4664, %v4593
    %4691 = vst.msk [vmem:[#allocation4 + $0x190] sm:$0x3] %vm4666, %v4595
    %4692 = vst.msk [vmem:[#allocation4 + $0x1a0] sm:$0xff] %vm4664, %v4597
    %4693 = vst.msk [vmem:[#allocation4 + $0x1b0] sm:$0x3] %vm4666, %v4599
    %4694 = vst.msk [vmem:[#allocation4 + $0x1c0] sm:$0xff] %vm4664, %v4601
    %4695 = vst.msk [vmem:[#allocation4 + $0x1d0] sm:$0x3] %vm4666, %v4603
    %4696 = vst.msk [vmem:[#allocation4 + $0x1e0] sm:$0xff] %vm4664, %v4605
    %4697 = vst.msk [vmem:[#allocation4 + $0x1f0] sm:$0x3] %vm4666, %v4607
    %4698 = vst.msk [vmem:[#allocation4 + $0x200] sm:$0xff] %vm4664, %v4609
    %4699 = vst.msk [vmem:[#allocation4 + $0x210] sm:$0x3] %vm4666, %v4611
    %4700 = vst.msk [vmem:[#allocation4 + $0x220] sm:$0xff] %vm4664, %v4613
    %4701 = vst.msk [vmem:[#allocation4 + $0x230] sm:$0x3] %vm4666, %v4615
    %4702 = vst.msk [vmem:[#allocation4 + $0x240] sm:$0xff] %vm4664, %v4617
    %4703 = vst.msk [vmem:[#allocation4 + $0x250] sm:$0x3] %vm4666, %v4619
    %4704 = vst.msk [vmem:[#allocation4 + $0x260] sm:$0xff] %vm4664, %v4621
    %4705 = vst.msk [vmem:[#allocation4 + $0x270] sm:$0x3] %vm4666, %v4623
    %v4706 = vrot.slane %v2113, 4
    %v4707 = vrot.slane %v2114, 4
    %v4708 = vsel %vm803, %v4706, %v4707
    %v4709 = vrot.slane %v2141, 4
    %v4710 = vrot.slane %v2142, 4
    %v4711 = vsel %vm803, %v4709, %v4710
    %4712 = vrot.lane.b32.xlu0 %v2984, 112
    %v4713 = vpop.permute.xlu0 %4712
    %4714 = vrot.lane.b32.xlu0 %v2983, 112
    %v4715 = vpop.permute.xlu0 %4714
    %4716 = vrot.lane.b32.xlu0 %v2987, 112
    %v4717 = vpop.permute.xlu0 %4716
    %4718 = vrot.lane.b32.xlu0 %v2986, 112
    %v4719 = vpop.permute.xlu0 %4718
    %4720 = vrot.lane.b32.xlu0 %v2990, 112
    %v4721 = vpop.permute.xlu0 %4720
    %4722 = vrot.lane.b32.xlu0 %v2989, 112
    %v4723 = vpop.permute.xlu0 %4722
    %4724 = vrot.lane.b32.xlu0 %v2993, 112
    %v4725 = vpop.permute.xlu0 %4724
    %4726 = vrot.lane.b32.xlu0 %v2992, 112
    %v4727 = vpop.permute.xlu0 %4726
    %4728 = vrot.lane.b32.xlu0 %v2996, 112
    %v4729 = vpop.permute.xlu0 %4728
    %4730 = vrot.lane.b32.xlu0 %v2995, 112
    %v4731 = vpop.permute.xlu0 %4730
    %4732 = vrot.lane.b32.xlu0 %v2999, 112
    %v4733 = vpop.permute.xlu0 %4732
    %4734 = vrot.lane.b32.xlu0 %v2998, 112
    %v4735 = vpop.permute.xlu0 %4734
    %4736 = vrot.lane.b32.xlu0 %v3002, 112
    %v4737 = vpop.permute.xlu0 %4736
    %4738 = vrot.lane.b32.xlu0 %v3001, 112
    %v4739 = vpop.permute.xlu0 %4738
    %4740 = vrot.lane.b32.xlu0 %v3005, 112
    %v4741 = vpop.permute.xlu0 %4740
    %4742 = vrot.lane.b32.xlu0 %v3004, 112
    %v4743 = vpop.permute.xlu0 %4742
    %4744 = vrot.lane.b32.xlu0 %v3870, 112
    %v4745 = vpop.permute.xlu0 %4744
    %4746 = vrot.lane.b32.xlu0 %v3869, 112
    %v4747 = vpop.permute.xlu0 %4746
    %4748 = vrot.lane.b32.xlu0 %v4708, 112
    %v4749 = vpop.permute.xlu0 %4748
    %4750 = vrot.lane.b32.xlu0 %v4707, 112
    %v4751 = vpop.permute.xlu0 %4750
    %4752 = vrot.lane.b32.xlu0 %v3014, 112
    %v4753 = vpop.permute.xlu0 %4752
    %4754 = vrot.lane.b32.xlu0 %v3013, 112
    %v4755 = vpop.permute.xlu0 %4754
    %4756 = vrot.lane.b32.xlu0 %v3017, 112
    %v4757 = vpop.permute.xlu0 %4756
    %4758 = vrot.lane.b32.xlu0 %v3016, 112
    %v4759 = vpop.permute.xlu0 %4758
    %4760 = vrot.lane.b32.xlu0 %v3020, 112
    %v4761 = vpop.permute.xlu0 %4760
    %4762 = vrot.lane.b32.xlu0 %v3019, 112
    %v4763 = vpop.permute.xlu0 %4762
    %4764 = vrot.lane.b32.xlu0 %v3023, 112
    %v4765 = vpop.permute.xlu0 %4764
    %4766 = vrot.lane.b32.xlu0 %v3022, 112
    %v4767 = vpop.permute.xlu0 %4766
    %4768 = vrot.lane.b32.xlu0 %v3026, 112
    %v4769 = vpop.permute.xlu0 %4768
    %4770 = vrot.lane.b32.xlu0 %v3025, 112
    %v4771 = vpop.permute.xlu0 %4770
    %4772 = vrot.lane.b32.xlu0 %v3029, 112
    %v4773 = vpop.permute.xlu0 %4772
    %4774 = vrot.lane.b32.xlu0 %v3028, 112
    %v4775 = vpop.permute.xlu0 %4774
    %4776 = vrot.lane.b32.xlu0 %v3032, 112
    %v4777 = vpop.permute.xlu0 %4776
    %4778 = vrot.lane.b32.xlu0 %v3031, 112
    %v4779 = vpop.permute.xlu0 %4778
    %4780 = vrot.lane.b32.xlu0 %v3035, 112
    %v4781 = vpop.permute.xlu0 %4780
    %4782 = vrot.lane.b32.xlu0 %v3034, 112
    %v4783 = vpop.permute.xlu0 %4782
    %4784 = vrot.lane.b32.xlu0 %v3873, 112
    %v4785 = vpop.permute.xlu0 %4784
    %4786 = vrot.lane.b32.xlu0 %v3872, 112
    %v4787 = vpop.permute.xlu0 %4786
    %4788 = vrot.lane.b32.xlu0 %v4711, 112
    %v4789 = vpop.permute.xlu0 %4788
    %4790 = vrot.lane.b32.xlu0 %v4710, 112
    %v4791 = vpop.permute.xlu0 %4790
    %vm4832 = vcmask 982912
    %4833 = vst.msk [vmem:[#allocation4] sm:$0xff] %vm4832, %v4713
    %vm4834 = vcmask 976768
    %4835 = vst.msk [vmem:[#allocation4 + $0x10] sm:$0x3] %vm4834, %v4715
    %4836 = vst.msk [vmem:[#allocation4 + $0x20] sm:$0xff] %vm4832, %v4717
    %4837 = vst.msk [vmem:[#allocation4 + $0x30] sm:$0x3] %vm4834, %v4719
    %4838 = vst.msk [vmem:[#allocation4 + $0x40] sm:$0xff] %vm4832, %v4721
    %4839 = vst.msk [vmem:[#allocation4 + $0x50] sm:$0x3] %vm4834, %v4723
    %4840 = vst.msk [vmem:[#allocation4 + $0x60] sm:$0xff] %vm4832, %v4725
    %4841 = vst.msk [vmem:[#allocation4 + $0x70] sm:$0x3] %vm4834, %v4727
    %4842 = vst.msk [vmem:[#allocation4 + $0x80] sm:$0xff] %vm4832, %v4729
    %4843 = vst.msk [vmem:[#allocation4 + $0x90] sm:$0x3] %vm4834, %v4731
    %4844 = vst.msk [vmem:[#allocation4 + $0xa0] sm:$0xff] %vm4832, %v4733
    %4845 = vst.msk [vmem:[#allocation4 + $0xb0] sm:$0x3] %vm4834, %v4735
    %4846 = vst.msk [vmem:[#allocation4 + $0xc0] sm:$0xff] %vm4832, %v4737
    %4847 = vst.msk [vmem:[#allocation4 + $0xd0] sm:$0x3] %vm4834, %v4739
    %4848 = vst.msk [vmem:[#allocation4 + $0xe0] sm:$0xff] %vm4832, %v4741
    %4849 = vst.msk [vmem:[#allocation4 + $0xf0] sm:$0x3] %vm4834, %v4743
    %4850 = vst.msk [vmem:[#allocation4 + $0x100] sm:$0xff] %vm4832, %v4745
    %4851 = vst.msk [vmem:[#allocation4 + $0x110] sm:$0x3] %vm4834, %v4747
    %4852 = vst.msk [vmem:[#allocation4 + $0x120] sm:$0xff] %vm4832, %v4749
    %4853 = vst.msk [vmem:[#allocation4 + $0x130] sm:$0x3] %vm4834, %v4751
    %4854 = vst.msk [vmem:[#allocation4 + $0x140] sm:$0xff] %vm4832, %v4753
    %4855 = vst.msk [vmem:[#allocation4 + $0x150] sm:$0x3] %vm4834, %v4755
    %4856 = vst.msk [vmem:[#allocation4 + $0x160] sm:$0xff] %vm4832, %v4757
    %4857 = vst.msk [vmem:[#allocation4 + $0x170] sm:$0x3] %vm4834, %v4759
    %4858 = vst.msk [vmem:[#allocation4 + $0x180] sm:$0xff] %vm4832, %v4761
    %4859 = vst.msk [vmem:[#allocation4 + $0x190] sm:$0x3] %vm4834, %v4763
    %4860 = vst.msk [vmem:[#allocation4 + $0x1a0] sm:$0xff] %vm4832, %v4765
    %4861 = vst.msk [vmem:[#allocation4 + $0x1b0] sm:$0x3] %vm4834, %v4767
    %4862 = vst.msk [vmem:[#allocation4 + $0x1c0] sm:$0xff] %vm4832, %v4769
    %4863 = vst.msk [vmem:[#allocation4 + $0x1d0] sm:$0x3] %vm4834, %v4771
    %4864 = vst.msk [vmem:[#allocation4 + $0x1e0] sm:$0xff] %vm4832, %v4773
    %4865 = vst.msk [vmem:[#allocation4 + $0x1f0] sm:$0x3] %vm4834, %v4775
    %4866 = vst.msk [vmem:[#allocation4 + $0x200] sm:$0xff] %vm4832, %v4777
    %4867 = vst.msk [vmem:[#allocation4 + $0x210] sm:$0x3] %vm4834, %v4779
    %4868 = vst.msk [vmem:[#allocation4 + $0x220] sm:$0xff] %vm4832, %v4781
    %4869 = vst.msk [vmem:[#allocation4 + $0x230] sm:$0x3] %vm4834, %v4783
    %4870 = vst.msk [vmem:[#allocation4 + $0x240] sm:$0xff] %vm4832, %v4785
    %4871 = vst.msk [vmem:[#allocation4 + $0x250] sm:$0x3] %vm4834, %v4787
    %4872 = vst.msk [vmem:[#allocation4 + $0x260] sm:$0xff] %vm4832, %v4789
    %4873 = vst.msk [vmem:[#allocation4 + $0x270] sm:$0x3] %vm4834, %v4791
    %4878 = vrot.lane.b32.xlu0 %v2097, 120
    %v4879 = vpop.permute.xlu0 %4878
    %4880 = vrot.lane.b32.xlu0 %v2098, 120
    %v4881 = vpop.permute.xlu0 %4880
    %4882 = vrot.lane.b32.xlu0 %v2099, 120
    %v4883 = vpop.permute.xlu0 %4882
    %4884 = vrot.lane.b32.xlu0 %v2100, 120
    %v4885 = vpop.permute.xlu0 %4884
    %4886 = vrot.lane.b32.xlu0 %v2101, 120
    %v4887 = vpop.permute.xlu0 %4886
    %4888 = vrot.lane.b32.xlu0 %v2102, 120
    %v4889 = vpop.permute.xlu0 %4888
    %4890 = vrot.lane.b32.xlu0 %v2103, 120
    %v4891 = vpop.permute.xlu0 %4890
    %4892 = vrot.lane.b32.xlu0 %v2104, 120
    %v4893 = vpop.permute.xlu0 %4892
    %4894 = vrot.lane.b32.xlu0 %v2105, 120
    %v4895 = vpop.permute.xlu0 %4894
    %4896 = vrot.lane.b32.xlu0 %v2106, 120
    %v4897 = vpop.permute.xlu0 %4896
    %4898 = vrot.lane.b32.xlu0 %v2107, 120
    %v4899 = vpop.permute.xlu0 %4898
    %4900 = vrot.lane.b32.xlu0 %v2108, 120
    %v4901 = vpop.permute.xlu0 %4900
    %4902 = vrot.lane.b32.xlu0 %v2109, 120
    %v4903 = vpop.permute.xlu0 %4902
    %4904 = vrot.lane.b32.xlu0 %v2110, 120
    %v4905 = vpop.permute.xlu0 %4904
    %4906 = vrot.lane.b32.xlu0 %v2111, 120
    %v4907 = vpop.permute.xlu0 %4906
    %4908 = vrot.lane.b32.xlu0 %v2112, 120
    %v4909 = vpop.permute.xlu0 %4908
    %4910 = vrot.lane.b32.xlu0 %v2113, 120
    %v4911 = vpop.permute.xlu0 %4910
    %4912 = vrot.lane.b32.xlu0 %v2114, 120
    %v4913 = vpop.permute.xlu0 %4912
    %4914 = vrot.lane.b32.xlu0 %v2115, 120
    %v4915 = vpop.permute.xlu0 %4914
    %4916 = vrot.lane.b32.xlu0 %v2116, 120
    %v4917 = vpop.permute.xlu0 %4916
    %4918 = vrot.lane.b32.xlu0 %v2125, 120
    %v4919 = vpop.permute.xlu0 %4918
    %4920 = vrot.lane.b32.xlu0 %v2126, 120
    %v4921 = vpop.permute.xlu0 %4920
    %4922 = vrot.lane.b32.xlu0 %v2127, 120
    %v4923 = vpop.permute.xlu0 %4922
    %4924 = vrot.lane.b32.xlu0 %v2128, 120
    %v4925 = vpop.permute.xlu0 %4924
    %4926 = vrot.lane.b32.xlu0 %v2129, 120
    %v4927 = vpop.permute.xlu0 %4926
    %4928 = vrot.lane.b32.xlu0 %v2130, 120
    %v4929 = vpop.permute.xlu0 %4928
    %4930 = vrot.lane.b32.xlu0 %v2131, 120
    %v4931 = vpop.permute.xlu0 %4930
    %4932 = vrot.lane.b32.xlu0 %v2132, 120
    %v4933 = vpop.permute.xlu0 %4932
    %4934 = vrot.lane.b32.xlu0 %v2133, 120
    %v4935 = vpop.permute.xlu0 %4934
    %4936 = vrot.lane.b32.xlu0 %v2134, 120
    %v4937 = vpop.permute.xlu0 %4936
    %4938 = vrot.lane.b32.xlu0 %v2135, 120
    %v4939 = vpop.permute.xlu0 %4938
    %4940 = vrot.lane.b32.xlu0 %v2136, 120
    %v4941 = vpop.permute.xlu0 %4940
    %4942 = vrot.lane.b32.xlu0 %v2137, 120
    %v4943 = vpop.permute.xlu0 %4942
    %4944 = vrot.lane.b32.xlu0 %v2138, 120
    %v4945 = vpop.permute.xlu0 %4944
    %4946 = vrot.lane.b32.xlu0 %v2139, 120
    %v4947 = vpop.permute.xlu0 %4946
    %4948 = vrot.lane.b32.xlu0 %v2140, 120
    %v4949 = vpop.permute.xlu0 %4948
    %4950 = vrot.lane.b32.xlu0 %v2141, 120
    %v4951 = vpop.permute.xlu0 %4950
    %4952 = vrot.lane.b32.xlu0 %v2142, 120
    %v4953 = vpop.permute.xlu0 %4952
    %4954 = vrot.lane.b32.xlu0 %v2143, 120
    %v4955 = vpop.permute.xlu0 %4954
    %4956 = vrot.lane.b32.xlu0 %v2144, 120
    %v4957 = vpop.permute.xlu0 %4956
    %vm4998 = vcmask 1048512
    %4999 = vst.msk [vmem:[#allocation4] sm:$0xff] %vm4998, %v4879
    %vm5000 = vcmask 1042368
    %5001 = vst.msk [vmem:[#allocation4 + $0x10] sm:$0x3] %vm5000, %v4881
    %5002 = vst.msk [vmem:[#allocation4 + $0x20] sm:$0xff] %vm4998, %v4883
    %5003 = vst.msk [vmem:[#allocation4 + $0x30] sm:$0x3] %vm5000, %v4885
    %5004 = vst.msk [vmem:[#allocation4 + $0x40] sm:$0xff] %vm4998, %v4887
    %5005 = vst.msk [vmem:[#allocation4 + $0x50] sm:$0x3] %vm5000, %v4889
    %5006 = vst.msk [vmem:[#allocation4 + $0x60] sm:$0xff] %vm4998, %v4891
    %5007 = vst.msk [vmem:[#allocation4 + $0x70] sm:$0x3] %vm5000, %v4893
    %5008 = vst.msk [vmem:[#allocation4 + $0x80] sm:$0xff] %vm4998, %v4895
    %5009 = vst.msk [vmem:[#allocation4 + $0x90] sm:$0x3] %vm5000, %v4897
    %5010 = vst.msk [vmem:[#allocation4 + $0xa0] sm:$0xff] %vm4998, %v4899
    %5011 = vst.msk [vmem:[#allocation4 + $0xb0] sm:$0x3] %vm5000, %v4901
    %5012 = vst.msk [vmem:[#allocation4 + $0xc0] sm:$0xff] %vm4998, %v4903
    %5013 = vst.msk [vmem:[#allocation4 + $0xd0] sm:$0x3] %vm5000, %v4905
    %5014 = vst.msk [vmem:[#allocation4 + $0xe0] sm:$0xff] %vm4998, %v4907
    %5015 = vst.msk [vmem:[#allocation4 + $0xf0] sm:$0x3] %vm5000, %v4909
    %5016 = vst.msk [vmem:[#allocation4 + $0x100] sm:$0xff] %vm4998, %v4911
    %5017 = vst.msk [vmem:[#allocation4 + $0x110] sm:$0x3] %vm5000, %v4913
    %5018 = vst.msk [vmem:[#allocation4 + $0x120] sm:$0xff] %vm4998, %v4915
    %5019 = vst.msk [vmem:[#allocation4 + $0x130] sm:$0x3] %vm5000, %v4917
    %5020 = vst.msk [vmem:[#allocation4 + $0x140] sm:$0xff] %vm4998, %v4919
    %5021 = vst.msk [vmem:[#allocation4 + $0x150] sm:$0x3] %vm5000, %v4921
    %5022 = vst.msk [vmem:[#allocation4 + $0x160] sm:$0xff] %vm4998, %v4923
    %5023 = vst.msk [vmem:[#allocation4 + $0x170] sm:$0x3] %vm5000, %v4925
    %5024 = vst.msk [vmem:[#allocation4 + $0x180] sm:$0xff] %vm4998, %v4927
    %5025 = vst.msk [vmem:[#allocation4 + $0x190] sm:$0x3] %vm5000, %v4929
    %5026 = vst.msk [vmem:[#allocation4 + $0x1a0] sm:$0xff] %vm4998, %v4931
    %5027 = vst.msk [vmem:[#allocation4 + $0x1b0] sm:$0x3] %vm5000, %v4933
    %5028 = vst.msk [vmem:[#allocation4 + $0x1c0] sm:$0xff] %vm4998, %v4935
    %5029 = vst.msk [vmem:[#allocation4 + $0x1d0] sm:$0x3] %vm5000, %v4937
    %5030 = vst.msk [vmem:[#allocation4 + $0x1e0] sm:$0xff] %vm4998, %v4939
    %5031 = vst.msk [vmem:[#allocation4 + $0x1f0] sm:$0x3] %vm5000, %v4941
    %5032 = vst.msk [vmem:[#allocation4 + $0x200] sm:$0xff] %vm4998, %v4943
    %5033 = vst.msk [vmem:[#allocation4 + $0x210] sm:$0x3] %vm5000, %v4945
    %5034 = vst.msk [vmem:[#allocation4 + $0x220] sm:$0xff] %vm4998, %v4947
    %5035 = vst.msk [vmem:[#allocation4 + $0x230] sm:$0x3] %vm5000, %v4949
    %5036 = vst.msk [vmem:[#allocation4 + $0x240] sm:$0xff] %vm4998, %v4951
    %5037 = vst.msk [vmem:[#allocation4 + $0x250] sm:$0x3] %vm5000, %v4953
    %5038 = vst.msk [vmem:[#allocation4 + $0x260] sm:$0xff] %vm4998, %v4955
    %5039 = vst.msk [vmem:[#allocation4 + $0x270] sm:$0x3] %vm5000, %v4957
    %v5040 = vrot.slane %v2115, 1
    %v5041 = vrot.slane %v2116, 1
    %v5042 = vsel %vm62, %v5040, %v5041
    %v5043 = vrot.slane %v2143, 1
    %v5044 = vrot.slane %v2144, 1
    %v5045 = vsel %vm62, %v5043, %v5044
    %5086 = vst.msk [vmem:[#allocation4 + $0x8] sm:$0xff] %vm1755, %v2320
    %5087 = vst.msk [vmem:[#allocation4 + $0x18] sm:$0x3] %vm2229, %v2319
    %5088 = vst.msk [vmem:[#allocation4 + $0x28] sm:$0xff] %vm1755, %v2323
    %5089 = vst.msk [vmem:[#allocation4 + $0x38] sm:$0x3] %vm2229, %v2322
    %5090 = vst.msk [vmem:[#allocation4 + $0x48] sm:$0xff] %vm1755, %v2326
    %5091 = vst.msk [vmem:[#allocation4 + $0x58] sm:$0x3] %vm2229, %v2325
    %5092 = vst.msk [vmem:[#allocation4 + $0x68] sm:$0xff] %vm1755, %v2329
    %5093 = vst.msk [vmem:[#allocation4 + $0x78] sm:$0x3] %vm2229, %v2328
    %5094 = vst.msk [vmem:[#allocation4 + $0x88] sm:$0xff] %vm1755, %v2332
    %5095 = vst.msk [vmem:[#allocation4 + $0x98] sm:$0x3] %vm2229, %v2331
    %5096 = vst.msk [vmem:[#allocation4 + $0xa8] sm:$0xff] %vm1755, %v2335
    %5097 = vst.msk [vmem:[#allocation4 + $0xb8] sm:$0x3] %vm2229, %v2334
    %5098 = vst.msk [vmem:[#allocation4 + $0xc8] sm:$0xff] %vm1755, %v2338
    %5099 = vst.msk [vmem:[#allocation4 + $0xd8] sm:$0x3] %vm2229, %v2337
    %5100 = vst.msk [vmem:[#allocation4 + $0xe8] sm:$0xff] %vm1755, %v3366
    %5101 = vst.msk [vmem:[#allocation4 + $0xf8] sm:$0x3] %vm2229, %v3365
    %5102 = vst.msk [vmem:[#allocation4 + $0x108] sm:$0xff] %vm1755, %v4204
    %5103 = vst.msk [vmem:[#allocation4 + $0x118] sm:$0x3] %vm2229, %v4203
    %5104 = vst.msk [vmem:[#allocation4 + $0x128] sm:$0xff] %vm1755, %v5042
    %5105 = vst.msk [vmem:[#allocation4 + $0x138] sm:$0x3] %vm2229, %v5041
    %5106 = vst.msk [vmem:[#allocation4 + $0x148] sm:$0xff] %vm1755, %v2350
    %5107 = vst.msk [vmem:[#allocation4 + $0x158] sm:$0x3] %vm2229, %v2349
    %5108 = vst.msk [vmem:[#allocation4 + $0x168] sm:$0xff] %vm1755, %v2353
    %5109 = vst.msk [vmem:[#allocation4 + $0x178] sm:$0x3] %vm2229, %v2352
    %5110 = vst.msk [vmem:[#allocation4 + $0x188] sm:$0xff] %vm1755, %v2356
    %5111 = vst.msk [vmem:[#allocation4 + $0x198] sm:$0x3] %vm2229, %v2355
    %5112 = vst.msk [vmem:[#allocation4 + $0x1a8] sm:$0xff] %vm1755, %v2359
    %5113 = vst.msk [vmem:[#allocation4 + $0x1b8] sm:$0x3] %vm2229, %v2358
    %5114 = vst.msk [vmem:[#allocation4 + $0x1c8] sm:$0xff] %vm1755, %v2362
    %5115 = vst.msk [vmem:[#allocation4 + $0x1d8] sm:$0x3] %vm2229, %v2361
    %5116 = vst.msk [vmem:[#allocation4 + $0x1e8] sm:$0xff] %vm1755, %v2365
    %5117 = vst.msk [vmem:[#allocation4 + $0x1f8] sm:$0x3] %vm2229, %v2364
    %5118 = vst.msk [vmem:[#allocation4 + $0x208] sm:$0xff] %vm1755, %v2368
    %5119 = vst.msk [vmem:[#allocation4 + $0x218] sm:$0x3] %vm2229, %v2367
    %5120 = vst.msk [vmem:[#allocation4 + $0x228] sm:$0xff] %vm1755, %v3369
    %5121 = vst.msk [vmem:[#allocation4 + $0x238] sm:$0x3] %vm2229, %v3368
    %5122 = vst.msk [vmem:[#allocation4 + $0x248] sm:$0xff] %vm1755, %v4207
    %5123 = vst.msk [vmem:[#allocation4 + $0x258] sm:$0x3] %vm2229, %v4206
    %5124 = vst.msk [vmem:[#allocation4 + $0x268] sm:$0xff] %vm1755, %v5045
    %5125 = vst.msk [vmem:[#allocation4 + $0x278] sm:$0x3] %vm2229, %v5044
    %v5126 = vrot.slane %v2115, 2
    %v5127 = vrot.slane %v2116, 2
    %v5128 = vsel %vm2531, %v5126, %v5127
    %v5129 = vrot.slane %v2143, 2
    %v5130 = vrot.slane %v2144, 2
    %v5131 = vsel %vm2531, %v5129, %v5130
    %5132 = vrot.lane.b32.xlu0 %v2543, 8
    %v5133 = vpop.permute.xlu0 %5132
    %5134 = vrot.lane.b32.xlu0 %v2542, 8
    %v5135 = vpop.permute.xlu0 %5134
    %5136 = vrot.lane.b32.xlu0 %v2546, 8
    %v5137 = vpop.permute.xlu0 %5136
    %5138 = vrot.lane.b32.xlu0 %v2545, 8
    %v5139 = vpop.permute.xlu0 %5138
    %5140 = vrot.lane.b32.xlu0 %v2549, 8
    %v5141 = vpop.permute.xlu0 %5140
    %5142 = vrot.lane.b32.xlu0 %v2548, 8
    %v5143 = vpop.permute.xlu0 %5142
    %5144 = vrot.lane.b32.xlu0 %v2552, 8
    %v5145 = vpop.permute.xlu0 %5144
    %5146 = vrot.lane.b32.xlu0 %v2551, 8
    %v5147 = vpop.permute.xlu0 %5146
    %5148 = vrot.lane.b32.xlu0 %v2555, 8
    %v5149 = vpop.permute.xlu0 %5148
    %5150 = vrot.lane.b32.xlu0 %v2554, 8
    %v5151 = vpop.permute.xlu0 %5150
    %5152 = vrot.lane.b32.xlu0 %v2558, 8
    %v5153 = vpop.permute.xlu0 %5152
    %5154 = vrot.lane.b32.xlu0 %v2557, 8
    %v5155 = vpop.permute.xlu0 %5154
    %5156 = vrot.lane.b32.xlu0 %v2561, 8
    %v5157 = vpop.permute.xlu0 %5156
    %5158 = vrot.lane.b32.xlu0 %v2560, 8
    %v5159 = vpop.permute.xlu0 %5158
    %5160 = vrot.lane.b32.xlu0 %v3534, 8
    %v5161 = vpop.permute.xlu0 %5160
    %5162 = vrot.lane.b32.xlu0 %v3533, 8
    %v5163 = vpop.permute.xlu0 %5162
    %5164 = vrot.lane.b32.xlu0 %v4372, 8
    %v5165 = vpop.permute.xlu0 %5164
    %5166 = vrot.lane.b32.xlu0 %v4371, 8
    %v5167 = vpop.permute.xlu0 %5166
    %5168 = vrot.lane.b32.xlu0 %v5128, 8
    %v5169 = vpop.permute.xlu0 %5168
    %5170 = vrot.lane.b32.xlu0 %v5127, 8
    %v5171 = vpop.permute.xlu0 %5170
    %5172 = vrot.lane.b32.xlu0 %v2573, 8
    %v5173 = vpop.permute.xlu0 %5172
    %5174 = vrot.lane.b32.xlu0 %v2572, 8
    %v5175 = vpop.permute.xlu0 %5174
    %5176 = vrot.lane.b32.xlu0 %v2576, 8
    %v5177 = vpop.permute.xlu0 %5176
    %5178 = vrot.lane.b32.xlu0 %v2575, 8
    %v5179 = vpop.permute.xlu0 %5178
    %5180 = vrot.lane.b32.xlu0 %v2579, 8
    %v5181 = vpop.permute.xlu0 %5180
    %5182 = vrot.lane.b32.xlu0 %v2578, 8
    %v5183 = vpop.permute.xlu0 %5182
    %5184 = vrot.lane.b32.xlu0 %v2582, 8
    %v5185 = vpop.permute.xlu0 %5184
    %5186 = vrot.lane.b32.xlu0 %v2581, 8
    %v5187 = vpop.permute.xlu0 %5186
    %5188 = vrot.lane.b32.xlu0 %v2585, 8
    %v5189 = vpop.permute.xlu0 %5188
    %5190 = vrot.lane.b32.xlu0 %v2584, 8
    %v5191 = vpop.permute.xlu0 %5190
    %5192 = vrot.lane.b32.xlu0 %v2588, 8
    %v5193 = vpop.permute.xlu0 %5192
    %5194 = vrot.lane.b32.xlu0 %v2587, 8
    %v5195 = vpop.permute.xlu0 %5194
    %5196 = vrot.lane.b32.xlu0 %v2591, 8
    %v5197 = vpop.permute.xlu0 %5196
    %5198 = vrot.lane.b32.xlu0 %v2590, 8
    %v5199 = vpop.permute.xlu0 %5198
    %5200 = vrot.lane.b32.xlu0 %v3537, 8
    %v5201 = vpop.permute.xlu0 %5200
    %5202 = vrot.lane.b32.xlu0 %v3536, 8
    %v5203 = vpop.permute.xlu0 %5202
    %5204 = vrot.lane.b32.xlu0 %v4375, 8
    %v5205 = vpop.permute.xlu0 %5204
    %5206 = vrot.lane.b32.xlu0 %v4374, 8
    %v5207 = vpop.permute.xlu0 %5206
    %5208 = vrot.lane.b32.xlu0 %v5131, 8
    %v5209 = vpop.permute.xlu0 %5208
    %5210 = vrot.lane.b32.xlu0 %v5130, 8
    %v5211 = vpop.permute.xlu0 %5210
    %5252 = vst.msk [vmem:[#allocation4 + $0x8] sm:$0xff] %vm2489, %v5133
    %5253 = vst.msk [vmem:[#allocation4 + $0x18] sm:$0x3] %vm2491, %v5135
    %5254 = vst.msk [vmem:[#allocation4 + $0x28] sm:$0xff] %vm2489, %v5137
    %5255 = vst.msk [vmem:[#allocation4 + $0x38] sm:$0x3] %vm2491, %v5139
    %5256 = vst.msk [vmem:[#allocation4 + $0x48] sm:$0xff] %vm2489, %v5141
    %5257 = vst.msk [vmem:[#allocation4 + $0x58] sm:$0x3] %vm2491, %v5143
    %5258 = vst.msk [vmem:[#allocation4 + $0x68] sm:$0xff] %vm2489, %v5145
    %5259 = vst.msk [vmem:[#allocation4 + $0x78] sm:$0x3] %vm2491, %v5147
    %5260 = vst.msk [vmem:[#allocation4 + $0x88] sm:$0xff] %vm2489, %v5149
    %5261 = vst.msk [vmem:[#allocation4 + $0x98] sm:$0x3] %vm2491, %v5151
    %5262 = vst.msk [vmem:[#allocation4 + $0xa8] sm:$0xff] %vm2489, %v5153
    %5263 = vst.msk [vmem:[#allocation4 + $0xb8] sm:$0x3] %vm2491, %v5155
    %5264 = vst.msk [vmem:[#allocation4 + $0xc8] sm:$0xff] %vm2489, %v5157
    %5265 = vst.msk [vmem:[#allocation4 + $0xd8] sm:$0x3] %vm2491, %v5159
    %5266 = vst.msk [vmem:[#allocation4 + $0xe8] sm:$0xff] %vm2489, %v5161
    %5267 = vst.msk [vmem:[#allocation4 + $0xf8] sm:$0x3] %vm2491, %v5163
    %5268 = vst.msk [vmem:[#allocation4 + $0x108] sm:$0xff] %vm2489, %v5165
    %5269 = vst.msk [vmem:[#allocation4 + $0x118] sm:$0x3] %vm2491, %v5167
    %5270 = vst.msk [vmem:[#allocation4 + $0x128] sm:$0xff] %vm2489, %v5169
    %5271 = vst.msk [vmem:[#allocation4 + $0x138] sm:$0x3] %vm2491, %v5171
    %5272 = vst.msk [vmem:[#allocation4 + $0x148] sm:$0xff] %vm2489, %v5173
    %5273 = vst.msk [vmem:[#allocation4 + $0x158] sm:$0x3] %vm2491, %v5175
    %5274 = vst.msk [vmem:[#allocation4 + $0x168] sm:$0xff] %vm2489, %v5177
    %5275 = vst.msk [vmem:[#allocation4 + $0x178] sm:$0x3] %vm2491, %v5179
    %5276 = vst.msk [vmem:[#allocation4 + $0x188] sm:$0xff] %vm2489, %v5181
    %5277 = vst.msk [vmem:[#allocation4 + $0x198] sm:$0x3] %vm2491, %v5183
    %5278 = vst.msk [vmem:[#allocation4 + $0x1a8] sm:$0xff] %vm2489, %v5185
    %5279 = vst.msk [vmem:[#allocation4 + $0x1b8] sm:$0x3] %vm2491, %v5187
    %5280 = vst.msk [vmem:[#allocation4 + $0x1c8] sm:$0xff] %vm2489, %v5189
    %5281 = vst.msk [vmem:[#allocation4 + $0x1d8] sm:$0x3] %vm2491, %v5191
    %5282 = vst.msk [vmem:[#allocation4 + $0x1e8] sm:$0xff] %vm2489, %v5193
    %5283 = vst.msk [vmem:[#allocation4 + $0x1f8] sm:$0x3] %vm2491, %v5195
    %5284 = vst.msk [vmem:[#allocation4 + $0x208] sm:$0xff] %vm2489, %v5197
    %5285 = vst.msk [vmem:[#allocation4 + $0x218] sm:$0x3] %vm2491, %v5199
    %5286 = vst.msk [vmem:[#allocation4 + $0x228] sm:$0xff] %vm2489, %v5201
    %5287 = vst.msk [vmem:[#allocation4 + $0x238] sm:$0x3] %vm2491, %v5203
    %5288 = vst.msk [vmem:[#allocation4 + $0x248] sm:$0xff] %vm2489, %v5205
    %5289 = vst.msk [vmem:[#allocation4 + $0x258] sm:$0x3] %vm2491, %v5207
    %5290 = vst.msk [vmem:[#allocation4 + $0x268] sm:$0xff] %vm2489, %v5209
    %5291 = vst.msk [vmem:[#allocation4 + $0x278] sm:$0x3] %vm2491, %v5211
    %v5292 = vrot.slane %v2115, 3
    %v5293 = vrot.slane %v2116, 3
    %v5294 = vsel %vm804, %v5292, %v5293
    %v5295 = vrot.slane %v2143, 3
    %v5296 = vrot.slane %v2144, 3
    %v5297 = vsel %vm804, %v5295, %v5296
    %5298 = vrot.lane.b32.xlu0 %v2765, 16
    %v5299 = vpop.permute.xlu0 %5298
    %5300 = vrot.lane.b32.xlu0 %v2764, 16
    %v5301 = vpop.permute.xlu0 %5300
    %5302 = vrot.lane.b32.xlu0 %v2768, 16
    %v5303 = vpop.permute.xlu0 %5302
    %5304 = vrot.lane.b32.xlu0 %v2767, 16
    %v5305 = vpop.permute.xlu0 %5304
    %5306 = vrot.lane.b32.xlu0 %v2771, 16
    %v5307 = vpop.permute.xlu0 %5306
    %5308 = vrot.lane.b32.xlu0 %v2770, 16
    %v5309 = vpop.permute.xlu0 %5308
    %5310 = vrot.lane.b32.xlu0 %v2774, 16
    %v5311 = vpop.permute.xlu0 %5310
    %5312 = vrot.lane.b32.xlu0 %v2773, 16
    %v5313 = vpop.permute.xlu0 %5312
    %5314 = vrot.lane.b32.xlu0 %v2777, 16
    %v5315 = vpop.permute.xlu0 %5314
    %5316 = vrot.lane.b32.xlu0 %v2776, 16
    %v5317 = vpop.permute.xlu0 %5316
    %5318 = vrot.lane.b32.xlu0 %v2780, 16
    %v5319 = vpop.permute.xlu0 %5318
    %5320 = vrot.lane.b32.xlu0 %v2779, 16
    %v5321 = vpop.permute.xlu0 %5320
    %5322 = vrot.lane.b32.xlu0 %v2783, 16
    %v5323 = vpop.permute.xlu0 %5322
    %5324 = vrot.lane.b32.xlu0 %v2782, 16
    %v5325 = vpop.permute.xlu0 %5324
    %5326 = vrot.lane.b32.xlu0 %v3702, 16
    %v5327 = vpop.permute.xlu0 %5326
    %5328 = vrot.lane.b32.xlu0 %v3701, 16
    %v5329 = vpop.permute.xlu0 %5328
    %5330 = vrot.lane.b32.xlu0 %v4540, 16
    %v5331 = vpop.permute.xlu0 %5330
    %5332 = vrot.lane.b32.xlu0 %v4539, 16
    %v5333 = vpop.permute.xlu0 %5332
    %5334 = vrot.lane.b32.xlu0 %v5294, 16
    %v5335 = vpop.permute.xlu0 %5334
    %5336 = vrot.lane.b32.xlu0 %v5293, 16
    %v5337 = vpop.permute.xlu0 %5336
    %5338 = vrot.lane.b32.xlu0 %v2795, 16
    %v5339 = vpop.permute.xlu0 %5338
    %5340 = vrot.lane.b32.xlu0 %v2794, 16
    %v5341 = vpop.permute.xlu0 %5340
    %5342 = vrot.lane.b32.xlu0 %v2798, 16
    %v5343 = vpop.permute.xlu0 %5342
    %5344 = vrot.lane.b32.xlu0 %v2797, 16
    %v5345 = vpop.permute.xlu0 %5344
    %5346 = vrot.lane.b32.xlu0 %v2801, 16
    %v5347 = vpop.permute.xlu0 %5346
    %5348 = vrot.lane.b32.xlu0 %v2800, 16
    %v5349 = vpop.permute.xlu0 %5348
    %5350 = vrot.lane.b32.xlu0 %v2804, 16
    %v5351 = vpop.permute.xlu0 %5350
    %5352 = vrot.lane.b32.xlu0 %v2803, 16
    %v5353 = vpop.permute.xlu0 %5352
    %5354 = vrot.lane.b32.xlu0 %v2807, 16
    %v5355 = vpop.permute.xlu0 %5354
    %5356 = vrot.lane.b32.xlu0 %v2806, 16
    %v5357 = vpop.permute.xlu0 %5356
    %5358 = vrot.lane.b32.xlu0 %v2810, 16
    %v5359 = vpop.permute.xlu0 %5358
    %5360 = vrot.lane.b32.xlu0 %v2809, 16
    %v5361 = vpop.permute.xlu0 %5360
    %5362 = vrot.lane.b32.xlu0 %v2813, 16
    %v5363 = vpop.permute.xlu0 %5362
    %5364 = vrot.lane.b32.xlu0 %v2812, 16
    %v5365 = vpop.permute.xlu0 %5364
    %5366 = vrot.lane.b32.xlu0 %v3705, 16
    %v5367 = vpop.permute.xlu0 %5366
    %5368 = vrot.lane.b32.xlu0 %v3704, 16
    %v5369 = vpop.permute.xlu0 %5368
    %5370 = vrot.lane.b32.xlu0 %v4543, 16
    %v5371 = vpop.permute.xlu0 %5370
    %5372 = vrot.lane.b32.xlu0 %v4542, 16
    %v5373 = vpop.permute.xlu0 %5372
    %5374 = vrot.lane.b32.xlu0 %v5297, 16
    %v5375 = vpop.permute.xlu0 %5374
    %5376 = vrot.lane.b32.xlu0 %v5296, 16
    %v5377 = vpop.permute.xlu0 %5376
    %5418 = vst.msk [vmem:[#allocation4 + $0x8] sm:$0xff] %vm2712, %v5299
    %5419 = vst.msk [vmem:[#allocation4 + $0x18] sm:$0x3] %vm2714, %v5301
    %5420 = vst.msk [vmem:[#allocation4 + $0x28] sm:$0xff] %vm2712, %v5303
    %5421 = vst.msk [vmem:[#allocation4 + $0x38] sm:$0x3] %vm2714, %v5305
    %5422 = vst.msk [vmem:[#allocation4 + $0x48] sm:$0xff] %vm2712, %v5307
    %5423 = vst.msk [vmem:[#allocation4 + $0x58] sm:$0x3] %vm2714, %v5309
    %5424 = vst.msk [vmem:[#allocation4 + $0x68] sm:$0xff] %vm2712, %v5311
    %5425 = vst.msk [vmem:[#allocation4 + $0x78] sm:$0x3] %vm2714, %v5313
    %5426 = vst.msk [vmem:[#allocation4 + $0x88] sm:$0xff] %vm2712, %v5315
    %5427 = vst.msk [vmem:[#allocation4 + $0x98] sm:$0x3] %vm2714, %v5317
    %5428 = vst.msk [vmem:[#allocation4 + $0xa8] sm:$0xff] %vm2712, %v5319
    %5429 = vst.msk [vmem:[#allocation4 + $0xb8] sm:$0x3] %vm2714, %v5321
    %5430 = vst.msk [vmem:[#allocation4 + $0xc8] sm:$0xff] %vm2712, %v5323
    %5431 = vst.msk [vmem:[#allocation4 + $0xd8] sm:$0x3] %vm2714, %v5325
    %5432 = vst.msk [vmem:[#allocation4 + $0xe8] sm:$0xff] %vm2712, %v5327
    %5433 = vst.msk [vmem:[#allocation4 + $0xf8] sm:$0x3] %vm2714, %v5329
    %5434 = vst.msk [vmem:[#allocation4 + $0x108] sm:$0xff] %vm2712, %v5331
    %5435 = vst.msk [vmem:[#allocation4 + $0x118] sm:$0x3] %vm2714, %v5333
    %5436 = vst.msk [vmem:[#allocation4 + $0x128] sm:$0xff] %vm2712, %v5335
    %5437 = vst.msk [vmem:[#allocation4 + $0x138] sm:$0x3] %vm2714, %v5337
    %5438 = vst.msk [vmem:[#allocation4 + $0x148] sm:$0xff] %vm2712, %v5339
    %5439 = vst.msk [vmem:[#allocation4 + $0x158] sm:$0x3] %vm2714, %v5341
    %5440 = vst.msk [vmem:[#allocation4 + $0x168] sm:$0xff] %vm2712, %v5343
    %5441 = vst.msk [vmem:[#allocation4 + $0x178] sm:$0x3] %vm2714, %v5345
    %5442 = vst.msk [vmem:[#allocation4 + $0x188] sm:$0xff] %vm2712, %v5347
    %5443 = vst.msk [vmem:[#allocation4 + $0x198] sm:$0x3] %vm2714, %v5349
    %5444 = vst.msk [vmem:[#allocation4 + $0x1a8] sm:$0xff] %vm2712, %v5351
    %5445 = vst.msk [vmem:[#allocation4 + $0x1b8] sm:$0x3] %vm2714, %v5353
    %5446 = vst.msk [vmem:[#allocation4 + $0x1c8] sm:$0xff] %vm2712, %v5355
    %5447 = vst.msk [vmem:[#allocation4 + $0x1d8] sm:$0x3] %vm2714, %v5357
    %5448 = vst.msk [vmem:[#allocation4 + $0x1e8] sm:$0xff] %vm2712, %v5359
    %5449 = vst.msk [vmem:[#allocation4 + $0x1f8] sm:$0x3] %vm2714, %v5361
    %5450 = vst.msk [vmem:[#allocation4 + $0x208] sm:$0xff] %vm2712, %v5363
    %5451 = vst.msk [vmem:[#allocation4 + $0x218] sm:$0x3] %vm2714, %v5365
    %5452 = vst.msk [vmem:[#allocation4 + $0x228] sm:$0xff] %vm2712, %v5367
    %5453 = vst.msk [vmem:[#allocation4 + $0x238] sm:$0x3] %vm2714, %v5369
    %5454 = vst.msk [vmem:[#allocation4 + $0x248] sm:$0xff] %vm2712, %v5371
    %5455 = vst.msk [vmem:[#allocation4 + $0x258] sm:$0x3] %vm2714, %v5373
    %5456 = vst.msk [vmem:[#allocation4 + $0x268] sm:$0xff] %vm2712, %v5375
    %5457 = vst.msk [vmem:[#allocation4 + $0x278] sm:$0x3] %vm2714, %v5377
    %v5458 = vrot.slane %v2115, 4
    %v5459 = vrot.slane %v2116, 4
    %v5460 = vsel %vm803, %v5458, %v5459
    %v5461 = vrot.slane %v2143, 4
    %v5462 = vrot.slane %v2144, 4
    %v5463 = vsel %vm803, %v5461, %v5462
    %5464 = vrot.lane.b32.xlu0 %v2987, 24
    %v5465 = vpop.permute.xlu0 %5464
    %5466 = vrot.lane.b32.xlu0 %v2986, 24
    %v5467 = vpop.permute.xlu0 %5466
    %5468 = vrot.lane.b32.xlu0 %v2990, 24
    %v5469 = vpop.permute.xlu0 %5468
    %5470 = vrot.lane.b32.xlu0 %v2989, 24
    %v5471 = vpop.permute.xlu0 %5470
    %5472 = vrot.lane.b32.xlu0 %v2993, 24
    %v5473 = vpop.permute.xlu0 %5472
    %5474 = vrot.lane.b32.xlu0 %v2992, 24
    %v5475 = vpop.permute.xlu0 %5474
    %5476 = vrot.lane.b32.xlu0 %v2996, 24
    %v5477 = vpop.permute.xlu0 %5476
    %5478 = vrot.lane.b32.xlu0 %v2995, 24
    %v5479 = vpop.permute.xlu0 %5478
    %5480 = vrot.lane.b32.xlu0 %v2999, 24
    %v5481 = vpop.permute.xlu0 %5480
    %5482 = vrot.lane.b32.xlu0 %v2998, 24
    %v5483 = vpop.permute.xlu0 %5482
    %5484 = vrot.lane.b32.xlu0 %v3002, 24
    %v5485 = vpop.permute.xlu0 %5484
    %5486 = vrot.lane.b32.xlu0 %v3001, 24
    %v5487 = vpop.permute.xlu0 %5486
    %5488 = vrot.lane.b32.xlu0 %v3005, 24
    %v5489 = vpop.permute.xlu0 %5488
    %5490 = vrot.lane.b32.xlu0 %v3004, 24
    %v5491 = vpop.permute.xlu0 %5490
    %5492 = vrot.lane.b32.xlu0 %v3870, 24
    %v5493 = vpop.permute.xlu0 %5492
    %5494 = vrot.lane.b32.xlu0 %v3869, 24
    %v5495 = vpop.permute.xlu0 %5494
    %5496 = vrot.lane.b32.xlu0 %v4708, 24
    %v5497 = vpop.permute.xlu0 %5496
    %5498 = vrot.lane.b32.xlu0 %v4707, 24
    %v5499 = vpop.permute.xlu0 %5498
    %5500 = vrot.lane.b32.xlu0 %v5460, 24
    %v5501 = vpop.permute.xlu0 %5500
    %5502 = vrot.lane.b32.xlu0 %v5459, 24
    %v5503 = vpop.permute.xlu0 %5502
    %5504 = vrot.lane.b32.xlu0 %v3017, 24
    %v5505 = vpop.permute.xlu0 %5504
    %5506 = vrot.lane.b32.xlu0 %v3016, 24
    %v5507 = vpop.permute.xlu0 %5506
    %5508 = vrot.lane.b32.xlu0 %v3020, 24
    %v5509 = vpop.permute.xlu0 %5508
    %5510 = vrot.lane.b32.xlu0 %v3019, 24
    %v5511 = vpop.permute.xlu0 %5510
    %5512 = vrot.lane.b32.xlu0 %v3023, 24
    %v5513 = vpop.permute.xlu0 %5512
    %5514 = vrot.lane.b32.xlu0 %v3022, 24
    %v5515 = vpop.permute.xlu0 %5514
    %5516 = vrot.lane.b32.xlu0 %v3026, 24
    %v5517 = vpop.permute.xlu0 %5516
    %5518 = vrot.lane.b32.xlu0 %v3025, 24
    %v5519 = vpop.permute.xlu0 %5518
    %5520 = vrot.lane.b32.xlu0 %v3029, 24
    %v5521 = vpop.permute.xlu0 %5520
    %5522 = vrot.lane.b32.xlu0 %v3028, 24
    %v5523 = vpop.permute.xlu0 %5522
    %5524 = vrot.lane.b32.xlu0 %v3032, 24
    %v5525 = vpop.permute.xlu0 %5524
    %5526 = vrot.lane.b32.xlu0 %v3031, 24
    %v5527 = vpop.permute.xlu0 %5526
    %5528 = vrot.lane.b32.xlu0 %v3035, 24
    %v5529 = vpop.permute.xlu0 %5528
    %5530 = vrot.lane.b32.xlu0 %v3034, 24
    %v5531 = vpop.permute.xlu0 %5530
    %5532 = vrot.lane.b32.xlu0 %v3873, 24
    %v5533 = vpop.permute.xlu0 %5532
    %5534 = vrot.lane.b32.xlu0 %v3872, 24
    %v5535 = vpop.permute.xlu0 %5534
    %5536 = vrot.lane.b32.xlu0 %v4711, 24
    %v5537 = vpop.permute.xlu0 %5536
    %5538 = vrot.lane.b32.xlu0 %v4710, 24
    %v5539 = vpop.permute.xlu0 %5538
    %5540 = vrot.lane.b32.xlu0 %v5463, 24
    %v5541 = vpop.permute.xlu0 %5540
    %5542 = vrot.lane.b32.xlu0 %v5462, 24
    %v5543 = vpop.permute.xlu0 %5542
    %5584 = vst.msk [vmem:[#allocation4 + $0x8] sm:$0xff] %vm2934, %v5465
    %5585 = vst.msk [vmem:[#allocation4 + $0x18] sm:$0x3] %vm2936, %v5467
    %5586 = vst.msk [vmem:[#allocation4 + $0x28] sm:$0xff] %vm2934, %v5469
    %5587 = vst.msk [vmem:[#allocation4 + $0x38] sm:$0x3] %vm2936, %v5471
    %5588 = vst.msk [vmem:[#allocation4 + $0x48] sm:$0xff] %vm2934, %v5473
    %5589 = vst.msk [vmem:[#allocation4 + $0x58] sm:$0x3] %vm2936, %v5475
    %5590 = vst.msk [vmem:[#allocation4 + $0x68] sm:$0xff] %vm2934, %v5477
    %5591 = vst.msk [vmem:[#allocation4 + $0x78] sm:$0x3] %vm2936, %v5479
    %5592 = vst.msk [vmem:[#allocation4 + $0x88] sm:$0xff] %vm2934, %v5481
    %5593 = vst.msk [vmem:[#allocation4 + $0x98] sm:$0x3] %vm2936, %v5483
    %5594 = vst.msk [vmem:[#allocation4 + $0xa8] sm:$0xff] %vm2934, %v5485
    %5595 = vst.msk [vmem:[#allocation4 + $0xb8] sm:$0x3] %vm2936, %v5487
    %5596 = vst.msk [vmem:[#allocation4 + $0xc8] sm:$0xff] %vm2934, %v5489
    %5597 = vst.msk [vmem:[#allocation4 + $0xd8] sm:$0x3] %vm2936, %v5491
    %5598 = vst.msk [vmem:[#allocation4 + $0xe8] sm:$0xff] %vm2934, %v5493
    %5599 = vst.msk [vmem:[#allocation4 + $0xf8] sm:$0x3] %vm2936, %v5495
    %5600 = vst.msk [vmem:[#allocation4 + $0x108] sm:$0xff] %vm2934, %v5497
    %5601 = vst.msk [vmem:[#allocation4 + $0x118] sm:$0x3] %vm2936, %v5499
    %5602 = vst.msk [vmem:[#allocation4 + $0x128] sm:$0xff] %vm2934, %v5501
    %5603 = vst.msk [vmem:[#allocation4 + $0x138] sm:$0x3] %vm2936, %v5503
    %5604 = vst.msk [vmem:[#allocation4 + $0x148] sm:$0xff] %vm2934, %v5505
    %5605 = vst.msk [vmem:[#allocation4 + $0x158] sm:$0x3] %vm2936, %v5507
    %5606 = vst.msk [vmem:[#allocation4 + $0x168] sm:$0xff] %vm2934, %v5509
    %5607 = vst.msk [vmem:[#allocation4 + $0x178] sm:$0x3] %vm2936, %v5511
    %5608 = vst.msk [vmem:[#allocation4 + $0x188] sm:$0xff] %vm2934, %v5513
    %5609 = vst.msk [vmem:[#allocation4 + $0x198] sm:$0x3] %vm2936, %v5515
    %5610 = vst.msk [vmem:[#allocation4 + $0x1a8] sm:$0xff] %vm2934, %v5517
    %5611 = vst.msk [vmem:[#allocation4 + $0x1b8] sm:$0x3] %vm2936, %v5519
    %5612 = vst.msk [vmem:[#allocation4 + $0x1c8] sm:$0xff] %vm2934, %v5521
    %5613 = vst.msk [vmem:[#allocation4 + $0x1d8] sm:$0x3] %vm2936, %v5523
    %5614 = vst.msk [vmem:[#allocation4 + $0x1e8] sm:$0xff] %vm2934, %v5525
    %5615 = vst.msk [vmem:[#allocation4 + $0x1f8] sm:$0x3] %vm2936, %v5527
    %5616 = vst.msk [vmem:[#allocation4 + $0x208] sm:$0xff] %vm2934, %v5529
    %5617 = vst.msk [vmem:[#allocation4 + $0x218] sm:$0x3] %vm2936, %v5531
    %5618 = vst.msk [vmem:[#allocation4 + $0x228] sm:$0xff] %vm2934, %v5533
    %5619 = vst.msk [vmem:[#allocation4 + $0x238] sm:$0x3] %vm2936, %v5535
    %5620 = vst.msk [vmem:[#allocation4 + $0x248] sm:$0xff] %vm2934, %v5537
    %5621 = vst.msk [vmem:[#allocation4 + $0x258] sm:$0x3] %vm2936, %v5539
    %5622 = vst.msk [vmem:[#allocation4 + $0x268] sm:$0xff] %vm2934, %v5541
    %5623 = vst.msk [vmem:[#allocation4 + $0x278] sm:$0x3] %vm2936, %v5543
    %5628 = vrot.lane.b32.xlu0 %v2099, 32
    %v5629 = vpop.permute.xlu0 %5628
    %5630 = vrot.lane.b32.xlu0 %v2100, 32
    %v5631 = vpop.permute.xlu0 %5630
    %5632 = vrot.lane.b32.xlu0 %v2101, 32
    %v5633 = vpop.permute.xlu0 %5632
    %5634 = vrot.lane.b32.xlu0 %v2102, 32
    %v5635 = vpop.permute.xlu0 %5634
    %5636 = vrot.lane.b32.xlu0 %v2103, 32
    %v5637 = vpop.permute.xlu0 %5636
    %5638 = vrot.lane.b32.xlu0 %v2104, 32
    %v5639 = vpop.permute.xlu0 %5638
    %5640 = vrot.lane.b32.xlu0 %v2105, 32
    %v5641 = vpop.permute.xlu0 %5640
    %5642 = vrot.lane.b32.xlu0 %v2106, 32
    %v5643 = vpop.permute.xlu0 %5642
    %5644 = vrot.lane.b32.xlu0 %v2107, 32
    %v5645 = vpop.permute.xlu0 %5644
    %5646 = vrot.lane.b32.xlu0 %v2108, 32
    %v5647 = vpop.permute.xlu0 %5646
    %5648 = vrot.lane.b32.xlu0 %v2109, 32
    %v5649 = vpop.permute.xlu0 %5648
    %5650 = vrot.lane.b32.xlu0 %v2110, 32
    %v5651 = vpop.permute.xlu0 %5650
    %5652 = vrot.lane.b32.xlu0 %v2111, 32
    %v5653 = vpop.permute.xlu0 %5652
    %5654 = vrot.lane.b32.xlu0 %v2112, 32
    %v5655 = vpop.permute.xlu0 %5654
    %5656 = vrot.lane.b32.xlu0 %v2113, 32
    %v5657 = vpop.permute.xlu0 %5656
    %5658 = vrot.lane.b32.xlu0 %v2114, 32
    %v5659 = vpop.permute.xlu0 %5658
    %5660 = vrot.lane.b32.xlu0 %v2115, 32
    %v5661 = vpop.permute.xlu0 %5660
    %5662 = vrot.lane.b32.xlu0 %v2116, 32
    %v5663 = vpop.permute.xlu0 %5662
    %5664 = vrot.lane.b32.xlu0 %v2117, 32
    %v5665 = vpop.permute.xlu0 %5664
    %5666 = vrot.lane.b32.xlu0 %v2118, 32
    %v5667 = vpop.permute.xlu0 %5666
    %5668 = vrot.lane.b32.xlu0 %v2127, 32
    %v5669 = vpop.permute.xlu0 %5668
    %5670 = vrot.lane.b32.xlu0 %v2128, 32
    %v5671 = vpop.permute.xlu0 %5670
    %5672 = vrot.lane.b32.xlu0 %v2129, 32
    %v5673 = vpop.permute.xlu0 %5672
    %5674 = vrot.lane.b32.xlu0 %v2130, 32
    %v5675 = vpop.permute.xlu0 %5674
    %5676 = vrot.lane.b32.xlu0 %v2131, 32
    %v5677 = vpop.permute.xlu0 %5676
    %5678 = vrot.lane.b32.xlu0 %v2132, 32
    %v5679 = vpop.permute.xlu0 %5678
    %5680 = vrot.lane.b32.xlu0 %v2133, 32
    %v5681 = vpop.permute.xlu0 %5680
    %5682 = vrot.lane.b32.xlu0 %v2134, 32
    %v5683 = vpop.permute.xlu0 %5682
    %5684 = vrot.lane.b32.xlu0 %v2135, 32
    %v5685 = vpop.permute.xlu0 %5684
    %5686 = vrot.lane.b32.xlu0 %v2136, 32
    %v5687 = vpop.permute.xlu0 %5686
    %5688 = vrot.lane.b32.xlu0 %v2137, 32
    %v5689 = vpop.permute.xlu0 %5688
    %5690 = vrot.lane.b32.xlu0 %v2138, 32
    %v5691 = vpop.permute.xlu0 %5690
    %5692 = vrot.lane.b32.xlu0 %v2139, 32
    %v5693 = vpop.permute.xlu0 %5692
    %5694 = vrot.lane.b32.xlu0 %v2140, 32
    %v5695 = vpop.permute.xlu0 %5694
    %5696 = vrot.lane.b32.xlu0 %v2141, 32
    %v5697 = vpop.permute.xlu0 %5696
    %5698 = vrot.lane.b32.xlu0 %v2142, 32
    %v5699 = vpop.permute.xlu0 %5698
    %5700 = vrot.lane.b32.xlu0 %v2143, 32
    %v5701 = vpop.permute.xlu0 %5700
    %5702 = vrot.lane.b32.xlu0 %v2144, 32
    %v5703 = vpop.permute.xlu0 %5702
    %5704 = vrot.lane.b32.xlu0 %v2145, 32
    %v5705 = vpop.permute.xlu0 %5704
    %5706 = vrot.lane.b32.xlu0 %v2146, 32
    %v5707 = vpop.permute.xlu0 %5706
    %5748 = vst.msk [vmem:[#allocation4 + $0x8] sm:$0xff] %vm3156, %v5629
    %5749 = vst.msk [vmem:[#allocation4 + $0x18] sm:$0x3] %vm3158, %v5631
    %5750 = vst.msk [vmem:[#allocation4 + $0x28] sm:$0xff] %vm3156, %v5633
    %5751 = vst.msk [vmem:[#allocation4 + $0x38] sm:$0x3] %vm3158, %v5635
    %5752 = vst.msk [vmem:[#allocation4 + $0x48] sm:$0xff] %vm3156, %v5637
    %5753 = vst.msk [vmem:[#allocation4 + $0x58] sm:$0x3] %vm3158, %v5639
    %5754 = vst.msk [vmem:[#allocation4 + $0x68] sm:$0xff] %vm3156, %v5641
    %5755 = vst.msk [vmem:[#allocation4 + $0x78] sm:$0x3] %vm3158, %v5643
    %5756 = vst.msk [vmem:[#allocation4 + $0x88] sm:$0xff] %vm3156, %v5645
    %5757 = vst.msk [vmem:[#allocation4 + $0x98] sm:$0x3] %vm3158, %v5647
    %5758 = vst.msk [vmem:[#allocation4 + $0xa8] sm:$0xff] %vm3156, %v5649
    %5759 = vst.msk [vmem:[#allocation4 + $0xb8] sm:$0x3] %vm3158, %v5651
    %5760 = vst.msk [vmem:[#allocation4 + $0xc8] sm:$0xff] %vm3156, %v5653
    %5761 = vst.msk [vmem:[#allocation4 + $0xd8] sm:$0x3] %vm3158, %v5655
    %5762 = vst.msk [vmem:[#allocation4 + $0xe8] sm:$0xff] %vm3156, %v5657
    %5763 = vst.msk [vmem:[#allocation4 + $0xf8] sm:$0x3] %vm3158, %v5659
    %5764 = vst.msk [vmem:[#allocation4 + $0x108] sm:$0xff] %vm3156, %v5661
    %5765 = vst.msk [vmem:[#allocation4 + $0x118] sm:$0x3] %vm3158, %v5663
    %5766 = vst.msk [vmem:[#allocation4 + $0x128] sm:$0xff] %vm3156, %v5665
    %5767 = vst.msk [vmem:[#allocation4 + $0x138] sm:$0x3] %vm3158, %v5667
    %5768 = vst.msk [vmem:[#allocation4 + $0x148] sm:$0xff] %vm3156, %v5669
    %5769 = vst.msk [vmem:[#allocation4 + $0x158] sm:$0x3] %vm3158, %v5671
    %5770 = vst.msk [vmem:[#allocation4 + $0x168] sm:$0xff] %vm3156, %v5673
    %5771 = vst.msk [vmem:[#allocation4 + $0x178] sm:$0x3] %vm3158, %v5675
    %5772 = vst.msk [vmem:[#allocation4 + $0x188] sm:$0xff] %vm3156, %v5677
    %5773 = vst.msk [vmem:[#allocation4 + $0x198] sm:$0x3] %vm3158, %v5679
    %5774 = vst.msk [vmem:[#allocation4 + $0x1a8] sm:$0xff] %vm3156, %v5681
    %5775 = vst.msk [vmem:[#allocation4 + $0x1b8] sm:$0x3] %vm3158, %v5683
    %5776 = vst.msk [vmem:[#allocation4 + $0x1c8] sm:$0xff] %vm3156, %v5685
    %5777 = vst.msk [vmem:[#allocation4 + $0x1d8] sm:$0x3] %vm3158, %v5687
    %5778 = vst.msk [vmem:[#allocation4 + $0x1e8] sm:$0xff] %vm3156, %v5689
    %5779 = vst.msk [vmem:[#allocation4 + $0x1f8] sm:$0x3] %vm3158, %v5691
    %5780 = vst.msk [vmem:[#allocation4 + $0x208] sm:$0xff] %vm3156, %v5693
    %5781 = vst.msk [vmem:[#allocation4 + $0x218] sm:$0x3] %vm3158, %v5695
    %5782 = vst.msk [vmem:[#allocation4 + $0x228] sm:$0xff] %vm3156, %v5697
    %5783 = vst.msk [vmem:[#allocation4 + $0x238] sm:$0x3] %vm3158, %v5699
    %5784 = vst.msk [vmem:[#allocation4 + $0x248] sm:$0xff] %vm3156, %v5701
    %5785 = vst.msk [vmem:[#allocation4 + $0x258] sm:$0x3] %vm3158, %v5703
    %5786 = vst.msk [vmem:[#allocation4 + $0x268] sm:$0xff] %vm3156, %v5705
    %5787 = vst.msk [vmem:[#allocation4 + $0x278] sm:$0x3] %vm3158, %v5707
    %v5788 = vrot.slane %v2117, 1
    %v5789 = vrot.slane %v2118, 1
    %v5790 = vsel %vm62, %v5788, %v5789
    %v5791 = vrot.slane %v2145, 1
    %v5792 = vrot.slane %v2146, 1
    %v5793 = vsel %vm62, %v5791, %v5792
    %5794 = vrot.lane.b32.xlu0 %v2323, 40
    %v5795 = vpop.permute.xlu0 %5794
    %5796 = vrot.lane.b32.xlu0 %v2322, 40
    %v5797 = vpop.permute.xlu0 %5796
    %5798 = vrot.lane.b32.xlu0 %v2326, 40
    %v5799 = vpop.permute.xlu0 %5798
    %5800 = vrot.lane.b32.xlu0 %v2325, 40
    %v5801 = vpop.permute.xlu0 %5800
    %5802 = vrot.lane.b32.xlu0 %v2329, 40
    %v5803 = vpop.permute.xlu0 %5802
    %5804 = vrot.lane.b32.xlu0 %v2328, 40
    %v5805 = vpop.permute.xlu0 %5804
    %5806 = vrot.lane.b32.xlu0 %v2332, 40
    %v5807 = vpop.permute.xlu0 %5806
    %5808 = vrot.lane.b32.xlu0 %v2331, 40
    %v5809 = vpop.permute.xlu0 %5808
    %5810 = vrot.lane.b32.xlu0 %v2335, 40
    %v5811 = vpop.permute.xlu0 %5810
    %5812 = vrot.lane.b32.xlu0 %v2334, 40
    %v5813 = vpop.permute.xlu0 %5812
    %5814 = vrot.lane.b32.xlu0 %v2338, 40
    %v5815 = vpop.permute.xlu0 %5814
    %5816 = vrot.lane.b32.xlu0 %v2337, 40
    %v5817 = vpop.permute.xlu0 %5816
    %5818 = vrot.lane.b32.xlu0 %v3366, 40
    %v5819 = vpop.permute.xlu0 %5818
    %5820 = vrot.lane.b32.xlu0 %v3365, 40
    %v5821 = vpop.permute.xlu0 %5820
    %5822 = vrot.lane.b32.xlu0 %v4204, 40
    %v5823 = vpop.permute.xlu0 %5822
    %5824 = vrot.lane.b32.xlu0 %v4203, 40
    %v5825 = vpop.permute.xlu0 %5824
    %5826 = vrot.lane.b32.xlu0 %v5042, 40
    %v5827 = vpop.permute.xlu0 %5826
    %5828 = vrot.lane.b32.xlu0 %v5041, 40
    %v5829 = vpop.permute.xlu0 %5828
    %5830 = vrot.lane.b32.xlu0 %v5790, 40
    %v5831 = vpop.permute.xlu0 %5830
    %5832 = vrot.lane.b32.xlu0 %v5789, 40
    %v5833 = vpop.permute.xlu0 %5832
    %5834 = vrot.lane.b32.xlu0 %v2353, 40
    %v5835 = vpop.permute.xlu0 %5834
    %5836 = vrot.lane.b32.xlu0 %v2352, 40
    %v5837 = vpop.permute.xlu0 %5836
    %5838 = vrot.lane.b32.xlu0 %v2356, 40
    %v5839 = vpop.permute.xlu0 %5838
    %5840 = vrot.lane.b32.xlu0 %v2355, 40
    %v5841 = vpop.permute.xlu0 %5840
    %5842 = vrot.lane.b32.xlu0 %v2359, 40
    %v5843 = vpop.permute.xlu0 %5842
    %5844 = vrot.lane.b32.xlu0 %v2358, 40
    %v5845 = vpop.permute.xlu0 %5844
    %5846 = vrot.lane.b32.xlu0 %v2362, 40
    %v5847 = vpop.permute.xlu0 %5846
    %5848 = vrot.lane.b32.xlu0 %v2361, 40
    %v5849 = vpop.permute.xlu0 %5848
    %5850 = vrot.lane.b32.xlu0 %v2365, 40
    %v5851 = vpop.permute.xlu0 %5850
    %5852 = vrot.lane.b32.xlu0 %v2364, 40
    %v5853 = vpop.permute.xlu0 %5852
    %5854 = vrot.lane.b32.xlu0 %v2368, 40
    %v5855 = vpop.permute.xlu0 %5854
    %5856 = vrot.lane.b32.xlu0 %v2367, 40
    %v5857 = vpop.permute.xlu0 %5856
    %5858 = vrot.lane.b32.xlu0 %v3369, 40
    %v5859 = vpop.permute.xlu0 %5858
    %5860 = vrot.lane.b32.xlu0 %v3368, 40
    %v5861 = vpop.permute.xlu0 %5860
    %5862 = vrot.lane.b32.xlu0 %v4207, 40
    %v5863 = vpop.permute.xlu0 %5862
    %5864 = vrot.lane.b32.xlu0 %v4206, 40
    %v5865 = vpop.permute.xlu0 %5864
    %5866 = vrot.lane.b32.xlu0 %v5045, 40
    %v5867 = vpop.permute.xlu0 %5866
    %5868 = vrot.lane.b32.xlu0 %v5044, 40
    %v5869 = vpop.permute.xlu0 %5868
    %5870 = vrot.lane.b32.xlu0 %v5793, 40
    %v5871 = vpop.permute.xlu0 %5870
    %5872 = vrot.lane.b32.xlu0 %v5792, 40
    %v5873 = vpop.permute.xlu0 %5872
    %5914 = vst.msk [vmem:[#allocation4 + $0x8] sm:$0xff] %vm3322, %v5795
    %5915 = vst.msk [vmem:[#allocation4 + $0x18] sm:$0x3] %vm3324, %v5797
    %5916 = vst.msk [vmem:[#allocation4 + $0x28] sm:$0xff] %vm3322, %v5799
    %5917 = vst.msk [vmem:[#allocation4 + $0x38] sm:$0x3] %vm3324, %v5801
    %5918 = vst.msk [vmem:[#allocation4 + $0x48] sm:$0xff] %vm3322, %v5803
    %5919 = vst.msk [vmem:[#allocation4 + $0x58] sm:$0x3] %vm3324, %v5805
    %5920 = vst.msk [vmem:[#allocation4 + $0x68] sm:$0xff] %vm3322, %v5807
    %5921 = vst.msk [vmem:[#allocation4 + $0x78] sm:$0x3] %vm3324, %v5809
    %5922 = vst.msk [vmem:[#allocation4 + $0x88] sm:$0xff] %vm3322, %v5811
    %5923 = vst.msk [vmem:[#allocation4 + $0x98] sm:$0x3] %vm3324, %v5813
    %5924 = vst.msk [vmem:[#allocation4 + $0xa8] sm:$0xff] %vm3322, %v5815
    %5925 = vst.msk [vmem:[#allocation4 + $0xb8] sm:$0x3] %vm3324, %v5817
    %5926 = vst.msk [vmem:[#allocation4 + $0xc8] sm:$0xff] %vm3322, %v5819
    %5927 = vst.msk [vmem:[#allocation4 + $0xd8] sm:$0x3] %vm3324, %v5821
    %5928 = vst.msk [vmem:[#allocation4 + $0xe8] sm:$0xff] %vm3322, %v5823
    %5929 = vst.msk [vmem:[#allocation4 + $0xf8] sm:$0x3] %vm3324, %v5825
    %5930 = vst.msk [vmem:[#allocation4 + $0x108] sm:$0xff] %vm3322, %v5827
    %5931 = vst.msk [vmem:[#allocation4 + $0x118] sm:$0x3] %vm3324, %v5829
    %5932 = vst.msk [vmem:[#allocation4 + $0x128] sm:$0xff] %vm3322, %v5831
    %5933 = vst.msk [vmem:[#allocation4 + $0x138] sm:$0x3] %vm3324, %v5833
    %5934 = vst.msk [vmem:[#allocation4 + $0x148] sm:$0xff] %vm3322, %v5835
    %5935 = vst.msk [vmem:[#allocation4 + $0x158] sm:$0x3] %vm3324, %v5837
    %5936 = vst.msk [vmem:[#allocation4 + $0x168] sm:$0xff] %vm3322, %v5839
    %5937 = vst.msk [vmem:[#allocation4 + $0x178] sm:$0x3] %vm3324, %v5841
    %5938 = vst.msk [vmem:[#allocation4 + $0x188] sm:$0xff] %vm3322, %v5843
    %5939 = vst.msk [vmem:[#allocation4 + $0x198] sm:$0x3] %vm3324, %v5845
    %5940 = vst.msk [vmem:[#allocation4 + $0x1a8] sm:$0xff] %vm3322, %v5847
    %5941 = vst.msk [vmem:[#allocation4 + $0x1b8] sm:$0x3] %vm3324, %v5849
    %5942 = vst.msk [vmem:[#allocation4 + $0x1c8] sm:$0xff] %vm3322, %v5851
    %5943 = vst.msk [vmem:[#allocation4 + $0x1d8] sm:$0x3] %vm3324, %v5853
    %5944 = vst.msk [vmem:[#allocation4 + $0x1e8] sm:$0xff] %vm3322, %v5855
    %5945 = vst.msk [vmem:[#allocation4 + $0x1f8] sm:$0x3] %vm3324, %v5857
    %5946 = vst.msk [vmem:[#allocation4 + $0x208] sm:$0xff] %vm3322, %v5859
    %5947 = vst.msk [vmem:[#allocation4 + $0x218] sm:$0x3] %vm3324, %v5861
    %5948 = vst.msk [vmem:[#allocation4 + $0x228] sm:$0xff] %vm3322, %v5863
    %5949 = vst.msk [vmem:[#allocation4 + $0x238] sm:$0x3] %vm3324, %v5865
    %5950 = vst.msk [vmem:[#allocation4 + $0x248] sm:$0xff] %vm3322, %v5867
    %5951 = vst.msk [vmem:[#allocation4 + $0x258] sm:$0x3] %vm3324, %v5869
    %5952 = vst.msk [vmem:[#allocation4 + $0x268] sm:$0xff] %vm3322, %v5871
    %5953 = vst.msk [vmem:[#allocation4 + $0x278] sm:$0x3] %vm3324, %v5873
    %v5954 = vrot.slane %v2117, 2
    %v5955 = vrot.slane %v2118, 2
    %v5956 = vsel %vm2531, %v5954, %v5955
    %v5957 = vrot.slane %v2145, 2
    %v5958 = vrot.slane %v2146, 2
    %v5959 = vsel %vm2531, %v5957, %v5958
    %5960 = vrot.lane.b32.xlu0 %v2546, 48
    %v5961 = vpop.permute.xlu0 %5960
    %5962 = vrot.lane.b32.xlu0 %v2545, 48
    %v5963 = vpop.permute.xlu0 %5962
    %5964 = vrot.lane.b32.xlu0 %v2549, 48
    %v5965 = vpop.permute.xlu0 %5964
    %5966 = vrot.lane.b32.xlu0 %v2548, 48
    %v5967 = vpop.permute.xlu0 %5966
    %5968 = vrot.lane.b32.xlu0 %v2552, 48
    %v5969 = vpop.permute.xlu0 %5968
    %5970 = vrot.lane.b32.xlu0 %v2551, 48
    %v5971 = vpop.permute.xlu0 %5970
    %5972 = vrot.lane.b32.xlu0 %v2555, 48
    %v5973 = vpop.permute.xlu0 %5972
    %5974 = vrot.lane.b32.xlu0 %v2554, 48
    %v5975 = vpop.permute.xlu0 %5974
    %5976 = vrot.lane.b32.xlu0 %v2558, 48
    %v5977 = vpop.permute.xlu0 %5976
    %5978 = vrot.lane.b32.xlu0 %v2557, 48
    %v5979 = vpop.permute.xlu0 %5978
    %5980 = vrot.lane.b32.xlu0 %v2561, 48
    %v5981 = vpop.permute.xlu0 %5980
    %5982 = vrot.lane.b32.xlu0 %v2560, 48
    %v5983 = vpop.permute.xlu0 %5982
    %5984 = vrot.lane.b32.xlu0 %v3534, 48
    %v5985 = vpop.permute.xlu0 %5984
    %5986 = vrot.lane.b32.xlu0 %v3533, 48
    %v5987 = vpop.permute.xlu0 %5986
    %5988 = vrot.lane.b32.xlu0 %v4372, 48
    %v5989 = vpop.permute.xlu0 %5988
    %5990 = vrot.lane.b32.xlu0 %v4371, 48
    %v5991 = vpop.permute.xlu0 %5990
    %5992 = vrot.lane.b32.xlu0 %v5128, 48
    %v5993 = vpop.permute.xlu0 %5992
    %5994 = vrot.lane.b32.xlu0 %v5127, 48
    %v5995 = vpop.permute.xlu0 %5994
    %5996 = vrot.lane.b32.xlu0 %v5956, 48
    %v5997 = vpop.permute.xlu0 %5996
    %5998 = vrot.lane.b32.xlu0 %v5955, 48
    %v5999 = vpop.permute.xlu0 %5998
    %6000 = vrot.lane.b32.xlu0 %v2576, 48
    %v6001 = vpop.permute.xlu0 %6000
    %6002 = vrot.lane.b32.xlu0 %v2575, 48
    %v6003 = vpop.permute.xlu0 %6002
    %6004 = vrot.lane.b32.xlu0 %v2579, 48
    %v6005 = vpop.permute.xlu0 %6004
    %6006 = vrot.lane.b32.xlu0 %v2578, 48
    %v6007 = vpop.permute.xlu0 %6006
    %6008 = vrot.lane.b32.xlu0 %v2582, 48
    %v6009 = vpop.permute.xlu0 %6008
    %6010 = vrot.lane.b32.xlu0 %v2581, 48
    %v6011 = vpop.permute.xlu0 %6010
    %6012 = vrot.lane.b32.xlu0 %v2585, 48
    %v6013 = vpop.permute.xlu0 %6012
    %6014 = vrot.lane.b32.xlu0 %v2584, 48
    %v6015 = vpop.permute.xlu0 %6014
    %6016 = vrot.lane.b32.xlu0 %v2588, 48
    %v6017 = vpop.permute.xlu0 %6016
    %6018 = vrot.lane.b32.xlu0 %v2587, 48
    %v6019 = vpop.permute.xlu0 %6018
    %6020 = vrot.lane.b32.xlu0 %v2591, 48
    %v6021 = vpop.permute.xlu0 %6020
    %6022 = vrot.lane.b32.xlu0 %v2590, 48
    %v6023 = vpop.permute.xlu0 %6022
    %6024 = vrot.lane.b32.xlu0 %v3537, 48
    %v6025 = vpop.permute.xlu0 %6024
    %6026 = vrot.lane.b32.xlu0 %v3536, 48
    %v6027 = vpop.permute.xlu0 %6026
    %6028 = vrot.lane.b32.xlu0 %v4375, 48
    %v6029 = vpop.permute.xlu0 %6028
    %6030 = vrot.lane.b32.xlu0 %v4374, 48
    %v6031 = vpop.permute.xlu0 %6030
    %6032 = vrot.lane.b32.xlu0 %v5131, 48
    %v6033 = vpop.permute.xlu0 %6032
    %6034 = vrot.lane.b32.xlu0 %v5130, 48
    %v6035 = vpop.permute.xlu0 %6034
    %6036 = vrot.lane.b32.xlu0 %v5959, 48
    %v6037 = vpop.permute.xlu0 %6036
    %6038 = vrot.lane.b32.xlu0 %v5958, 48
    %v6039 = vpop.permute.xlu0 %6038
    %6080 = vst.msk [vmem:[#allocation4 + $0x8] sm:$0xff] %vm3490, %v5961
    %6081 = vst.msk [vmem:[#allocation4 + $0x18] sm:$0x3] %vm3492, %v5963
    %6082 = vst.msk [vmem:[#allocation4 + $0x28] sm:$0xff] %vm3490, %v5965
    %6083 = vst.msk [vmem:[#allocation4 + $0x38] sm:$0x3] %vm3492, %v5967
    %6084 = vst.msk [vmem:[#allocation4 + $0x48] sm:$0xff] %vm3490, %v5969
    %6085 = vst.msk [vmem:[#allocation4 + $0x58] sm:$0x3] %vm3492, %v5971
    %6086 = vst.msk [vmem:[#allocation4 + $0x68] sm:$0xff] %vm3490, %v5973
    %6087 = vst.msk [vmem:[#allocation4 + $0x78] sm:$0x3] %vm3492, %v5975
    %6088 = vst.msk [vmem:[#allocation4 + $0x88] sm:$0xff] %vm3490, %v5977
    %6089 = vst.msk [vmem:[#allocation4 + $0x98] sm:$0x3] %vm3492, %v5979
    %6090 = vst.msk [vmem:[#allocation4 + $0xa8] sm:$0xff] %vm3490, %v5981
    %6091 = vst.msk [vmem:[#allocation4 + $0xb8] sm:$0x3] %vm3492, %v5983
    %6092 = vst.msk [vmem:[#allocation4 + $0xc8] sm:$0xff] %vm3490, %v5985
    %6093 = vst.msk [vmem:[#allocation4 + $0xd8] sm:$0x3] %vm3492, %v5987
    %6094 = vst.msk [vmem:[#allocation4 + $0xe8] sm:$0xff] %vm3490, %v5989
    %6095 = vst.msk [vmem:[#allocation4 + $0xf8] sm:$0x3] %vm3492, %v5991
    %6096 = vst.msk [vmem:[#allocation4 + $0x108] sm:$0xff] %vm3490, %v5993
    %6097 = vst.msk [vmem:[#allocation4 + $0x118] sm:$0x3] %vm3492, %v5995
    %6098 = vst.msk [vmem:[#allocation4 + $0x128] sm:$0xff] %vm3490, %v5997
    %6099 = vst.msk [vmem:[#allocation4 + $0x138] sm:$0x3] %vm3492, %v5999
    %6100 = vst.msk [vmem:[#allocation4 + $0x148] sm:$0xff] %vm3490, %v6001
    %6101 = vst.msk [vmem:[#allocation4 + $0x158] sm:$0x3] %vm3492, %v6003
    %6102 = vst.msk [vmem:[#allocation4 + $0x168] sm:$0xff] %vm3490, %v6005
    %6103 = vst.msk [vmem:[#allocation4 + $0x178] sm:$0x3] %vm3492, %v6007
    %6104 = vst.msk [vmem:[#allocation4 + $0x188] sm:$0xff] %vm3490, %v6009
    %6105 = vst.msk [vmem:[#allocation4 + $0x198] sm:$0x3] %vm3492, %v6011
    %6106 = vst.msk [vmem:[#allocation4 + $0x1a8] sm:$0xff] %vm3490, %v6013
    %6107 = vst.msk [vmem:[#allocation4 + $0x1b8] sm:$0x3] %vm3492, %v6015
    %6108 = vst.msk [vmem:[#allocation4 + $0x1c8] sm:$0xff] %vm3490, %v6017
    %6109 = vst.msk [vmem:[#allocation4 + $0x1d8] sm:$0x3] %vm3492, %v6019
    %6110 = vst.msk [vmem:[#allocation4 + $0x1e8] sm:$0xff] %vm3490, %v6021
    %6111 = vst.msk [vmem:[#allocation4 + $0x1f8] sm:$0x3] %vm3492, %v6023
    %6112 = vst.msk [vmem:[#allocation4 + $0x208] sm:$0xff] %vm3490, %v6025
    %6113 = vst.msk [vmem:[#allocation4 + $0x218] sm:$0x3] %vm3492, %v6027
    %6114 = vst.msk [vmem:[#allocation4 + $0x228] sm:$0xff] %vm3490, %v6029
    %6115 = vst.msk [vmem:[#allocation4 + $0x238] sm:$0x3] %vm3492, %v6031
    %6116 = vst.msk [vmem:[#allocation4 + $0x248] sm:$0xff] %vm3490, %v6033
    %6117 = vst.msk [vmem:[#allocation4 + $0x258] sm:$0x3] %vm3492, %v6035
    %6118 = vst.msk [vmem:[#allocation4 + $0x268] sm:$0xff] %vm3490, %v6037
    %6119 = vst.msk [vmem:[#allocation4 + $0x278] sm:$0x3] %vm3492, %v6039
    %v6120 = vrot.slane %v2117, 3
    %v6121 = vrot.slane %v2118, 3
    %v6122 = vsel %vm804, %v6120, %v6121
    %v6123 = vrot.slane %v2145, 3
    %v6124 = vrot.slane %v2146, 3
    %v6125 = vsel %vm804, %v6123, %v6124
    %6126 = vrot.lane.b32.xlu0 %v2768, 56
    %v6127 = vpop.permute.xlu0 %6126
    %6128 = vrot.lane.b32.xlu0 %v2767, 56
    %v6129 = vpop.permute.xlu0 %6128
    %6130 = vrot.lane.b32.xlu0 %v2771, 56
    %v6131 = vpop.permute.xlu0 %6130
    %6132 = vrot.lane.b32.xlu0 %v2770, 56
    %v6133 = vpop.permute.xlu0 %6132
    %6134 = vrot.lane.b32.xlu0 %v2774, 56
    %v6135 = vpop.permute.xlu0 %6134
    %6136 = vrot.lane.b32.xlu0 %v2773, 56
    %v6137 = vpop.permute.xlu0 %6136
    %6138 = vrot.lane.b32.xlu0 %v2777, 56
    %v6139 = vpop.permute.xlu0 %6138
    %6140 = vrot.lane.b32.xlu0 %v2776, 56
    %v6141 = vpop.permute.xlu0 %6140
    %6142 = vrot.lane.b32.xlu0 %v2780, 56
    %v6143 = vpop.permute.xlu0 %6142
    %6144 = vrot.lane.b32.xlu0 %v2779, 56
    %v6145 = vpop.permute.xlu0 %6144
    %6146 = vrot.lane.b32.xlu0 %v2783, 56
    %v6147 = vpop.permute.xlu0 %6146
    %6148 = vrot.lane.b32.xlu0 %v2782, 56
    %v6149 = vpop.permute.xlu0 %6148
    %6150 = vrot.lane.b32.xlu0 %v3702, 56
    %v6151 = vpop.permute.xlu0 %6150
    %6152 = vrot.lane.b32.xlu0 %v3701, 56
    %v6153 = vpop.permute.xlu0 %6152
    %6154 = vrot.lane.b32.xlu0 %v4540, 56
    %v6155 = vpop.permute.xlu0 %6154
    %6156 = vrot.lane.b32.xlu0 %v4539, 56
    %v6157 = vpop.permute.xlu0 %6156
    %6158 = vrot.lane.b32.xlu0 %v5294, 56
    %v6159 = vpop.permute.xlu0 %6158
    %6160 = vrot.lane.b32.xlu0 %v5293, 56
    %v6161 = vpop.permute.xlu0 %6160
    %6162 = vrot.lane.b32.xlu0 %v6122, 56
    %v6163 = vpop.permute.xlu0 %6162
    %6164 = vrot.lane.b32.xlu0 %v6121, 56
    %v6165 = vpop.permute.xlu0 %6164
    %6166 = vrot.lane.b32.xlu0 %v2798, 56
    %v6167 = vpop.permute.xlu0 %6166
    %6168 = vrot.lane.b32.xlu0 %v2797, 56
    %v6169 = vpop.permute.xlu0 %6168
    %6170 = vrot.lane.b32.xlu0 %v2801, 56
    %v6171 = vpop.permute.xlu0 %6170
    %6172 = vrot.lane.b32.xlu0 %v2800, 56
    %v6173 = vpop.permute.xlu0 %6172
    %6174 = vrot.lane.b32.xlu0 %v2804, 56
    %v6175 = vpop.permute.xlu0 %6174
    %6176 = vrot.lane.b32.xlu0 %v2803, 56
    %v6177 = vpop.permute.xlu0 %6176
    %6178 = vrot.lane.b32.xlu0 %v2807, 56
    %v6179 = vpop.permute.xlu0 %6178
    %6180 = vrot.lane.b32.xlu0 %v2806, 56
    %v6181 = vpop.permute.xlu0 %6180
    %6182 = vrot.lane.b32.xlu0 %v2810, 56
    %v6183 = vpop.permute.xlu0 %6182
    %6184 = vrot.lane.b32.xlu0 %v2809, 56
    %v6185 = vpop.permute.xlu0 %6184
    %6186 = vrot.lane.b32.xlu0 %v2813, 56
    %v6187 = vpop.permute.xlu0 %6186
    %6188 = vrot.lane.b32.xlu0 %v2812, 56
    %v6189 = vpop.permute.xlu0 %6188
    %6190 = vrot.lane.b32.xlu0 %v3705, 56
    %v6191 = vpop.permute.xlu0 %6190
    %6192 = vrot.lane.b32.xlu0 %v3704, 56
    %v6193 = vpop.permute.xlu0 %6192
    %6194 = vrot.lane.b32.xlu0 %v4543, 56
    %v6195 = vpop.permute.xlu0 %6194
    %6196 = vrot.lane.b32.xlu0 %v4542, 56
    %v6197 = vpop.permute.xlu0 %6196
    %6198 = vrot.lane.b32.xlu0 %v5297, 56
    %v6199 = vpop.permute.xlu0 %6198
    %6200 = vrot.lane.b32.xlu0 %v5296, 56
    %v6201 = vpop.permute.xlu0 %6200
    %6202 = vrot.lane.b32.xlu0 %v6125, 56
    %v6203 = vpop.permute.xlu0 %6202
    %6204 = vrot.lane.b32.xlu0 %v6124, 56
    %v6205 = vpop.permute.xlu0 %6204
    %6246 = vst.msk [vmem:[#allocation4 + $0x8] sm:$0xff] %vm3658, %v6127
    %6247 = vst.msk [vmem:[#allocation4 + $0x18] sm:$0x3] %vm3660, %v6129
    %6248 = vst.msk [vmem:[#allocation4 + $0x28] sm:$0xff] %vm3658, %v6131
    %6249 = vst.msk [vmem:[#allocation4 + $0x38] sm:$0x3] %vm3660, %v6133
    %6250 = vst.msk [vmem:[#allocation4 + $0x48] sm:$0xff] %vm3658, %v6135
    %6251 = vst.msk [vmem:[#allocation4 + $0x58] sm:$0x3] %vm3660, %v6137
    %6252 = vst.msk [vmem:[#allocation4 + $0x68] sm:$0xff] %vm3658, %v6139
    %6253 = vst.msk [vmem:[#allocation4 + $0x78] sm:$0x3] %vm3660, %v6141
    %6254 = vst.msk [vmem:[#allocation4 + $0x88] sm:$0xff] %vm3658, %v6143
    %6255 = vst.msk [vmem:[#allocation4 + $0x98] sm:$0x3] %vm3660, %v6145
    %6256 = vst.msk [vmem:[#allocation4 + $0xa8] sm:$0xff] %vm3658, %v6147
    %6257 = vst.msk [vmem:[#allocation4 + $0xb8] sm:$0x3] %vm3660, %v6149
    %6258 = vst.msk [vmem:[#allocation4 + $0xc8] sm:$0xff] %vm3658, %v6151
    %6259 = vst.msk [vmem:[#allocation4 + $0xd8] sm:$0x3] %vm3660, %v6153
    %6260 = vst.msk [vmem:[#allocation4 + $0xe8] sm:$0xff] %vm3658, %v6155
    %6261 = vst.msk [vmem:[#allocation4 + $0xf8] sm:$0x3] %vm3660, %v6157
    %6262 = vst.msk [vmem:[#allocation4 + $0x108] sm:$0xff] %vm3658, %v6159
    %6263 = vst.msk [vmem:[#allocation4 + $0x118] sm:$0x3] %vm3660, %v6161
    %6264 = vst.msk [vmem:[#allocation4 + $0x128] sm:$0xff] %vm3658, %v6163
    %6265 = vst.msk [vmem:[#allocation4 + $0x138] sm:$0x3] %vm3660, %v6165
    %6266 = vst.msk [vmem:[#allocation4 + $0x148] sm:$0xff] %vm3658, %v6167
    %6267 = vst.msk [vmem:[#allocation4 + $0x158] sm:$0x3] %vm3660, %v6169
    %6268 = vst.msk [vmem:[#allocation4 + $0x168] sm:$0xff] %vm3658, %v6171
    %6269 = vst.msk [vmem:[#allocation4 + $0x178] sm:$0x3] %vm3660, %v6173
    %6270 = vst.msk [vmem:[#allocation4 + $0x188] sm:$0xff] %vm3658, %v6175
    %6271 = vst.msk [vmem:[#allocation4 + $0x198] sm:$0x3] %vm3660, %v6177
    %6272 = vst.msk [vmem:[#allocation4 + $0x1a8] sm:$0xff] %vm3658, %v6179
    %6273 = vst.msk [vmem:[#allocation4 + $0x1b8] sm:$0x3] %vm3660, %v6181
    %6274 = vst.msk [vmem:[#allocation4 + $0x1c8] sm:$0xff] %vm3658, %v6183
    %6275 = vst.msk [vmem:[#allocation4 + $0x1d8] sm:$0x3] %vm3660, %v6185
    %6276 = vst.msk [vmem:[#allocation4 + $0x1e8] sm:$0xff] %vm3658, %v6187
    %6277 = vst.msk [vmem:[#allocation4 + $0x1f8] sm:$0x3] %vm3660, %v6189
    %6278 = vst.msk [vmem:[#allocation4 + $0x208] sm:$0xff] %vm3658, %v6191
    %6279 = vst.msk [vmem:[#allocation4 + $0x218] sm:$0x3] %vm3660, %v6193
    %6280 = vst.msk [vmem:[#allocation4 + $0x228] sm:$0xff] %vm3658, %v6195
    %6281 = vst.msk [vmem:[#allocation4 + $0x238] sm:$0x3] %vm3660, %v6197
    %6282 = vst.msk [vmem:[#allocation4 + $0x248] sm:$0xff] %vm3658, %v6199
    %6283 = vst.msk [vmem:[#allocation4 + $0x258] sm:$0x3] %vm3660, %v6201
    %6284 = vst.msk [vmem:[#allocation4 + $0x268] sm:$0xff] %vm3658, %v6203
    %6285 = vst.msk [vmem:[#allocation4 + $0x278] sm:$0x3] %vm3660, %v6205
    %v6286 = vrot.slane %v2117, 4
    %v6287 = vrot.slane %v2118, 4
    %v6288 = vsel %vm803, %v6286, %v6287
    %v6289 = vrot.slane %v2145, 4
    %v6290 = vrot.slane %v2146, 4
    %v6291 = vsel %vm803, %v6289, %v6290
    %6292 = vrot.lane.b32.xlu0 %v2990, 64
    %v6293 = vpop.permute.xlu0 %6292
    %6294 = vrot.lane.b32.xlu0 %v2989, 64
    %v6295 = vpop.permute.xlu0 %6294
    %6296 = vrot.lane.b32.xlu0 %v2993, 64
    %v6297 = vpop.permute.xlu0 %6296
    %6298 = vrot.lane.b32.xlu0 %v2992, 64
    %v6299 = vpop.permute.xlu0 %6298
    %6300 = vrot.lane.b32.xlu0 %v2996, 64
    %v6301 = vpop.permute.xlu0 %6300
    %6302 = vrot.lane.b32.xlu0 %v2995, 64
    %v6303 = vpop.permute.xlu0 %6302
    %6304 = vrot.lane.b32.xlu0 %v2999, 64
    %v6305 = vpop.permute.xlu0 %6304
    %6306 = vrot.lane.b32.xlu0 %v2998, 64
    %v6307 = vpop.permute.xlu0 %6306
    %6308 = vrot.lane.b32.xlu0 %v3002, 64
    %v6309 = vpop.permute.xlu0 %6308
    %6310 = vrot.lane.b32.xlu0 %v3001, 64
    %v6311 = vpop.permute.xlu0 %6310
    %6312 = vrot.lane.b32.xlu0 %v3005, 64
    %v6313 = vpop.permute.xlu0 %6312
    %6314 = vrot.lane.b32.xlu0 %v3004, 64
    %v6315 = vpop.permute.xlu0 %6314
    %6316 = vrot.lane.b32.xlu0 %v3870, 64
    %v6317 = vpop.permute.xlu0 %6316
    %6318 = vrot.lane.b32.xlu0 %v3869, 64
    %v6319 = vpop.permute.xlu0 %6318
    %6320 = vrot.lane.b32.xlu0 %v4708, 64
    %v6321 = vpop.permute.xlu0 %6320
    %6322 = vrot.lane.b32.xlu0 %v4707, 64
    %v6323 = vpop.permute.xlu0 %6322
    %6324 = vrot.lane.b32.xlu0 %v5460, 64
    %v6325 = vpop.permute.xlu0 %6324
    %6326 = vrot.lane.b32.xlu0 %v5459, 64
    %v6327 = vpop.permute.xlu0 %6326
    %6328 = vrot.lane.b32.xlu0 %v6288, 64
    %v6329 = vpop.permute.xlu0 %6328
    %6330 = vrot.lane.b32.xlu0 %v6287, 64
    %v6331 = vpop.permute.xlu0 %6330
    %6332 = vrot.lane.b32.xlu0 %v3020, 64
    %v6333 = vpop.permute.xlu0 %6332
    %6334 = vrot.lane.b32.xlu0 %v3019, 64
    %v6335 = vpop.permute.xlu0 %6334
    %6336 = vrot.lane.b32.xlu0 %v3023, 64
    %v6337 = vpop.permute.xlu0 %6336
    %6338 = vrot.lane.b32.xlu0 %v3022, 64
    %v6339 = vpop.permute.xlu0 %6338
    %6340 = vrot.lane.b32.xlu0 %v3026, 64
    %v6341 = vpop.permute.xlu0 %6340
    %6342 = vrot.lane.b32.xlu0 %v3025, 64
    %v6343 = vpop.permute.xlu0 %6342
    %6344 = vrot.lane.b32.xlu0 %v3029, 64
    %v6345 = vpop.permute.xlu0 %6344
    %6346 = vrot.lane.b32.xlu0 %v3028, 64
    %v6347 = vpop.permute.xlu0 %6346
    %6348 = vrot.lane.b32.xlu0 %v3032, 64
    %v6349 = vpop.permute.xlu0 %6348
    %6350 = vrot.lane.b32.xlu0 %v3031, 64
    %v6351 = vpop.permute.xlu0 %6350
    %6352 = vrot.lane.b32.xlu0 %v3035, 64
    %v6353 = vpop.permute.xlu0 %6352
    %6354 = vrot.lane.b32.xlu0 %v3034, 64
    %v6355 = vpop.permute.xlu0 %6354
    %6356 = vrot.lane.b32.xlu0 %v3873, 64
    %v6357 = vpop.permute.xlu0 %6356
    %6358 = vrot.lane.b32.xlu0 %v3872, 64
    %v6359 = vpop.permute.xlu0 %6358
    %6360 = vrot.lane.b32.xlu0 %v4711, 64
    %v6361 = vpop.permute.xlu0 %6360
    %6362 = vrot.lane.b32.xlu0 %v4710, 64
    %v6363 = vpop.permute.xlu0 %6362
    %6364 = vrot.lane.b32.xlu0 %v5463, 64
    %v6365 = vpop.permute.xlu0 %6364
    %6366 = vrot.lane.b32.xlu0 %v5462, 64
    %v6367 = vpop.permute.xlu0 %6366
    %6368 = vrot.lane.b32.xlu0 %v6291, 64
    %v6369 = vpop.permute.xlu0 %6368
    %6370 = vrot.lane.b32.xlu0 %v6290, 64
    %v6371 = vpop.permute.xlu0 %6370
    %6412 = vst.msk [vmem:[#allocation4 + $0x8] sm:$0xff] %vm3826, %v6293
    %6413 = vst.msk [vmem:[#allocation4 + $0x18] sm:$0x3] %vm3828, %v6295
    %6414 = vst.msk [vmem:[#allocation4 + $0x28] sm:$0xff] %vm3826, %v6297
    %6415 = vst.msk [vmem:[#allocation4 + $0x38] sm:$0x3] %vm3828, %v6299
    %6416 = vst.msk [vmem:[#allocation4 + $0x48] sm:$0xff] %vm3826, %v6301
    %6417 = vst.msk [vmem:[#allocation4 + $0x58] sm:$0x3] %vm3828, %v6303
    %6418 = vst.msk [vmem:[#allocation4 + $0x68] sm:$0xff] %vm3826, %v6305
    %6419 = vst.msk [vmem:[#allocation4 + $0x78] sm:$0x3] %vm3828, %v6307
    %6420 = vst.msk [vmem:[#allocation4 + $0x88] sm:$0xff] %vm3826, %v6309
    %6421 = vst.msk [vmem:[#allocation4 + $0x98] sm:$0x3] %vm3828, %v6311
    %6422 = vst.msk [vmem:[#allocation4 + $0xa8] sm:$0xff] %vm3826, %v6313
    %6423 = vst.msk [vmem:[#allocation4 + $0xb8] sm:$0x3] %vm3828, %v6315
    %6424 = vst.msk [vmem:[#allocation4 + $0xc8] sm:$0xff] %vm3826, %v6317
    %6425 = vst.msk [vmem:[#allocation4 + $0xd8] sm:$0x3] %vm3828, %v6319
    %6426 = vst.msk [vmem:[#allocation4 + $0xe8] sm:$0xff] %vm3826, %v6321
    %6427 = vst.msk [vmem:[#allocation4 + $0xf8] sm:$0x3] %vm3828, %v6323
    %6428 = vst.msk [vmem:[#allocation4 + $0x108] sm:$0xff] %vm3826, %v6325
    %6429 = vst.msk [vmem:[#allocation4 + $0x118] sm:$0x3] %vm3828, %v6327
    %6430 = vst.msk [vmem:[#allocation4 + $0x128] sm:$0xff] %vm3826, %v6329
    %6431 = vst.msk [vmem:[#allocation4 + $0x138] sm:$0x3] %vm3828, %v6331
    %6432 = vst.msk [vmem:[#allocation4 + $0x148] sm:$0xff] %vm3826, %v6333
    %6433 = vst.msk [vmem:[#allocation4 + $0x158] sm:$0x3] %vm3828, %v6335
    %6434 = vst.msk [vmem:[#allocation4 + $0x168] sm:$0xff] %vm3826, %v6337
    %6435 = vst.msk [vmem:[#allocation4 + $0x178] sm:$0x3] %vm3828, %v6339
    %6436 = vst.msk [vmem:[#allocation4 + $0x188] sm:$0xff] %vm3826, %v6341
    %6437 = vst.msk [vmem:[#allocation4 + $0x198] sm:$0x3] %vm3828, %v6343
    %6438 = vst.msk [vmem:[#allocation4 + $0x1a8] sm:$0xff] %vm3826, %v6345
    %6439 = vst.msk [vmem:[#allocation4 + $0x1b8] sm:$0x3] %vm3828, %v6347
    %6440 = vst.msk [vmem:[#allocation4 + $0x1c8] sm:$0xff] %vm3826, %v6349
    %6441 = vst.msk [vmem:[#allocation4 + $0x1d8] sm:$0x3] %vm3828, %v6351
    %6442 = vst.msk [vmem:[#allocation4 + $0x1e8] sm:$0xff] %vm3826, %v6353
    %6443 = vst.msk [vmem:[#allocation4 + $0x1f8] sm:$0x3] %vm3828, %v6355
    %6444 = vst.msk [vmem:[#allocation4 + $0x208] sm:$0xff] %vm3826, %v6357
    %6445 = vst.msk [vmem:[#allocation4 + $0x218] sm:$0x3] %vm3828, %v6359
    %6446 = vst.msk [vmem:[#allocation4 + $0x228] sm:$0xff] %vm3826, %v6361
    %6447 = vst.msk [vmem:[#allocation4 + $0x238] sm:$0x3] %vm3828, %v6363
    %6448 = vst.msk [vmem:[#allocation4 + $0x248] sm:$0xff] %vm3826, %v6365
    %6449 = vst.msk [vmem:[#allocation4 + $0x258] sm:$0x3] %vm3828, %v6367
    %6450 = vst.msk [vmem:[#allocation4 + $0x268] sm:$0xff] %vm3826, %v6369
    %6451 = vst.msk [vmem:[#allocation4 + $0x278] sm:$0x3] %vm3828, %v6371
    %v6452 = vld [vmem:[#allocation4] sm:$0xff]
    %v6453 = vld [vmem:[#allocation4 + $0x8] sm:$0xff]
    %v6454 = vld [vmem:[#allocation4 + $0x10] sm:$0xff]
    %v6455 = vld [vmem:[#allocation4 + $0x18] sm:$0xff]
    %v6456 = vld [vmem:[#allocation4 + $0x20] sm:$0xff]
    %v6457 = vld [vmem:[#allocation4 + $0x28] sm:$0xff]
    %v6458 = vld [vmem:[#allocation4 + $0x30] sm:$0xff]
    %v6459 = vld [vmem:[#allocation4 + $0x38] sm:$0xff]
    %v6460 = vld [vmem:[#allocation4 + $0x40] sm:$0xff]
    %v6461 = vld [vmem:[#allocation4 + $0x48] sm:$0xff]
    %v6462 = vld [vmem:[#allocation4 + $0x50] sm:$0xff]
    %v6463 = vld [vmem:[#allocation4 + $0x58] sm:$0xff]
    %v6464 = vld [vmem:[#allocation4 + $0x60] sm:$0xff]
    %v6465 = vld [vmem:[#allocation4 + $0x68] sm:$0xff]
    %v6466 = vld [vmem:[#allocation4 + $0x70] sm:$0xff]
    %v6467 = vld [vmem:[#allocation4 + $0x78] sm:$0xff]
    %v6468 = vld [vmem:[#allocation4 + $0x80] sm:$0xff]
    %v6469 = vld [vmem:[#allocation4 + $0x88] sm:$0xff]
    %v6470 = vld [vmem:[#allocation4 + $0x90] sm:$0xff]
    %v6471 = vld [vmem:[#allocation4 + $0x98] sm:$0xff]
    %v6472 = vld [vmem:[#allocation4 + $0xa0] sm:$0xff]
    %v6473 = vld [vmem:[#allocation4 + $0xa8] sm:$0xff]
    %v6474 = vld [vmem:[#allocation4 + $0xb0] sm:$0xff]
    %v6475 = vld [vmem:[#allocation4 + $0xb8] sm:$0xff]
    %v6476 = vld [vmem:[#allocation4 + $0xc0] sm:$0xff]
    %v6477 = vld [vmem:[#allocation4 + $0xc8] sm:$0xff]
    %v6478 = vld [vmem:[#allocation4 + $0xd0] sm:$0xff]
    %v6479 = vld [vmem:[#allocation4 + $0xd8] sm:$0xff]
    %v6480 = vld [vmem:[#allocation4 + $0xe0] sm:$0xff]
    %v6481 = vld [vmem:[#allocation4 + $0xe8] sm:$0xff]
    %v6482 = vld [vmem:[#allocation4 + $0xf0] sm:$0xff]
    %v6483 = vld [vmem:[#allocation4 + $0xf8] sm:$0xff]
    %v6484 = vld [vmem:[#allocation4 + $0x100] sm:$0xff]
    %v6485 = vld [vmem:[#allocation4 + $0x108] sm:$0xff]
    %v6486 = vld [vmem:[#allocation4 + $0x110] sm:$0xff]
    %v6487 = vld [vmem:[#allocation4 + $0x118] sm:$0xff]
    %v6488 = vld [vmem:[#allocation4 + $0x120] sm:$0xff]
    %v6489 = vld [vmem:[#allocation4 + $0x128] sm:$0xff]
    %v6490 = vld [vmem:[#allocation4 + $0x130] sm:$0xff]
    %v6491 = vld [vmem:[#allocation4 + $0x138] sm:$0xff]
    %v6492 = vld [vmem:[#allocation4 + $0x140] sm:$0xff]
    %v6493 = vld [vmem:[#allocation4 + $0x148] sm:$0xff]
    %v6494 = vld [vmem:[#allocation4 + $0x150] sm:$0xff]
    %v6495 = vld [vmem:[#allocation4 + $0x158] sm:$0xff]
    %v6496 = vld [vmem:[#allocation4 + $0x160] sm:$0xff]
    %v6497 = vld [vmem:[#allocation4 + $0x168] sm:$0xff]
    %v6498 = vld [vmem:[#allocation4 + $0x170] sm:$0xff]
    %v6499 = vld [vmem:[#allocation4 + $0x178] sm:$0xff]
    %v6500 = vld [vmem:[#allocation4 + $0x180] sm:$0xff]
    %v6501 = vld [vmem:[#allocation4 + $0x188] sm:$0xff]
    %v6502 = vld [vmem:[#allocation4 + $0x190] sm:$0xff]
    %v6503 = vld [vmem:[#allocation4 + $0x198] sm:$0xff]
    %v6504 = vld [vmem:[#allocation4 + $0x1a0] sm:$0xff]
    %v6505 = vld [vmem:[#allocation4 + $0x1a8] sm:$0xff]
    %v6506 = vld [vmem:[#allocation4 + $0x1b0] sm:$0xff]
    %v6507 = vld [vmem:[#allocation4 + $0x1b8] sm:$0xff]
    %v6508 = vld [vmem:[#allocation4 + $0x1c0] sm:$0xff]
    %v6509 = vld [vmem:[#allocation4 + $0x1c8] sm:$0xff]
    %v6510 = vld [vmem:[#allocation4 + $0x1d0] sm:$0xff]
    %v6511 = vld [vmem:[#allocation4 + $0x1d8] sm:$0xff]
    %v6512 = vld [vmem:[#allocation4 + $0x1e0] sm:$0xff]
    %v6513 = vld [vmem:[#allocation4 + $0x1e8] sm:$0xff]
    %v6514 = vld [vmem:[#allocation4 + $0x1f0] sm:$0xff]
    %v6515 = vld [vmem:[#allocation4 + $0x1f8] sm:$0xff]
    %v6516 = vld [vmem:[#allocation4 + $0x200] sm:$0xff]
    %v6517 = vld [vmem:[#allocation4 + $0x208] sm:$0xff]
    %v6518 = vld [vmem:[#allocation4 + $0x210] sm:$0xff]
    %v6519 = vld [vmem:[#allocation4 + $0x218] sm:$0xff]
    %v6520 = vld [vmem:[#allocation4 + $0x220] sm:$0xff]
    %v6521 = vld [vmem:[#allocation4 + $0x228] sm:$0xff]
    %v6522 = vld [vmem:[#allocation4 + $0x230] sm:$0xff]
    %v6523 = vld [vmem:[#allocation4 + $0x238] sm:$0xff]
    %v6524 = vld [vmem:[#allocation4 + $0x240] sm:$0xff]
    %v6525 = vld [vmem:[#allocation4 + $0x248] sm:$0xff]
    %v6526 = vld [vmem:[#allocation4 + $0x250] sm:$0xff]
    %v6527 = vld [vmem:[#allocation4 + $0x258] sm:$0xff]
    %v6528 = vld [vmem:[#allocation4 + $0x260] sm:$0xff]
    %v6529 = vld [vmem:[#allocation4 + $0x268] sm:$0xff]
    %v6530 = vld [vmem:[#allocation4 + $0x270] sm:$0xff]
    %v6531 = vld [vmem:[#allocation4 + $0x278] sm:$0xff]
    %v6532 = vpack.c.bf16 %v6454, %v6452
    %v6533 = vpack.c.bf16 %v6455, %v6453
    %v6534 = vpack.c.bf16 %v6458, %v6456
    %v6535 = vpack.c.bf16 %v6459, %v6457
    %v6536 = vpack.c.bf16 %v6462, %v6460
    %v6537 = vpack.c.bf16 %v6463, %v6461
    %v6538 = vpack.c.bf16 %v6466, %v6464
    %v6539 = vpack.c.bf16 %v6467, %v6465
    %v6540 = vpack.c.bf16 %v6470, %v6468
    %v6541 = vpack.c.bf16 %v6471, %v6469
    %v6542 = vpack.c.bf16 %v6474, %v6472
    %v6543 = vpack.c.bf16 %v6475, %v6473
    %v6544 = vpack.c.bf16 %v6478, %v6476
    %v6545 = vpack.c.bf16 %v6479, %v6477
    %v6546 = vpack.c.bf16 %v6482, %v6480
    %v6547 = vpack.c.bf16 %v6483, %v6481
    %v6548 = vpack.c.bf16 %v6486, %v6484
    %v6549 = vpack.c.bf16 %v6487, %v6485
    %v6550 = vpack.c.bf16 %v6490, %v6488
    %v6551 = vpack.c.bf16 %v6491, %v6489
    %v6552 = vpack.c.bf16 %v6494, %v6492
    %v6553 = vpack.c.bf16 %v6495, %v6493
    %v6554 = vpack.c.bf16 %v6498, %v6496
    %v6555 = vpack.c.bf16 %v6499, %v6497
    %v6556 = vpack.c.bf16 %v6502, %v6500
    %v6557 = vpack.c.bf16 %v6503, %v6501
    %v6558 = vpack.c.bf16 %v6506, %v6504
    %v6559 = vpack.c.bf16 %v6507, %v6505
    %v6560 = vpack.c.bf16 %v6510, %v6508
    %v6561 = vpack.c.bf16 %v6511, %v6509
    %v6562 = vpack.c.bf16 %v6514, %v6512
    %v6563 = vpack.c.bf16 %v6515, %v6513
    %v6564 = vpack.c.bf16 %v6518, %v6516
    %v6565 = vpack.c.bf16 %v6519, %v6517
    %v6566 = vpack.c.bf16 %v6522, %v6520
    %v6567 = vpack.c.bf16 %v6523, %v6521
    %v6568 = vpack.c.bf16 %v6526, %v6524
    %v6569 = vpack.c.bf16 %v6527, %v6525
    %v6570 = vpack.c.bf16 %v6530, %v6528
    %v6571 = vpack.c.bf16 %v6531, %v6529
    %v6572 = vld [vmem:[%s3] sm:$0xf]
    %v6573 = vld [vmem:[%s3 + $0x4] sm:$0xf]
    %v6574 = vld [vmem:[%s3 + $0x8] sm:$0xf]
    %v6575 = vld [vmem:[%s3 + $0xc] sm:$0xf]
    %v6576 = vld [vmem:[%s3 + $0x10] sm:$0xf]
    %v6577 = vld [vmem:[%s3 + $0x14] sm:$0xf]
    %v6578 = vld [vmem:[%s3 + $0x18] sm:$0xf]
    %v6579 = vld [vmem:[%s3 + $0x1c] sm:$0xf]
    %v6580 = vld [vmem:[%s3 + $0x20] sm:$0xf]
    %v6581 = vld [vmem:[%s3 + $0x24] sm:$0xf]
    %v6582 = vld [vmem:[%s3 + $0x28] sm:$0xf]
    %v6583 = vld [vmem:[%s3 + $0x2c] sm:$0xf]
    %v6584 = vld [vmem:[%s3 + $0x30] sm:$0xf]
    %v6585 = vld [vmem:[%s3 + $0x34] sm:$0xf]
    %v6586 = vld [vmem:[%s3 + $0x38] sm:$0xf]
    %v6587 = vld [vmem:[%s3 + $0x3c] sm:$0xf]
    %v6588 = vld [vmem:[%s3 + $0x40] sm:$0xf]
    %v6589 = vld [vmem:[%s3 + $0x44] sm:$0xf]
    %v6590 = vld [vmem:[%s3 + $0x48] sm:$0xf]
    %v6591 = vld [vmem:[%s3 + $0x4c] sm:$0xf]
    %v6592 = vld [vmem:[%s3 + $0x50] sm:$0xf]
    %v6593 = vld [vmem:[%s3 + $0x54] sm:$0xf]
    %v6594 = vld [vmem:[%s3 + $0x58] sm:$0xf]
    %v6595 = vld [vmem:[%s3 + $0x5c] sm:$0xf]
    %v6596 = vld [vmem:[%s3 + $0x60] sm:$0xf]
    %v6622 = vunpack.c.l.b16 %v6572
    %v6623 = vunpack.c.l.b16 %v6573
    %v6624 = vunpack.c.l.b16 %v6574
    %v6625 = vunpack.c.l.b16 %v6575
    %v6626 = vunpack.c.l.b16 %v6576
    %v6627 = vunpack.c.l.b16 %v6577
    %v6628 = vunpack.c.l.b16 %v6578
    %v6629 = vunpack.c.l.b16 %v6579
    %v6630 = vunpack.c.l.b16 %v6580
    %v6631 = vunpack.c.l.b16 %v6581
    %v6632 = vunpack.c.l.b16 %v6582
    %v6633 = vunpack.c.l.b16 %v6583
    %v6634 = vunpack.c.l.b16 %v6584
    %v6635 = vunpack.c.l.b16 %v6585
    %v6636 = vunpack.c.l.b16 %v6586
    %v6637 = vunpack.c.l.b16 %v6587
    %v6638 = vunpack.c.l.b16 %v6588
    %v6639 = vunpack.c.l.b16 %v6589
    %v6640 = vunpack.c.l.b16 %v6590
    %v6641 = vunpack.c.l.b16 %v6591
    %v6642 = vunpack.c.l.b16 %v6592
    %v6643 = vunpack.c.l.b16 %v6593
    %v6644 = vunpack.c.l.b16 %v6594
    %v6645 = vunpack.c.l.b16 %v6595
    %v6646 = vunpack.c.l.b16 %v6596
    %v6647 = vpack.c.b16 %v6623, %v6622
    %v6648 = vpack.c.b16 %v6625, %v6624
    %v6649 = vpack.c.b16 %v6627, %v6626
    %v6650 = vpack.c.b16 %v6629, %v6628
    %v6651 = vpack.c.b16 %v6631, %v6630
    %v6652 = vpack.c.b16 %v6633, %v6632
    %v6653 = vpack.c.b16 %v6635, %v6634
    %v6654 = vpack.c.b16 %v6637, %v6636
    %v6655 = vpack.c.b16 %v6639, %v6638
    %v6656 = vpack.c.b16 %v6641, %v6640
    %v6657 = vpack.c.b16 %v6643, %v6642
    %v6658 = vpack.c.b16 %v6645, %v6644
    %v6659 = vpack.c.b16 %v6646, %v6646
    %v6673 = vsel %vm2148, %v6533, 0
    %v6676 = vsel %vm2148, %v6535, 0
    %v6679 = vsel %vm2148, %v6537, 0
    %v6682 = vsel %vm2148, %v6539, 0
    %v6685 = vsel %vm2148, %v6541, 0
    %v6688 = vsel %vm2148, %v6543, 0
    %v6691 = vsel %vm2148, %v6545, 0
    %v6694 = vsel %vm2148, %v6547, 0
    %v6697 = vsel %vm2148, %v6549, 0
    %v6700 = vsel %vm2148, %v6551, 0
    %v6703 = vsel %vm2148, %v6553, 0
    %v6706 = vsel %vm2148, %v6555, 0
    %v6709 = vsel %vm2148, %v6557, 0
    %v6712 = vsel %vm2148, %v6559, 0
    %v6715 = vsel %vm2148, %v6561, 0
    %v6718 = vsel %vm2148, %v6563, 0
    %v6721 = vsel %vm2148, %v6565, 0
    %v6724 = vsel %vm2148, %v6567, 0
    %v6727 = vsel %vm2148, %v6569, 0
    %v6730 = vsel %vm2148, %v6571, 0
    %v6733 = vsel %vm803, %v6659, 0
    %6735 = vmatprep.subr.bf16.mxu0 0
    %6736 = vmatpush1.bf16.msra.mxu0 %v6654
    %6737 = vmatprep.subr.bf16.mxu0 0
    %6738 = vmatpush1.bf16.msra.mxu0 %v6653
    %6739 = vmatprep.subr.bf16.mxu0 0
    %6740 = vmatpush1.bf16.msra.mxu0 %v6652
    %6741 = vmatprep.subr.bf16.mxu0 0
    %6742 = vmatpush1.bf16.msra.mxu0 %v6651
    %6743 = vmatprep.subr.bf16.mxu0 0
    %6744 = vmatpush1.bf16.msra.mxu0 %v6650
    %6745 = vmatprep.subr.bf16.mxu0 0
    %6746 = vmatpush1.bf16.msra.mxu0 %v6649
    %6747 = vmatprep.subr.bf16.mxu0 0
    %6748 = vmatpush1.bf16.msra.mxu0 %v6648
    %6749 = vmatprep.subr.bf16.mxu0 0
    %6750 = vmatpush1.bf16.msra.mxu0 %v6647
    %6751 = vmatprep.subr.bf16.mxu0 0
    %6752 = vmatpush2.bf16.msra.mxu0 0
    %6753 = vmatprep.subr.bf16.mxu0 0
    %6754 = vmatpush2.bf16.msra.mxu0 0
    %6755 = vmatprep.subr.bf16.mxu0 0
    %6756 = vmatpush2.bf16.msra.mxu0 0
    %6757 = vmatprep.subr.bf16.mxu0 0
    %6758 = vmatpush2.bf16.msra.mxu0 %v6733
    %6759 = vmatprep.subr.bf16.mxu0 0
    %6760 = vmatpush2.bf16.msra.mxu0 %v6658
    %6761 = vmatprep.subr.bf16.mxu0 0
    %6762 = vmatpush2.bf16.msra.mxu0 %v6657
    %6763 = vmatprep.subr.bf16.mxu0 0
    %6764 = vmatpush2.bf16.msra.mxu0 %v6656
    %6765 = vmatprep.subr.bf16.mxu0 0
    %6766 = vmatpush2.bf16.msra.mxu0 %v6655
    %6767 = vmatprep.mubr.bf16.mxu0 %v6673
    %6768 = vmatmul.mubr.bf16.gmra.mxu0 %v6532
    %v6769 = vpop.f32.mrf.mxu0
    %v6770 = vadd.f32 0.0, %v6769
    %v6771 = vpop.f32.mrf.mxu0
    %v6772 = vpop.f32.mrf.mxu0
    %v6773 = vadd.f32 0.0, %v6772
    %v6774 = vpop.f32.mrf.mxu0
    %6775 = vmatprep.mubr.bf16.mxu0 %v6676
    %6776 = vmatmul.mubr.bf16.gmra.mxu0 %v6534
    %v6777 = vpop.f32.mrf.mxu0
    %v6778 = vadd.f32 0.0, %v6777
    %v6779 = vpop.f32.mrf.mxu0
    %v6780 = vpop.f32.mrf.mxu0
    %v6781 = vadd.f32 0.0, %v6780
    %v6782 = vpop.f32.mrf.mxu0
    %6783 = vmatprep.mubr.bf16.mxu0 %v6679
    %6784 = vmatmul.mubr.bf16.gmra.mxu0 %v6536
    %v6785 = vpop.f32.mrf.mxu0
    %v6786 = vadd.f32 0.0, %v6785
    %v6787 = vpop.f32.mrf.mxu0
    %v6788 = vpop.f32.mrf.mxu0
    %v6789 = vadd.f32 0.0, %v6788
    %v6790 = vpop.f32.mrf.mxu0
    %6791 = vmatprep.mubr.bf16.mxu0 %v6682
    %6792 = vmatmul.mubr.bf16.gmra.mxu0 %v6538
    %v6793 = vpop.f32.mrf.mxu0
    %v6794 = vadd.f32 0.0, %v6793
    %v6795 = vpop.f32.mrf.mxu0
    %v6796 = vpop.f32.mrf.mxu0
    %v6797 = vadd.f32 0.0, %v6796
    %v6798 = vpop.f32.mrf.mxu0
    %6799 = vmatprep.mubr.bf16.mxu0 %v6685
    %6800 = vmatmul.mubr.bf16.gmra.mxu0 %v6540
    %v6801 = vpop.f32.mrf.mxu0
    %v6802 = vadd.f32 0.0, %v6801
    %v6803 = vpop.f32.mrf.mxu0
    %v6804 = vpop.f32.mrf.mxu0
    %v6805 = vadd.f32 0.0, %v6804
    %v6806 = vpop.f32.mrf.mxu0
    %6807 = vmatprep.mubr.bf16.mxu0 %v6688
    %6808 = vmatmul.mubr.bf16.gmra.mxu0 %v6542
    %v6809 = vpop.f32.mrf.mxu0
    %v6810 = vadd.f32 0.0, %v6809
    %v6811 = vpop.f32.mrf.mxu0
    %v6812 = vpop.f32.mrf.mxu0
    %v6813 = vadd.f32 0.0, %v6812
    %v6814 = vpop.f32.mrf.mxu0
    %6815 = vmatprep.mubr.bf16.mxu0 %v6691
    %6816 = vmatmul.mubr.bf16.gmra.mxu0 %v6544
    %v6817 = vpop.f32.mrf.mxu0
    %v6818 = vadd.f32 0.0, %v6817
    %v6819 = vpop.f32.mrf.mxu0
    %v6820 = vpop.f32.mrf.mxu0
    %v6821 = vadd.f32 0.0, %v6820
    %v6822 = vpop.f32.mrf.mxu0
    %6823 = vmatprep.mubr.bf16.mxu0 %v6694
    %6824 = vmatmul.mubr.bf16.gmra.mxu0 %v6546
    %v6825 = vpop.f32.mrf.mxu0
    %v6826 = vadd.f32 0.0, %v6825
    %v6827 = vpop.f32.mrf.mxu0
    %v6828 = vpop.f32.mrf.mxu0
    %v6829 = vadd.f32 0.0, %v6828
    %v6830 = vpop.f32.mrf.mxu0
    %6831 = vmatprep.mubr.bf16.mxu0 %v6697
    %6832 = vmatmul.mubr.bf16.gmra.mxu0 %v6548
    %v6833 = vpop.f32.mrf.mxu0
    %v6834 = vadd.f32 0.0, %v6833
    %v6835 = vpop.f32.mrf.mxu0
    %v6836 = vpop.f32.mrf.mxu0
    %v6837 = vadd.f32 0.0, %v6836
    %v6838 = vpop.f32.mrf.mxu0
    %6839 = vmatprep.mubr.bf16.mxu0 %v6700
    %6840 = vmatmul.mubr.bf16.gmra.mxu0 %v6550
    %v6841 = vpop.f32.mrf.mxu0
    %v6842 = vadd.f32 0.0, %v6841
    %v6843 = vpop.f32.mrf.mxu0
    %v6844 = vpop.f32.mrf.mxu0
    %v6845 = vadd.f32 0.0, %v6844
    %v6846 = vpop.f32.mrf.mxu0
    %6847 = vmatprep.mubr.bf16.mxu0 %v6703
    %6848 = vmatmul.mubr.bf16.gmra.mxu0 %v6552
    %v6849 = vpop.f32.mrf.mxu0
    %v6850 = vadd.f32 0.0, %v6849
    %v6851 = vpop.f32.mrf.mxu0
    %v6852 = vpop.f32.mrf.mxu0
    %v6853 = vadd.f32 0.0, %v6852
    %v6854 = vpop.f32.mrf.mxu0
    %6855 = vmatprep.mubr.bf16.mxu0 %v6706
    %6856 = vmatmul.mubr.bf16.gmra.mxu0 %v6554
    %v6857 = vpop.f32.mrf.mxu0
    %v6858 = vadd.f32 0.0, %v6857
    %v6859 = vpop.f32.mrf.mxu0
    %v6860 = vpop.f32.mrf.mxu0
    %v6861 = vadd.f32 0.0, %v6860
    %v6862 = vpop.f32.mrf.mxu0
    %6863 = vmatprep.mubr.bf16.mxu0 %v6709
    %6864 = vmatmul.mubr.bf16.gmra.mxu0 %v6556
    %v6865 = vpop.f32.mrf.mxu0
    %v6866 = vadd.f32 0.0, %v6865
    %v6867 = vpop.f32.mrf.mxu0
    %v6868 = vpop.f32.mrf.mxu0
    %v6869 = vadd.f32 0.0, %v6868
    %v6870 = vpop.f32.mrf.mxu0
    %6871 = vmatprep.mubr.bf16.mxu0 %v6712
    %6872 = vmatmul.mubr.bf16.gmra.mxu0 %v6558
    %v6873 = vpop.f32.mrf.mxu0
    %v6874 = vadd.f32 0.0, %v6873
    %v6875 = vpop.f32.mrf.mxu0
    %v6876 = vpop.f32.mrf.mxu0
    %v6877 = vadd.f32 0.0, %v6876
    %v6878 = vpop.f32.mrf.mxu0
    %6879 = vmatprep.mubr.bf16.mxu0 %v6715
    %6880 = vmatmul.mubr.bf16.gmra.mxu0 %v6560
    %v6881 = vpop.f32.mrf.mxu0
    %v6882 = vadd.f32 0.0, %v6881
    %v6883 = vpop.f32.mrf.mxu0
    %v6884 = vpop.f32.mrf.mxu0
    %v6885 = vadd.f32 0.0, %v6884
    %v6886 = vpop.f32.mrf.mxu0
    %6887 = vmatprep.mubr.bf16.mxu0 %v6718
    %6888 = vmatmul.mubr.bf16.gmra.mxu0 %v6562
    %v6889 = vpop.f32.mrf.mxu0
    %v6890 = vadd.f32 0.0, %v6889
    %v6891 = vpop.f32.mrf.mxu0
    %v6892 = vpop.f32.mrf.mxu0
    %v6893 = vadd.f32 0.0, %v6892
    %v6894 = vpop.f32.mrf.mxu0
    %6895 = vmatprep.mubr.bf16.mxu0 %v6721
    %6896 = vmatmul.mubr.bf16.gmra.mxu0 %v6564
    %v6897 = vpop.f32.mrf.mxu0
    %v6898 = vadd.f32 0.0, %v6897
    %v6899 = vpop.f32.mrf.mxu0
    %v6900 = vpop.f32.mrf.mxu0
    %v6901 = vadd.f32 0.0, %v6900
    %v6902 = vpop.f32.mrf.mxu0
    %6903 = vmatprep.mubr.bf16.mxu0 %v6724
    %6904 = vmatmul.mubr.bf16.gmra.mxu0 %v6566
    %v6905 = vpop.f32.mrf.mxu0
    %v6906 = vadd.f32 0.0, %v6905
    %v6907 = vpop.f32.mrf.mxu0
    %v6908 = vpop.f32.mrf.mxu0
    %v6909 = vadd.f32 0.0, %v6908
    %v6910 = vpop.f32.mrf.mxu0
    %6911 = vmatprep.mubr.bf16.mxu0 %v6727
    %6912 = vmatmul.mubr.bf16.gmra.mxu0 %v6568
    %v6913 = vpop.f32.mrf.mxu0
    %v6914 = vadd.f32 0.0, %v6913
    %v6915 = vpop.f32.mrf.mxu0
    %v6916 = vpop.f32.mrf.mxu0
    %v6917 = vadd.f32 0.0, %v6916
    %v6918 = vpop.f32.mrf.mxu0
    %6919 = vmatprep.mubr.bf16.mxu0 %v6730
    %6920 = vmatmul.mubr.bf16.gmra.mxu0 %v6570
    %v6921 = vpop.f32.mrf.mxu0
    %v6922 = vadd.f32 0.0, %v6921
    %v6923 = vpop.f32.mrf.mxu0
    %v6924 = vpop.f32.mrf.mxu0
    %v6925 = vadd.f32 0.0, %v6924
    %v6926 = vpop.f32.mrf.mxu0
    %6927 = vdwg.mxu0
    %v6928 = vmax.f32 %v6770, %v6778
    %v6929 = vmax.f32 %v6773, %v6781
    %v6930 = vmax.f32 %v6786, %v6794
    %v6931 = vmax.f32 %v6789, %v6797
    %v6932 = vmax.f32 %v6802, %v6810
    %v6933 = vmax.f32 %v6805, %v6813
    %v6934 = vmax.f32 %v6818, %v6826
    %v6935 = vmax.f32 %v6821, %v6829
    %v6936 = vmax.f32 %v6834, %v6842
    %v6937 = vmax.f32 %v6837, %v6845
    %v6938 = vmax.f32 %v6850, %v6858
    %v6939 = vmax.f32 %v6853, %v6861
    %v6940 = vmax.f32 %v6866, %v6874
    %v6941 = vmax.f32 %v6869, %v6877
    %v6942 = vmax.f32 %v6882, %v6890
    %v6943 = vmax.f32 %v6885, %v6893
    %v6944 = vmax.f32 %v6898, %v6906
    %v6945 = vmax.f32 %v6901, %v6909
    %v6946 = vmax.f32 %v6914, %v6922
    %v6947 = vmax.f32 %v6917, %v6925
    %vm6948 = vcmask 916480
    %6949 = vst.msk [vmem:[#allocation5] sm:$0xff] %vm6948, %v6928
    %vm6950 = vcmask 910336
    %6951 = vst.msk [vmem:[#allocation5 + $0x8] sm:$0x3] %vm6950, %v6929
    %6952 = vst.msk [vmem:[#allocation5 + $0x10] sm:$0xff] %vm6948, %v6930
    %6953 = vst.msk [vmem:[#allocation5 + $0x18] sm:$0x3] %vm6950, %v6931
    %6954 = vst.msk [vmem:[#allocation5 + $0x20] sm:$0xff] %vm6948, %v6932
    %6955 = vst.msk [vmem:[#allocation5 + $0x28] sm:$0x3] %vm6950, %v6933
    %6956 = vst.msk [vmem:[#allocation5 + $0x30] sm:$0xff] %vm6948, %v6934
    %6957 = vst.msk [vmem:[#allocation5 + $0x38] sm:$0x3] %vm6950, %v6935
    %6958 = vst.msk [vmem:[#allocation5 + $0x40] sm:$0xff] %vm6948, %v6936
    %6959 = vst.msk [vmem:[#allocation5 + $0x48] sm:$0x3] %vm6950, %v6937
    %6960 = vst.msk [vmem:[#allocation5 + $0x50] sm:$0xff] %vm6948, %v6938
    %6961 = vst.msk [vmem:[#allocation5 + $0x58] sm:$0x3] %vm6950, %v6939
    %6962 = vst.msk [vmem:[#allocation5 + $0x60] sm:$0xff] %vm6948, %v6940
    %6963 = vst.msk [vmem:[#allocation5 + $0x68] sm:$0x3] %vm6950, %v6941
    %6964 = vst.msk [vmem:[#allocation5 + $0x70] sm:$0xff] %vm6948, %v6942
    %6965 = vst.msk [vmem:[#allocation5 + $0x78] sm:$0x3] %vm6950, %v6943
    %6966 = vst.msk [vmem:[#allocation5 + $0x80] sm:$0xff] %vm6948, %v6944
    %6967 = vst.msk [vmem:[#allocation5 + $0x88] sm:$0x3] %vm6950, %v6945
    %6968 = vst.msk [vmem:[#allocation5 + $0x90] sm:$0xff] %vm6948, %v6946
    %6969 = vst.msk [vmem:[#allocation5 + $0x98] sm:$0x3] %vm6950, %v6947
    %v6970 = vld [vmem:[#allocation5] ss:$2 sm:$0x1f]
    %s6971 = scalar_lea.vmem [#allocation5], 16
    %v6972 = vld [vmem:[%s6971] ss:$2 sm:$0x1f]
    %s6973 = scalar_lea.vmem [#allocation5], 32
    %v6974 = vld [vmem:[%s6973] ss:$2 sm:$0x1f]
    %s6975 = scalar_lea.vmem [#allocation5], 48
    %v6976 = vld [vmem:[%s6975] ss:$2 sm:$0x1f]
    %s6977 = scalar_lea.vmem [#allocation5], 64
    %v6978 = vld [vmem:[%s6977] ss:$2 sm:$0x1f]
    %s6979 = scalar_lea.vmem [#allocation5], 80
    %v6980 = vld [vmem:[%s6979] ss:$2 sm:$0x1f]
    %s6981 = scalar_lea.vmem [#allocation5], 96
    %v6982 = vld [vmem:[%s6981] ss:$2 sm:$0x1f]
    %s6983 = scalar_lea.vmem [#allocation5], 112
    %v6984 = vld [vmem:[%s6983] ss:$2 sm:$0x1f]
    %s6985 = scalar_lea.vmem [#allocation5], 128
    %v6986 = vld [vmem:[%s6985] ss:$2 sm:$0x1f]
    %s6987 = scalar_lea.vmem [#allocation5], 144
    %v6988 = vld [vmem:[%s6987] ss:$2 sm:$0x1f]
    %s6989 = scalar_lea.vmem [#allocation5], 1
    %v6990 = vld [vmem:[%s6989] ss:$2 sm:$0x1f]
    %s6991 = scalar_lea.vmem [#allocation5], 17
    %v6992 = vld [vmem:[%s6991] ss:$2 sm:$0x1f]
    %s6993 = scalar_lea.vmem [#allocation5], 33
    %v6994 = vld [vmem:[%s6993] ss:$2 sm:$0x1f]
    %s6995 = scalar_lea.vmem [#allocation5], 49
    %v6996 = vld [vmem:[%s6995] ss:$2 sm:$0x1f]
    %s6997 = scalar_lea.vmem [#allocation5], 65
    %v6998 = vld [vmem:[%s6997] ss:$2 sm:$0x1f]
    %s6999 = scalar_lea.vmem [#allocation5], 81
    %v7000 = vld [vmem:[%s6999] ss:$2 sm:$0x1f]
    %s7001 = scalar_lea.vmem [#allocation5], 97
    %v7002 = vld [vmem:[%s7001] ss:$2 sm:$0x1f]
    %s7003 = scalar_lea.vmem [#allocation5], 113
    %v7004 = vld [vmem:[%s7003] ss:$2 sm:$0x1f]
    %s7005 = scalar_lea.vmem [#allocation5], 129
    %v7006 = vld [vmem:[%s7005] ss:$2 sm:$0x1f]
    %s7007 = scalar_lea.vmem [#allocation5], 145
    %v7008 = vld [vmem:[%s7007] ss:$2 sm:$0x1f]
    %v7009 = vmax.f32 %v6970, %v6990
    %v7010 = vmax.f32 %v6972, %v6992
    %v7011 = vmax.f32 %v6974, %v6994
    %v7012 = vmax.f32 %v6976, %v6996
    %v7013 = vmax.f32 %v6978, %v6998
    %v7014 = vmax.f32 %v6980, %v7000
    %v7015 = vmax.f32 %v6982, %v7002
    %v7016 = vmax.f32 %v6984, %v7004
    %v7017 = vmax.f32 %v6986, %v7006
    %v7018 = vmax.f32 %v6988, %v7008
    %v7019 = vld [vmem:[%s4] sm:$0x1]
    %v7021 = vlaneseq
    %v7022 = vshrl.u32 %v7021, 7
    %v7023 = vsub.s32 0, %v7022
    %v7024 = vrot.slane %v7019, %v7023
    %v7026 = vadd.f32 %v7009, %v7024
    %v7027 = vadd.f32 %v7010, %v7024
    %v7028 = vadd.f32 %v7011, %v7024
    %v7029 = vadd.f32 %v7012, %v7024
    %v7030 = vadd.f32 %v7013, %v7024
    %v7031 = vadd.f32 %v7014, %v7024
    %v7032 = vadd.f32 %v7015, %v7024
    %v7033 = vadd.f32 %v7016, %v7024
    %v7034 = vadd.f32 %v7017, %v7024
    %v7035 = vadd.f32 %v7018, %v7024
    %v7036 = vmax.f32 %v7026, 0.0
    %v7037 = vmax.f32 %v7027, 0.0
    %v7038 = vmax.f32 %v7028, 0.0
    %v7039 = vmax.f32 %v7029, 0.0
    %v7040 = vmax.f32 %v7030, 0.0
    %v7041 = vmax.f32 %v7031, 0.0
    %v7042 = vmax.f32 %v7032, 0.0
    %v7043 = vmax.f32 %v7033, 0.0
    %v7044 = vmax.f32 %v7034, 0.0
    %v7045 = vmax.f32 %v7035, 0.0
    %7046 = vst [vmem:[#allocation6] sm:$0xff] 0.0
    %7047 = vst [vmem:[#allocation6 + $0x8] sm:$0xff] 0.0
    %7048 = vst [vmem:[#allocation6 + $0x10] sm:$0xff] 0.0
    %7049 = vst [vmem:[#allocation6 + $0x18] sm:$0xff] 0.0
    %7050 = vst [vmem:[#allocation6 + $0x20] sm:$0xff] 0.0
    %7051 = vst [vmem:[#allocation6 + $0x28] sm:$0xff] 0.0
    %7052 = vst [vmem:[#allocation6 + $0x30] sm:$0x3] 0.0
    %v7056 = vunpack.c.l.s4 1983009808
    %v7057 = vunpack.c.0.s8 %v7056
    %v7058 = vlaneseq
    %v7059 = vshrl.u32 %v7058, 7
    %v7060 = vsub.s32 %v7057, %v7059
    %v7061 = vrot.slane %v7036, %v7060
    %v7063 = vunpack.c.l.s4 1983009808
    %v7064 = vunpack.c.0.s8 %v7063
    %v7065 = vlaneseq
    %v7066 = vshrl.u32 %v7065, 7
    %v7067 = vsub.s32 %v7064, %v7066
    %v7068 = vrot.slane %v7041, %v7067
    %vm7069 = vcmask 1044484
    %v7070 = vsel %vm7069, %v7061, %v7061
    %vm7071 = vcmask 1046534
    %v7072 = vsel %vm7071, %v7061, %v7070
    %v7073 = vrot.slane %v7068, 7
    %vm7074 = vcmask 1041409
    %v7075 = vsel %vm7074, %v7073, %v7072
    %vm7076 = vcmask 1043459
    %v7077 = vsel %vm7076, %v7073, %v7075
    %vm7078 = vcmask 1045509
    %v7079 = vsel %vm7078, %v7073, %v7077
    %vm7080 = vcmask 1047559
    %v7081 = vsel %vm7080, %v7073, %v7079
    %7083 = vst.msk [vmem:[#allocation6] sm:$0x3] %vm6950, %v7081
    %v7084 = vrot.slane %v7061, 1
    %v7085 = vsel %vm7069, %v7084, %v7084
    %v7086 = vsel %vm7071, %v7084, %v7085
    %v7087 = vsel %vm7074, %v7068, %v7086
    %v7088 = vsel %vm7076, %v7068, %v7087
    %v7089 = vsel %vm7078, %v7068, %v7088
    %v7090 = vsel %vm7080, %v7068, %v7089
    %7092 = vst.msk [vmem:[#allocation6 + $0x2] sm:$0x3] %vm6950, %v7090
    %v7093 = vcombine.high %v7061, %v7061
    %v7094 = vcombine.high %v7068, %v7068
    %v7095 = vsel %vm7069, %v7093, %v7093
    %v7096 = vsel %vm7071, %v7093, %v7095
    %v7097 = vrot.slane %v7094, 7
    %v7098 = vsel %vm7074, %v7097, %v7096
    %v7099 = vsel %vm7076, %v7097, %v7098
    %v7100 = vsel %vm7078, %v7097, %v7099
    %v7101 = vsel %vm7080, %v7097, %v7100
    %7103 = vst.msk [vmem:[#allocation6 + $0x4] sm:$0x3] %vm6950, %v7101
    %v7104 = vrot.slane %v7093, 1
    %v7105 = vsel %vm7069, %v7104, %v7104
    %v7106 = vsel %vm7071, %v7104, %v7105
    %v7107 = vsel %vm7074, %v7094, %v7106
    %v7108 = vsel %vm7076, %v7094, %v7107
    %v7109 = vsel %vm7078, %v7094, %v7108
    %v7110 = vsel %vm7080, %v7094, %v7109
    %7112 = vst.msk [vmem:[#allocation6 + $0x6] sm:$0x3] %vm6950, %v7110
    %v7113 = vcombine.high %v7036, %v7036
    %v7115 = vunpack.c.l.s4 1983009808
    %v7116 = vunpack.c.0.s8 %v7115
    %v7117 = vlaneseq
    %v7118 = vshrl.u32 %v7117, 7
    %v7119 = vsub.s32 %v7116, %v7118
    %v7120 = vrot.slane %v7113, %v7119
    %v7121 = vcombine.high %v7041, %v7041
    %v7123 = vunpack.c.l.s4 1983009808
    %v7124 = vunpack.c.0.s8 %v7123
    %v7125 = vlaneseq
    %v7126 = vshrl.u32 %v7125, 7
    %v7127 = vsub.s32 %v7124, %v7126
    %v7128 = vrot.slane %v7121, %v7127
    %v7129 = vsel %vm7069, %v7120, %v7120
    %v7130 = vsel %vm7071, %v7120, %v7129
    %v7131 = vrot.slane %v7128, 7
    %v7132 = vsel %vm7074, %v7131, %v7130
    %v7133 = vsel %vm7076, %v7131, %v7132
    %v7134 = vsel %vm7078, %v7131, %v7133
    %v7135 = vsel %vm7080, %v7131, %v7134
    %7137 = vst.msk [vmem:[#allocation6 + $0x8] sm:$0x3] %vm6950, %v7135
    %v7141 = vunpack.c.l.s4 1983009808
    %v7142 = vunpack.c.0.s8 %v7141
    %v7143 = vlaneseq
    %v7144 = vshrl.u32 %v7143, 7
    %v7145 = vsub.s32 %v7142, %v7144
    %v7146 = vrot.slane %v7037, %v7145
    %v7148 = vunpack.c.l.s4 1983009808
    %v7149 = vunpack.c.0.s8 %v7148
    %v7150 = vlaneseq
    %v7151 = vshrl.u32 %v7150, 7
    %v7152 = vsub.s32 %v7149, %v7151
    %v7153 = vrot.slane %v7042, %v7152
    %v7154 = vsel %vm7069, %v7146, %v7146
    %v7155 = vsel %vm7071, %v7146, %v7154
    %v7156 = vrot.slane %v7153, 7
    %v7157 = vsel %vm7074, %v7156, %v7155
    %v7158 = vsel %vm7076, %v7156, %v7157
    %v7159 = vsel %vm7078, %v7156, %v7158
    %v7160 = vsel %vm7080, %v7156, %v7159
    %7162 = vst.msk [vmem:[#allocation6 + $0xa] sm:$0x3] %vm6950, %v7160
    %v7163 = vrot.slane %v7146, 1
    %v7164 = vsel %vm7069, %v7163, %v7163
    %v7165 = vsel %vm7071, %v7163, %v7164
    %v7166 = vsel %vm7074, %v7153, %v7165
    %v7167 = vsel %vm7076, %v7153, %v7166
    %v7168 = vsel %vm7078, %v7153, %v7167
    %v7169 = vsel %vm7080, %v7153, %v7168
    %7171 = vst.msk [vmem:[#allocation6 + $0xc] sm:$0x3] %vm6950, %v7169
    %v7172 = vcombine.high %v7146, %v7146
    %v7173 = vcombine.high %v7153, %v7153
    %v7174 = vsel %vm7069, %v7172, %v7172
    %v7175 = vsel %vm7071, %v7172, %v7174
    %v7176 = vrot.slane %v7173, 7
    %v7177 = vsel %vm7074, %v7176, %v7175
    %v7178 = vsel %vm7076, %v7176, %v7177
    %v7179 = vsel %vm7078, %v7176, %v7178
    %v7180 = vsel %vm7080, %v7176, %v7179
    %7182 = vst.msk [vmem:[#allocation6 + $0xe] sm:$0x3] %vm6950, %v7180
    %v7183 = vrot.slane %v7172, 1
    %v7184 = vsel %vm7069, %v7183, %v7183
    %v7185 = vsel %vm7071, %v7183, %v7184
    %v7186 = vsel %vm7074, %v7173, %v7185
    %v7187 = vsel %vm7076, %v7173, %v7186
    %v7188 = vsel %vm7078, %v7173, %v7187
    %v7189 = vsel %vm7080, %v7173, %v7188
    %7191 = vst.msk [vmem:[#allocation6 + $0x10] sm:$0x3] %vm6950, %v7189
    %v7192 = vcombine.high %v7037, %v7037
    %v7194 = vunpack.c.l.s4 1983009808
    %v7195 = vunpack.c.0.s8 %v7194
    %v7196 = vlaneseq
    %v7197 = vshrl.u32 %v7196, 7
    %v7198 = vsub.s32 %v7195, %v7197
    %v7199 = vrot.slane %v7192, %v7198
    %v7200 = vcombine.high %v7042, %v7042
    %v7202 = vunpack.c.l.s4 1983009808
    %v7203 = vunpack.c.0.s8 %v7202
    %v7204 = vlaneseq
    %v7205 = vshrl.u32 %v7204, 7
    %v7206 = vsub.s32 %v7203, %v7205
    %v7207 = vrot.slane %v7200, %v7206
    %v7208 = vsel %vm7069, %v7199, %v7199
    %v7209 = vsel %vm7071, %v7199, %v7208
    %v7210 = vrot.slane %v7207, 7
    %v7211 = vsel %vm7074, %v7210, %v7209
    %v7212 = vsel %vm7076, %v7210, %v7211
    %v7213 = vsel %vm7078, %v7210, %v7212
    %v7214 = vsel %vm7080, %v7210, %v7213
    %7216 = vst.msk [vmem:[#allocation6 + $0x12] sm:$0x3] %vm6950, %v7214
    %v7220 = vunpack.c.l.s4 1983009808
    %v7221 = vunpack.c.0.s8 %v7220
    %v7222 = vlaneseq
    %v7223 = vshrl.u32 %v7222, 7
    %v7224 = vsub.s32 %v7221, %v7223
    %v7225 = vrot.slane %v7038, %v7224
    %v7227 = vunpack.c.l.s4 1983009808
    %v7228 = vunpack.c.0.s8 %v7227
    %v7229 = vlaneseq
    %v7230 = vshrl.u32 %v7229, 7
    %v7231 = vsub.s32 %v7228, %v7230
    %v7232 = vrot.slane %v7043, %v7231
    %v7233 = vsel %vm7069, %v7225, %v7225
    %v7234 = vsel %vm7071, %v7225, %v7233
    %v7235 = vrot.slane %v7232, 7
    %v7236 = vsel %vm7074, %v7235, %v7234
    %v7237 = vsel %vm7076, %v7235, %v7236
    %v7238 = vsel %vm7078, %v7235, %v7237
    %v7239 = vsel %vm7080, %v7235, %v7238
    %7241 = vst.msk [vmem:[#allocation6 + $0x14] sm:$0x3] %vm6950, %v7239
    %v7242 = vrot.slane %v7225, 1
    %v7243 = vsel %vm7069, %v7242, %v7242
    %v7244 = vsel %vm7071, %v7242, %v7243
    %v7245 = vsel %vm7074, %v7232, %v7244
    %v7246 = vsel %vm7076, %v7232, %v7245
    %v7247 = vsel %vm7078, %v7232, %v7246
    %v7248 = vsel %vm7080, %v7232, %v7247
    %7250 = vst.msk [vmem:[#allocation6 + $0x16] sm:$0x3] %vm6950, %v7248
    %v7251 = vcombine.high %v7225, %v7225
    %v7252 = vcombine.high %v7232, %v7232
    %v7253 = vsel %vm7069, %v7251, %v7251
    %v7254 = vsel %vm7071, %v7251, %v7253
    %v7255 = vrot.slane %v7252, 7
    %v7256 = vsel %vm7074, %v7255, %v7254
    %v7257 = vsel %vm7076, %v7255, %v7256
    %v7258 = vsel %vm7078, %v7255, %v7257
    %v7259 = vsel %vm7080, %v7255, %v7258
    %7261 = vst.msk [vmem:[#allocation6 + $0x18] sm:$0x3] %vm6950, %v7259
    %v7262 = vrot.slane %v7251, 1
    %v7263 = vsel %vm7069, %v7262, %v7262
    %v7264 = vsel %vm7071, %v7262, %v7263
    %v7265 = vsel %vm7074, %v7252, %v7264
    %v7266 = vsel %vm7076, %v7252, %v7265
    %v7267 = vsel %vm7078, %v7252, %v7266
    %v7268 = vsel %vm7080, %v7252, %v7267
    %7270 = vst.msk [vmem:[#allocation6 + $0x1a] sm:$0x3] %vm6950, %v7268
    %v7271 = vcombine.high %v7038, %v7038
    %v7273 = vunpack.c.l.s4 1983009808
    %v7274 = vunpack.c.0.s8 %v7273
    %v7275 = vlaneseq
    %v7276 = vshrl.u32 %v7275, 7
    %v7277 = vsub.s32 %v7274, %v7276
    %v7278 = vrot.slane %v7271, %v7277
    %v7279 = vcombine.high %v7043, %v7043
    %v7281 = vunpack.c.l.s4 1983009808
    %v7282 = vunpack.c.0.s8 %v7281
    %v7283 = vlaneseq
    %v7284 = vshrl.u32 %v7283, 7
    %v7285 = vsub.s32 %v7282, %v7284
    %v7286 = vrot.slane %v7279, %v7285
    %v7287 = vsel %vm7069, %v7278, %v7278
    %v7288 = vsel %vm7071, %v7278, %v7287
    %v7289 = vrot.slane %v7286, 7
    %v7290 = vsel %vm7074, %v7289, %v7288
    %v7291 = vsel %vm7076, %v7289, %v7290
    %v7292 = vsel %vm7078, %v7289, %v7291
    %v7293 = vsel %vm7080, %v7289, %v7292
    %7295 = vst.msk [vmem:[#allocation6 + $0x1c] sm:$0x3] %vm6950, %v7293
    %v7299 = vunpack.c.l.s4 1983009808
    %v7300 = vunpack.c.0.s8 %v7299
    %v7301 = vlaneseq
    %v7302 = vshrl.u32 %v7301, 7
    %v7303 = vsub.s32 %v7300, %v7302
    %v7304 = vrot.slane %v7039, %v7303
    %v7306 = vunpack.c.l.s4 1983009808
    %v7307 = vunpack.c.0.s8 %v7306
    %v7308 = vlaneseq
    %v7309 = vshrl.u32 %v7308, 7
    %v7310 = vsub.s32 %v7307, %v7309
    %v7311 = vrot.slane %v7044, %v7310
    %v7312 = vsel %vm7069, %v7304, %v7304
    %v7313 = vsel %vm7071, %v7304, %v7312
    %v7314 = vrot.slane %v7311, 7
    %v7315 = vsel %vm7074, %v7314, %v7313
    %v7316 = vsel %vm7076, %v7314, %v7315
    %v7317 = vsel %vm7078, %v7314, %v7316
    %v7318 = vsel %vm7080, %v7314, %v7317
    %7320 = vst.msk [vmem:[#allocation6 + $0x1e] sm:$0x3] %vm6950, %v7318
    %v7321 = vrot.slane %v7304, 1
    %v7322 = vsel %vm7069, %v7321, %v7321
    %v7323 = vsel %vm7071, %v7321, %v7322
    %v7324 = vsel %vm7074, %v7311, %v7323
    %v7325 = vsel %vm7076, %v7311, %v7324
    %v7326 = vsel %vm7078, %v7311, %v7325
    %v7327 = vsel %vm7080, %v7311, %v7326
    %7329 = vst.msk [vmem:[#allocation6 + $0x20] sm:$0x3] %vm6950, %v7327
    %v7330 = vcombine.high %v7304, %v7304
    %v7331 = vcombine.high %v7311, %v7311
    %v7332 = vsel %vm7069, %v7330, %v7330
    %v7333 = vsel %vm7071, %v7330, %v7332
    %v7334 = vrot.slane %v7331, 7
    %v7335 = vsel %vm7074, %v7334, %v7333
    %v7336 = vsel %vm7076, %v7334, %v7335
    %v7337 = vsel %vm7078, %v7334, %v7336
    %v7338 = vsel %vm7080, %v7334, %v7337
    %7340 = vst.msk [vmem:[#allocation6 + $0x22] sm:$0x3] %vm6950, %v7338
    %v7341 = vrot.slane %v7330, 1
    %v7342 = vsel %vm7069, %v7341, %v7341
    %v7343 = vsel %vm7071, %v7341, %v7342
    %v7344 = vsel %vm7074, %v7331, %v7343
    %v7345 = vsel %vm7076, %v7331, %v7344
    %v7346 = vsel %vm7078, %v7331, %v7345
    %v7347 = vsel %vm7080, %v7331, %v7346
    %7349 = vst.msk [vmem:[#allocation6 + $0x24] sm:$0x3] %vm6950, %v7347
    %v7350 = vcombine.high %v7039, %v7039
    %v7352 = vunpack.c.l.s4 1983009808
    %v7353 = vunpack.c.0.s8 %v7352
    %v7354 = vlaneseq
    %v7355 = vshrl.u32 %v7354, 7
    %v7356 = vsub.s32 %v7353, %v7355
    %v7357 = vrot.slane %v7350, %v7356
    %v7358 = vcombine.high %v7044, %v7044
    %v7360 = vunpack.c.l.s4 1983009808
    %v7361 = vunpack.c.0.s8 %v7360
    %v7362 = vlaneseq
    %v7363 = vshrl.u32 %v7362, 7
    %v7364 = vsub.s32 %v7361, %v7363
    %v7365 = vrot.slane %v7358, %v7364
    %v7366 = vsel %vm7069, %v7357, %v7357
    %v7367 = vsel %vm7071, %v7357, %v7366
    %v7368 = vrot.slane %v7365, 7
    %v7369 = vsel %vm7074, %v7368, %v7367
    %v7370 = vsel %vm7076, %v7368, %v7369
    %v7371 = vsel %vm7078, %v7368, %v7370
    %v7372 = vsel %vm7080, %v7368, %v7371
    %7374 = vst.msk [vmem:[#allocation6 + $0x26] sm:$0x3] %vm6950, %v7372
    %v7378 = vunpack.c.l.s4 1983009808
    %v7379 = vunpack.c.0.s8 %v7378
    %v7380 = vlaneseq
    %v7381 = vshrl.u32 %v7380, 7
    %v7382 = vsub.s32 %v7379, %v7381
    %v7383 = vrot.slane %v7040, %v7382
    %v7385 = vunpack.c.l.s4 1983009808
    %v7386 = vunpack.c.0.s8 %v7385
    %v7387 = vlaneseq
    %v7388 = vshrl.u32 %v7387, 7
    %v7389 = vsub.s32 %v7386, %v7388
    %v7390 = vrot.slane %v7045, %v7389
    %v7391 = vsel %vm7069, %v7383, %v7383
    %v7392 = vsel %vm7071, %v7383, %v7391
    %v7393 = vrot.slane %v7390, 7
    %v7394 = vsel %vm7074, %v7393, %v7392
    %v7395 = vsel %vm7076, %v7393, %v7394
    %v7396 = vsel %vm7078, %v7393, %v7395
    %v7397 = vsel %vm7080, %v7393, %v7396
    %7399 = vst.msk [vmem:[#allocation6 + $0x28] sm:$0x3] %vm6950, %v7397
    %v7400 = vrot.slane %v7383, 1
    %v7401 = vsel %vm7069, %v7400, %v7400
    %v7402 = vsel %vm7071, %v7400, %v7401
    %v7403 = vsel %vm7074, %v7390, %v7402
    %v7404 = vsel %vm7076, %v7390, %v7403
    %v7405 = vsel %vm7078, %v7390, %v7404
    %v7406 = vsel %vm7080, %v7390, %v7405
    %7408 = vst.msk [vmem:[#allocation6 + $0x2a] sm:$0x3] %vm6950, %v7406
    %v7409 = vcombine.high %v7383, %v7383
    %v7410 = vcombine.high %v7390, %v7390
    %v7411 = vsel %vm7069, %v7409, %v7409
    %v7412 = vsel %vm7071, %v7409, %v7411
    %v7413 = vrot.slane %v7410, 7
    %v7414 = vsel %vm7074, %v7413, %v7412
    %v7415 = vsel %vm7076, %v7413, %v7414
    %v7416 = vsel %vm7078, %v7413, %v7415
    %v7417 = vsel %vm7080, %v7413, %v7416
    %7419 = vst.msk [vmem:[#allocation6 + $0x2c] sm:$0x3] %vm6950, %v7417
    %v7420 = vrot.slane %v7409, 1
    %v7421 = vsel %vm7069, %v7420, %v7420
    %v7422 = vsel %vm7071, %v7420, %v7421
    %v7423 = vsel %vm7074, %v7410, %v7422
    %v7424 = vsel %vm7076, %v7410, %v7423
    %v7425 = vsel %vm7078, %v7410, %v7424
    %v7426 = vsel %vm7080, %v7410, %v7425
    %7428 = vst.msk [vmem:[#allocation6 + $0x2e] sm:$0x3] %vm6950, %v7426
    %v7429 = vcombine.high %v7040, %v7040
    %v7431 = vunpack.c.l.s4 1983009808
    %v7432 = vunpack.c.0.s8 %v7431
    %v7433 = vlaneseq
    %v7434 = vshrl.u32 %v7433, 7
    %v7435 = vsub.s32 %v7432, %v7434
    %v7436 = vrot.slane %v7429, %v7435
    %v7437 = vcombine.high %v7045, %v7045
    %v7439 = vunpack.c.l.s4 1983009808
    %v7440 = vunpack.c.0.s8 %v7439
    %v7441 = vlaneseq
    %v7442 = vshrl.u32 %v7441, 7
    %v7443 = vsub.s32 %v7440, %v7442
    %v7444 = vrot.slane %v7437, %v7443
    %v7445 = vsel %vm7069, %v7436, %v7436
    %v7446 = vsel %vm7071, %v7436, %v7445
    %v7447 = vrot.slane %v7444, 7
    %v7448 = vsel %vm7074, %v7447, %v7446
    %v7449 = vsel %vm7076, %v7447, %v7448
    %v7450 = vsel %vm7078, %v7447, %v7449
    %v7451 = vsel %vm7080, %v7447, %v7450
    %7453 = vst.msk [vmem:[#allocation6 + $0x30] sm:$0x3] %vm6950, %v7451
    %v7454 = vld [vmem:[#allocation6] sm:$0xff]
    %v7455 = vld [vmem:[#allocation6 + $0x8] sm:$0xff]
    %v7456 = vld [vmem:[#allocation6 + $0x10] sm:$0xff]
    %v7457 = vld [vmem:[#allocation6 + $0x18] sm:$0xff]
    %v7458 = vld [vmem:[#allocation6 + $0x20] sm:$0xff]
    %v7459 = vld [vmem:[#allocation6 + $0x28] sm:$0xff]
    %v7460 = vld [vmem:[#allocation6 + $0x30] sm:$0x3]
    %v7468 = vcombine.high %v7454, %v7454
    %v7470 = vunpack.c.l.s4 1983009808
    %v7471 = vunpack.c.0.s8 %v7470
    %v7472 = vlaneseq
    %v7473 = vshrl.u32 %v7472, 7
    %v7474 = vsub.s32 %v7471, %v7473
    %v7475 = vrot.slane %v7454, %v7474
    %v7477 = vunpack.c.l.s4 1983009808
    %v7478 = vunpack.c.0.s8 %v7477
    %v7479 = vlaneseq
    %v7480 = vshrl.u32 %v7479, 7
    %v7481 = vsub.s32 %v7478, %v7480
    %v7482 = vrot.slane %v7468, %v7481
    %v7483 = vcombine.high %v7475, %v7475
    %v7484 = vcombine.high %v7482, %v7482
    %v7485 = vcombine.high %v7455, %v7455
    %v7487 = vunpack.c.l.s4 1983009808
    %v7488 = vunpack.c.0.s8 %v7487
    %v7489 = vlaneseq
    %v7490 = vshrl.u32 %v7489, 7
    %v7491 = vsub.s32 %v7488, %v7490
    %v7492 = vrot.slane %v7455, %v7491
    %v7494 = vunpack.c.l.s4 1983009808
    %v7495 = vunpack.c.0.s8 %v7494
    %v7496 = vlaneseq
    %v7497 = vshrl.u32 %v7496, 7
    %v7498 = vsub.s32 %v7495, %v7497
    %v7499 = vrot.slane %v7485, %v7498
    %v7500 = vcombine.high %v7492, %v7492
    %v7501 = vcombine.high %v7499, %v7499
    %v7502 = vcombine.high %v7456, %v7456
    %v7504 = vunpack.c.l.s4 1983009808
    %v7505 = vunpack.c.0.s8 %v7504
    %v7506 = vlaneseq
    %v7507 = vshrl.u32 %v7506, 7
    %v7508 = vsub.s32 %v7505, %v7507
    %v7509 = vrot.slane %v7456, %v7508
    %v7511 = vunpack.c.l.s4 1983009808
    %v7512 = vunpack.c.0.s8 %v7511
    %v7513 = vlaneseq
    %v7514 = vshrl.u32 %v7513, 7
    %v7515 = vsub.s32 %v7512, %v7514
    %v7516 = vrot.slane %v7502, %v7515
    %v7517 = vcombine.high %v7509, %v7509
    %v7518 = vcombine.high %v7516, %v7516
    %v7519 = vcombine.high %v7457, %v7457
    %v7521 = vunpack.c.l.s4 1983009808
    %v7522 = vunpack.c.0.s8 %v7521
    %v7523 = vlaneseq
    %v7524 = vshrl.u32 %v7523, 7
    %v7525 = vsub.s32 %v7522, %v7524
    %v7526 = vrot.slane %v7457, %v7525
    %v7528 = vunpack.c.l.s4 1983009808
    %v7529 = vunpack.c.0.s8 %v7528
    %v7530 = vlaneseq
    %v7531 = vshrl.u32 %v7530, 7
    %v7532 = vsub.s32 %v7529, %v7531
    %v7533 = vrot.slane %v7519, %v7532
    %v7534 = vcombine.high %v7526, %v7526
    %v7535 = vcombine.high %v7533, %v7533
    %v7536 = vcombine.high %v7458, %v7458
    %v7538 = vunpack.c.l.s4 1983009808
    %v7539 = vunpack.c.0.s8 %v7538
    %v7540 = vlaneseq
    %v7541 = vshrl.u32 %v7540, 7
    %v7542 = vsub.s32 %v7539, %v7541
    %v7543 = vrot.slane %v7458, %v7542
    %v7545 = vunpack.c.l.s4 1983009808
    %v7546 = vunpack.c.0.s8 %v7545
    %v7547 = vlaneseq
    %v7548 = vshrl.u32 %v7547, 7
    %v7549 = vsub.s32 %v7546, %v7548
    %v7550 = vrot.slane %v7536, %v7549
    %v7551 = vcombine.high %v7543, %v7543
    %v7552 = vcombine.high %v7550, %v7550
    %v7553 = vcombine.high %v7459, %v7459
    %v7555 = vunpack.c.l.s4 1983009808
    %v7556 = vunpack.c.0.s8 %v7555
    %v7557 = vlaneseq
    %v7558 = vshrl.u32 %v7557, 7
    %v7559 = vsub.s32 %v7556, %v7558
    %v7560 = vrot.slane %v7459, %v7559
    %v7562 = vunpack.c.l.s4 1983009808
    %v7563 = vunpack.c.0.s8 %v7562
    %v7564 = vlaneseq
    %v7565 = vshrl.u32 %v7564, 7
    %v7566 = vsub.s32 %v7563, %v7565
    %v7567 = vrot.slane %v7553, %v7566
    %v7568 = vcombine.high %v7560, %v7560
    %v7569 = vcombine.high %v7567, %v7567
    %v7571 = vunpack.c.l.s4 1983009808
    %v7572 = vunpack.c.0.s8 %v7571
    %v7573 = vlaneseq
    %v7574 = vshrl.u32 %v7573, 7
    %v7575 = vsub.s32 %v7572, %v7574
    %v7576 = vrot.slane %v7460, %v7575
    %v7602 = vpack.c.bf16 %v7475, %v7475
    %v7603 = vpack.c.bf16 %v7483, %v7483
    %v7604 = vpack.c.bf16 %v7482, %v7482
    %v7605 = vpack.c.bf16 %v7484, %v7484
    %v7606 = vpack.c.bf16 %v7492, %v7492
    %v7607 = vpack.c.bf16 %v7500, %v7500
    %v7608 = vpack.c.bf16 %v7499, %v7499
    %v7609 = vpack.c.bf16 %v7501, %v7501
    %v7610 = vpack.c.bf16 %v7509, %v7509
    %v7611 = vpack.c.bf16 %v7517, %v7517
    %v7612 = vpack.c.bf16 %v7516, %v7516
    %v7613 = vpack.c.bf16 %v7518, %v7518
    %v7614 = vpack.c.bf16 %v7526, %v7526
    %v7615 = vpack.c.bf16 %v7534, %v7534
    %v7616 = vpack.c.bf16 %v7533, %v7533
    %v7617 = vpack.c.bf16 %v7535, %v7535
    %v7618 = vpack.c.bf16 %v7543, %v7543
    %v7619 = vpack.c.bf16 %v7551, %v7551
    %v7620 = vpack.c.bf16 %v7550, %v7550
    %v7621 = vpack.c.bf16 %v7552, %v7552
    %v7622 = vpack.c.bf16 %v7560, %v7560
    %v7623 = vpack.c.bf16 %v7568, %v7568
    %v7624 = vpack.c.bf16 %v7567, %v7567
    %v7625 = vpack.c.bf16 %v7569, %v7569
    %v7626 = vpack.c.bf16 %v7576, %v7576
    %v7627 = vld [vmem:[%s5] sm:$0xf]
    %v7628 = vld [vmem:[%s5 + $0x4] sm:$0xf]
    %v7629 = vld [vmem:[%s5 + $0x8] sm:$0xf]
    %v7630 = vld [vmem:[%s5 + $0xc] sm:$0xf]
    %v7631 = vld [vmem:[%s5 + $0x10] sm:$0xf]
    %v7632 = vld [vmem:[%s5 + $0x14] sm:$0xf]
    %v7633 = vld [vmem:[%s5 + $0x18] sm:$0xf]
    %v7634 = vld [vmem:[%s5 + $0x1c] sm:$0xf]
    %v7635 = vld [vmem:[%s5 + $0x20] sm:$0xf]
    %v7636 = vld [vmem:[%s5 + $0x24] sm:$0xf]
    %v7637 = vld [vmem:[%s5 + $0x28] sm:$0xf]
    %v7638 = vld [vmem:[%s5 + $0x2c] sm:$0xf]
    %v7639 = vld [vmem:[%s5 + $0x30] sm:$0xf]
    %v7640 = vld [vmem:[%s5 + $0x34] sm:$0xf]
    %v7641 = vld [vmem:[%s5 + $0x38] sm:$0xf]
    %v7642 = vld [vmem:[%s5 + $0x3c] sm:$0xf]
    %v7643 = vld [vmem:[%s5 + $0x40] sm:$0xf]
    %v7644 = vld [vmem:[%s5 + $0x44] sm:$0xf]
    %v7645 = vld [vmem:[%s5 + $0x48] sm:$0xf]
    %v7646 = vld [vmem:[%s5 + $0x4c] sm:$0xf]
    %v7647 = vld [vmem:[%s5 + $0x50] sm:$0xf]
    %v7648 = vld [vmem:[%s5 + $0x54] sm:$0xf]
    %v7649 = vld [vmem:[%s5 + $0x58] sm:$0xf]
    %v7650 = vld [vmem:[%s5 + $0x5c] sm:$0xf]
    %v7651 = vld [vmem:[%s5 + $0x60] sm:$0xf]
    %v7652 = vld [vmem:[%s5 + $0x64] sm:$0xf]
    %v7653 = vld [vmem:[%s5 + $0x68] sm:$0xf]
    %v7654 = vld [vmem:[%s5 + $0x6c] sm:$0xf]
    %v7655 = vld [vmem:[%s5 + $0x70] sm:$0xf]
    %v7656 = vld [vmem:[%s5 + $0x74] sm:$0xf]
    %v7657 = vld [vmem:[%s5 + $0x78] sm:$0xf]
    %v7658 = vld [vmem:[%s5 + $0x7c] sm:$0xf]
    %v7659 = vld [vmem:[%s5 + $0x80] sm:$0xf]
    %v7660 = vld [vmem:[%s5 + $0x84] sm:$0xf]
    %v7661 = vld [vmem:[%s5 + $0x88] sm:$0xf]
    %v7662 = vld [vmem:[%s5 + $0x8c] sm:$0xf]
    %v7663 = vld [vmem:[%s5 + $0x90] sm:$0xf]
    %v7664 = vld [vmem:[%s5 + $0x94] sm:$0xf]
    %v7665 = vld [vmem:[%s5 + $0x98] sm:$0xf]
    %v7666 = vld [vmem:[%s5 + $0x9c] sm:$0xf]
    %v7667 = vld [vmem:[%s5 + $0xa0] sm:$0xf]
    %v7668 = vld [vmem:[%s5 + $0xa4] sm:$0xf]
    %v7669 = vld [vmem:[%s5 + $0xa8] sm:$0xf]
    %v7670 = vld [vmem:[%s5 + $0xac] sm:$0xf]
    %v7671 = vld [vmem:[%s5 + $0xb0] sm:$0xf]
    %v7672 = vld [vmem:[%s5 + $0xb4] sm:$0xf]
    %v7673 = vld [vmem:[%s5 + $0xb8] sm:$0xf]
    %v7674 = vld [vmem:[%s5 + $0xbc] sm:$0xf]
    %v7675 = vld [vmem:[%s5 + $0xc0] sm:$0xf]
    %v7676 = vld [vmem:[%s5 + $0xc4] sm:$0xf]
    %v7677 = vld [vmem:[%s5 + $0xc8] sm:$0xf]
    %v7678 = vld [vmem:[%s5 + $0xcc] sm:$0xf]
    %v7679 = vld [vmem:[%s5 + $0xd0] sm:$0xf]
    %v7680 = vld [vmem:[%s5 + $0xd4] sm:$0xf]
    %v7681 = vld [vmem:[%s5 + $0xd8] sm:$0xf]
    %v7682 = vld [vmem:[%s5 + $0xdc] sm:$0xf]
    %v7683 = vld [vmem:[%s5 + $0xe0] sm:$0xf]
    %v7684 = vld [vmem:[%s5 + $0xe4] sm:$0xf]
    %v7685 = vld [vmem:[%s5 + $0xe8] sm:$0xf]
    %v7686 = vld [vmem:[%s5 + $0xec] sm:$0xf]
    %v7687 = vld [vmem:[%s5 + $0xf0] sm:$0xf]
    %v7688 = vld [vmem:[%s5 + $0xf4] sm:$0xf]
    %v7689 = vld [vmem:[%s5 + $0xf8] sm:$0xf]
    %v7690 = vld [vmem:[%s5 + $0xfc] sm:$0xf]
    %v7691 = vld [vmem:[%s5 + $0x100] sm:$0xf]
    %v7692 = vld [vmem:[%s5 + $0x104] sm:$0xf]
    %v7693 = vld [vmem:[%s5 + $0x108] sm:$0xf]
    %v7694 = vld [vmem:[%s5 + $0x10c] sm:$0xf]
    %v7695 = vld [vmem:[%s5 + $0x110] sm:$0xf]
    %v7696 = vld [vmem:[%s5 + $0x114] sm:$0xf]
    %v7697 = vld [vmem:[%s5 + $0x118] sm:$0xf]
    %v7698 = vld [vmem:[%s5 + $0x11c] sm:$0xf]
    %v7699 = vld [vmem:[%s5 + $0x120] sm:$0xf]
    %v7700 = vld [vmem:[%s5 + $0x124] sm:$0xf]
    %v7701 = vld [vmem:[%s5 + $0x128] sm:$0xf]
    %v7702 = vld [vmem:[%s5 + $0x12c] sm:$0xf]
    %v7703 = vld [vmem:[%s5 + $0x130] sm:$0xf]
    %v7704 = vld [vmem:[%s5 + $0x134] sm:$0xf]
    %v7705 = vld [vmem:[%s5 + $0x138] sm:$0xf]
    %v7706 = vld [vmem:[%s5 + $0x13c] sm:$0xf]
    %v7707 = vld [vmem:[%s5 + $0x140] sm:$0xf]
    %v7708 = vld [vmem:[%s5 + $0x144] sm:$0xf]
    %v7709 = vld [vmem:[%s5 + $0x148] sm:$0xf]
    %v7710 = vld [vmem:[%s5 + $0x14c] sm:$0xf]
    %v7711 = vld [vmem:[%s5 + $0x150] sm:$0xf]
    %v7712 = vld [vmem:[%s5 + $0x154] sm:$0xf]
    %v7713 = vld [vmem:[%s5 + $0x158] sm:$0xf]
    %v7714 = vld [vmem:[%s5 + $0x15c] sm:$0xf]
    %v7715 = vld [vmem:[%s5 + $0x160] sm:$0xf]
    %v7716 = vld [vmem:[%s5 + $0x164] sm:$0xf]
    %v7717 = vld [vmem:[%s5 + $0x168] sm:$0xf]
    %v7718 = vld [vmem:[%s5 + $0x16c] sm:$0xf]
    %v7719 = vld [vmem:[%s5 + $0x170] sm:$0xf]
    %v7720 = vld [vmem:[%s5 + $0x174] sm:$0xf]
    %v7721 = vld [vmem:[%s5 + $0x178] sm:$0xf]
    %v7722 = vld [vmem:[%s5 + $0x17c] sm:$0xf]
    %v7723 = vld [vmem:[%s5 + $0x180] sm:$0xf]
    %v7724 = vld [vmem:[%s5 + $0x184] sm:$0xf]
    %v7725 = vld [vmem:[%s5 + $0x188] sm:$0xf]
    %v7726 = vld [vmem:[%s5 + $0x18c] sm:$0xf]
    %v7727 = vld [vmem:[%s5 + $0x190] sm:$0xf]
    %v7728 = vld [vmem:[%s5 + $0x194] sm:$0xf]
    %v7729 = vld [vmem:[%s5 + $0x198] sm:$0xf]
    %v7730 = vld [vmem:[%s5 + $0x19c] sm:$0xf]
    %v7731 = vld [vmem:[%s5 + $0x1a0] sm:$0xf]
    %v7732 = vld [vmem:[%s5 + $0x1a4] sm:$0xf]
    %v7733 = vld [vmem:[%s5 + $0x1a8] sm:$0xf]
    %v7734 = vld [vmem:[%s5 + $0x1ac] sm:$0xf]
    %v7735 = vld [vmem:[%s5 + $0x1b0] sm:$0xf]
    %v7736 = vld [vmem:[%s5 + $0x1b4] sm:$0xf]
    %v7737 = vld [vmem:[%s5 + $0x1b8] sm:$0xf]
    %v7738 = vld [vmem:[%s5 + $0x1bc] sm:$0xf]
    %v7739 = vld [vmem:[%s5 + $0x1c0] sm:$0xf]
    %v7740 = vld [vmem:[%s5 + $0x1c4] sm:$0xf]
    %v7741 = vld [vmem:[%s5 + $0x1c8] sm:$0xf]
    %v7742 = vld [vmem:[%s5 + $0x1cc] sm:$0xf]
    %v7743 = vld [vmem:[%s5 + $0x1d0] sm:$0xf]
    %v7744 = vld [vmem:[%s5 + $0x1d4] sm:$0xf]
    %v7745 = vld [vmem:[%s5 + $0x1d8] sm:$0xf]
    %v7746 = vld [vmem:[%s5 + $0x1dc] sm:$0xf]
    %v7747 = vld [vmem:[%s5 + $0x1e0] sm:$0xf]
    %v7748 = vld [vmem:[%s5 + $0x1e4] sm:$0xf]
    %v7749 = vld [vmem:[%s5 + $0x1e8] sm:$0xf]
    %v7750 = vld [vmem:[%s5 + $0x1ec] sm:$0xf]
    %v7751 = vld [vmem:[%s5 + $0x1f0] sm:$0xf]
    %v7752 = vld [vmem:[%s5 + $0x1f4] sm:$0xf]
    %v7753 = vld [vmem:[%s5 + $0x1f8] sm:$0xf]
    %v7754 = vld [vmem:[%s5 + $0x1fc] sm:$0xf]
    %v7755 = vld [vmem:[%s5 + $0x200] sm:$0xf]
    %v7756 = vld [vmem:[%s5 + $0x204] sm:$0xf]
    %v7757 = vld [vmem:[%s5 + $0x208] sm:$0xf]
    %v7758 = vld [vmem:[%s5 + $0x20c] sm:$0xf]
    %v7759 = vld [vmem:[%s5 + $0x210] sm:$0xf]
    %v7760 = vld [vmem:[%s5 + $0x214] sm:$0xf]
    %v7761 = vld [vmem:[%s5 + $0x218] sm:$0xf]
    %v7762 = vld [vmem:[%s5 + $0x21c] sm:$0xf]
    %v7763 = vld [vmem:[%s5 + $0x220] sm:$0xf]
    %v7764 = vld [vmem:[%s5 + $0x224] sm:$0xf]
    %v7765 = vld [vmem:[%s5 + $0x228] sm:$0xf]
    %v7766 = vld [vmem:[%s5 + $0x22c] sm:$0xf]
    %v7767 = vld [vmem:[%s5 + $0x230] sm:$0xf]
    %v7768 = vld [vmem:[%s5 + $0x234] sm:$0xf]
    %v7769 = vld [vmem:[%s5 + $0x238] sm:$0xf]
    %v7770 = vld [vmem:[%s5 + $0x23c] sm:$0xf]
    %v7771 = vld [vmem:[%s5 + $0x240] sm:$0xf]
    %v7772 = vld [vmem:[%s5 + $0x244] sm:$0xf]
    %v7773 = vld [vmem:[%s5 + $0x248] sm:$0xf]
    %v7774 = vld [vmem:[%s5 + $0x24c] sm:$0xf]
    %v7775 = vld [vmem:[%s5 + $0x250] sm:$0xf]
    %v7776 = vld [vmem:[%s5 + $0x254] sm:$0xf]
    %v7777 = vld [vmem:[%s5 + $0x258] sm:$0xf]
    %v7778 = vld [vmem:[%s5 + $0x25c] sm:$0xf]
    %v7779 = vld [vmem:[%s5 + $0x260] sm:$0xf]
    %v7780 = vld [vmem:[%s5 + $0x264] sm:$0xf]
    %v7781 = vld [vmem:[%s5 + $0x268] sm:$0xf]
    %v7782 = vld [vmem:[%s5 + $0x26c] sm:$0xf]
    %v7783 = vld [vmem:[%s5 + $0x270] sm:$0xf]
    %v7784 = vld [vmem:[%s5 + $0x274] sm:$0xf]
    %v7785 = vld [vmem:[%s5 + $0x278] sm:$0xf]
    %v7786 = vld [vmem:[%s5 + $0x27c] sm:$0xf]
    %v7787 = vld [vmem:[%s5 + $0x280] sm:$0xf]
    %v7788 = vld [vmem:[%s5 + $0x284] sm:$0xf]
    %v7789 = vld [vmem:[%s5 + $0x288] sm:$0xf]
    %v7790 = vld [vmem:[%s5 + $0x28c] sm:$0xf]
    %v7791 = vld [vmem:[%s5 + $0x290] sm:$0xf]
    %v7792 = vld [vmem:[%s5 + $0x294] sm:$0xf]
    %v7793 = vld [vmem:[%s5 + $0x298] sm:$0xf]
    %v7794 = vld [vmem:[%s5 + $0x29c] sm:$0xf]
    %v7795 = vld [vmem:[%s5 + $0x2a0] sm:$0xf]
    %v7796 = vld [vmem:[%s5 + $0x2a4] sm:$0xf]
    %v7797 = vld [vmem:[%s5 + $0x2a8] sm:$0xf]
    %v7798 = vld [vmem:[%s5 + $0x2ac] sm:$0xf]
    %v7799 = vld [vmem:[%s5 + $0x2b0] sm:$0xf]
    %v7800 = vld [vmem:[%s5 + $0x2b4] sm:$0xf]
    %v7801 = vld [vmem:[%s5 + $0x2b8] sm:$0xf]
    %v7802 = vld [vmem:[%s5 + $0x2bc] sm:$0xf]
    %v7803 = vld [vmem:[%s5 + $0x2c0] sm:$0xf]
    %v7804 = vld [vmem:[%s5 + $0x2c4] sm:$0xf]
    %v7805 = vld [vmem:[%s5 + $0x2c8] sm:$0xf]
    %v7806 = vld [vmem:[%s5 + $0x2cc] sm:$0xf]
    %v7807 = vld [vmem:[%s5 + $0x2d0] sm:$0xf]
    %v7808 = vld [vmem:[%s5 + $0x2d4] sm:$0xf]
    %v7809 = vld [vmem:[%s5 + $0x2d8] sm:$0xf]
    %v7810 = vld [vmem:[%s5 + $0x2dc] sm:$0xf]
    %v7811 = vld [vmem:[%s5 + $0x2e0] sm:$0xf]
    %v7812 = vld [vmem:[%s5 + $0x2e4] sm:$0xf]
    %v7813 = vld [vmem:[%s5 + $0x2e8] sm:$0xf]
    %v7814 = vld [vmem:[%s5 + $0x2ec] sm:$0xf]
    %v7815 = vld [vmem:[%s5 + $0x2f0] sm:$0xf]
    %v7816 = vld [vmem:[%s5 + $0x2f4] sm:$0xf]
    %v7817 = vld [vmem:[%s5 + $0x2f8] sm:$0xf]
    %v7818 = vld [vmem:[%s5 + $0x2fc] sm:$0xf]
    %v7819 = vld [vmem:[%s5 + $0x300] sm:$0xf]
    %v7820 = vld [vmem:[%s5 + $0x304] sm:$0xf]
    %v7821 = vld [vmem:[%s5 + $0x308] sm:$0xf]
    %v7822 = vld [vmem:[%s5 + $0x30c] sm:$0xf]
    %v7823 = vld [vmem:[%s5 + $0x310] sm:$0xf]
    %v7824 = vld [vmem:[%s5 + $0x314] sm:$0xf]
    %v7825 = vld [vmem:[%s5 + $0x318] sm:$0xf]
    %v7826 = vld [vmem:[%s5 + $0x31c] sm:$0xf]
    %v7827 = vld [vmem:[%s5 + $0x320] sm:$0xf]
    %v7828 = vld [vmem:[%s5 + $0x324] sm:$0xf]
    %v7829 = vld [vmem:[%s5 + $0x328] sm:$0xf]
    %v7830 = vld [vmem:[%s5 + $0x32c] sm:$0xf]
    %v7831 = vld [vmem:[%s5 + $0x330] sm:$0xf]
    %v7832 = vld [vmem:[%s5 + $0x334] sm:$0xf]
    %v7833 = vld [vmem:[%s5 + $0x338] sm:$0xf]
    %v7834 = vld [vmem:[%s5 + $0x33c] sm:$0xf]
    %v7835 = vld [vmem:[%s5 + $0x340] sm:$0xf]
    %v7836 = vld [vmem:[%s5 + $0x344] sm:$0xf]
    %v7837 = vld [vmem:[%s5 + $0x348] sm:$0xf]
    %v7838 = vld [vmem:[%s5 + $0x34c] sm:$0xf]
    %v7839 = vld [vmem:[%s5 + $0x350] sm:$0xf]
    %v7840 = vld [vmem:[%s5 + $0x354] sm:$0xf]
    %v7841 = vld [vmem:[%s5 + $0x358] sm:$0xf]
    %v7842 = vld [vmem:[%s5 + $0x35c] sm:$0xf]
    %v7843 = vld [vmem:[%s5 + $0x360] sm:$0xf]
    %v7844 = vld [vmem:[%s5 + $0x364] sm:$0xf]
    %v7845 = vld [vmem:[%s5 + $0x368] sm:$0xf]
    %v7846 = vld [vmem:[%s5 + $0x36c] sm:$0xf]
    %v7847 = vld [vmem:[%s5 + $0x370] sm:$0xf]
    %v7848 = vld [vmem:[%s5 + $0x374] sm:$0xf]
    %v7849 = vld [vmem:[%s5 + $0x378] sm:$0xf]
    %v7850 = vld [vmem:[%s5 + $0x37c] sm:$0xf]
    %v7851 = vld [vmem:[%s5 + $0x380] sm:$0xf]
    %v7852 = vld [vmem:[%s5 + $0x384] sm:$0xf]
    %v7853 = vld [vmem:[%s5 + $0x388] sm:$0xf]
    %v7854 = vld [vmem:[%s5 + $0x38c] sm:$0xf]
    %v7855 = vld [vmem:[%s5 + $0x390] sm:$0xf]
    %v7856 = vld [vmem:[%s5 + $0x394] sm:$0xf]
    %v7857 = vld [vmem:[%s5 + $0x398] sm:$0xf]
    %v7858 = vld [vmem:[%s5 + $0x39c] sm:$0xf]
    %v7859 = vld [vmem:[%s5 + $0x3a0] sm:$0xf]
    %v7860 = vld [vmem:[%s5 + $0x3a4] sm:$0xf]
    %v7861 = vld [vmem:[%s5 + $0x3a8] sm:$0xf]
    %v7862 = vld [vmem:[%s5 + $0x3ac] sm:$0xf]
    %v7863 = vld [vmem:[%s5 + $0x3b0] sm:$0xf]
    %v7864 = vld [vmem:[%s5 + $0x3b4] sm:$0xf]
    %v7865 = vld [vmem:[%s5 + $0x3b8] sm:$0xf]
    %v7866 = vld [vmem:[%s5 + $0x3bc] sm:$0xf]
    %v7867 = vld [vmem:[%s5 + $0x3c0] sm:$0xf]
    %v7868 = vld [vmem:[%s5 + $0x3c4] sm:$0xf]
    %v7869 = vld [vmem:[%s5 + $0x3c8] sm:$0xf]
    %v7870 = vld [vmem:[%s5 + $0x3cc] sm:$0xf]
    %v7871 = vld [vmem:[%s5 + $0x3d0] sm:$0xf]
    %v7872 = vld [vmem:[%s5 + $0x3d4] sm:$0xf]
    %v7873 = vld [vmem:[%s5 + $0x3d8] sm:$0xf]
    %v7874 = vld [vmem:[%s5 + $0x3dc] sm:$0xf]
    %v7875 = vld [vmem:[%s5 + $0x3e0] sm:$0xf]
    %v7876 = vld [vmem:[%s5 + $0x3e4] sm:$0xf]
    %v7877 = vld [vmem:[%s5 + $0x3e8] sm:$0xf]
    %v7878 = vld [vmem:[%s5 + $0x3ec] sm:$0xf]
    %v7879 = vld [vmem:[%s5 + $0x3f0] sm:$0xf]
    %v7880 = vld [vmem:[%s5 + $0x3f4] sm:$0xf]
    %v7881 = vld [vmem:[%s5 + $0x3f8] sm:$0xf]
    %v7882 = vld [vmem:[%s5 + $0x3fc] sm:$0xf]
    %v7883 = vld [vmem:[%s5 + $0x400] sm:$0xf]
    %v7884 = vld [vmem:[%s5 + $0x404] sm:$0xf]
    %v7885 = vld [vmem:[%s5 + $0x408] sm:$0xf]
    %v7886 = vld [vmem:[%s5 + $0x40c] sm:$0xf]
    %v7887 = vld [vmem:[%s5 + $0x410] sm:$0xf]
    %v7888 = vld [vmem:[%s5 + $0x414] sm:$0xf]
    %v7889 = vld [vmem:[%s5 + $0x418] sm:$0xf]
    %v7890 = vld [vmem:[%s5 + $0x41c] sm:$0xf]
    %v7891 = vld [vmem:[%s5 + $0x420] sm:$0xf]
    %v7892 = vld [vmem:[%s5 + $0x424] sm:$0xf]
    %v7893 = vld [vmem:[%s5 + $0x428] sm:$0xf]
    %v7894 = vld [vmem:[%s5 + $0x42c] sm:$0xf]
    %v7895 = vld [vmem:[%s5 + $0x430] sm:$0xf]
    %v7896 = vld [vmem:[%s5 + $0x434] sm:$0xf]
    %v7897 = vld [vmem:[%s5 + $0x438] sm:$0xf]
    %v7898 = vld [vmem:[%s5 + $0x43c] sm:$0xf]
    %v7899 = vld [vmem:[%s5 + $0x440] sm:$0xf]
    %v7900 = vld [vmem:[%s5 + $0x444] sm:$0xf]
    %v7901 = vld [vmem:[%s5 + $0x448] sm:$0xf]
    %v7902 = vld [vmem:[%s5 + $0x44c] sm:$0xf]
    %v7903 = vld [vmem:[%s5 + $0x450] sm:$0xf]
    %v7904 = vld [vmem:[%s5 + $0x454] sm:$0xf]
    %v7905 = vld [vmem:[%s5 + $0x458] sm:$0xf]
    %v7906 = vld [vmem:[%s5 + $0x45c] sm:$0xf]
    %v7907 = vld [vmem:[%s5 + $0x460] sm:$0xf]
    %v7908 = vld [vmem:[%s5 + $0x464] sm:$0xf]
    %v7909 = vld [vmem:[%s5 + $0x468] sm:$0xf]
    %v7910 = vld [vmem:[%s5 + $0x46c] sm:$0xf]
    %v7911 = vld [vmem:[%s5 + $0x470] sm:$0xf]
    %v7912 = vld [vmem:[%s5 + $0x474] sm:$0xf]
    %v7913 = vld [vmem:[%s5 + $0x478] sm:$0xf]
    %v7914 = vld [vmem:[%s5 + $0x47c] sm:$0xf]
    %v7915 = vld [vmem:[%s5 + $0x480] sm:$0xf]
    %v7916 = vld [vmem:[%s5 + $0x484] sm:$0xf]
    %v7917 = vld [vmem:[%s5 + $0x488] sm:$0xf]
    %v7918 = vld [vmem:[%s5 + $0x48c] sm:$0xf]
    %v7919 = vld [vmem:[%s5 + $0x490] sm:$0xf]
    %v7920 = vld [vmem:[%s5 + $0x494] sm:$0xf]
    %v7921 = vld [vmem:[%s5 + $0x498] sm:$0xf]
    %v7922 = vld [vmem:[%s5 + $0x49c] sm:$0xf]
    %v7923 = vld [vmem:[%s5 + $0x4a0] sm:$0xf]
    %v7924 = vld [vmem:[%s5 + $0x4a4] sm:$0xf]
    %v7925 = vld [vmem:[%s5 + $0x4a8] sm:$0xf]
    %v7926 = vld [vmem:[%s5 + $0x4ac] sm:$0xf]
    %v7927 = vld [vmem:[%s5 + $0x4b0] sm:$0xf]
    %v7928 = vld [vmem:[%s5 + $0x4b4] sm:$0xf]
    %v7929 = vld [vmem:[%s5 + $0x4b8] sm:$0xf]
    %v7930 = vld [vmem:[%s5 + $0x4bc] sm:$0xf]
    %v7931 = vld [vmem:[%s5 + $0x4c0] sm:$0xf]
    %v7932 = vld [vmem:[%s5 + $0x4c4] sm:$0xf]
    %v7933 = vld [vmem:[%s5 + $0x4c8] sm:$0xf]
    %v7934 = vld [vmem:[%s5 + $0x4cc] sm:$0xf]
    %v7935 = vld [vmem:[%s5 + $0x4d0] sm:$0xf]
    %v7936 = vld [vmem:[%s5 + $0x4d4] sm:$0xf]
    %v7937 = vld [vmem:[%s5 + $0x4d8] sm:$0xf]
    %v7938 = vld [vmem:[%s5 + $0x4dc] sm:$0xf]
    %v7939 = vld [vmem:[%s5 + $0x4e0] sm:$0xf]
    %v7940 = vld [vmem:[%s5 + $0x4e4] sm:$0xf]
    %v7941 = vld [vmem:[%s5 + $0x4e8] sm:$0xf]
    %v7942 = vld [vmem:[%s5 + $0x4ec] sm:$0xf]
    %v7943 = vld [vmem:[%s5 + $0x4f0] sm:$0xf]
    %v7944 = vld [vmem:[%s5 + $0x4f4] sm:$0xf]
    %v7945 = vld [vmem:[%s5 + $0x4f8] sm:$0xf]
    %v7946 = vld [vmem:[%s5 + $0x4fc] sm:$0xf]
    %v7947 = vld [vmem:[%s5 + $0x500] sm:$0xf]
    %v7948 = vld [vmem:[%s5 + $0x504] sm:$0xf]
    %v7949 = vld [vmem:[%s5 + $0x508] sm:$0xf]
    %v7950 = vld [vmem:[%s5 + $0x50c] sm:$0xf]
    %v7951 = vld [vmem:[%s5 + $0x510] sm:$0xf]
    %v7952 = vld [vmem:[%s5 + $0x514] sm:$0xf]
    %v7953 = vld [vmem:[%s5 + $0x518] sm:$0xf]
    %v7954 = vld [vmem:[%s5 + $0x51c] sm:$0xf]
    %v7955 = vld [vmem:[%s5 + $0x520] sm:$0xf]
    %v7956 = vld [vmem:[%s5 + $0x524] sm:$0xf]
    %v7957 = vld [vmem:[%s5 + $0x528] sm:$0xf]
    %v7958 = vld [vmem:[%s5 + $0x52c] sm:$0xf]
    %v7959 = vld [vmem:[%s5 + $0x530] sm:$0xf]
    %v7960 = vld [vmem:[%s5 + $0x534] sm:$0xf]
    %v7961 = vld [vmem:[%s5 + $0x538] sm:$0xf]
    %v7962 = vld [vmem:[%s5 + $0x53c] sm:$0xf]
    %v7963 = vld [vmem:[%s5 + $0x540] sm:$0xf]
    %v7964 = vld [vmem:[%s5 + $0x544] sm:$0xf]
    %v7965 = vld [vmem:[%s5 + $0x548] sm:$0xf]
    %v7966 = vld [vmem:[%s5 + $0x54c] sm:$0xf]
    %v7967 = vld [vmem:[%s5 + $0x550] sm:$0xf]
    %v7968 = vld [vmem:[%s5 + $0x554] sm:$0xf]
    %v7969 = vld [vmem:[%s5 + $0x558] sm:$0xf]
    %v7970 = vld [vmem:[%s5 + $0x55c] sm:$0xf]
    %v7971 = vld [vmem:[%s5 + $0x560] sm:$0xf]
    %v7972 = vld [vmem:[%s5 + $0x564] sm:$0xf]
    %v7973 = vld [vmem:[%s5 + $0x568] sm:$0xf]
    %v7974 = vld [vmem:[%s5 + $0x56c] sm:$0xf]
    %v7975 = vld [vmem:[%s5 + $0x570] sm:$0xf]
    %v7976 = vld [vmem:[%s5 + $0x574] sm:$0xf]
    %v7977 = vld [vmem:[%s5 + $0x578] sm:$0xf]
    %v7978 = vld [vmem:[%s5 + $0x57c] sm:$0xf]
    %v7979 = vld [vmem:[%s5 + $0x580] sm:$0xf]
    %v7980 = vld [vmem:[%s5 + $0x584] sm:$0xf]
    %v7981 = vld [vmem:[%s5 + $0x588] sm:$0xf]
    %v7982 = vld [vmem:[%s5 + $0x58c] sm:$0xf]
    %v7983 = vld [vmem:[%s5 + $0x590] sm:$0xf]
    %v7984 = vld [vmem:[%s5 + $0x594] sm:$0xf]
    %v7985 = vld [vmem:[%s5 + $0x598] sm:$0xf]
    %v7986 = vld [vmem:[%s5 + $0x59c] sm:$0xf]
    %v7987 = vld [vmem:[%s5 + $0x5a0] sm:$0xf]
    %v7988 = vld [vmem:[%s5 + $0x5a4] sm:$0xf]
    %v7989 = vld [vmem:[%s5 + $0x5a8] sm:$0xf]
    %v7990 = vld [vmem:[%s5 + $0x5ac] sm:$0xf]
    %v7991 = vld [vmem:[%s5 + $0x5b0] sm:$0xf]
    %v7992 = vld [vmem:[%s5 + $0x5b4] sm:$0xf]
    %v7993 = vld [vmem:[%s5 + $0x5b8] sm:$0xf]
    %v7994 = vld [vmem:[%s5 + $0x5bc] sm:$0xf]
    %v7995 = vld [vmem:[%s5 + $0x5c0] sm:$0xf]
    %v7996 = vld [vmem:[%s5 + $0x5c4] sm:$0xf]
    %v7997 = vld [vmem:[%s5 + $0x5c8] sm:$0xf]
    %v7998 = vld [vmem:[%s5 + $0x5cc] sm:$0xf]
    %v7999 = vld [vmem:[%s5 + $0x5d0] sm:$0xf]
    %v8000 = vld [vmem:[%s5 + $0x5d4] sm:$0xf]
    %v8001 = vld [vmem:[%s5 + $0x5d8] sm:$0xf]
    %v8002 = vld [vmem:[%s5 + $0x5dc] sm:$0xf]
    %v8003 = vld [vmem:[%s5 + $0x5e0] sm:$0xf]
    %v8004 = vld [vmem:[%s5 + $0x5e4] sm:$0xf]
    %v8005 = vld [vmem:[%s5 + $0x5e8] sm:$0xf]
    %v8006 = vld [vmem:[%s5 + $0x5ec] sm:$0xf]
    %v8007 = vld [vmem:[%s5 + $0x5f0] sm:$0xf]
    %v8008 = vld [vmem:[%s5 + $0x5f4] sm:$0xf]
    %v8009 = vld [vmem:[%s5 + $0x5f8] sm:$0xf]
    %v8010 = vld [vmem:[%s5 + $0x5fc] sm:$0xf]
    %v8011 = vld [vmem:[%s5 + $0x600] sm:$0xf]
    %v8012 = vld [vmem:[%s5 + $0x604] sm:$0xf]
    %v8013 = vld [vmem:[%s5 + $0x608] sm:$0xf]
    %v8014 = vld [vmem:[%s5 + $0x60c] sm:$0xf]
    %v8015 = vld [vmem:[%s5 + $0x610] sm:$0xf]
    %v8016 = vld [vmem:[%s5 + $0x614] sm:$0xf]
    %v8017 = vld [vmem:[%s5 + $0x618] sm:$0xf]
    %v8018 = vld [vmem:[%s5 + $0x61c] sm:$0xf]
    %v8019 = vld [vmem:[%s5 + $0x620] sm:$0xf]
    %v8020 = vld [vmem:[%s5 + $0x624] sm:$0xf]
    %v8021 = vld [vmem:[%s5 + $0x628] sm:$0xf]
    %v8022 = vld [vmem:[%s5 + $0x62c] sm:$0xf]
    %v8023 = vld [vmem:[%s5 + $0x630] sm:$0xf]
    %v8024 = vld [vmem:[%s5 + $0x634] sm:$0xf]
    %v8025 = vld [vmem:[%s5 + $0x638] sm:$0xf]
    %v8026 = vld [vmem:[%s5 + $0x63c] sm:$0xf]
    %v8027 = vld [vmem:[%s6] sm:$0x1]
    %v8029 = vlaneseq
    %v8030 = vshrl.u32 %v8029, 7
    %v8031 = vsub.s32 0, %v8030
    %v8032 = vrot.slane %v8027, %v8031
    %v8434 = vunpack.c.l.b16 %v7627
    %v8435 = vunpack.c.l.b16 %v7628
    %v8436 = vunpack.c.l.b16 %v7629
    %v8437 = vunpack.c.l.b16 %v7630
    %v8438 = vunpack.c.l.b16 %v7631
    %v8439 = vunpack.c.l.b16 %v7632
    %v8440 = vunpack.c.l.b16 %v7633
    %v8441 = vunpack.c.l.b16 %v7634
    %v8442 = vunpack.c.l.b16 %v7635
    %v8443 = vunpack.c.l.b16 %v7636
    %v8444 = vunpack.c.l.b16 %v7637
    %v8445 = vunpack.c.l.b16 %v7638
    %v8446 = vunpack.c.l.b16 %v7639
    %v8447 = vunpack.c.l.b16 %v7640
    %v8448 = vunpack.c.l.b16 %v7641
    %v8449 = vunpack.c.l.b16 %v7642
    %v8450 = vunpack.c.l.b16 %v7643
    %v8451 = vunpack.c.l.b16 %v7644
    %v8452 = vunpack.c.l.b16 %v7645
    %v8453 = vunpack.c.l.b16 %v7646
    %v8454 = vunpack.c.l.b16 %v7647
    %v8455 = vunpack.c.l.b16 %v7648
    %v8456 = vunpack.c.l.b16 %v7649
    %v8457 = vunpack.c.l.b16 %v7650
    %v8458 = vunpack.c.l.b16 %v7651
    %v8459 = vunpack.c.l.b16 %v7652
    %v8460 = vunpack.c.l.b16 %v7653
    %v8461 = vunpack.c.l.b16 %v7654
    %v8462 = vunpack.c.l.b16 %v7655
    %v8463 = vunpack.c.l.b16 %v7656
    %v8464 = vunpack.c.l.b16 %v7657
    %v8465 = vunpack.c.l.b16 %v7658
    %v8466 = vunpack.c.l.b16 %v7659
    %v8467 = vunpack.c.l.b16 %v7660
    %v8468 = vunpack.c.l.b16 %v7661
    %v8469 = vunpack.c.l.b16 %v7662
    %v8470 = vunpack.c.l.b16 %v7663
    %v8471 = vunpack.c.l.b16 %v7664
    %v8472 = vunpack.c.l.b16 %v7665
    %v8473 = vunpack.c.l.b16 %v7666
    %v8474 = vunpack.c.l.b16 %v7667
    %v8475 = vunpack.c.l.b16 %v7668
    %v8476 = vunpack.c.l.b16 %v7669
    %v8477 = vunpack.c.l.b16 %v7670
    %v8478 = vunpack.c.l.b16 %v7671
    %v8479 = vunpack.c.l.b16 %v7672
    %v8480 = vunpack.c.l.b16 %v7673
    %v8481 = vunpack.c.l.b16 %v7674
    %v8482 = vunpack.c.l.b16 %v7675
    %v8483 = vunpack.c.l.b16 %v7676
    %v8484 = vunpack.c.l.b16 %v7677
    %v8485 = vunpack.c.l.b16 %v7678
    %v8486 = vunpack.c.l.b16 %v7679
    %v8487 = vunpack.c.l.b16 %v7680
    %v8488 = vunpack.c.l.b16 %v7681
    %v8489 = vunpack.c.l.b16 %v7682
    %v8490 = vunpack.c.l.b16 %v7683
    %v8491 = vunpack.c.l.b16 %v7684
    %v8492 = vunpack.c.l.b16 %v7685
    %v8493 = vunpack.c.l.b16 %v7686
    %v8494 = vunpack.c.l.b16 %v7687
    %v8495 = vunpack.c.l.b16 %v7688
    %v8496 = vunpack.c.l.b16 %v7689
    %v8497 = vunpack.c.l.b16 %v7690
    %v8498 = vunpack.c.l.b16 %v7691
    %v8499 = vunpack.c.l.b16 %v7692
    %v8500 = vunpack.c.l.b16 %v7693
    %v8501 = vunpack.c.l.b16 %v7694
    %v8502 = vunpack.c.l.b16 %v7695
    %v8503 = vunpack.c.l.b16 %v7696
    %v8504 = vunpack.c.l.b16 %v7697
    %v8505 = vunpack.c.l.b16 %v7698
    %v8506 = vunpack.c.l.b16 %v7699
    %v8507 = vunpack.c.l.b16 %v7700
    %v8508 = vunpack.c.l.b16 %v7701
    %v8509 = vunpack.c.l.b16 %v7702
    %v8510 = vunpack.c.l.b16 %v7703
    %v8511 = vunpack.c.l.b16 %v7704
    %v8512 = vunpack.c.l.b16 %v7705
    %v8513 = vunpack.c.l.b16 %v7706
    %v8514 = vunpack.c.l.b16 %v7707
    %v8515 = vunpack.c.l.b16 %v7708
    %v8516 = vunpack.c.l.b16 %v7709
    %v8517 = vunpack.c.l.b16 %v7710
    %v8518 = vunpack.c.l.b16 %v7711
    %v8519 = vunpack.c.l.b16 %v7712
    %v8520 = vunpack.c.l.b16 %v7713
    %v8521 = vunpack.c.l.b16 %v7714
    %v8522 = vunpack.c.l.b16 %v7715
    %v8523 = vunpack.c.l.b16 %v7716
    %v8524 = vunpack.c.l.b16 %v7717
    %v8525 = vunpack.c.l.b16 %v7718
    %v8526 = vunpack.c.l.b16 %v7719
    %v8527 = vunpack.c.l.b16 %v7720
    %v8528 = vunpack.c.l.b16 %v7721
    %v8529 = vunpack.c.l.b16 %v7722
    %v8530 = vunpack.c.l.b16 %v7723
    %v8531 = vunpack.c.l.b16 %v7724
    %v8532 = vunpack.c.l.b16 %v7725
    %v8533 = vunpack.c.l.b16 %v7726
    %v8534 = vunpack.c.l.b16 %v7727
    %v8535 = vunpack.c.l.b16 %v7728
    %v8536 = vunpack.c.l.b16 %v7729
    %v8537 = vunpack.c.l.b16 %v7730
    %v8538 = vunpack.c.l.b16 %v7731
    %v8539 = vunpack.c.l.b16 %v7732
    %v8540 = vunpack.c.l.b16 %v7733
    %v8541 = vunpack.c.l.b16 %v7734
    %v8542 = vunpack.c.l.b16 %v7735
    %v8543 = vunpack.c.l.b16 %v7736
    %v8544 = vunpack.c.l.b16 %v7737
    %v8545 = vunpack.c.l.b16 %v7738
    %v8546 = vunpack.c.l.b16 %v7739
    %v8547 = vunpack.c.l.b16 %v7740
    %v8548 = vunpack.c.l.b16 %v7741
    %v8549 = vunpack.c.l.b16 %v7742
    %v8550 = vunpack.c.l.b16 %v7743
    %v8551 = vunpack.c.l.b16 %v7744
    %v8552 = vunpack.c.l.b16 %v7745
    %v8553 = vunpack.c.l.b16 %v7746
    %v8554 = vunpack.c.l.b16 %v7747
    %v8555 = vunpack.c.l.b16 %v7748
    %v8556 = vunpack.c.l.b16 %v7749
    %v8557 = vunpack.c.l.b16 %v7750
    %v8558 = vunpack.c.l.b16 %v7751
    %v8559 = vunpack.c.l.b16 %v7752
    %v8560 = vunpack.c.l.b16 %v7753
    %v8561 = vunpack.c.l.b16 %v7754
    %v8562 = vunpack.c.l.b16 %v7755
    %v8563 = vunpack.c.l.b16 %v7756
    %v8564 = vunpack.c.l.b16 %v7757
    %v8565 = vunpack.c.l.b16 %v7758
    %v8566 = vunpack.c.l.b16 %v7759
    %v8567 = vunpack.c.l.b16 %v7760
    %v8568 = vunpack.c.l.b16 %v7761
    %v8569 = vunpack.c.l.b16 %v7762
    %v8570 = vunpack.c.l.b16 %v7763
    %v8571 = vunpack.c.l.b16 %v7764
    %v8572 = vunpack.c.l.b16 %v7765
    %v8573 = vunpack.c.l.b16 %v7766
    %v8574 = vunpack.c.l.b16 %v7767
    %v8575 = vunpack.c.l.b16 %v7768
    %v8576 = vunpack.c.l.b16 %v7769
    %v8577 = vunpack.c.l.b16 %v7770
    %v8578 = vunpack.c.l.b16 %v7771
    %v8579 = vunpack.c.l.b16 %v7772
    %v8580 = vunpack.c.l.b16 %v7773
    %v8581 = vunpack.c.l.b16 %v7774
    %v8582 = vunpack.c.l.b16 %v7775
    %v8583 = vunpack.c.l.b16 %v7776
    %v8584 = vunpack.c.l.b16 %v7777
    %v8585 = vunpack.c.l.b16 %v7778
    %v8586 = vunpack.c.l.b16 %v7779
    %v8587 = vunpack.c.l.b16 %v7780
    %v8588 = vunpack.c.l.b16 %v7781
    %v8589 = vunpack.c.l.b16 %v7782
    %v8590 = vunpack.c.l.b16 %v7783
    %v8591 = vunpack.c.l.b16 %v7784
    %v8592 = vunpack.c.l.b16 %v7785
    %v8593 = vunpack.c.l.b16 %v7786
    %v8594 = vunpack.c.l.b16 %v7787
    %v8595 = vunpack.c.l.b16 %v7788
    %v8596 = vunpack.c.l.b16 %v7789
    %v8597 = vunpack.c.l.b16 %v7790
    %v8598 = vunpack.c.l.b16 %v7791
    %v8599 = vunpack.c.l.b16 %v7792
    %v8600 = vunpack.c.l.b16 %v7793
    %v8601 = vunpack.c.l.b16 %v7794
    %v8602 = vunpack.c.l.b16 %v7795
    %v8603 = vunpack.c.l.b16 %v7796
    %v8604 = vunpack.c.l.b16 %v7797
    %v8605 = vunpack.c.l.b16 %v7798
    %v8606 = vunpack.c.l.b16 %v7799
    %v8607 = vunpack.c.l.b16 %v7800
    %v8608 = vunpack.c.l.b16 %v7801
    %v8609 = vunpack.c.l.b16 %v7802
    %v8610 = vunpack.c.l.b16 %v7803
    %v8611 = vunpack.c.l.b16 %v7804
    %v8612 = vunpack.c.l.b16 %v7805
    %v8613 = vunpack.c.l.b16 %v7806
    %v8614 = vunpack.c.l.b16 %v7807
    %v8615 = vunpack.c.l.b16 %v7808
    %v8616 = vunpack.c.l.b16 %v7809
    %v8617 = vunpack.c.l.b16 %v7810
    %v8618 = vunpack.c.l.b16 %v7811
    %v8619 = vunpack.c.l.b16 %v7812
    %v8620 = vunpack.c.l.b16 %v7813
    %v8621 = vunpack.c.l.b16 %v7814
    %v8622 = vunpack.c.l.b16 %v7815
    %v8623 = vunpack.c.l.b16 %v7816
    %v8624 = vunpack.c.l.b16 %v7817
    %v8625 = vunpack.c.l.b16 %v7818
    %v8626 = vunpack.c.l.b16 %v7819
    %v8627 = vunpack.c.l.b16 %v7820
    %v8628 = vunpack.c.l.b16 %v7821
    %v8629 = vunpack.c.l.b16 %v7822
    %v8630 = vunpack.c.l.b16 %v7823
    %v8631 = vunpack.c.l.b16 %v7824
    %v8632 = vunpack.c.l.b16 %v7825
    %v8633 = vunpack.c.l.b16 %v7826
    %v8634 = vunpack.c.l.b16 %v7827
    %v8635 = vunpack.c.l.b16 %v7828
    %v8636 = vunpack.c.l.b16 %v7829
    %v8637 = vunpack.c.l.b16 %v7830
    %v8638 = vunpack.c.l.b16 %v7831
    %v8639 = vunpack.c.l.b16 %v7832
    %v8640 = vunpack.c.l.b16 %v7833
    %v8641 = vunpack.c.l.b16 %v7834
    %v8642 = vunpack.c.l.b16 %v7835
    %v8643 = vunpack.c.l.b16 %v7836
    %v8644 = vunpack.c.l.b16 %v7837
    %v8645 = vunpack.c.l.b16 %v7838
    %v8646 = vunpack.c.l.b16 %v7839
    %v8647 = vunpack.c.l.b16 %v7840
    %v8648 = vunpack.c.l.b16 %v7841
    %v8649 = vunpack.c.l.b16 %v7842
    %v8650 = vunpack.c.l.b16 %v7843
    %v8651 = vunpack.c.l.b16 %v7844
    %v8652 = vunpack.c.l.b16 %v7845
    %v8653 = vunpack.c.l.b16 %v7846
    %v8654 = vunpack.c.l.b16 %v7847
    %v8655 = vunpack.c.l.b16 %v7848
    %v8656 = vunpack.c.l.b16 %v7849
    %v8657 = vunpack.c.l.b16 %v7850
    %v8658 = vunpack.c.l.b16 %v7851
    %v8659 = vunpack.c.l.b16 %v7852
    %v8660 = vunpack.c.l.b16 %v7853
    %v8661 = vunpack.c.l.b16 %v7854
    %v8662 = vunpack.c.l.b16 %v7855
    %v8663 = vunpack.c.l.b16 %v7856
    %v8664 = vunpack.c.l.b16 %v7857
    %v8665 = vunpack.c.l.b16 %v7858
    %v8666 = vunpack.c.l.b16 %v7859
    %v8667 = vunpack.c.l.b16 %v7860
    %v8668 = vunpack.c.l.b16 %v7861
    %v8669 = vunpack.c.l.b16 %v7862
    %v8670 = vunpack.c.l.b16 %v7863
    %v8671 = vunpack.c.l.b16 %v7864
    %v8672 = vunpack.c.l.b16 %v7865
    %v8673 = vunpack.c.l.b16 %v7866
    %v8674 = vunpack.c.l.b16 %v7867
    %v8675 = vunpack.c.l.b16 %v7868
    %v8676 = vunpack.c.l.b16 %v7869
    %v8677 = vunpack.c.l.b16 %v7870
    %v8678 = vunpack.c.l.b16 %v7871
    %v8679 = vunpack.c.l.b16 %v7872
    %v8680 = vunpack.c.l.b16 %v7873
    %v8681 = vunpack.c.l.b16 %v7874
    %v8682 = vunpack.c.l.b16 %v7875
    %v8683 = vunpack.c.l.b16 %v7876
    %v8684 = vunpack.c.l.b16 %v7877
    %v8685 = vunpack.c.l.b16 %v7878
    %v8686 = vunpack.c.l.b16 %v7879
    %v8687 = vunpack.c.l.b16 %v7880
    %v8688 = vunpack.c.l.b16 %v7881
    %v8689 = vunpack.c.l.b16 %v7882
    %v8690 = vunpack.c.l.b16 %v7883
    %v8691 = vunpack.c.l.b16 %v7884
    %v8692 = vunpack.c.l.b16 %v7885
    %v8693 = vunpack.c.l.b16 %v7886
    %v8694 = vunpack.c.l.b16 %v7887
    %v8695 = vunpack.c.l.b16 %v7888
    %v8696 = vunpack.c.l.b16 %v7889
    %v8697 = vunpack.c.l.b16 %v7890
    %v8698 = vunpack.c.l.b16 %v7891
    %v8699 = vunpack.c.l.b16 %v7892
    %v8700 = vunpack.c.l.b16 %v7893
    %v8701 = vunpack.c.l.b16 %v7894
    %v8702 = vunpack.c.l.b16 %v7895
    %v8703 = vunpack.c.l.b16 %v7896
    %v8704 = vunpack.c.l.b16 %v7897
    %v8705 = vunpack.c.l.b16 %v7898
    %v8706 = vunpack.c.l.b16 %v7899
    %v8707 = vunpack.c.l.b16 %v7900
    %v8708 = vunpack.c.l.b16 %v7901
    %v8709 = vunpack.c.l.b16 %v7902
    %v8710 = vunpack.c.l.b16 %v7903
    %v8711 = vunpack.c.l.b16 %v7904
    %v8712 = vunpack.c.l.b16 %v7905
    %v8713 = vunpack.c.l.b16 %v7906
    %v8714 = vunpack.c.l.b16 %v7907
    %v8715 = vunpack.c.l.b16 %v7908
    %v8716 = vunpack.c.l.b16 %v7909
    %v8717 = vunpack.c.l.b16 %v7910
    %v8718 = vunpack.c.l.b16 %v7911
    %v8719 = vunpack.c.l.b16 %v7912
    %v8720 = vunpack.c.l.b16 %v7913
    %v8721 = vunpack.c.l.b16 %v7914
    %v8722 = vunpack.c.l.b16 %v7915
    %v8723 = vunpack.c.l.b16 %v7916
    %v8724 = vunpack.c.l.b16 %v7917
    %v8725 = vunpack.c.l.b16 %v7918
    %v8726 = vunpack.c.l.b16 %v7919
    %v8727 = vunpack.c.l.b16 %v7920
    %v8728 = vunpack.c.l.b16 %v7921
    %v8729 = vunpack.c.l.b16 %v7922
    %v8730 = vunpack.c.l.b16 %v7923
    %v8731 = vunpack.c.l.b16 %v7924
    %v8732 = vunpack.c.l.b16 %v7925
    %v8733 = vunpack.c.l.b16 %v7926
    %v8734 = vunpack.c.l.b16 %v7927
    %v8735 = vunpack.c.l.b16 %v7928
    %v8736 = vunpack.c.l.b16 %v7929
    %v8737 = vunpack.c.l.b16 %v7930
    %v8738 = vunpack.c.l.b16 %v7931
    %v8739 = vunpack.c.l.b16 %v7932
    %v8740 = vunpack.c.l.b16 %v7933
    %v8741 = vunpack.c.l.b16 %v7934
    %v8742 = vunpack.c.l.b16 %v7935
    %v8743 = vunpack.c.l.b16 %v7936
    %v8744 = vunpack.c.l.b16 %v7937
    %v8745 = vunpack.c.l.b16 %v7938
    %v8746 = vunpack.c.l.b16 %v7939
    %v8747 = vunpack.c.l.b16 %v7940
    %v8748 = vunpack.c.l.b16 %v7941
    %v8749 = vunpack.c.l.b16 %v7942
    %v8750 = vunpack.c.l.b16 %v7943
    %v8751 = vunpack.c.l.b16 %v7944
    %v8752 = vunpack.c.l.b16 %v7945
    %v8753 = vunpack.c.l.b16 %v7946
    %v8754 = vunpack.c.l.b16 %v7947
    %v8755 = vunpack.c.l.b16 %v7948
    %v8756 = vunpack.c.l.b16 %v7949
    %v8757 = vunpack.c.l.b16 %v7950
    %v8758 = vunpack.c.l.b16 %v7951
    %v8759 = vunpack.c.l.b16 %v7952
    %v8760 = vunpack.c.l.b16 %v7953
    %v8761 = vunpack.c.l.b16 %v7954
    %v8762 = vunpack.c.l.b16 %v7955
    %v8763 = vunpack.c.l.b16 %v7956
    %v8764 = vunpack.c.l.b16 %v7957
    %v8765 = vunpack.c.l.b16 %v7958
    %v8766 = vunpack.c.l.b16 %v7959
    %v8767 = vunpack.c.l.b16 %v7960
    %v8768 = vunpack.c.l.b16 %v7961
    %v8769 = vunpack.c.l.b16 %v7962
    %v8770 = vunpack.c.l.b16 %v7963
    %v8771 = vunpack.c.l.b16 %v7964
    %v8772 = vunpack.c.l.b16 %v7965
    %v8773 = vunpack.c.l.b16 %v7966
    %v8774 = vunpack.c.l.b16 %v7967
    %v8775 = vunpack.c.l.b16 %v7968
    %v8776 = vunpack.c.l.b16 %v7969
    %v8777 = vunpack.c.l.b16 %v7970
    %v8778 = vunpack.c.l.b16 %v7971
    %v8779 = vunpack.c.l.b16 %v7972
    %v8780 = vunpack.c.l.b16 %v7973
    %v8781 = vunpack.c.l.b16 %v7974
    %v8782 = vunpack.c.l.b16 %v7975
    %v8783 = vunpack.c.l.b16 %v7976
    %v8784 = vunpack.c.l.b16 %v7977
    %v8785 = vunpack.c.l.b16 %v7978
    %v8786 = vunpack.c.l.b16 %v7979
    %v8787 = vunpack.c.l.b16 %v7980
    %v8788 = vunpack.c.l.b16 %v7981
    %v8789 = vunpack.c.l.b16 %v7982
    %v8790 = vunpack.c.l.b16 %v7983
    %v8791 = vunpack.c.l.b16 %v7984
    %v8792 = vunpack.c.l.b16 %v7985
    %v8793 = vunpack.c.l.b16 %v7986
    %v8794 = vunpack.c.l.b16 %v7987
    %v8795 = vunpack.c.l.b16 %v7988
    %v8796 = vunpack.c.l.b16 %v7989
    %v8797 = vunpack.c.l.b16 %v7990
    %v8798 = vunpack.c.l.b16 %v7991
    %v8799 = vunpack.c.l.b16 %v7992
    %v8800 = vunpack.c.l.b16 %v7993
    %v8801 = vunpack.c.l.b16 %v7994
    %v8802 = vunpack.c.l.b16 %v7995
    %v8803 = vunpack.c.l.b16 %v7996
    %v8804 = vunpack.c.l.b16 %v7997
    %v8805 = vunpack.c.l.b16 %v7998
    %v8806 = vunpack.c.l.b16 %v7999
    %v8807 = vunpack.c.l.b16 %v8000
    %v8808 = vunpack.c.l.b16 %v8001
    %v8809 = vunpack.c.l.b16 %v8002
    %v8810 = vunpack.c.l.b16 %v8003
    %v8811 = vunpack.c.l.b16 %v8004
    %v8812 = vunpack.c.l.b16 %v8005
    %v8813 = vunpack.c.l.b16 %v8006
    %v8814 = vunpack.c.l.b16 %v8007
    %v8815 = vunpack.c.l.b16 %v8008
    %v8816 = vunpack.c.l.b16 %v8009
    %v8817 = vunpack.c.l.b16 %v8010
    %v8818 = vunpack.c.l.b16 %v8011
    %v8819 = vunpack.c.l.b16 %v8012
    %v8820 = vunpack.c.l.b16 %v8013
    %v8821 = vunpack.c.l.b16 %v8014
    %v8822 = vunpack.c.l.b16 %v8015
    %v8823 = vunpack.c.l.b16 %v8016
    %v8824 = vunpack.c.l.b16 %v8017
    %v8825 = vunpack.c.l.b16 %v8018
    %v8826 = vunpack.c.l.b16 %v8019
    %v8827 = vunpack.c.l.b16 %v8020
    %v8828 = vunpack.c.l.b16 %v8021
    %v8829 = vunpack.c.l.b16 %v8022
    %v8830 = vunpack.c.l.b16 %v8023
    %v8831 = vunpack.c.l.b16 %v8024
    %v8832 = vunpack.c.l.b16 %v8025
    %v8833 = vunpack.c.l.b16 %v8026
    %v8834 = vpack.c.b16 %v8435, %v8434
    %v8835 = vpack.c.b16 %v8437, %v8436
    %v8836 = vpack.c.b16 %v8439, %v8438
    %v8837 = vpack.c.b16 %v8441, %v8440
    %v8838 = vpack.c.b16 %v8443, %v8442
    %v8839 = vpack.c.b16 %v8445, %v8444
    %v8840 = vpack.c.b16 %v8447, %v8446
    %v8841 = vpack.c.b16 %v8449, %v8448
    %v8842 = vpack.c.b16 %v8451, %v8450
    %v8843 = vpack.c.b16 %v8453, %v8452
    %v8844 = vpack.c.b16 %v8455, %v8454
    %v8845 = vpack.c.b16 %v8457, %v8456
    %v8846 = vpack.c.b16 %v8459, %v8458
    %v8847 = vpack.c.b16 %v8461, %v8460
    %v8848 = vpack.c.b16 %v8463, %v8462
    %v8849 = vpack.c.b16 %v8465, %v8464
    %v8850 = vpack.c.b16 %v8467, %v8466
    %v8851 = vpack.c.b16 %v8469, %v8468
    %v8852 = vpack.c.b16 %v8471, %v8470
    %v8853 = vpack.c.b16 %v8473, %v8472
    %v8854 = vpack.c.b16 %v8475, %v8474
    %v8855 = vpack.c.b16 %v8477, %v8476
    %v8856 = vpack.c.b16 %v8479, %v8478
    %v8857 = vpack.c.b16 %v8481, %v8480
    %v8858 = vpack.c.b16 %v8483, %v8482
    %v8859 = vpack.c.b16 %v8485, %v8484
    %v8860 = vpack.c.b16 %v8487, %v8486
    %v8861 = vpack.c.b16 %v8489, %v8488
    %v8862 = vpack.c.b16 %v8491, %v8490
    %v8863 = vpack.c.b16 %v8493, %v8492
    %v8864 = vpack.c.b16 %v8495, %v8494
    %v8865 = vpack.c.b16 %v8497, %v8496
    %v8866 = vpack.c.b16 %v8499, %v8498
    %v8867 = vpack.c.b16 %v8501, %v8500
    %v8868 = vpack.c.b16 %v8503, %v8502
    %v8869 = vpack.c.b16 %v8505, %v8504
    %v8870 = vpack.c.b16 %v8507, %v8506
    %v8871 = vpack.c.b16 %v8509, %v8508
    %v8872 = vpack.c.b16 %v8511, %v8510
    %v8873 = vpack.c.b16 %v8513, %v8512
    %v8874 = vpack.c.b16 %v8515, %v8514
    %v8875 = vpack.c.b16 %v8517, %v8516
    %v8876 = vpack.c.b16 %v8519, %v8518
    %v8877 = vpack.c.b16 %v8521, %v8520
    %v8878 = vpack.c.b16 %v8523, %v8522
    %v8879 = vpack.c.b16 %v8525, %v8524
    %v8880 = vpack.c.b16 %v8527, %v8526
    %v8881 = vpack.c.b16 %v8529, %v8528
    %v8882 = vpack.c.b16 %v8531, %v8530
    %v8883 = vpack.c.b16 %v8533, %v8532
    %v8884 = vpack.c.b16 %v8535, %v8534
    %v8885 = vpack.c.b16 %v8537, %v8536
    %v8886 = vpack.c.b16 %v8539, %v8538
    %v8887 = vpack.c.b16 %v8541, %v8540
    %v8888 = vpack.c.b16 %v8543, %v8542
    %v8889 = vpack.c.b16 %v8545, %v8544
    %v8890 = vpack.c.b16 %v8547, %v8546
    %v8891 = vpack.c.b16 %v8549, %v8548
    %v8892 = vpack.c.b16 %v8551, %v8550
    %v8893 = vpack.c.b16 %v8553, %v8552
    %v8894 = vpack.c.b16 %v8555, %v8554
    %v8895 = vpack.c.b16 %v8557, %v8556
    %v8896 = vpack.c.b16 %v8559, %v8558
    %v8897 = vpack.c.b16 %v8561, %v8560
    %v8898 = vpack.c.b16 %v8563, %v8562
    %v8899 = vpack.c.b16 %v8565, %v8564
    %v8900 = vpack.c.b16 %v8567, %v8566
    %v8901 = vpack.c.b16 %v8569, %v8568
    %v8902 = vpack.c.b16 %v8571, %v8570
    %v8903 = vpack.c.b16 %v8573, %v8572
    %v8904 = vpack.c.b16 %v8575, %v8574
    %v8905 = vpack.c.b16 %v8577, %v8576
    %v8906 = vpack.c.b16 %v8579, %v8578
    %v8907 = vpack.c.b16 %v8581, %v8580
    %v8908 = vpack.c.b16 %v8583, %v8582
    %v8909 = vpack.c.b16 %v8585, %v8584
    %v8910 = vpack.c.b16 %v8587, %v8586
    %v8911 = vpack.c.b16 %v8589, %v8588
    %v8912 = vpack.c.b16 %v8591, %v8590
    %v8913 = vpack.c.b16 %v8593, %v8592
    %v8914 = vpack.c.b16 %v8595, %v8594
    %v8915 = vpack.c.b16 %v8597, %v8596
    %v8916 = vpack.c.b16 %v8599, %v8598
    %v8917 = vpack.c.b16 %v8601, %v8600
    %v8918 = vpack.c.b16 %v8603, %v8602
    %v8919 = vpack.c.b16 %v8605, %v8604
    %v8920 = vpack.c.b16 %v8607, %v8606
    %v8921 = vpack.c.b16 %v8609, %v8608
    %v8922 = vpack.c.b16 %v8611, %v8610
    %v8923 = vpack.c.b16 %v8613, %v8612
    %v8924 = vpack.c.b16 %v8615, %v8614
    %v8925 = vpack.c.b16 %v8617, %v8616
    %v8926 = vpack.c.b16 %v8619, %v8618
    %v8927 = vpack.c.b16 %v8621, %v8620
    %v8928 = vpack.c.b16 %v8623, %v8622
    %v8929 = vpack.c.b16 %v8625, %v8624
    %v8930 = vpack.c.b16 %v8627, %v8626
    %v8931 = vpack.c.b16 %v8629, %v8628
    %v8932 = vpack.c.b16 %v8631, %v8630
    %v8933 = vpack.c.b16 %v8633, %v8632
    %v8934 = vpack.c.b16 %v8635, %v8634
    %v8935 = vpack.c.b16 %v8637, %v8636
    %v8936 = vpack.c.b16 %v8639, %v8638
    %v8937 = vpack.c.b16 %v8641, %v8640
    %v8938 = vpack.c.b16 %v8643, %v8642
    %v8939 = vpack.c.b16 %v8645, %v8644
    %v8940 = vpack.c.b16 %v8647, %v8646
    %v8941 = vpack.c.b16 %v8649, %v8648
    %v8942 = vpack.c.b16 %v8651, %v8650
    %v8943 = vpack.c.b16 %v8653, %v8652
    %v8944 = vpack.c.b16 %v8655, %v8654
    %v8945 = vpack.c.b16 %v8657, %v8656
    %v8946 = vpack.c.b16 %v8659, %v8658
    %v8947 = vpack.c.b16 %v8661, %v8660
    %v8948 = vpack.c.b16 %v8663, %v8662
    %v8949 = vpack.c.b16 %v8665, %v8664
    %v8950 = vpack.c.b16 %v8667, %v8666
    %v8951 = vpack.c.b16 %v8669, %v8668
    %v8952 = vpack.c.b16 %v8671, %v8670
    %v8953 = vpack.c.b16 %v8673, %v8672
    %v8954 = vpack.c.b16 %v8675, %v8674
    %v8955 = vpack.c.b16 %v8677, %v8676
    %v8956 = vpack.c.b16 %v8679, %v8678
    %v8957 = vpack.c.b16 %v8681, %v8680
    %v8958 = vpack.c.b16 %v8683, %v8682
    %v8959 = vpack.c.b16 %v8685, %v8684
    %v8960 = vpack.c.b16 %v8687, %v8686
    %v8961 = vpack.c.b16 %v8689, %v8688
    %v8962 = vpack.c.b16 %v8691, %v8690
    %v8963 = vpack.c.b16 %v8693, %v8692
    %v8964 = vpack.c.b16 %v8695, %v8694
    %v8965 = vpack.c.b16 %v8697, %v8696
    %v8966 = vpack.c.b16 %v8699, %v8698
    %v8967 = vpack.c.b16 %v8701, %v8700
    %v8968 = vpack.c.b16 %v8703, %v8702
    %v8969 = vpack.c.b16 %v8705, %v8704
    %v8970 = vpack.c.b16 %v8707, %v8706
    %v8971 = vpack.c.b16 %v8709, %v8708
    %v8972 = vpack.c.b16 %v8711, %v8710
    %v8973 = vpack.c.b16 %v8713, %v8712
    %v8974 = vpack.c.b16 %v8715, %v8714
    %v8975 = vpack.c.b16 %v8717, %v8716
    %v8976 = vpack.c.b16 %v8719, %v8718
    %v8977 = vpack.c.b16 %v8721, %v8720
    %v8978 = vpack.c.b16 %v8723, %v8722
    %v8979 = vpack.c.b16 %v8725, %v8724
    %v8980 = vpack.c.b16 %v8727, %v8726
    %v8981 = vpack.c.b16 %v8729, %v8728
    %v8982 = vpack.c.b16 %v8731, %v8730
    %v8983 = vpack.c.b16 %v8733, %v8732
    %v8984 = vpack.c.b16 %v8735, %v8734
    %v8985 = vpack.c.b16 %v8737, %v8736
    %v8986 = vpack.c.b16 %v8739, %v8738
    %v8987 = vpack.c.b16 %v8741, %v8740
    %v8988 = vpack.c.b16 %v8743, %v8742
    %v8989 = vpack.c.b16 %v8745, %v8744
    %v8990 = vpack.c.b16 %v8747, %v8746
    %v8991 = vpack.c.b16 %v8749, %v8748
    %v8992 = vpack.c.b16 %v8751, %v8750
    %v8993 = vpack.c.b16 %v8753, %v8752
    %v8994 = vpack.c.b16 %v8755, %v8754
    %v8995 = vpack.c.b16 %v8757, %v8756
    %v8996 = vpack.c.b16 %v8759, %v8758
    %v8997 = vpack.c.b16 %v8761, %v8760
    %v8998 = vpack.c.b16 %v8763, %v8762
    %v8999 = vpack.c.b16 %v8765, %v8764
    %v9000 = vpack.c.b16 %v8767, %v8766
    %v9001 = vpack.c.b16 %v8769, %v8768
    %v9002 = vpack.c.b16 %v8771, %v8770
    %v9003 = vpack.c.b16 %v8773, %v8772
    %v9004 = vpack.c.b16 %v8775, %v8774
    %v9005 = vpack.c.b16 %v8777, %v8776
    %v9006 = vpack.c.b16 %v8779, %v8778
    %v9007 = vpack.c.b16 %v8781, %v8780
    %v9008 = vpack.c.b16 %v8783, %v8782
    %v9009 = vpack.c.b16 %v8785, %v8784
    %v9010 = vpack.c.b16 %v8787, %v8786
    %v9011 = vpack.c.b16 %v8789, %v8788
    %v9012 = vpack.c.b16 %v8791, %v8790
    %v9013 = vpack.c.b16 %v8793, %v8792
    %v9014 = vpack.c.b16 %v8795, %v8794
    %v9015 = vpack.c.b16 %v8797, %v8796
    %v9016 = vpack.c.b16 %v8799, %v8798
    %v9017 = vpack.c.b16 %v8801, %v8800
    %v9018 = vpack.c.b16 %v8803, %v8802
    %v9019 = vpack.c.b16 %v8805, %v8804
    %v9020 = vpack.c.b16 %v8807, %v8806
    %v9021 = vpack.c.b16 %v8809, %v8808
    %v9022 = vpack.c.b16 %v8811, %v8810
    %v9023 = vpack.c.b16 %v8813, %v8812
    %v9024 = vpack.c.b16 %v8815, %v8814
    %v9025 = vpack.c.b16 %v8817, %v8816
    %v9026 = vpack.c.b16 %v8819, %v8818
    %v9027 = vpack.c.b16 %v8821, %v8820
    %v9028 = vpack.c.b16 %v8823, %v8822
    %v9029 = vpack.c.b16 %v8825, %v8824
    %v9030 = vpack.c.b16 %v8827, %v8826
    %v9031 = vpack.c.b16 %v8829, %v8828
    %v9032 = vpack.c.b16 %v8831, %v8830
    %v9033 = vpack.c.b16 %v8833, %v8832
    %9234 = vmatprep.subr.bf16.mxu0 0
    %9235 = vmatpush1.bf16.msra.mxu0 %v8841
    %9236 = vmatprep.subr.bf16.mxu0 0
    %9237 = vmatpush1.bf16.msra.mxu0 %v8840
    %9238 = vmatprep.subr.bf16.mxu0 0
    %9239 = vmatpush1.bf16.msra.mxu0 %v8839
    %9240 = vmatprep.subr.bf16.mxu0 0
    %9241 = vmatpush1.bf16.msra.mxu0 %v8838
    %9242 = vmatprep.subr.bf16.mxu0 0
    %9243 = vmatpush1.bf16.msra.mxu0 %v8837
    %9244 = vmatprep.subr.bf16.mxu0 0
    %9245 = vmatpush1.bf16.msra.mxu0 %v8836
    %9246 = vmatprep.subr.bf16.mxu0 0
    %9247 = vmatpush1.bf16.msra.mxu0 %v8835
    %9248 = vmatprep.subr.bf16.mxu0 0
    %9249 = vmatpush1.bf16.msra.mxu0 %v8834
    %9250 = vmatprep.subr.bf16.mxu0 0
    %9251 = vmatpush2.bf16.msra.mxu0 %v8849
    %9252 = vmatprep.subr.bf16.mxu0 0
    %9253 = vmatpush2.bf16.msra.mxu0 %v8848
    %9254 = vmatprep.subr.bf16.mxu0 0
    %9255 = vmatpush2.bf16.msra.mxu0 %v8847
    %9256 = vmatprep.subr.bf16.mxu0 0
    %9257 = vmatpush2.bf16.msra.mxu0 %v8846
    %9258 = vmatprep.subr.bf16.mxu0 0
    %9259 = vmatpush2.bf16.msra.mxu0 %v8845
    %9260 = vmatprep.subr.bf16.mxu0 0
    %9261 = vmatpush2.bf16.msra.mxu0 %v8844
    %9262 = vmatprep.subr.bf16.mxu0 0
    %9263 = vmatpush2.bf16.msra.mxu0 %v8843
    %9264 = vmatprep.subr.bf16.mxu0 0
    %9265 = vmatpush2.bf16.msra.mxu0 %v8842
    %9266 = vmatprep.mubr.bf16.mxu0 %v7603
    %9267 = vmatmul.mubr.bf16.gmra.mxu0 %v7602
    %v9268 = vpop.f32.mrf.mxu0
    %v9269 = vadd.f32 %v8032, %v9268
    %v9270 = vpop.f32.mrf.mxu0
    %v9271 = vpop.f32.mrf.mxu0
    %v9272 = vpop.f32.mrf.mxu0
    %9273 = vdwg.mxu0
    %9274 = vmatprep.subr.bf16.mxu0 0
    %9275 = vmatpush1.bf16.msra.mxu0 %v8857
    %9276 = vmatprep.subr.bf16.mxu0 0
    %9277 = vmatpush1.bf16.msra.mxu0 %v8856
    %9278 = vmatprep.subr.bf16.mxu0 0
    %9279 = vmatpush1.bf16.msra.mxu0 %v8855
    %9280 = vmatprep.subr.bf16.mxu0 0
    %9281 = vmatpush1.bf16.msra.mxu0 %v8854
    %9282 = vmatprep.subr.bf16.mxu0 0
    %9283 = vmatpush1.bf16.msra.mxu0 %v8853
    %9284 = vmatprep.subr.bf16.mxu0 0
    %9285 = vmatpush1.bf16.msra.mxu0 %v8852
    %9286 = vmatprep.subr.bf16.mxu0 0
    %9287 = vmatpush1.bf16.msra.mxu0 %v8851
    %9288 = vmatprep.subr.bf16.mxu0 0
    %9289 = vmatpush1.bf16.msra.mxu0 %v8850
    %9290 = vmatprep.subr.bf16.mxu0 0
    %9291 = vmatpush2.bf16.msra.mxu0 %v8865
    %9292 = vmatprep.subr.bf16.mxu0 0
    %9293 = vmatpush2.bf16.msra.mxu0 %v8864
    %9294 = vmatprep.subr.bf16.mxu0 0
    %9295 = vmatpush2.bf16.msra.mxu0 %v8863
    %9296 = vmatprep.subr.bf16.mxu0 0
    %9297 = vmatpush2.bf16.msra.mxu0 %v8862
    %9298 = vmatprep.subr.bf16.mxu0 0
    %9299 = vmatpush2.bf16.msra.mxu0 %v8861
    %9300 = vmatprep.subr.bf16.mxu0 0
    %9301 = vmatpush2.bf16.msra.mxu0 %v8860
    %9302 = vmatprep.subr.bf16.mxu0 0
    %9303 = vmatpush2.bf16.msra.mxu0 %v8859
    %9304 = vmatprep.subr.bf16.mxu0 0
    %9305 = vmatpush2.bf16.msra.mxu0 %v8858
    %9306 = vmatprep.mubr.bf16.mxu0 %v7605
    %9307 = vmatmul.mubr.bf16.gmra.mxu0 %v7604
    %v9308 = vpop.f32.mrf.mxu0
    %v9309 = vadd.f32 %v9269, %v9308
    %v9310 = vpop.f32.mrf.mxu0
    %v9311 = vpop.f32.mrf.mxu0
    %v9312 = vpop.f32.mrf.mxu0
    %9313 = vdwg.mxu0
    %9314 = vmatprep.subr.bf16.mxu0 0
    %9315 = vmatpush1.bf16.msra.mxu0 %v8873
    %9316 = vmatprep.subr.bf16.mxu0 0
    %9317 = vmatpush1.bf16.msra.mxu0 %v8872
    %9318 = vmatprep.subr.bf16.mxu0 0
    %9319 = vmatpush1.bf16.msra.mxu0 %v8871
    %9320 = vmatprep.subr.bf16.mxu0 0
    %9321 = vmatpush1.bf16.msra.mxu0 %v8870
    %9322 = vmatprep.subr.bf16.mxu0 0
    %9323 = vmatpush1.bf16.msra.mxu0 %v8869
    %9324 = vmatprep.subr.bf16.mxu0 0
    %9325 = vmatpush1.bf16.msra.mxu0 %v8868
    %9326 = vmatprep.subr.bf16.mxu0 0
    %9327 = vmatpush1.bf16.msra.mxu0 %v8867
    %9328 = vmatprep.subr.bf16.mxu0 0
    %9329 = vmatpush1.bf16.msra.mxu0 %v8866
    %9330 = vmatprep.subr.bf16.mxu0 0
    %9331 = vmatpush2.bf16.msra.mxu0 %v8881
    %9332 = vmatprep.subr.bf16.mxu0 0
    %9333 = vmatpush2.bf16.msra.mxu0 %v8880
    %9334 = vmatprep.subr.bf16.mxu0 0
    %9335 = vmatpush2.bf16.msra.mxu0 %v8879
    %9336 = vmatprep.subr.bf16.mxu0 0
    %9337 = vmatpush2.bf16.msra.mxu0 %v8878
    %9338 = vmatprep.subr.bf16.mxu0 0
    %9339 = vmatpush2.bf16.msra.mxu0 %v8877
    %9340 = vmatprep.subr.bf16.mxu0 0
    %9341 = vmatpush2.bf16.msra.mxu0 %v8876
    %9342 = vmatprep.subr.bf16.mxu0 0
    %9343 = vmatpush2.bf16.msra.mxu0 %v8875
    %9344 = vmatprep.subr.bf16.mxu0 0
    %9345 = vmatpush2.bf16.msra.mxu0 %v8874
    %9346 = vmatprep.mubr.bf16.mxu0 %v7607
    %9347 = vmatmul.mubr.bf16.gmra.mxu0 %v7606
    %v9348 = vpop.f32.mrf.mxu0
    %v9349 = vadd.f32 %v9309, %v9348
    %v9350 = vpop.f32.mrf.mxu0
    %v9351 = vpop.f32.mrf.mxu0
    %v9352 = vpop.f32.mrf.mxu0
    %9353 = vdwg.mxu0
    %9354 = vmatprep.subr.bf16.mxu0 0
    %9355 = vmatpush1.bf16.msra.mxu0 %v8889
    %9356 = vmatprep.subr.bf16.mxu0 0
    %9357 = vmatpush1.bf16.msra.mxu0 %v8888
    %9358 = vmatprep.subr.bf16.mxu0 0
    %9359 = vmatpush1.bf16.msra.mxu0 %v8887
    %9360 = vmatprep.subr.bf16.mxu0 0
    %9361 = vmatpush1.bf16.msra.mxu0 %v8886
    %9362 = vmatprep.subr.bf16.mxu0 0
    %9363 = vmatpush1.bf16.msra.mxu0 %v8885
    %9364 = vmatprep.subr.bf16.mxu0 0
    %9365 = vmatpush1.bf16.msra.mxu0 %v8884
    %9366 = vmatprep.subr.bf16.mxu0 0
    %9367 = vmatpush1.bf16.msra.mxu0 %v8883
    %9368 = vmatprep.subr.bf16.mxu0 0
    %9369 = vmatpush1.bf16.msra.mxu0 %v8882
    %9370 = vmatprep.subr.bf16.mxu0 0
    %9371 = vmatpush2.bf16.msra.mxu0 %v8897
    %9372 = vmatprep.subr.bf16.mxu0 0
    %9373 = vmatpush2.bf16.msra.mxu0 %v8896
    %9374 = vmatprep.subr.bf16.mxu0 0
    %9375 = vmatpush2.bf16.msra.mxu0 %v8895
    %9376 = vmatprep.subr.bf16.mxu0 0
    %9377 = vmatpush2.bf16.msra.mxu0 %v8894
    %9378 = vmatprep.subr.bf16.mxu0 0
    %9379 = vmatpush2.bf16.msra.mxu0 %v8893
    %9380 = vmatprep.subr.bf16.mxu0 0
    %9381 = vmatpush2.bf16.msra.mxu0 %v8892
    %9382 = vmatprep.subr.bf16.mxu0 0
    %9383 = vmatpush2.bf16.msra.mxu0 %v8891
    %9384 = vmatprep.subr.bf16.mxu0 0
    %9385 = vmatpush2.bf16.msra.mxu0 %v8890
    %9386 = vmatprep.mubr.bf16.mxu0 %v7609
    %9387 = vmatmul.mubr.bf16.gmra.mxu0 %v7608
    %v9388 = vpop.f32.mrf.mxu0
    %v9389 = vadd.f32 %v9349, %v9388
    %v9390 = vpop.f32.mrf.mxu0
    %v9391 = vpop.f32.mrf.mxu0
    %v9392 = vpop.f32.mrf.mxu0
    %9393 = vdwg.mxu0
    %9394 = vmatprep.subr.bf16.mxu0 0
    %9395 = vmatpush1.bf16.msra.mxu0 %v8905
    %9396 = vmatprep.subr.bf16.mxu0 0
    %9397 = vmatpush1.bf16.msra.mxu0 %v8904
    %9398 = vmatprep.subr.bf16.mxu0 0
    %9399 = vmatpush1.bf16.msra.mxu0 %v8903
    %9400 = vmatprep.subr.bf16.mxu0 0
    %9401 = vmatpush1.bf16.msra.mxu0 %v8902
    %9402 = vmatprep.subr.bf16.mxu0 0
    %9403 = vmatpush1.bf16.msra.mxu0 %v8901
    %9404 = vmatprep.subr.bf16.mxu0 0
    %9405 = vmatpush1.bf16.msra.mxu0 %v8900
    %9406 = vmatprep.subr.bf16.mxu0 0
    %9407 = vmatpush1.bf16.msra.mxu0 %v8899
    %9408 = vmatprep.subr.bf16.mxu0 0
    %9409 = vmatpush1.bf16.msra.mxu0 %v8898
    %9410 = vmatprep.subr.bf16.mxu0 0
    %9411 = vmatpush2.bf16.msra.mxu0 %v8913
    %9412 = vmatprep.subr.bf16.mxu0 0
    %9413 = vmatpush2.bf16.msra.mxu0 %v8912
    %9414 = vmatprep.subr.bf16.mxu0 0
    %9415 = vmatpush2.bf16.msra.mxu0 %v8911
    %9416 = vmatprep.subr.bf16.mxu0 0
    %9417 = vmatpush2.bf16.msra.mxu0 %v8910
    %9418 = vmatprep.subr.bf16.mxu0 0
    %9419 = vmatpush2.bf16.msra.mxu0 %v8909
    %9420 = vmatprep.subr.bf16.mxu0 0
    %9421 = vmatpush2.bf16.msra.mxu0 %v8908
    %9422 = vmatprep.subr.bf16.mxu0 0
    %9423 = vmatpush2.bf16.msra.mxu0 %v8907
    %9424 = vmatprep.subr.bf16.mxu0 0
    %9425 = vmatpush2.bf16.msra.mxu0 %v8906
    %9426 = vmatprep.mubr.bf16.mxu0 %v7611
    %9427 = vmatmul.mubr.bf16.gmra.mxu0 %v7610
    %v9428 = vpop.f32.mrf.mxu0
    %v9429 = vadd.f32 %v9389, %v9428
    %v9430 = vpop.f32.mrf.mxu0
    %v9431 = vpop.f32.mrf.mxu0
    %v9432 = vpop.f32.mrf.mxu0
    %9433 = vdwg.mxu0
    %9434 = vmatprep.subr.bf16.mxu0 0
    %9435 = vmatpush1.bf16.msra.mxu0 %v8921
    %9436 = vmatprep.subr.bf16.mxu0 0
    %9437 = vmatpush1.bf16.msra.mxu0 %v8920
    %9438 = vmatprep.subr.bf16.mxu0 0
    %9439 = vmatpush1.bf16.msra.mxu0 %v8919
    %9440 = vmatprep.subr.bf16.mxu0 0
    %9441 = vmatpush1.bf16.msra.mxu0 %v8918
    %9442 = vmatprep.subr.bf16.mxu0 0
    %9443 = vmatpush1.bf16.msra.mxu0 %v8917
    %9444 = vmatprep.subr.bf16.mxu0 0
    %9445 = vmatpush1.bf16.msra.mxu0 %v8916
    %9446 = vmatprep.subr.bf16.mxu0 0
    %9447 = vmatpush1.bf16.msra.mxu0 %v8915
    %9448 = vmatprep.subr.bf16.mxu0 0
    %9449 = vmatpush1.bf16.msra.mxu0 %v8914
    %9450 = vmatprep.subr.bf16.mxu0 0
    %9451 = vmatpush2.bf16.msra.mxu0 %v8929
    %9452 = vmatprep.subr.bf16.mxu0 0
    %9453 = vmatpush2.bf16.msra.mxu0 %v8928
    %9454 = vmatprep.subr.bf16.mxu0 0
    %9455 = vmatpush2.bf16.msra.mxu0 %v8927
    %9456 = vmatprep.subr.bf16.mxu0 0
    %9457 = vmatpush2.bf16.msra.mxu0 %v8926
    %9458 = vmatprep.subr.bf16.mxu0 0
    %9459 = vmatpush2.bf16.msra.mxu0 %v8925
    %9460 = vmatprep.subr.bf16.mxu0 0
    %9461 = vmatpush2.bf16.msra.mxu0 %v8924
    %9462 = vmatprep.subr.bf16.mxu0 0
    %9463 = vmatpush2.bf16.msra.mxu0 %v8923
    %9464 = vmatprep.subr.bf16.mxu0 0
    %9465 = vmatpush2.bf16.msra.mxu0 %v8922
    %9466 = vmatprep.mubr.bf16.mxu0 %v7613
    %9467 = vmatmul.mubr.bf16.gmra.mxu0 %v7612
    %v9468 = vpop.f32.mrf.mxu0
    %v9469 = vadd.f32 %v9429, %v9468
    %v9470 = vpop.f32.mrf.mxu0
    %v9471 = vpop.f32.mrf.mxu0
    %v9472 = vpop.f32.mrf.mxu0
    %9473 = vdwg.mxu0
    %9474 = vmatprep.subr.bf16.mxu0 0
    %9475 = vmatpush1.bf16.msra.mxu0 %v8937
    %9476 = vmatprep.subr.bf16.mxu0 0
    %9477 = vmatpush1.bf16.msra.mxu0 %v8936
    %9478 = vmatprep.subr.bf16.mxu0 0
    %9479 = vmatpush1.bf16.msra.mxu0 %v8935
    %9480 = vmatprep.subr.bf16.mxu0 0
    %9481 = vmatpush1.bf16.msra.mxu0 %v8934
    %9482 = vmatprep.subr.bf16.mxu0 0
    %9483 = vmatpush1.bf16.msra.mxu0 %v8933
    %9484 = vmatprep.subr.bf16.mxu0 0
    %9485 = vmatpush1.bf16.msra.mxu0 %v8932
    %9486 = vmatprep.subr.bf16.mxu0 0
    %9487 = vmatpush1.bf16.msra.mxu0 %v8931
    %9488 = vmatprep.subr.bf16.mxu0 0
    %9489 = vmatpush1.bf16.msra.mxu0 %v8930
    %9490 = vmatprep.subr.bf16.mxu0 0
    %9491 = vmatpush2.bf16.msra.mxu0 %v8945
    %9492 = vmatprep.subr.bf16.mxu0 0
    %9493 = vmatpush2.bf16.msra.mxu0 %v8944
    %9494 = vmatprep.subr.bf16.mxu0 0
    %9495 = vmatpush2.bf16.msra.mxu0 %v8943
    %9496 = vmatprep.subr.bf16.mxu0 0
    %9497 = vmatpush2.bf16.msra.mxu0 %v8942
    %9498 = vmatprep.subr.bf16.mxu0 0
    %9499 = vmatpush2.bf16.msra.mxu0 %v8941
    %9500 = vmatprep.subr.bf16.mxu0 0
    %9501 = vmatpush2.bf16.msra.mxu0 %v8940
    %9502 = vmatprep.subr.bf16.mxu0 0
    %9503 = vmatpush2.bf16.msra.mxu0 %v8939
    %9504 = vmatprep.subr.bf16.mxu0 0
    %9505 = vmatpush2.bf16.msra.mxu0 %v8938
    %9506 = vmatprep.mubr.bf16.mxu0 %v7615
    %9507 = vmatmul.mubr.bf16.gmra.mxu0 %v7614
    %v9508 = vpop.f32.mrf.mxu0
    %v9509 = vadd.f32 %v9469, %v9508
    %v9510 = vpop.f32.mrf.mxu0
    %v9511 = vpop.f32.mrf.mxu0
    %v9512 = vpop.f32.mrf.mxu0
    %9513 = vdwg.mxu0
    %9514 = vmatprep.subr.bf16.mxu0 0
    %9515 = vmatpush1.bf16.msra.mxu0 %v8953
    %9516 = vmatprep.subr.bf16.mxu0 0
    %9517 = vmatpush1.bf16.msra.mxu0 %v8952
    %9518 = vmatprep.subr.bf16.mxu0 0
    %9519 = vmatpush1.bf16.msra.mxu0 %v8951
    %9520 = vmatprep.subr.bf16.mxu0 0
    %9521 = vmatpush1.bf16.msra.mxu0 %v8950
    %9522 = vmatprep.subr.bf16.mxu0 0
    %9523 = vmatpush1.bf16.msra.mxu0 %v8949
    %9524 = vmatprep.subr.bf16.mxu0 0
    %9525 = vmatpush1.bf16.msra.mxu0 %v8948
    %9526 = vmatprep.subr.bf16.mxu0 0
    %9527 = vmatpush1.bf16.msra.mxu0 %v8947
    %9528 = vmatprep.subr.bf16.mxu0 0
    %9529 = vmatpush1.bf16.msra.mxu0 %v8946
    %9530 = vmatprep.subr.bf16.mxu0 0
    %9531 = vmatpush2.bf16.msra.mxu0 %v8961
    %9532 = vmatprep.subr.bf16.mxu0 0
    %9533 = vmatpush2.bf16.msra.mxu0 %v8960
    %9534 = vmatprep.subr.bf16.mxu0 0
    %9535 = vmatpush2.bf16.msra.mxu0 %v8959
    %9536 = vmatprep.subr.bf16.mxu0 0
    %9537 = vmatpush2.bf16.msra.mxu0 %v8958
    %9538 = vmatprep.subr.bf16.mxu0 0
    %9539 = vmatpush2.bf16.msra.mxu0 %v8957
    %9540 = vmatprep.subr.bf16.mxu0 0
    %9541 = vmatpush2.bf16.msra.mxu0 %v8956
    %9542 = vmatprep.subr.bf16.mxu0 0
    %9543 = vmatpush2.bf16.msra.mxu0 %v8955
    %9544 = vmatprep.subr.bf16.mxu0 0
    %9545 = vmatpush2.bf16.msra.mxu0 %v8954
    %9546 = vmatprep.mubr.bf16.mxu0 %v7617
    %9547 = vmatmul.mubr.bf16.gmra.mxu0 %v7616
    %v9548 = vpop.f32.mrf.mxu0
    %v9549 = vadd.f32 %v9509, %v9548
    %v9550 = vpop.f32.mrf.mxu0
    %v9551 = vpop.f32.mrf.mxu0
    %v9552 = vpop.f32.mrf.mxu0
    %9553 = vdwg.mxu0
    %9554 = vmatprep.subr.bf16.mxu0 0
    %9555 = vmatpush1.bf16.msra.mxu0 %v8969
    %9556 = vmatprep.subr.bf16.mxu0 0
    %9557 = vmatpush1.bf16.msra.mxu0 %v8968
    %9558 = vmatprep.subr.bf16.mxu0 0
    %9559 = vmatpush1.bf16.msra.mxu0 %v8967
    %9560 = vmatprep.subr.bf16.mxu0 0
    %9561 = vmatpush1.bf16.msra.mxu0 %v8966
    %9562 = vmatprep.subr.bf16.mxu0 0
    %9563 = vmatpush1.bf16.msra.mxu0 %v8965
    %9564 = vmatprep.subr.bf16.mxu0 0
    %9565 = vmatpush1.bf16.msra.mxu0 %v8964
    %9566 = vmatprep.subr.bf16.mxu0 0
    %9567 = vmatpush1.bf16.msra.mxu0 %v8963
    %9568 = vmatprep.subr.bf16.mxu0 0
    %9569 = vmatpush1.bf16.msra.mxu0 %v8962
    %9570 = vmatprep.subr.bf16.mxu0 0
    %9571 = vmatpush2.bf16.msra.mxu0 %v8977
    %9572 = vmatprep.subr.bf16.mxu0 0
    %9573 = vmatpush2.bf16.msra.mxu0 %v8976
    %9574 = vmatprep.subr.bf16.mxu0 0
    %9575 = vmatpush2.bf16.msra.mxu0 %v8975
    %9576 = vmatprep.subr.bf16.mxu0 0
    %9577 = vmatpush2.bf16.msra.mxu0 %v8974
    %9578 = vmatprep.subr.bf16.mxu0 0
    %9579 = vmatpush2.bf16.msra.mxu0 %v8973
    %9580 = vmatprep.subr.bf16.mxu0 0
    %9581 = vmatpush2.bf16.msra.mxu0 %v8972
    %9582 = vmatprep.subr.bf16.mxu0 0
    %9583 = vmatpush2.bf16.msra.mxu0 %v8971
    %9584 = vmatprep.subr.bf16.mxu0 0
    %9585 = vmatpush2.bf16.msra.mxu0 %v8970
    %9586 = vmatprep.mubr.bf16.mxu0 %v7619
    %9587 = vmatmul.mubr.bf16.gmra.mxu0 %v7618
    %v9588 = vpop.f32.mrf.mxu0
    %v9589 = vadd.f32 %v9549, %v9588
    %v9590 = vpop.f32.mrf.mxu0
    %v9591 = vpop.f32.mrf.mxu0
    %v9592 = vpop.f32.mrf.mxu0
    %9593 = vdwg.mxu0
    %9594 = vmatprep.subr.bf16.mxu0 0
    %9595 = vmatpush1.bf16.msra.mxu0 %v8985
    %9596 = vmatprep.subr.bf16.mxu0 0
    %9597 = vmatpush1.bf16.msra.mxu0 %v8984
    %9598 = vmatprep.subr.bf16.mxu0 0
    %9599 = vmatpush1.bf16.msra.mxu0 %v8983
    %9600 = vmatprep.subr.bf16.mxu0 0
    %9601 = vmatpush1.bf16.msra.mxu0 %v8982
    %9602 = vmatprep.subr.bf16.mxu0 0
    %9603 = vmatpush1.bf16.msra.mxu0 %v8981
    %9604 = vmatprep.subr.bf16.mxu0 0
    %9605 = vmatpush1.bf16.msra.mxu0 %v8980
    %9606 = vmatprep.subr.bf16.mxu0 0
    %9607 = vmatpush1.bf16.msra.mxu0 %v8979
    %9608 = vmatprep.subr.bf16.mxu0 0
    %9609 = vmatpush1.bf16.msra.mxu0 %v8978
    %9610 = vmatprep.subr.bf16.mxu0 0
    %9611 = vmatpush2.bf16.msra.mxu0 %v8993
    %9612 = vmatprep.subr.bf16.mxu0 0
    %9613 = vmatpush2.bf16.msra.mxu0 %v8992
    %9614 = vmatprep.subr.bf16.mxu0 0
    %9615 = vmatpush2.bf16.msra.mxu0 %v8991
    %9616 = vmatprep.subr.bf16.mxu0 0
    %9617 = vmatpush2.bf16.msra.mxu0 %v8990
    %9618 = vmatprep.subr.bf16.mxu0 0
    %9619 = vmatpush2.bf16.msra.mxu0 %v8989
    %9620 = vmatprep.subr.bf16.mxu0 0
    %9621 = vmatpush2.bf16.msra.mxu0 %v8988
    %9622 = vmatprep.subr.bf16.mxu0 0
    %9623 = vmatpush2.bf16.msra.mxu0 %v8987
    %9624 = vmatprep.subr.bf16.mxu0 0
    %9625 = vmatpush2.bf16.msra.mxu0 %v8986
    %9626 = vmatprep.mubr.bf16.mxu0 %v7621
    %9627 = vmatmul.mubr.bf16.gmra.mxu0 %v7620
    %v9628 = vpop.f32.mrf.mxu0
    %v9629 = vadd.f32 %v9589, %v9628
    %v9630 = vpop.f32.mrf.mxu0
    %v9631 = vpop.f32.mrf.mxu0
    %v9632 = vpop.f32.mrf.mxu0
    %9633 = vdwg.mxu0
    %9634 = vmatprep.subr.bf16.mxu0 0
    %9635 = vmatpush1.bf16.msra.mxu0 %v9001
    %9636 = vmatprep.subr.bf16.mxu0 0
    %9637 = vmatpush1.bf16.msra.mxu0 %v9000
    %9638 = vmatprep.subr.bf16.mxu0 0
    %9639 = vmatpush1.bf16.msra.mxu0 %v8999
    %9640 = vmatprep.subr.bf16.mxu0 0
    %9641 = vmatpush1.bf16.msra.mxu0 %v8998
    %9642 = vmatprep.subr.bf16.mxu0 0
    %9643 = vmatpush1.bf16.msra.mxu0 %v8997
    %9644 = vmatprep.subr.bf16.mxu0 0
    %9645 = vmatpush1.bf16.msra.mxu0 %v8996
    %9646 = vmatprep.subr.bf16.mxu0 0
    %9647 = vmatpush1.bf16.msra.mxu0 %v8995
    %9648 = vmatprep.subr.bf16.mxu0 0
    %9649 = vmatpush1.bf16.msra.mxu0 %v8994
    %9650 = vmatprep.subr.bf16.mxu0 0
    %9651 = vmatpush2.bf16.msra.mxu0 %v9009
    %9652 = vmatprep.subr.bf16.mxu0 0
    %9653 = vmatpush2.bf16.msra.mxu0 %v9008
    %9654 = vmatprep.subr.bf16.mxu0 0
    %9655 = vmatpush2.bf16.msra.mxu0 %v9007
    %9656 = vmatprep.subr.bf16.mxu0 0
    %9657 = vmatpush2.bf16.msra.mxu0 %v9006
    %9658 = vmatprep.subr.bf16.mxu0 0
    %9659 = vmatpush2.bf16.msra.mxu0 %v9005
    %9660 = vmatprep.subr.bf16.mxu0 0
    %9661 = vmatpush2.bf16.msra.mxu0 %v9004
    %9662 = vmatprep.subr.bf16.mxu0 0
    %9663 = vmatpush2.bf16.msra.mxu0 %v9003
    %9664 = vmatprep.subr.bf16.mxu0 0
    %9665 = vmatpush2.bf16.msra.mxu0 %v9002
    %9666 = vmatprep.mubr.bf16.mxu0 %v7623
    %9667 = vmatmul.mubr.bf16.gmra.mxu0 %v7622
    %v9668 = vpop.f32.mrf.mxu0
    %v9669 = vadd.f32 %v9629, %v9668
    %v9670 = vpop.f32.mrf.mxu0
    %v9671 = vpop.f32.mrf.mxu0
    %v9672 = vpop.f32.mrf.mxu0
    %9673 = vdwg.mxu0
    %9674 = vmatprep.subr.bf16.mxu0 0
    %9675 = vmatpush1.bf16.msra.mxu0 %v9017
    %9676 = vmatprep.subr.bf16.mxu0 0
    %9677 = vmatpush1.bf16.msra.mxu0 %v9016
    %9678 = vmatprep.subr.bf16.mxu0 0
    %9679 = vmatpush1.bf16.msra.mxu0 %v9015
    %9680 = vmatprep.subr.bf16.mxu0 0
    %9681 = vmatpush1.bf16.msra.mxu0 %v9014
    %9682 = vmatprep.subr.bf16.mxu0 0
    %9683 = vmatpush1.bf16.msra.mxu0 %v9013
    %9684 = vmatprep.subr.bf16.mxu0 0
    %9685 = vmatpush1.bf16.msra.mxu0 %v9012
    %9686 = vmatprep.subr.bf16.mxu0 0
    %9687 = vmatpush1.bf16.msra.mxu0 %v9011
    %9688 = vmatprep.subr.bf16.mxu0 0
    %9689 = vmatpush1.bf16.msra.mxu0 %v9010
    %9690 = vmatprep.subr.bf16.mxu0 0
    %9691 = vmatpush2.bf16.msra.mxu0 %v9025
    %9692 = vmatprep.subr.bf16.mxu0 0
    %9693 = vmatpush2.bf16.msra.mxu0 %v9024
    %9694 = vmatprep.subr.bf16.mxu0 0
    %9695 = vmatpush2.bf16.msra.mxu0 %v9023
    %9696 = vmatprep.subr.bf16.mxu0 0
    %9697 = vmatpush2.bf16.msra.mxu0 %v9022
    %9698 = vmatprep.subr.bf16.mxu0 0
    %9699 = vmatpush2.bf16.msra.mxu0 %v9021
    %9700 = vmatprep.subr.bf16.mxu0 0
    %9701 = vmatpush2.bf16.msra.mxu0 %v9020
    %9702 = vmatprep.subr.bf16.mxu0 0
    %9703 = vmatpush2.bf16.msra.mxu0 %v9019
    %9704 = vmatprep.subr.bf16.mxu0 0
    %9705 = vmatpush2.bf16.msra.mxu0 %v9018
    %9706 = vmatprep.mubr.bf16.mxu0 %v7625
    %9707 = vmatmul.mubr.bf16.gmra.mxu0 %v7624
    %v9708 = vpop.f32.mrf.mxu0
    %v9709 = vadd.f32 %v9669, %v9708
    %v9710 = vpop.f32.mrf.mxu0
    %v9711 = vpop.f32.mrf.mxu0
    %v9712 = vpop.f32.mrf.mxu0
    %9713 = vdwg.mxu0
    %9714 = vmatprep.subr.bf16.mxu0 0
    %9715 = vmatpush1.bf16.msra.mxu0 %v9033
    %9716 = vmatprep.subr.bf16.mxu0 0
    %9717 = vmatpush1.bf16.msra.mxu0 %v9032
    %9718 = vmatprep.subr.bf16.mxu0 0
    %9719 = vmatpush1.bf16.msra.mxu0 %v9031
    %9720 = vmatprep.subr.bf16.mxu0 0
    %9721 = vmatpush1.bf16.msra.mxu0 %v9030
    %9722 = vmatprep.subr.bf16.mxu0 0
    %9723 = vmatpush1.bf16.msra.mxu0 %v9029
    %9724 = vmatprep.subr.bf16.mxu0 0
    %9725 = vmatpush1.bf16.msra.mxu0 %v9028
    %9726 = vmatprep.subr.bf16.mxu0 0
    %9727 = vmatpush1.bf16.msra.mxu0 %v9027
    %9728 = vmatprep.subr.bf16.mxu0 0
    %9729 = vmatpush1.bf16.msra.mxu0 %v9026
    %9730 = vmatprep.subr.bf16.mxu0 0
    %9731 = vmatpush2.bf16.msra.mxu0 0
    %9732 = vmatprep.subr.bf16.mxu0 0
    %9733 = vmatpush2.bf16.msra.mxu0 0
    %9734 = vmatprep.subr.bf16.mxu0 0
    %9735 = vmatpush2.bf16.msra.mxu0 0
    %9736 = vmatprep.subr.bf16.mxu0 0
    %9737 = vmatpush2.bf16.msra.mxu0 0
    %9738 = vmatprep.subr.bf16.mxu0 0
    %9739 = vmatpush2.bf16.msra.mxu0 0
    %9740 = vmatprep.subr.bf16.mxu0 0
    %9741 = vmatpush2.bf16.msra.mxu0 0
    %9742 = vmatprep.subr.bf16.mxu0 0
    %9743 = vmatpush2.bf16.msra.mxu0 0
    %9744 = vmatprep.subr.bf16.mxu0 0
    %9745 = vmatpush2.bf16.msra.mxu0 0
    %9746 = vmatprep.mubr.bf16.mxu0 0
    %9747 = vmatmul.mubr.bf16.gmra.mxu0 %v7626
    %v9748 = vpop.f32.mrf.mxu0
    %v9749 = vadd.f32 %v9709, %v9748
    %v9750 = vpop.f32.mrf.mxu0
    %v9751 = vpop.f32.mrf.mxu0
    %v9752 = vpop.f32.mrf.mxu0
    %9753 = vdwg.mxu0
    %v9754 = vmax.f32 %v9749, 0.0
    %v9755 = vpack.c.bf16 %v9754, %v9754
    %v9756 = vld [vmem:[%s7] sm:$0xf]
    %v9757 = vld [vmem:[%s7 + $0x4] sm:$0xf]
    %v9758 = vld [vmem:[%s7 + $0x8] sm:$0xf]
    %v9759 = vld [vmem:[%s7 + $0xc] sm:$0xf]
    %v9760 = vld [vmem:[%s7 + $0x10] sm:$0xf]
    %v9761 = vld [vmem:[%s7 + $0x14] sm:$0xf]
    %v9762 = vld [vmem:[%s7 + $0x18] sm:$0xf]
    %v9763 = vld [vmem:[%s7 + $0x1c] sm:$0xf]
    %v9764 = vld [vmem:[%s7 + $0x20] sm:$0xf]
    %v9765 = vld [vmem:[%s7 + $0x24] sm:$0xf]
    %v9766 = vld [vmem:[%s7 + $0x28] sm:$0xf]
    %v9767 = vld [vmem:[%s7 + $0x2c] sm:$0xf]
    %v9768 = vld [vmem:[%s7 + $0x30] sm:$0xf]
    %v9769 = vld [vmem:[%s7 + $0x34] sm:$0xf]
    %v9770 = vld [vmem:[%s7 + $0x38] sm:$0xf]
    %v9771 = vld [vmem:[%s8] sm:$0x1]
    %v9773 = vlaneseq
    %v9774 = vshrl.u32 %v9773, 7
    %v9775 = vsub.s32 0, %v9774
    %v9776 = vrot.slane %v9771, %v9775
    %v9793 = vunpack.c.l.b16 %v9756
    %v9794 = vunpack.c.l.b16 %v9757
    %v9795 = vunpack.c.l.b16 %v9758
    %v9796 = vunpack.c.l.b16 %v9759
    %v9797 = vunpack.c.l.b16 %v9760
    %v9798 = vunpack.c.l.b16 %v9761
    %v9799 = vunpack.c.l.b16 %v9762
    %v9800 = vunpack.c.l.b16 %v9763
    %v9801 = vunpack.c.l.b16 %v9764
    %v9802 = vunpack.c.l.b16 %v9765
    %v9803 = vunpack.c.l.b16 %v9766
    %v9804 = vunpack.c.l.b16 %v9767
    %v9805 = vunpack.c.l.b16 %v9768
    %v9806 = vunpack.c.l.b16 %v9769
    %v9807 = vunpack.c.l.b16 %v9770
    %v9808 = vpack.c.b16 %v9794, %v9793
    %v9809 = vpack.c.b16 %v9796, %v9795
    %v9810 = vpack.c.b16 %v9798, %v9797
    %v9811 = vpack.c.b16 %v9800, %v9799
    %v9812 = vpack.c.b16 %v9802, %v9801
    %v9813 = vpack.c.b16 %v9804, %v9803
    %v9814 = vpack.c.b16 %v9806, %v9805
    %v9815 = vpack.c.b16 %v9807, %v9807
    %vm9823 = vcmask 982016
    %v9825 = vsel %vm9823, %v9755, 0
    %v9828 = vsel %vm803, %v9815, 0
    %9830 = vmatprep.subr.bf16.mxu0 0
    %9831 = vmatpush1.bf16.msra.mxu0 %v9828
    %9832 = vmatprep.subr.bf16.mxu0 0
    %9833 = vmatpush1.bf16.msra.mxu0 %v9814
    %9834 = vmatprep.subr.bf16.mxu0 0
    %9835 = vmatpush1.bf16.msra.mxu0 %v9813
    %9836 = vmatprep.subr.bf16.mxu0 0
    %9837 = vmatpush1.bf16.msra.mxu0 %v9812
    %9838 = vmatprep.subr.bf16.mxu0 0
    %9839 = vmatpush1.bf16.msra.mxu0 %v9811
    %9840 = vmatprep.subr.bf16.mxu0 0
    %9841 = vmatpush1.bf16.msra.mxu0 %v9810
    %9842 = vmatprep.subr.bf16.mxu0 0
    %9843 = vmatpush1.bf16.msra.mxu0 %v9809
    %9844 = vmatprep.subr.bf16.mxu0 0
    %9845 = vmatpush1.bf16.msra.mxu0 %v9808
    %9846 = vmatprep.subr.bf16.mxu0 0
    %9847 = vmatpush2.bf16.msra.mxu0 0
    %9848 = vmatprep.subr.bf16.mxu0 0
    %9849 = vmatpush2.bf16.msra.mxu0 0
    %9850 = vmatprep.subr.bf16.mxu0 0
    %9851 = vmatpush2.bf16.msra.mxu0 0
    %9852 = vmatprep.subr.bf16.mxu0 0
    %9853 = vmatpush2.bf16.msra.mxu0 0
    %9854 = vmatprep.subr.bf16.mxu0 0
    %9855 = vmatpush2.bf16.msra.mxu0 0
    %9856 = vmatprep.subr.bf16.mxu0 0
    %9857 = vmatpush2.bf16.msra.mxu0 0
    %9858 = vmatprep.subr.bf16.mxu0 0
    %9859 = vmatpush2.bf16.msra.mxu0 0
    %9860 = vmatprep.subr.bf16.mxu0 0
    %9861 = vmatpush2.bf16.msra.mxu0 0
    %9862 = vmatprep.mubr.bf16.mxu0 0
    %9863 = vmatmul.mubr.bf16.gmra.mxu0 %v9825
    %v9864 = vpop.f32.mrf.mxu0
    %v9865 = vadd.f32 %v9776, %v9864
    %v9866 = vpop.f32.mrf.mxu0
    %v9867 = vpop.f32.mrf.mxu0
    %v9868 = vpop.f32.mrf.mxu0
    %9869 = vdwg.mxu0
    %v9870 = vmax.f32 %v9865, 0.0
    %v9871 = vpack.c.bf16 %v9870, %v9870
    %v9872 = vld [vmem:[%s9] sm:$0xf]
    %v9873 = vld [vmem:[%s9 + $0x4] sm:$0xf]
    %v9874 = vld [vmem:[%s9 + $0x8] sm:$0xf]
    %v9875 = vld [vmem:[%s9 + $0xc] sm:$0xf]
    %v9876 = vld [vmem:[%s9 + $0x10] sm:$0xf]
    %v9877 = vld [vmem:[%s9 + $0x14] sm:$0xf]
    %v9878 = vld [vmem:[%s9 + $0x18] sm:$0xf]
    %v9879 = vld [vmem:[%s9 + $0x1c] sm:$0xf]
    %v9880 = vld [vmem:[%s9 + $0x20] sm:$0xf]
    %v9881 = vld [vmem:[%s9 + $0x24] sm:$0xf]
    %v9882 = vld [vmem:[%s9 + $0x28] sm:$0x3]
    %v9883 = vld [vmem:[%s10] sm:$0x1]
    %v9885 = vlaneseq
    %v9886 = vshrl.u32 %v9885, 7
    %v9887 = vsub.s32 0, %v9886
    %v9888 = vrot.slane %v9883, %v9887
    %v9901 = vunpack.c.l.b16 %v9872
    %v9902 = vunpack.c.l.b16 %v9873
    %v9903 = vunpack.c.l.b16 %v9874
    %v9904 = vunpack.c.l.b16 %v9875
    %v9905 = vunpack.c.l.b16 %v9876
    %v9906 = vunpack.c.l.b16 %v9877
    %v9907 = vunpack.c.l.b16 %v9878
    %v9908 = vunpack.c.l.b16 %v9879
    %v9909 = vunpack.c.l.b16 %v9880
    %v9910 = vunpack.c.l.b16 %v9881
    %v9911 = vunpack.c.l.b16 %v9882
    %v9912 = vpack.c.b16 %v9902, %v9901
    %v9913 = vpack.c.b16 %v9904, %v9903
    %v9914 = vpack.c.b16 %v9906, %v9905
    %v9915 = vpack.c.b16 %v9908, %v9907
    %v9916 = vpack.c.b16 %v9910, %v9909
    %v9917 = vpack.c.b16 %v9911, %v9911
    %vm9923 = vcmask 687104
    %v9925 = vsel %vm9923, %v9871, 0
    %vm9927 = vcmask 1041408
    %v9929 = vsel %vm9927, %v9917, 0
    %9931 = vmatprep.subr.bf16.mxu0 0
    %9932 = vmatpush1.bf16.msra.mxu0 0
    %9933 = vmatprep.subr.bf16.mxu0 0
    %9934 = vmatpush1.bf16.msra.mxu0 0
    %9935 = vmatprep.subr.bf16.mxu0 0
    %9936 = vmatpush1.bf16.msra.mxu0 %v9929
    %9937 = vmatprep.subr.bf16.mxu0 0
    %9938 = vmatpush1.bf16.msra.mxu0 %v9916
    %9939 = vmatprep.subr.bf16.mxu0 0
    %9940 = vmatpush1.bf16.msra.mxu0 %v9915
    %9941 = vmatprep.subr.bf16.mxu0 0
    %9942 = vmatpush1.bf16.msra.mxu0 %v9914
    %9943 = vmatprep.subr.bf16.mxu0 0
    %9944 = vmatpush1.bf16.msra.mxu0 %v9913
    %9945 = vmatprep.subr.bf16.mxu0 0
    %9946 = vmatpush1.bf16.msra.mxu0 %v9912
    %9947 = vmatprep.subr.bf16.mxu0 0
    %9948 = vmatpush2.bf16.msra.mxu0 0
    %9949 = vmatprep.subr.bf16.mxu0 0
    %9950 = vmatpush2.bf16.msra.mxu0 0
    %9951 = vmatprep.subr.bf16.mxu0 0
    %9952 = vmatpush2.bf16.msra.mxu0 0
    %9953 = vmatprep.subr.bf16.mxu0 0
    %9954 = vmatpush2.bf16.msra.mxu0 0
    %9955 = vmatprep.subr.bf16.mxu0 0
    %9956 = vmatpush2.bf16.msra.mxu0 0
    %9957 = vmatprep.subr.bf16.mxu0 0
    %9958 = vmatpush2.bf16.msra.mxu0 0
    %9959 = vmatprep.subr.bf16.mxu0 0
    %9960 = vmatpush2.bf16.msra.mxu0 0
    %9961 = vmatprep.subr.bf16.mxu0 0
    %9962 = vmatpush2.bf16.msra.mxu0 0
    %9963 = vmatprep.mubr.bf16.mxu0 0
    %9964 = vmatmul.mubr.bf16.gmra.mxu0 %v9925
    %v9965 = vpop.f32.mrf.mxu0
    %v9966 = vadd.f32 %v9888, %v9965
    %v9967 = vpop.f32.mrf.mxu0
    %v9968 = vpop.f32.mrf.mxu0
    %v9969 = vpop.f32.mrf.mxu0
    %9970 = vdwg.mxu0
    %vm9971 = vcmask 246784
    %9972 = vst.msk [vmem:[#allocation7] sm:$0x3] %vm9971, %v9966
    // Predicated region
    $region46: #{net_forward.1} parent=1 // pred_check
      _
    $region47: #{net_forward.1} parent=1 // pred_check_branch
      %9974 = sbr.rel (0) target = $region49
    $region48: #{net_forward.1} parent=1 // pred_region
      %s9976 = ssub.s32 32, 32
      %9977 = vsyncadd [#allocation8], %s9976
      %s9979 = sshll.u32 [#allocation7], 4
      %s9980 = int_to_ptr.vmem [resolvable:$true] %s9979
      %9982 = dma.vmem_to_hbm [thread:$0]  %s9980, 32, %s11, [#allocation8]
    $region49: #{net_forward.1} parent=1 // pred_fallthru
      _
    // Predicated region
    $region50: #{net_forward.1} parent=1 // pred_check
      _
    $region51: #{net_forward.1} parent=1 // pred_check_branch
      %9984 = sbr.rel (0) target = $region53
    $region52: #{net_forward.1} parent=1 // pred_region
      %9985 = dma.done [#allocation8], 32
    $region53: #{net_forward.1} parent=1 // pred_fallthru
      _
    %9986 = vsyncpa [#allocation8], 1

</llo_original>
